<compile_context>
chip_gen: v7x
topology: tpu7x:2x2x1
jax: 0.10.0
libtpu: 0.0.40
codegen_flags: <defaults>
</compile_context>

<pallas_src>
import functools
import math

import jax
import jax.numpy as jnp
from jax import lax
from jax.experimental import pallas as pl
from jax.experimental.pallas import tpu as pltpu

LANE = 128


def _round_up(x, m):
    return ((x + m - 1) // m) * m


def _sigmoid(z):
    # written out explicitly so the in-kernel lowering only needs exp / divide
    return 1.0 / (1.0 + jnp.exp(-z))


# ----------------------- kernel 1: conv1 + ReLU + residual --------------------

def _conv_relu_residual_kernel(xp_ref, w_ref, b_ref, o_ref, *, H, W, K):
    """One image:  out = relu(conv_KxK(x) + b) + x.

    xp_ref: (1, H+K-1, W+K-1, Cp)  spatially zero-padded input (lane-padded C)
    w_ref : (K, K, Cp, Cp)         HWIO weights (zero-padded channels)
    b_ref : (1, Cp)
    o_ref : (1, H*W, Cp)           flattened-spatial output
    """
    Cp = o_ref.shape[-1]
    M = H * W
    acc = jnp.zeros((M, Cp), jnp.float32)
    for dy in range(K):                 # K*K taps folded into one accumulator:
        for dx in range(K):             # shifted VMEM window -> MXU matmul
            patch = xp_ref[0, dy:dy + H, dx:dx + W, :].reshape(M, Cp)
            acc = acc + jnp.dot(patch, w_ref[dy, dx],
                                preferred_element_type=jnp.float32)
    y = jnp.maximum(acc + b_ref[...], 0.0)          # bias + ReLU
    pad = K // 2
    residual = xp_ref[0, pad:pad + H, pad:pad + W, :].reshape(M, Cp)
    o_ref[0] = (y + residual).astype(o_ref.dtype)   # fused residual add


def _conv1_call(xp, w, b, H, W, K):
    N, Hpd, Wpd, Cp = xp.shape
    M = H * W
    return pl.pallas_call(
        functools.partial(_conv_relu_residual_kernel, H=H, W=W, K=K),
        out_shape=jax.ShapeDtypeStruct((N, M, Cp), jnp.float32),
        grid=(N,),
        in_specs=[
            pl.BlockSpec((1, Hpd, Wpd, Cp), lambda n: (n, 0, 0, 0)),
            pl.BlockSpec((K, K, Cp, Cp), lambda n: (0, 0, 0, 0)),
            pl.BlockSpec((1, Cp), lambda n: (0, 0)),
        ],
        out_specs=pl.BlockSpec((1, M, Cp), lambda n: (n, 0, 0)),
        compiler_params=pltpu.CompilerParams(
            dimension_semantics=("parallel",)),
    )(xp, w, b)


# ------------- kernel 2: conv2 + CALayer + PALayer + residual -----------------

def _conv_ca_pa_residual_kernel(r1p_ref, x_ref, w_ref, b_ref,
                                wc1_ref, bc1_ref, wc2_ref, bc2_ref,
                                wp1_ref, bp1_ref, wp2_ref, bp2_ref,
                                o_ref, *, H, W, K):
    """One image: r2 = conv(r1)+b ; channel attn ; pixel attn ; + x."""
    Cp = o_ref.shape[-1]
    M = H * W

    acc = jnp.zeros((M, Cp), jnp.float32)
    for dy in range(K):
        for dx in range(K):
            patch = r1p_ref[0, dy:dy + H, dx:dx + W, :].reshape(M, Cp)
            acc = acc + jnp.dot(patch, w_ref[dy, dx],
                                preferred_element_type=jnp.float32)
    r2 = acc + b_ref[...]                           # conv2 (no activation)

    # ---- CALayer: r3 = r2 * sigmoid(W2 relu(W1 gap(r2) + b1) + b2) -----------
    gap = jnp.mean(r2, axis=0, keepdims=True)       # (1, Cp) global avg pool
    gap8 = jnp.broadcast_to(gap, (8, Cp))           # pad rows for a clean matmul
    hca = jnp.maximum(
        jnp.dot(gap8, wc1_ref[...], preferred_element_type=jnp.float32)
        + bc1_ref[...], 0.0)
    ca = _sigmoid(
        jnp.dot(hca, wc2_ref[...], preferred_element_type=jnp.float32)
        + bc2_ref[...])
    r3 = r2 * ca[0:1, :]                            # broadcast over pixels

    # ---- PALayer: r4 = r3 * sigmoid(w2 . relu(W1 r3 + b1) + b2) --------------
    hpa = jnp.maximum(
        jnp.dot(r3, wp1_ref[...], preferred_element_type=jnp.float32)
        + bp1_ref[...], 0.0)                        # (M, Hcp)
    pa_logit = jnp.sum(hpa * wp2_ref[...], axis=-1, keepdims=True) + bp2_ref[...]
    pa = _sigmoid(pa_logit)                         # (M, 1)
    r4 = r3 * pa                                    # broadcast over channels

    o_ref[0] = (r4 + x_ref[0]).astype(o_ref.dtype)  # fused final residual add


def _conv2_attn_call(r1p, x_flat, pk, H, W, K):
    N, M, Cp = x_flat.shape
    Hpd, Wpd = r1p.shape[1], r1p.shape[2]

    def full(a):
        return pl.BlockSpec(a.shape, lambda n, _nd=a.ndim: (0,) * _nd)

    return pl.pallas_call(
        functools.partial(_conv_ca_pa_residual_kernel, H=H, W=W, K=K),
        out_shape=jax.ShapeDtypeStruct((N, M, Cp), jnp.float32),
        grid=(N,),
        in_specs=[
            pl.BlockSpec((1, Hpd, Wpd, Cp), lambda n: (n, 0, 0, 0)),
            pl.BlockSpec((1, M, Cp), lambda n: (n, 0, 0)),
            full(pk['w2']), full(pk['b2']),
            full(pk['wc1']), full(pk['bc1']), full(pk['wc2']), full(pk['bc2']),
            full(pk['wp1']), full(pk['bp1']), full(pk['wp2']), full(pk['bp2']),
        ],
        out_specs=pl.BlockSpec((1, M, Cp), lambda n: (n, 0, 0)),
        compiler_params=pltpu.CompilerParams(
            dimension_semantics=("parallel",)),
    )(r1p, x_flat, pk['w2'], pk['b2'],
      pk['wc1'], pk['bc1'], pk['wc2'], pk['bc2'],
      pk['wp1'], pk['bp1'], pk['wp2'], pk['bp2'])


# ----------------------------- parameters -------------------------------------

def init_dehaze_block(key, dim, ksize):
    """PyTorch-style init; 'real' (unpadded) params used by the JAX reference."""
    hidden = dim // 8
    ks = jax.random.split(key, 12)

    def conv_w(kk, cout, cin, k):
        bound = 1.0 / math.sqrt(cin * k * k)
        return jax.random.uniform(kk, (k, k, cin, cout), jnp.float32, -bound, bound)

    def conv_b(kk, cout, cin, k):
        bound = 1.0 / math.sqrt(cin * k * k)
        return jax.random.uniform(kk, (cout,), jnp.float32, -bound, bound)

    return {
        'w1': conv_w(ks[0], dim, dim, ksize), 'b1': conv_b(ks[1], dim, dim, ksize),
        'w2': conv_w(ks[2], dim, dim, ksize), 'b2': conv_b(ks[3], dim, dim, ksize),
        'wc1': conv_w(ks[4], hidden, dim, 1)[0, 0], 'bc1': conv_b(ks[5], hidden, dim, 1),
        'wc2': conv_w(ks[6], dim, hidden, 1)[0, 0], 'bc2': conv_b(ks[7], dim, hidden, 1),
        'wp1': conv_w(ks[8], hidden, dim, 1)[0, 0], 'bp1': conv_b(ks[9], hidden, dim, 1),
        'wp2': conv_w(ks[10], 1, hidden, 1)[0, 0, :, 0], 'bp2': conv_b(ks[11], 1, hidden, 1),
    }


def pack_params(real, dim, ksize):
    """One-time lane padding / layout of all weights (hoisted out of the call path)."""
    hidden = real['wc1'].shape[1]
    Cp = _round_up(dim, LANE)
    Hcp = _round_up(hidden, LANE)

    def pad2(a, r, c):
        return jnp.pad(a, ((0, r - a.shape[0]), (0, c - a.shape[1])))

    def padv(a, n):
        return jnp.pad(a, (0, n - a.shape[0])).reshape(1, n)

    return {
        'w1': jnp.pad(real['w1'], ((0, 0), (0, 0), (0, Cp - dim), (0, Cp - dim))),
        'b1': padv(real['b1'], Cp),
        'w2': jnp.pad(real['w2'], ((0, 0), (0, 0), (0, Cp - dim), (0, Cp - dim))),
        'b2': padv(real['b2'], Cp),
        'wc1': pad2(real['wc1'], Cp, Hcp), 'bc1': padv(real['bc1'], Hcp),
        'wc2': pad2(real['wc2'], Hcp, Cp), 'bc2': padv(real['bc2'], Cp),
        'wp1': pad2(real['wp1'], Cp, Hcp), 'bp1': padv(real['bp1'], Hcp),
        'wp2': padv(real['wp2'], Hcp),
        'bp2': real['bp2'].reshape(1, 1),
        'ksize': ksize, 'dim': dim, 'Cp': Cp,
    }


# ------------------------------- forward --------------------------------------

def dehaze_block_forward(x_nchw, pk):
    N, C, H, W = x_nchw.shape
    K = pk['ksize']
    pad = K // 2
    Cp = pk['Cp']

    x = jnp.transpose(x_nchw, (0, 2, 3, 1)).astype(jnp.float32)      # NCHW -> NHWC
    x = jnp.pad(x, ((0, 0), (0, 0), (0, 0), (0, Cp - C)))            # lane pad C once
    xp = jnp.pad(x, ((0, 0), (pad, pad), (pad, pad), (0, 0)))        # spatial pad once
    x_flat = x.reshape(N, H * W, Cp)

    r1_flat = _conv1_call(xp, pk['w1'], pk['b1'], H, W, K)           # relu(conv1)+x
    r1p = jnp.pad(r1_flat.reshape(N, H, W, Cp),
                  ((0, 0), (pad, pad), (pad, pad), (0, 0)))
    out_flat = _conv2_attn_call(r1p, x_flat, pk, H, W, K)            # conv2+CA+PA+x

    out = out_flat.reshape(N, H, W, Cp)[..., :C]
    return jnp.transpose(out, (0, 3, 1, 2))                          # NHWC -> NCHW


# --------------------------- pure-JAX reference --------------------------------

def dehaze_block_reference(x_nchw, real):
    x = jnp.transpose(x_nchw, (0, 2, 3, 1)).astype(jnp.float32)

    def conv(inp, w, b):
        y = lax.conv_general_dilated(inp, w, (1, 1), 'SAME',
                                     dimension_numbers=('NHWC', 'HWIO', 'NHWC'))
        return y + b

    r1 = jnp.maximum(conv(x, real['w1'], real['b1']), 0.0) + x
    r2 = conv(r1, real['w2'], real['b2'])
    gap = jnp.mean(r2, axis=(1, 2), keepdims=True)
    hca = jnp.maximum(jnp.einsum('nijc,ch->nijh', gap, real['wc1']) + real['bc1'], 0.0)
    ca = _sigmoid(jnp.einsum('nijh,hc->nijc', hca, real['wc2']) + real['bc2'])
    r3 = r2 * ca
    hpa = jnp.maximum(jnp.einsum('nxyc,ch->nxyh', r3, real['wp1']) + real['bp1'], 0.0)
    pa = _sigmoid(jnp.einsum('nxyh,h->nxy', hpa, real['wp2'])[..., None] + real['bp2'])
    r4 = r3 * pa
    return jnp.transpose(r4 + x, (0, 3, 1, 2))


# ---------------------------------- main ---------------------------------------

if __name__ == "__main__":
    key = jax.random.PRNGKey(0)
    kp, kx = jax.random.split(key)

    dim, ksize = 64, 3
    N, H, W = 2, 16, 16

    real = init_dehaze_block(kp, dim, ksize)
    packed = pack_params(real, dim, ksize)

    x = jax.random.normal(kx, (N, dim, H, W), dtype=jnp.float32)

    fwd = jax.jit(lambda inp: dehaze_block_forward(inp, packed))
    out = fwd(x)
    jax.block_until_ready(out)

    ref = jax.jit(lambda inp: dehaze_block_reference(inp, real))(x)
    jax.block_until_ready(ref)

    assert out.shape == (N, dim, H, W), out.shape
    assert bool(jnp.all(jnp.isfinite(out)))
    max_err = float(jnp.max(jnp.abs(out - ref)))
    assert max_err < 3e-2, f"max abs err vs reference: {max_err}"
    print("KERNEL_OK")
</pallas_src>

<mosaic_0001>
module attributes {stable_mosaic.version = 11 : i64} {
  func.func @_conv_ca_pa_residual_kernel(%arg0: i32, %arg1: memref<1x18x18x128xf32, #tpu.memory_space<vmem>>, %arg2: memref<1x256x128xf32, #tpu.memory_space<vmem>>, %arg3: memref<3x3x128x128xf32, #tpu.memory_space<vmem>>, %arg4: memref<1x128xf32, #tpu.memory_space<vmem>>, %arg5: memref<128x128xf32, #tpu.memory_space<vmem>>, %arg6: memref<1x128xf32, #tpu.memory_space<vmem>>, %arg7: memref<128x128xf32, #tpu.memory_space<vmem>>, %arg8: memref<1x128xf32, #tpu.memory_space<vmem>>, %arg9: memref<128x128xf32, #tpu.memory_space<vmem>>, %arg10: memref<1x128xf32, #tpu.memory_space<vmem>>, %arg11: memref<1x128xf32, #tpu.memory_space<vmem>>, %arg12: memref<1x1xf32, #tpu.memory_space<vmem>>, %arg13: memref<1x256x128xf32, #tpu.memory_space<vmem>>) attributes {dimension_semantics = [#tpu.dimension_semantics<parallel>], iteration_bounds = array<i64: 2>, scalar_prefetch = 0 : i64, scratch_operands = 0 : i64, tpu.core_type = #tpu.core_type<tc>, window_params = [{transform_indices = @transform_0, window_bounds = array<i64: 1, 18, 18, 128>}, {transform_indices = @transform_1, window_bounds = array<i64: 1, 256, 128>}, {pipeline_mode = #tpu.pipeline_mode<synchronous>, transform_indices = @transform_2, window_bounds = array<i64: 3, 3, 128, 128>}, {pipeline_mode = #tpu.pipeline_mode<synchronous>, transform_indices = @transform_3, window_bounds = array<i64: 1, 128>}, {pipeline_mode = #tpu.pipeline_mode<synchronous>, transform_indices = @transform_4, window_bounds = array<i64: 128, 128>}, {pipeline_mode = #tpu.pipeline_mode<synchronous>, transform_indices = @transform_5, window_bounds = array<i64: 1, 128>}, {pipeline_mode = #tpu.pipeline_mode<synchronous>, transform_indices = @transform_6, window_bounds = array<i64: 128, 128>}, {pipeline_mode = #tpu.pipeline_mode<synchronous>, transform_indices = @transform_7, window_bounds = array<i64: 1, 128>}, {pipeline_mode = #tpu.pipeline_mode<synchronous>, transform_indices = @transform_8, window_bounds = array<i64: 128, 128>}, {pipeline_mode = #tpu.pipeline_mode<synchronous>, transform_indices = @transform_9, window_bounds = array<i64: 1, 128>}, {pipeline_mode = #tpu.pipeline_mode<synchronous>, transform_indices = @transform_10, window_bounds = array<i64: 1, 128>}, {pipeline_mode = #tpu.pipeline_mode<synchronous>, transform_indices = @transform_11, window_bounds = array<i64: 1, 1>}, {transform_indices = @transform_12, window_bounds = array<i64: 1, 256, 128>}]} {
    %cst = arith.constant 0.000000e+00 : f32
    %0 = vector.broadcast %cst : f32 to vector<256x128xf32>
    %c0 = arith.constant 0 : index
    %c0_0 = arith.constant 0 : index
    %c0_1 = arith.constant 0 : index
    %c0_2 = arith.constant 0 : index
    %1 = vector.load %arg1[%c0, %c0_0, %c0_1, %c0_2] : memref<1x18x18x128xf32, #tpu.memory_space<vmem>>, vector<1x16x16x128xf32>
    %2 = vector.shape_cast %1 : vector<1x16x16x128xf32> to vector<16x16x128xf32>
    %3 = vector.shape_cast %2 : vector<16x16x128xf32> to vector<256x128xf32>
    %c0_3 = arith.constant 0 : index
    %c0_4 = arith.constant 0 : index
    %c0_5 = arith.constant 0 : index
    %c0_6 = arith.constant 0 : index
    %4 = vector.load %arg3[%c0_3, %c0_4, %c0_5, %c0_6] : memref<3x3x128x128xf32, #tpu.memory_space<vmem>>, vector<1x1x128x128xf32>
    %5 = vector.shape_cast %4 : vector<1x1x128x128xf32> to vector<128x128xf32>
    %cst_7 = arith.constant dense<0.000000e+00> : vector<256x128xf32>
    %6 = tpu.matmul %3, %5, %cst_7 {dimension_numbers = #tpu.dot_dimension_numbers<[1], [0], [0], [1], [0, 0, 1, 1], [], []>} : vector<256x128xf32>, vector<128x128xf32>, vector<256x128xf32> -> vector<256x128xf32>
    %7 = arith.addf %0, %6 : vector<256x128xf32>
    %c0_8 = arith.constant 0 : index
    %c0_9 = arith.constant 0 : index
    %c1 = arith.constant 1 : index
    %c0_10 = arith.constant 0 : index
    %8 = vector.load %arg1[%c0_8, %c0_9, %c1, %c0_10] : memref<1x18x18x128xf32, #tpu.memory_space<vmem>>, vector<1x16x16x128xf32>
    %9 = vector.shape_cast %8 : vector<1x16x16x128xf32> to vector<16x16x128xf32>
    %10 = vector.shape_cast %9 : vector<16x16x128xf32> to vector<256x128xf32>
    %c0_11 = arith.constant 0 : index
    %c1_12 = arith.constant 1 : index
    %c0_13 = arith.constant 0 : index
    %c0_14 = arith.constant 0 : index
    %11 = vector.load %arg3[%c0_11, %c1_12, %c0_13, %c0_14] : memref<3x3x128x128xf32, #tpu.memory_space<vmem>>, vector<1x1x128x128xf32>
    %12 = vector.shape_cast %11 : vector<1x1x128x128xf32> to vector<128x128xf32>
    %cst_15 = arith.constant dense<0.000000e+00> : vector<256x128xf32>
    %13 = tpu.matmul %10, %12, %cst_15 {dimension_numbers = #tpu.dot_dimension_numbers<[1], [0], [0], [1], [0, 0, 1, 1], [], []>} : vector<256x128xf32>, vector<128x128xf32>, vector<256x128xf32> -> vector<256x128xf32>
    %14 = arith.addf %7, %13 : vector<256x128xf32>
    %c0_16 = arith.constant 0 : index
    %c0_17 = arith.constant 0 : index
    %c2 = arith.constant 2 : index
    %c0_18 = arith.constant 0 : index
    %15 = vector.load %arg1[%c0_16, %c0_17, %c2, %c0_18] : memref<1x18x18x128xf32, #tpu.memory_space<vmem>>, vector<1x16x16x128xf32>
    %16 = vector.shape_cast %15 : vector<1x16x16x128xf32> to vector<16x16x128xf32>
    %17 = vector.shape_cast %16 : vector<16x16x128xf32> to vector<256x128xf32>
    %c0_19 = arith.constant 0 : index
    %c2_20 = arith.constant 2 : index
    %c0_21 = arith.constant 0 : index
    %c0_22 = arith.constant 0 : index
    %18 = vector.load %arg3[%c0_19, %c2_20, %c0_21, %c0_22] : memref<3x3x128x128xf32, #tpu.memory_space<vmem>>, vector<1x1x128x128xf32>
    %19 = vector.shape_cast %18 : vector<1x1x128x128xf32> to vector<128x128xf32>
    %cst_23 = arith.constant dense<0.000000e+00> : vector<256x128xf32>
    %20 = tpu.matmul %17, %19, %cst_23 {dimension_numbers = #tpu.dot_dimension_numbers<[1], [0], [0], [1], [0, 0, 1, 1], [], []>} : vector<256x128xf32>, vector<128x128xf32>, vector<256x128xf32> -> vector<256x128xf32>
    %21 = arith.addf %14, %20 : vector<256x128xf32>
    %c0_24 = arith.constant 0 : index
    %c1_25 = arith.constant 1 : index
    %c0_26 = arith.constant 0 : index
    %c0_27 = arith.constant 0 : index
    %22 = vector.load %arg1[%c0_24, %c1_25, %c0_26, %c0_27] : memref<1x18x18x128xf32, #tpu.memory_space<vmem>>, vector<1x16x16x128xf32>
    %23 = vector.shape_cast %22 : vector<1x16x16x128xf32> to vector<16x16x128xf32>
    %24 = vector.shape_cast %23 : vector<16x16x128xf32> to vector<256x128xf32>
    %c1_28 = arith.constant 1 : index
    %c0_29 = arith.constant 0 : index
    %c0_30 = arith.constant 0 : index
    %c0_31 = arith.constant 0 : index
    %25 = vector.load %arg3[%c1_28, %c0_29, %c0_30, %c0_31] : memref<3x3x128x128xf32, #tpu.memory_space<vmem>>, vector<1x1x128x128xf32>
    %26 = vector.shape_cast %25 : vector<1x1x128x128xf32> to vector<128x128xf32>
    %cst_32 = arith.constant dense<0.000000e+00> : vector<256x128xf32>
    %27 = tpu.matmul %24, %26, %cst_32 {dimension_numbers = #tpu.dot_dimension_numbers<[1], [0], [0], [1], [0, 0, 1, 1], [], []>} : vector<256x128xf32>, vector<128x128xf32>, vector<256x128xf32> -> vector<256x128xf32>
    %28 = arith.addf %21, %27 : vector<256x128xf32>
    %c0_33 = arith.constant 0 : index
    %c1_34 = arith.constant 1 : index
    %c1_35 = arith.constant 1 : index
    %c0_36 = arith.constant 0 : index
    %29 = vector.load %arg1[%c0_33, %c1_34, %c1_35, %c0_36] : memref<1x18x18x128xf32, #tpu.memory_space<vmem>>, vector<1x16x16x128xf32>
    %30 = vector.shape_cast %29 : vector<1x16x16x128xf32> to vector<16x16x128xf32>
    %31 = vector.shape_cast %30 : vector<16x16x128xf32> to vector<256x128xf32>
    %c1_37 = arith.constant 1 : index
    %c1_38 = arith.constant 1 : index
    %c0_39 = arith.constant 0 : index
    %c0_40 = arith.constant 0 : index
    %32 = vector.load %arg3[%c1_37, %c1_38, %c0_39, %c0_40] : memref<3x3x128x128xf32, #tpu.memory_space<vmem>>, vector<1x1x128x128xf32>
    %33 = vector.shape_cast %32 : vector<1x1x128x128xf32> to vector<128x128xf32>
    %cst_41 = arith.constant dense<0.000000e+00> : vector<256x128xf32>
    %34 = tpu.matmul %31, %33, %cst_41 {dimension_numbers = #tpu.dot_dimension_numbers<[1], [0], [0], [1], [0, 0, 1, 1], [], []>} : vector<256x128xf32>, vector<128x128xf32>, vector<256x128xf32> -> vector<256x128xf32>
    %35 = arith.addf %28, %34 : vector<256x128xf32>
    %c0_42 = arith.constant 0 : index
    %c1_43 = arith.constant 1 : index
    %c2_44 = arith.constant 2 : index
    %c0_45 = arith.constant 0 : index
    %36 = vector.load %arg1[%c0_42, %c1_43, %c2_44, %c0_45] : memref<1x18x18x128xf32, #tpu.memory_space<vmem>>, vector<1x16x16x128xf32>
    %37 = vector.shape_cast %36 : vector<1x16x16x128xf32> to vector<16x16x128xf32>
    %38 = vector.shape_cast %37 : vector<16x16x128xf32> to vector<256x128xf32>
    %c1_46 = arith.constant 1 : index
    %c2_47 = arith.constant 2 : index
    %c0_48 = arith.constant 0 : index
    %c0_49 = arith.constant 0 : index
    %39 = vector.load %arg3[%c1_46, %c2_47, %c0_48, %c0_49] : memref<3x3x128x128xf32, #tpu.memory_space<vmem>>, vector<1x1x128x128xf32>
    %40 = vector.shape_cast %39 : vector<1x1x128x128xf32> to vector<128x128xf32>
    %cst_50 = arith.constant dense<0.000000e+00> : vector<256x128xf32>
    %41 = tpu.matmul %38, %40, %cst_50 {dimension_numbers = #tpu.dot_dimension_numbers<[1], [0], [0], [1], [0, 0, 1, 1], [], []>} : vector<256x128xf32>, vector<128x128xf32>, vector<256x128xf32> -> vector<256x128xf32>
    %42 = arith.addf %35, %41 : vector<256x128xf32>
    %c0_51 = arith.constant 0 : index
    %c2_52 = arith.constant 2 : index
    %c0_53 = arith.constant 0 : index
    %c0_54 = arith.constant 0 : index
    %43 = vector.load %arg1[%c0_51, %c2_52, %c0_53, %c0_54] : memref<1x18x18x128xf32, #tpu.memory_space<vmem>>, vector<1x16x16x128xf32>
    %44 = vector.shape_cast %43 : vector<1x16x16x128xf32> to vector<16x16x128xf32>
    %45 = vector.shape_cast %44 : vector<16x16x128xf32> to vector<256x128xf32>
    %c2_55 = arith.constant 2 : index
    %c0_56 = arith.constant 0 : index
    %c0_57 = arith.constant 0 : index
    %c0_58 = arith.constant 0 : index
    %46 = vector.load %arg3[%c2_55, %c0_56, %c0_57, %c0_58] : memref<3x3x128x128xf32, #tpu.memory_space<vmem>>, vector<1x1x128x128xf32>
    %47 = vector.shape_cast %46 : vector<1x1x128x128xf32> to vector<128x128xf32>
    %cst_59 = arith.constant dense<0.000000e+00> : vector<256x128xf32>
    %48 = tpu.matmul %45, %47, %cst_59 {dimension_numbers = #tpu.dot_dimension_numbers<[1], [0], [0], [1], [0, 0, 1, 1], [], []>} : vector<256x128xf32>, vector<128x128xf32>, vector<256x128xf32> -> vector<256x128xf32>
    %49 = arith.addf %42, %48 : vector<256x128xf32>
    %c0_60 = arith.constant 0 : index
    %c2_61 = arith.constant 2 : index
    %c1_62 = arith.constant 1 : index
    %c0_63 = arith.constant 0 : index
    %50 = vector.load %arg1[%c0_60, %c2_61, %c1_62, %c0_63] : memref<1x18x18x128xf32, #tpu.memory_space<vmem>>, vector<1x16x16x128xf32>
    %51 = vector.shape_cast %50 : vector<1x16x16x128xf32> to vector<16x16x128xf32>
    %52 = vector.shape_cast %51 : vector<16x16x128xf32> to vector<256x128xf32>
    %c2_64 = arith.constant 2 : index
    %c1_65 = arith.constant 1 : index
    %c0_66 = arith.constant 0 : index
    %c0_67 = arith.constant 0 : index
    %53 = vector.load %arg3[%c2_64, %c1_65, %c0_66, %c0_67] : memref<3x3x128x128xf32, #tpu.memory_space<vmem>>, vector<1x1x128x128xf32>
    %54 = vector.shape_cast %53 : vector<1x1x128x128xf32> to vector<128x128xf32>
    %cst_68 = arith.constant dense<0.000000e+00> : vector<256x128xf32>
    %55 = tpu.matmul %52, %54, %cst_68 {dimension_numbers = #tpu.dot_dimension_numbers<[1], [0], [0], [1], [0, 0, 1, 1], [], []>} : vector<256x128xf32>, vector<128x128xf32>, vector<256x128xf32> -> vector<256x128xf32>
    %56 = arith.addf %49, %55 : vector<256x128xf32>
    %c0_69 = arith.constant 0 : index
    %c2_70 = arith.constant 2 : index
    %c2_71 = arith.constant 2 : index
    %c0_72 = arith.constant 0 : index
    %57 = vector.load %arg1[%c0_69, %c2_70, %c2_71, %c0_72] : memref<1x18x18x128xf32, #tpu.memory_space<vmem>>, vector<1x16x16x128xf32>
    %58 = vector.shape_cast %57 : vector<1x16x16x128xf32> to vector<16x16x128xf32>
    %59 = vector.shape_cast %58 : vector<16x16x128xf32> to vector<256x128xf32>
    %c2_73 = arith.constant 2 : index
    %c2_74 = arith.constant 2 : index
    %c0_75 = arith.constant 0 : index
    %c0_76 = arith.constant 0 : index
    %60 = vector.load %arg3[%c2_73, %c2_74, %c0_75, %c0_76] : memref<3x3x128x128xf32, #tpu.memory_space<vmem>>, vector<1x1x128x128xf32>
    %61 = vector.shape_cast %60 : vector<1x1x128x128xf32> to vector<128x128xf32>
    %cst_77 = arith.constant dense<0.000000e+00> : vector<256x128xf32>
    %62 = tpu.matmul %59, %61, %cst_77 {dimension_numbers = #tpu.dot_dimension_numbers<[1], [0], [0], [1], [0, 0, 1, 1], [], []>} : vector<256x128xf32>, vector<128x128xf32>, vector<256x128xf32> -> vector<256x128xf32>
    %63 = arith.addf %56, %62 : vector<256x128xf32>
    %c0_78 = arith.constant 0 : index
    %c0_79 = arith.constant 0 : index
    %64 = vector.load %arg4[%c0_78, %c0_79] : memref<1x128xf32, #tpu.memory_space<vmem>>, vector<1x128xf32>
    %65 = vector.broadcast %64 : vector<1x128xf32> to vector<256x128xf32>
    %66 = arith.addf %63, %65 : vector<256x128xf32>
    %cst_80 = arith.constant dense<0.000000e+00> : vector<128xf32>
    %67 = vector.multi_reduction <add>, %66, %cst_80 [0] : vector<256x128xf32> to vector<128xf32>
    %68 = vector.shape_cast %67 : vector<128xf32> to vector<1x128xf32>
    %cst_81 = arith.constant 2.560000e+02 : f32
    %69 = vector.broadcast %cst_81 : f32 to vector<1x128xf32>
    %70 = arith.divf %68, %69 : vector<1x128xf32>
    %71 = vector.shape_cast %70 : vector<1x128xf32> to vector<1x128xf32>
    %72 = vector.broadcast %71 : vector<1x128xf32> to vector<8x128xf32>
    %c0_82 = arith.constant 0 : index
    %c0_83 = arith.constant 0 : index
    %73 = vector.load %arg5[%c0_82, %c0_83] : memref<128x128xf32, #tpu.memory_space<vmem>>, vector<128x128xf32>
    %cst_84 = arith.constant dense<0.000000e+00> : vector<8x128xf32>
    %74 = tpu.matmul %72, %73, %cst_84 {dimension_numbers = #tpu.dot_dimension_numbers<[1], [0], [0], [1], [0, 0, 1, 1], [], []>} : vector<8x128xf32>, vector<128x128xf32>, vector<8x128xf32> -> vector<8x128xf32>
    %c0_85 = arith.constant 0 : index
    %c0_86 = arith.constant 0 : index
    %75 = vector.load %arg6[%c0_85, %c0_86] : memref<1x128xf32, #tpu.memory_space<vmem>>, vector<1x128xf32>
    %76 = vector.broadcast %75 : vector<1x128xf32> to vector<8x128xf32>
    %77 = arith.addf %74, %76 : vector<8x128xf32>
    %cst_87 = arith.constant 0.000000e+00 : f32
    %78 = vector.broadcast %cst_87 : f32 to vector<8x128xf32>
    %79 = arith.maximumf %77, %78 : vector<8x128xf32>
    %c0_88 = arith.constant 0 : index
    %c0_89 = arith.constant 0 : index
    %80 = vector.load %arg7[%c0_88, %c0_89] : memref<128x128xf32, #tpu.memory_space<vmem>>, vector<128x128xf32>
    %cst_90 = arith.constant dense<0.000000e+00> : vector<8x128xf32>
    %81 = tpu.matmul %79, %80, %cst_90 {dimension_numbers = #tpu.dot_dimension_numbers<[1], [0], [0], [1], [0, 0, 1, 1], [], []>} : vector<8x128xf32>, vector<128x128xf32>, vector<8x128xf32> -> vector<8x128xf32>
    %c0_91 = arith.constant 0 : index
    %c0_92 = arith.constant 0 : index
    %82 = vector.load %arg8[%c0_91, %c0_92] : memref<1x128xf32, #tpu.memory_space<vmem>>, vector<1x128xf32>
    %83 = vector.broadcast %82 : vector<1x128xf32> to vector<8x128xf32>
    %84 = arith.addf %81, %83 : vector<8x128xf32>
    %cst_93 = arith.constant 0.000000e+00 : f32
    %85 = vector.broadcast %cst_93 : f32 to vector<8x128xf32>
    %86 = arith.subf %85, %84 : vector<8x128xf32>
    %87 = math.exp %86 : vector<8x128xf32>
    %cst_94 = arith.constant 1.000000e+00 : f32
    %88 = vector.broadcast %cst_94 : f32 to vector<8x128xf32>
    %89 = arith.addf %88, %87 : vector<8x128xf32>
    %cst_95 = arith.constant 1.000000e+00 : f32
    %90 = vector.broadcast %cst_95 : f32 to vector<8x128xf32>
    %91 = arith.divf %90, %89 : vector<8x128xf32>
    %92 = vector.extract_strided_slice %91 {offsets = [0, 0], sizes = [1, 128], strides = [1, 1]} : vector<8x128xf32> to vector<1x128xf32>
    %93 = vector.broadcast %92 : vector<1x128xf32> to vector<256x128xf32>
    %94 = arith.mulf %66, %93 : vector<256x128xf32>
    %c0_96 = arith.constant 0 : index
    %c0_97 = arith.constant 0 : index
    %95 = vector.load %arg9[%c0_96, %c0_97] : memref<128x128xf32, #tpu.memory_space<vmem>>, vector<128x128xf32>
    %cst_98 = arith.constant dense<0.000000e+00> : vector<256x128xf32>
    %96 = tpu.matmul %94, %95, %cst_98 {dimension_numbers = #tpu.dot_dimension_numbers<[1], [0], [0], [1], [0, 0, 1, 1], [], []>} : vector<256x128xf32>, vector<128x128xf32>, vector<256x128xf32> -> vector<256x128xf32>
    %c0_99 = arith.constant 0 : index
    %c0_100 = arith.constant 0 : index
    %97 = vector.load %arg10[%c0_99, %c0_100] : memref<1x128xf32, #tpu.memory_space<vmem>>, vector<1x128xf32>
    %98 = vector.broadcast %97 : vector<1x128xf32> to vector<256x128xf32>
    %99 = arith.addf %96, %98 : vector<256x128xf32>
    %cst_101 = arith.constant 0.000000e+00 : f32
    %100 = vector.broadcast %cst_101 : f32 to vector<256x128xf32>
    %101 = arith.maximumf %99, %100 : vector<256x128xf32>
    %c0_102 = arith.constant 0 : index
    %c0_103 = arith.constant 0 : index
    %102 = vector.load %arg11[%c0_102, %c0_103] : memref<1x128xf32, #tpu.memory_space<vmem>>, vector<1x128xf32>
    %103 = vector.broadcast %102 : vector<1x128xf32> to vector<256x128xf32>
    %104 = arith.mulf %101, %103 : vector<256x128xf32>
    %cst_104 = arith.constant dense<0.000000e+00> : vector<256xf32>
    %105 = vector.multi_reduction <add>, %104, %cst_104 [1] : vector<256x128xf32> to vector<256xf32>
    %106 = vector.shape_cast %105 : vector<256xf32> to vector<256x1xf32>
    %c0_105 = arith.constant 0 : index
    %c0_106 = arith.constant 0 : index
    %107 = vector.load %arg12[%c0_105, %c0_106] : memref<1x1xf32, #tpu.memory_space<vmem>>, vector<1x1xf32>
    %108 = vector.broadcast %107 : vector<1x1xf32> to vector<256x1xf32>
    %109 = arith.addf %106, %108 : vector<256x1xf32>
    %cst_107 = arith.constant 0.000000e+00 : f32
    %110 = vector.broadcast %cst_107 : f32 to vector<256x1xf32>
    %111 = arith.subf %110, %109 : vector<256x1xf32>
    %112 = math.exp %111 : vector<256x1xf32>
    %cst_108 = arith.constant 1.000000e+00 : f32
    %113 = vector.broadcast %cst_108 : f32 to vector<256x1xf32>
    %114 = arith.addf %113, %112 : vector<256x1xf32>
    %cst_109 = arith.constant 1.000000e+00 : f32
    %115 = vector.broadcast %cst_109 : f32 to vector<256x1xf32>
    %116 = arith.divf %115, %114 : vector<256x1xf32>
    %117 = vector.broadcast %116 : vector<256x1xf32> to vector<256x128xf32>
    %118 = arith.mulf %94, %117 : vector<256x128xf32>
    %c0_110 = arith.constant 0 : index
    %c0_111 = arith.constant 0 : index
    %c0_112 = arith.constant 0 : index
    %119 = vector.load %arg2[%c0_110, %c0_111, %c0_112] : memref<1x256x128xf32, #tpu.memory_space<vmem>>, vector<1x256x128xf32>
    %120 = vector.shape_cast %119 : vector<1x256x128xf32> to vector<256x128xf32>
    %121 = arith.addf %118, %120 : vector<256x128xf32>
    %c0_113 = arith.constant 0 : index
    %c0_114 = arith.constant 0 : index
    %c0_115 = arith.constant 0 : index
    %122 = vector.load %arg13[%c0_113, %c0_114, %c0_115] : memref<1x256x128xf32, #tpu.memory_space<vmem>>, vector<1x256x128xf32>
    %123 = vector.shape_cast %122 : vector<1x256x128xf32> to vector<256x128xf32>
    %124 = vector.shape_cast %121 : vector<256x128xf32> to vector<1x256x128xf32>
    tpu.vector_store %arg13[%c0_113, %c0_114, %c0_115], %124 {strides = array<i32>} : memref<1x256x128xf32, #tpu.memory_space<vmem>>, vector<1x256x128xf32>,
    return
  }
  func.func @transform_0(%arg0: i32) -> (i32, i32, i32, i32) {
    %c0_i32 = arith.constant 0 : i32
    %c0_i32_0 = arith.constant 0 : i32
    %c0_i32_1 = arith.constant 0 : i32
    %c0_i32_2 = arith.constant 0 : i32
    return %arg0, %c0_i32, %c0_i32_0, %c0_i32_1 : i32, i32, i32, i32
  }
  func.func @transform_1(%arg0: i32) -> (i32, i32, i32) {
    %c0_i32 = arith.constant 0 : i32
    %c0_i32_0 = arith.constant 0 : i32
    %c0_i32_1 = arith.constant 0 : i32
    return %arg0, %c0_i32, %c0_i32_0 : i32, i32, i32
  }
  func.func @transform_2(%arg0: i32) -> (i32, i32, i32, i32) {
    %c0_i32 = arith.constant 0 : i32
    %c0_i32_0 = arith.constant 0 : i32
    %c0_i32_1 = arith.constant 0 : i32
    %c0_i32_2 = arith.constant 0 : i32
    %c0_i32_3 = arith.constant 0 : i32
    return %c0_i32, %c0_i32_0, %c0_i32_1, %c0_i32_2 : i32, i32, i32, i32
  }
  func.func @transform_3(%arg0: i32) -> (i32, i32) {
    %c0_i32 = arith.constant 0 : i32
    %c0_i32_0 = arith.constant 0 : i32
    %c0_i32_1 = arith.constant 0 : i32
    return %c0_i32, %c0_i32_0 : i32, i32
  }
  func.func @transform_4(%arg0: i32) -> (i32, i32) {
    %c0_i32 = arith.constant 0 : i32
    %c0_i32_0 = arith.constant 0 : i32
    %c0_i32_1 = arith.constant 0 : i32
    return %c0_i32, %c0_i32_0 : i32, i32
  }
  func.func @transform_5(%arg0: i32) -> (i32, i32) {
    %c0_i32 = arith.constant 0 : i32
    %c0_i32_0 = arith.constant 0 : i32
    %c0_i32_1 = arith.constant 0 : i32
    return %c0_i32, %c0_i32_0 : i32, i32
  }
  func.func @transform_6(%arg0: i32) -> (i32, i32) {
    %c0_i32 = arith.constant 0 : i32
    %c0_i32_0 = arith.constant 0 : i32
    %c0_i32_1 = arith.constant 0 : i32
    return %c0_i32, %c0_i32_0 : i32, i32
  }
  func.func @transform_7(%arg0: i32) -> (i32, i32) {
    %c0_i32 = arith.constant 0 : i32
    %c0_i32_0 = arith.constant 0 : i32
    %c0_i32_1 = arith.constant 0 : i32
    return %c0_i32, %c0_i32_0 : i32, i32
  }
  func.func @transform_8(%arg0: i32) -> (i32, i32) {
    %c0_i32 = arith.constant 0 : i32
    %c0_i32_0 = arith.constant 0 : i32
    %c0_i32_1 = arith.constant 0 : i32
    return %c0_i32, %c0_i32_0 : i32, i32
  }
  func.func @transform_9(%arg0: i32) -> (i32, i32) {
    %c0_i32 = arith.constant 0 : i32
    %c0_i32_0 = arith.constant 0 : i32
    %c0_i32_1 = arith.constant 0 : i32
    return %c0_i32, %c0_i32_0 : i32, i32
  }
  func.func @transform_10(%arg0: i32) -> (i32, i32) {
    %c0_i32 = arith.constant 0 : i32
    %c0_i32_0 = arith.constant 0 : i32
    %c0_i32_1 = arith.constant 0 : i32
    return %c0_i32, %c0_i32_0 : i32, i32
  }
  func.func @transform_11(%arg0: i32) -> (i32, i32) {
    %c0_i32 = arith.constant 0 : i32
    %c0_i32_0 = arith.constant 0 : i32
    %c0_i32_1 = arith.constant 0 : i32
    return %c0_i32, %c0_i32_0 : i32, i32
  }
  func.func @transform_12(%arg0: i32) -> (i32, i32, i32) {
    %c0_i32 = arith.constant 0 : i32
    %c0_i32_0 = arith.constant 0 : i32
    %c0_i32_1 = arith.constant 0 : i32
    return %arg0, %c0_i32, %c0_i32_0 : i32, i32, i32
  }
}

module attributes {stable_mosaic.version = 11 : i64} {
  func.func @_conv_relu_residual_kernel(%arg0: i32, %arg1: memref<1x18x18x128xf32, #tpu.memory_space<vmem>>, %arg2: memref<3x3x128x128xf32, #tpu.memory_space<vmem>>, %arg3: memref<1x128xf32, #tpu.memory_space<vmem>>, %arg4: memref<1x256x128xf32, #tpu.memory_space<vmem>>) attributes {dimension_semantics = [#tpu.dimension_semantics<parallel>], iteration_bounds = array<i64: 2>, scalar_prefetch = 0 : i64, scratch_operands = 0 : i64, tpu.core_type = #tpu.core_type<tc>, window_params = [{transform_indices = @transform_0, window_bounds = array<i64: 1, 18, 18, 128>}, {pipeline_mode = #tpu.pipeline_mode<synchronous>, transform_indices = @transform_1, window_bounds = array<i64: 3, 3, 128, 128>}, {pipeline_mode = #tpu.pipeline_mode<synchronous>, transform_indices = @transform_2, window_bounds = array<i64: 1, 128>}, {transform_indices = @transform_3, window_bounds = array<i64: 1, 256, 128>}]} {
    %cst = arith.constant 0.000000e+00 : f32
    %0 = vector.broadcast %cst : f32 to vector<256x128xf32>
    %c0 = arith.constant 0 : index
    %c0_0 = arith.constant 0 : index
    %c0_1 = arith.constant 0 : index
    %c0_2 = arith.constant 0 : index
    %1 = vector.load %arg1[%c0, %c0_0, %c0_1, %c0_2] : memref<1x18x18x128xf32, #tpu.memory_space<vmem>>, vector<1x16x16x128xf32>
    %2 = vector.shape_cast %1 : vector<1x16x16x128xf32> to vector<16x16x128xf32>
    %3 = vector.shape_cast %2 : vector<16x16x128xf32> to vector<256x128xf32>
    %c0_3 = arith.constant 0 : index
    %c0_4 = arith.constant 0 : index
    %c0_5 = arith.constant 0 : index
    %c0_6 = arith.constant 0 : index
    %4 = vector.load %arg2[%c0_3, %c0_4, %c0_5, %c0_6] : memref<3x3x128x128xf32, #tpu.memory_space<vmem>>, vector<1x1x128x128xf32>
    %5 = vector.shape_cast %4 : vector<1x1x128x128xf32> to vector<128x128xf32>
    %cst_7 = arith.constant dense<0.000000e+00> : vector<256x128xf32>
    %6 = tpu.matmul %3, %5, %cst_7 {dimension_numbers = #tpu.dot_dimension_numbers<[1], [0], [0], [1], [0, 0, 1, 1], [], []>} : vector<256x128xf32>, vector<128x128xf32>, vector<256x128xf32> -> vector<256x128xf32>
    %7 = arith.addf %0, %6 : vector<256x128xf32>
    %c0_8 = arith.constant 0 : index
    %c0_9 = arith.constant 0 : index
    %c1 = arith.constant 1 : index
    %c0_10 = arith.constant 0 : index
    %8 = vector.load %arg1[%c0_8, %c0_9, %c1, %c0_10] : memref<1x18x18x128xf32, #tpu.memory_space<vmem>>, vector<1x16x16x128xf32>
    %9 = vector.shape_cast %8 : vector<1x16x16x128xf32> to vector<16x16x128xf32>
    %10 = vector.shape_cast %9 : vector<16x16x128xf32> to vector<256x128xf32>
    %c0_11 = arith.constant 0 : index
    %c1_12 = arith.constant 1 : index
    %c0_13 = arith.constant 0 : index
    %c0_14 = arith.constant 0 : index
    %11 = vector.load %arg2[%c0_11, %c1_12, %c0_13, %c0_14] : memref<3x3x128x128xf32, #tpu.memory_space<vmem>>, vector<1x1x128x128xf32>
    %12 = vector.shape_cast %11 : vector<1x1x128x128xf32> to vector<128x128xf32>
    %cst_15 = arith.constant dense<0.000000e+00> : vector<256x128xf32>
    %13 = tpu.matmul %10, %12, %cst_15 {dimension_numbers = #tpu.dot_dimension_numbers<[1], [0], [0], [1], [0, 0, 1, 1], [], []>} : vector<256x128xf32>, vector<128x128xf32>, vector<256x128xf32> -> vector<256x128xf32>
    %14 = arith.addf %7, %13 : vector<256x128xf32>
    %c0_16 = arith.constant 0 : index
    %c0_17 = arith.constant 0 : index
    %c2 = arith.constant 2 : index
    %c0_18 = arith.constant 0 : index
    %15 = vector.load %arg1[%c0_16, %c0_17, %c2, %c0_18] : memref<1x18x18x128xf32, #tpu.memory_space<vmem>>, vector<1x16x16x128xf32>
    %16 = vector.shape_cast %15 : vector<1x16x16x128xf32> to vector<16x16x128xf32>
    %17 = vector.shape_cast %16 : vector<16x16x128xf32> to vector<256x128xf32>
    %c0_19 = arith.constant 0 : index
    %c2_20 = arith.constant 2 : index
    %c0_21 = arith.constant 0 : index
    %c0_22 = arith.constant 0 : index
    %18 = vector.load %arg2[%c0_19, %c2_20, %c0_21, %c0_22] : memref<3x3x128x128xf32, #tpu.memory_space<vmem>>, vector<1x1x128x128xf32>
    %19 = vector.shape_cast %18 : vector<1x1x128x128xf32> to vector<128x128xf32>
    %cst_23 = arith.constant dense<0.000000e+00> : vector<256x128xf32>
    %20 = tpu.matmul %17, %19, %cst_23 {dimension_numbers = #tpu.dot_dimension_numbers<[1], [0], [0], [1], [0, 0, 1, 1], [], []>} : vector<256x128xf32>, vector<128x128xf32>, vector<256x128xf32> -> vector<256x128xf32>
    %21 = arith.addf %14, %20 : vector<256x128xf32>
    %c0_24 = arith.constant 0 : index
    %c1_25 = arith.constant 1 : index
    %c0_26 = arith.constant 0 : index
    %c0_27 = arith.constant 0 : index
    %22 = vector.load %arg1[%c0_24, %c1_25, %c0_26, %c0_27] : memref<1x18x18x128xf32, #tpu.memory_space<vmem>>, vector<1x16x16x128xf32>
    %23 = vector.shape_cast %22 : vector<1x16x16x128xf32> to vector<16x16x128xf32>
    %24 = vector.shape_cast %23 : vector<16x16x128xf32> to vector<256x128xf32>
    %c1_28 = arith.constant 1 : index
    %c0_29 = arith.constant 0 : index
    %c0_30 = arith.constant 0 : index
    %c0_31 = arith.constant 0 : index
    %25 = vector.load %arg2[%c1_28, %c0_29, %c0_30, %c0_31] : memref<3x3x128x128xf32, #tpu.memory_space<vmem>>, vector<1x1x128x128xf32>
    %26 = vector.shape_cast %25 : vector<1x1x128x128xf32> to vector<128x128xf32>
    %cst_32 = arith.constant dense<0.000000e+00> : vector<256x128xf32>
    %27 = tpu.matmul %24, %26, %cst_32 {dimension_numbers = #tpu.dot_dimension_numbers<[1], [0], [0], [1], [0, 0, 1, 1], [], []>} : vector<256x128xf32>, vector<128x128xf32>, vector<256x128xf32> -> vector<256x128xf32>
    %28 = arith.addf %21, %27 : vector<256x128xf32>
    %c0_33 = arith.constant 0 : index
    %c1_34 = arith.constant 1 : index
    %c1_35 = arith.constant 1 : index
    %c0_36 = arith.constant 0 : index
    %29 = vector.load %arg1[%c0_33, %c1_34, %c1_35, %c0_36] : memref<1x18x18x128xf32, #tpu.memory_space<vmem>>, vector<1x16x16x128xf32>
    %30 = vector.shape_cast %29 : vector<1x16x16x128xf32> to vector<16x16x128xf32>
    %31 = vector.shape_cast %30 : vector<16x16x128xf32> to vector<256x128xf32>
    %c1_37 = arith.constant 1 : index
    %c1_38 = arith.constant 1 : index
    %c0_39 = arith.constant 0 : index
    %c0_40 = arith.constant 0 : index
    %32 = vector.load %arg2[%c1_37, %c1_38, %c0_39, %c0_40] : memref<3x3x128x128xf32, #tpu.memory_space<vmem>>, vector<1x1x128x128xf32>
    %33 = vector.shape_cast %32 : vector<1x1x128x128xf32> to vector<128x128xf32>
    %cst_41 = arith.constant dense<0.000000e+00> : vector<256x128xf32>
    %34 = tpu.matmul %31, %33, %cst_41 {dimension_numbers = #tpu.dot_dimension_numbers<[1], [0], [0], [1], [0, 0, 1, 1], [], []>} : vector<256x128xf32>, vector<128x128xf32>, vector<256x128xf32> -> vector<256x128xf32>
    %35 = arith.addf %28, %34 : vector<256x128xf32>
    %c0_42 = arith.constant 0 : index
    %c1_43 = arith.constant 1 : index
    %c2_44 = arith.constant 2 : index
    %c0_45 = arith.constant 0 : index
    %36 = vector.load %arg1[%c0_42, %c1_43, %c2_44, %c0_45] : memref<1x18x18x128xf32, #tpu.memory_space<vmem>>, vector<1x16x16x128xf32>
    %37 = vector.shape_cast %36 : vector<1x16x16x128xf32> to vector<16x16x128xf32>
    %38 = vector.shape_cast %37 : vector<16x16x128xf32> to vector<256x128xf32>
    %c1_46 = arith.constant 1 : index
    %c2_47 = arith.constant 2 : index
    %c0_48 = arith.constant 0 : index
    %c0_49 = arith.constant 0 : index
    %39 = vector.load %arg2[%c1_46, %c2_47, %c0_48, %c0_49] : memref<3x3x128x128xf32, #tpu.memory_space<vmem>>, vector<1x1x128x128xf32>
    %40 = vector.shape_cast %39 : vector<1x1x128x128xf32> to vector<128x128xf32>
    %cst_50 = arith.constant dense<0.000000e+00> : vector<256x128xf32>
    %41 = tpu.matmul %38, %40, %cst_50 {dimension_numbers = #tpu.dot_dimension_numbers<[1], [0], [0], [1], [0, 0, 1, 1], [], []>} : vector<256x128xf32>, vector<128x128xf32>, vector<256x128xf32> -> vector<256x128xf32>
    %42 = arith.addf %35, %41 : vector<256x128xf32>
    %c0_51 = arith.constant 0 : index
    %c2_52 = arith.constant 2 : index
    %c0_53 = arith.constant 0 : index
    %c0_54 = arith.constant 0 : index
    %43 = vector.load %arg1[%c0_51, %c2_52, %c0_53, %c0_54] : memref<1x18x18x128xf32, #tpu.memory_space<vmem>>, vector<1x16x16x128xf32>
    %44 = vector.shape_cast %43 : vector<1x16x16x128xf32> to vector<16x16x128xf32>
    %45 = vector.shape_cast %44 : vector<16x16x128xf32> to vector<256x128xf32>
    %c2_55 = arith.constant 2 : index
    %c0_56 = arith.constant 0 : index
    %c0_57 = arith.constant 0 : index
    %c0_58 = arith.constant 0 : index
    %46 = vector.load %arg2[%c2_55, %c0_56, %c0_57, %c0_58] : memref<3x3x128x128xf32, #tpu.memory_space<vmem>>, vector<1x1x128x128xf32>
    %47 = vector.shape_cast %46 : vector<1x1x128x128xf32> to vector<128x128xf32>
    %cst_59 = arith.constant dense<0.000000e+00> : vector<256x128xf32>
    %48 = tpu.matmul %45, %47, %cst_59 {dimension_numbers = #tpu.dot_dimension_numbers<[1], [0], [0], [1], [0, 0, 1, 1], [], []>} : vector<256x128xf32>, vector<128x128xf32>, vector<256x128xf32> -> vector<256x128xf32>
    %49 = arith.addf %42, %48 : vector<256x128xf32>
    %c0_60 = arith.constant 0 : index
    %c2_61 = arith.constant 2 : index
    %c1_62 = arith.constant 1 : index
    %c0_63 = arith.constant 0 : index
    %50 = vector.load %arg1[%c0_60, %c2_61, %c1_62, %c0_63] : memref<1x18x18x128xf32, #tpu.memory_space<vmem>>, vector<1x16x16x128xf32>
    %51 = vector.shape_cast %50 : vector<1x16x16x128xf32> to vector<16x16x128xf32>
    %52 = vector.shape_cast %51 : vector<16x16x128xf32> to vector<256x128xf32>
    %c2_64 = arith.constant 2 : index
    %c1_65 = arith.constant 1 : index
    %c0_66 = arith.constant 0 : index
    %c0_67 = arith.constant 0 : index
    %53 = vector.load %arg2[%c2_64, %c1_65, %c0_66, %c0_67] : memref<3x3x128x128xf32, #tpu.memory_space<vmem>>, vector<1x1x128x128xf32>
    %54 = vector.shape_cast %53 : vector<1x1x128x128xf32> to vector<128x128xf32>
    %cst_68 = arith.constant dense<0.000000e+00> : vector<256x128xf32>
    %55 = tpu.matmul %52, %54, %cst_68 {dimension_numbers = #tpu.dot_dimension_numbers<[1], [0], [0], [1], [0, 0, 1, 1], [], []>} : vector<256x128xf32>, vector<128x128xf32>, vector<256x128xf32> -> vector<256x128xf32>
    %56 = arith.addf %49, %55 : vector<256x128xf32>
    %c0_69 = arith.constant 0 : index
    %c2_70 = arith.constant 2 : index
    %c2_71 = arith.constant 2 : index
    %c0_72 = arith.constant 0 : index
    %57 = vector.load %arg1[%c0_69, %c2_70, %c2_71, %c0_72] : memref<1x18x18x128xf32, #tpu.memory_space<vmem>>, vector<1x16x16x128xf32>
    %58 = vector.shape_cast %57 : vector<1x16x16x128xf32> to vector<16x16x128xf32>
    %59 = vector.shape_cast %58 : vector<16x16x128xf32> to vector<256x128xf32>
    %c2_73 = arith.constant 2 : index
    %c2_74 = arith.constant 2 : index
    %c0_75 = arith.constant 0 : index
    %c0_76 = arith.constant 0 : index
    %60 = vector.load %arg2[%c2_73, %c2_74, %c0_75, %c0_76] : memref<3x3x128x128xf32, #tpu.memory_space<vmem>>, vector<1x1x128x128xf32>
    %61 = vector.shape_cast %60 : vector<1x1x128x128xf32> to vector<128x128xf32>
    %cst_77 = arith.constant dense<0.000000e+00> : vector<256x128xf32>
    %62 = tpu.matmul %59, %61, %cst_77 {dimension_numbers = #tpu.dot_dimension_numbers<[1], [0], [0], [1], [0, 0, 1, 1], [], []>} : vector<256x128xf32>, vector<128x128xf32>, vector<256x128xf32> -> vector<256x128xf32>
    %63 = arith.addf %56, %62 : vector<256x128xf32>
    %c0_78 = arith.constant 0 : index
    %c0_79 = arith.constant 0 : index
    %64 = vector.load %arg3[%c0_78, %c0_79] : memref<1x128xf32, #tpu.memory_space<vmem>>, vector<1x128xf32>
    %65 = vector.broadcast %64 : vector<1x128xf32> to vector<256x128xf32>
    %66 = arith.addf %63, %65 : vector<256x128xf32>
    %cst_80 = arith.constant 0.000000e+00 : f32
    %67 = vector.broadcast %cst_80 : f32 to vector<256x128xf32>
    %68 = arith.maximumf %66, %67 : vector<256x128xf32>
    %c0_81 = arith.constant 0 : index
    %c1_82 = arith.constant 1 : index
    %c1_83 = arith.constant 1 : index
    %c0_84 = arith.constant 0 : index
    %69 = vector.load %arg1[%c0_81, %c1_82, %c1_83, %c0_84] : memref<1x18x18x128xf32, #tpu.memory_space<vmem>>, vector<1x16x16x128xf32>
    %70 = vector.shape_cast %69 : vector<1x16x16x128xf32> to vector<16x16x128xf32>
    %71 = vector.shape_cast %70 : vector<16x16x128xf32> to vector<256x128xf32>
    %72 = arith.addf %68, %71 : vector<256x128xf32>
    %c0_85 = arith.constant 0 : index
    %c0_86 = arith.constant 0 : index
    %c0_87 = arith.constant 0 : index
    %73 = vector.load %arg4[%c0_85, %c0_86, %c0_87] : memref<1x256x128xf32, #tpu.memory_space<vmem>>, vector<1x256x128xf32>
    %74 = vector.shape_cast %73 : vector<1x256x128xf32> to vector<256x128xf32>
    %75 = vector.shape_cast %72 : vector<256x128xf32> to vector<1x256x128xf32>
    tpu.vector_store %arg4[%c0_85, %c0_86, %c0_87], %75 {strides = array<i32>} : memref<1x256x128xf32, #tpu.memory_space<vmem>>, vector<1x256x128xf32>,
    return
  }
  func.func @transform_0(%arg0: i32) -> (i32, i32, i32, i32) {
    %c0_i32 = arith.constant 0 : i32
    %c0_i32_0 = arith.constant 0 : i32
    %c0_i32_1 = arith.constant 0 : i32
    %c0_i32_2 = arith.constant 0 : i32
    return %arg0, %c0_i32, %c0_i32_0, %c0_i32_1 : i32, i32, i32, i32
  }
  func.func @transform_1(%arg0: i32) -> (i32, i32, i32, i32) {
    %c0_i32 = arith.constant 0 : i32
    %c0_i32_0 = arith.constant 0 : i32
    %c0_i32_1 = arith.constant 0 : i32
    %c0_i32_2 = arith.constant 0 : i32
    %c0_i32_3 = arith.constant 0 : i32
    return %c0_i32, %c0_i32_0, %c0_i32_1, %c0_i32_2 : i32, i32, i32, i32
  }
  func.func @transform_2(%arg0: i32) -> (i32, i32) {
    %c0_i32 = arith.constant 0 : i32
    %c0_i32_0 = arith.constant 0 : i32
    %c0_i32_1 = arith.constant 0 : i32
    return %c0_i32, %c0_i32_0 : i32, i32
  }
  func.func @transform_3(%arg0: i32) -> (i32, i32, i32) {
    %c0_i32 = arith.constant 0 : i32
    %c0_i32_0 = arith.constant 0 : i32
    %c0_i32_1 = arith.constant 0 : i32
    return %arg0, %c0_i32, %c0_i32_0 : i32, i32, i32
  }
}

</mosaic_0001>

<llo_original>
// kernel: _lambda_.3
$region0: #{_lambda_.3}
  #allocation0 [shape = 'u32[]', space=smem, size = 0x4, offset = 0x4, fixed_abs, tag = 'smem constant byte address 0x4 - core index']
  #allocation1 [shape = 'u32[144,128]{1,0:T(1,128)}', space=vmem, size = 0x12000, scoped, tag = 'internal scratch']
  #allocation2 [shape = 'f32[1,1]{1,0:T(1,128)S(1)}', space=vmem, size = 0x200, scoped, tag = 'scoped memory for _lambda_.3']
  %s0 = inlined_call_operand.vmem [shape: f32[2,18,18,128], index: 0, kind: input, shape index: {}]
  %s1 = inlined_call_operand.vmem [shape: f32[2,256,128], index: 1, kind: input, shape index: {}]
  %s2 = inlined_call_operand.vmem [shape: f32[3,3,128,128], index: 2, kind: input, shape index: {}]
  %s3 = inlined_call_operand.vmem [shape: f32[1,128], index: 3, kind: input, shape index: {}]
  %s4 = inlined_call_operand.vmem [shape: f32[128,128], index: 4, kind: input, shape index: {}]
  %s5 = inlined_call_operand.vmem [shape: f32[1,128], index: 5, kind: input, shape index: {}]
  %s6 = inlined_call_operand.vmem [shape: f32[128,128], index: 6, kind: input, shape index: {}]
  %s7 = inlined_call_operand.vmem [shape: f32[1,128], index: 7, kind: input, shape index: {}]
  %s8 = inlined_call_operand.vmem [shape: f32[128,128], index: 8, kind: input, shape index: {}]
  %s9 = inlined_call_operand.vmem [shape: f32[1,128], index: 9, kind: input, shape index: {}]
  %s10 = inlined_call_operand.vmem [shape: f32[1,128], index: 10, kind: input, shape index: {}]
  %s11 = inlined_call_operand.<no memory space> [shape: f32[1,1], index: 11, kind: input, shape index: {}]
  %s12 = inlined_call_operand.vmem [shape: f32[2,256,128], index: 12, kind: output, shape index: {}]
  %s13 = sld [smem:[#allocation0]]
  $region81: #{_lambda_.3} parent=0
    _
  %s15 = ssub.s32 1, %s13
  %s16 = scalar_select 0, %s15, %s13
  %v17 = vstv %s11
  %18 = vst [vmem:[#allocation2] sm:$0x1] %v17
  loop: start=0, step=1, limit=4
  $region2: #{_lambda_.3} parent=0 // loop_pre_header
    _
  $region3: #{_lambda_.3} parent=0 // loop_header
    %s20 = sphi 0, %s24
    %p21 = scmp.ge.s32.totalorder %s20, 4
    %s30 = sphi 0, %s32
    %s33 = sphi 0, %s30
    %s34 = sphi 0, %s33
    %s50 = sphi 0, %s34
    %s56 = sphi 0, %s58
    %s59 = sphi 0, %s56
    %s60 = sphi 0, %s59
    %s76 = sphi 0, %s60
    %s80 = sphi 0, %s80
    %s82 = sphi 0, %s80
    %s83 = sphi 0, %s82
    %s97 = sphi 0, %s83
    %s101 = sphi 0, %s101
    %s103 = sphi 0, %s101
    %s104 = sphi 0, %s103
    %s118 = sphi 0, %s104
    %s122 = sphi 0, %s122
    %s124 = sphi 0, %s122
    %s125 = sphi 0, %s124
    %s139 = sphi 0, %s125
    %s143 = sphi 0, %s143
    %s145 = sphi 0, %s143
    %s146 = sphi 0, %s145
    %s160 = sphi 0, %s146
    %s164 = sphi 0, %s164
    %s166 = sphi 0, %s164
    %s167 = sphi 0, %s166
    %s181 = sphi 0, %s167
    %s185 = sphi 0, %s185
    %s187 = sphi 0, %s185
    %s188 = sphi 0, %s187
    %s202 = sphi 0, %s188
    %s206 = sphi 0, %s206
    %s208 = sphi 0, %s206
    %s209 = sphi 0, %s208
    %s223 = sphi 0, %s209
    %s227 = sphi 0, %s227
    %s229 = sphi 0, %s227
    %s230 = sphi 0, %s229
    %s244 = sphi 0, %s230
    %s248 = sphi 0, %s248
    %s250 = sphi 0, %s248
    %s251 = sphi 0, %s250
    %s265 = sphi 0, %s251
    %s269 = sphi 0, %s269
    %s271 = sphi 0, %s269
    %s272 = sphi 0, %s271
    %s286 = sphi 0, %s272
    %s292 = sphi 0, %s294
    %s295 = sphi 0, %s292
    %s296 = sphi 0, %s295
    %s312 = sphi 0, %s296
  $region4: #{_lambda_.3} parent=0 // loop_header_branch
    %23 = sbr.rel (%p21) target = $region8
  $region5: #{_lambda_.3} parent=0 // loop_body
    %s25 = ssub.s32 %s20, 1
    %s26 = ssub.s32 %s20, 2
    %s27 = sadd.s32 %s20, 1
    %s28 = ssub.s32 %s20, %s27
    %p29 = scmp.eq.s32.totalorder %s28, 0
    %s31 = sadd.s32 %s30, 1
    %s32 = scalar_select %p29, %s30, %s31
    %p35 = pneg %p29
    %p36 = scmp.eq.s32.totalorder %s20, 1
    %p37 = por %p35, %p36
    %p38 = scmp.ne.s32.totalorder %s30, %s33
    %p39 = scmp.eq.s32.totalorder %s20, 0
    %p40 = por %p38, %p39
    %p41 = scmp.ne.s32.totalorder %s30, %s33
    %p42 = scmp.eq.s32.totalorder %s25, 1
    %p43 = por %p41, %p42
    %p44 = scmp.ne.s32.totalorder %s33, %s34
    %p45 = scmp.eq.s32.totalorder %s25, 0
    %p46 = por %p44, %p45
    %p47 = scmp.ne.s32.totalorder %s33, %s34
    %p48 = scmp.eq.s32.totalorder %s26, 1
    %p49 = por %p47, %p48
    %p51 = scmp.ne.s32.totalorder %s34, %s50
    %p52 = scmp.eq.s32.totalorder %s26, 0
    %p53 = por %p51, %p52
    %s54 = ssub.s32 %s20, %s27
    %p55 = scmp.eq.s32.totalorder %s54, 0
    %s57 = sadd.s32 %s56, 1
    %s58 = scalar_select %p55, %s56, %s57
    %p61 = pneg %p55
    %p62 = scmp.eq.s32.totalorder %s20, 1
    %p63 = por %p61, %p62
    %p64 = scmp.ne.s32.totalorder %s56, %s59
    %p65 = scmp.eq.s32.totalorder %s20, 0
    %p66 = por %p64, %p65
    %p67 = scmp.ne.s32.totalorder %s56, %s59
    %p68 = scmp.eq.s32.totalorder %s25, 1
    %p69 = por %p67, %p68
    %p70 = scmp.ne.s32.totalorder %s59, %s60
    %p71 = scmp.eq.s32.totalorder %s25, 0
    %p72 = por %p70, %p71
    %p73 = scmp.ne.s32.totalorder %s59, %s60
    %p74 = scmp.eq.s32.totalorder %s26, 1
    %p75 = por %p73, %p74
    %p77 = scmp.ne.s32.totalorder %s60, %s76
    %p78 = scmp.eq.s32.totalorder %s26, 0
    %p79 = por %p77, %p78
    %s81 = sadd.s32 %s80, 1
    %p84 = scmp.eq.s32.totalorder %s20, 1
    %p85 = scmp.ne.s32.totalorder %s80, %s82
    %p86 = scmp.eq.s32.totalorder %s20, 0
    %p87 = por %p85, %p86
    %p88 = scmp.ne.s32.totalorder %s80, %s82
    %p89 = scmp.eq.s32.totalorder %s25, 1
    %p90 = por %p88, %p89
    %p91 = scmp.ne.s32.totalorder %s82, %s83
    %p92 = scmp.eq.s32.totalorder %s25, 0
    %p93 = por %p91, %p92
    %p94 = scmp.ne.s32.totalorder %s82, %s83
    %p95 = scmp.eq.s32.totalorder %s26, 1
    %p96 = por %p94, %p95
    %p98 = scmp.ne.s32.totalorder %s83, %s97
    %p99 = scmp.eq.s32.totalorder %s26, 0
    %p100 = por %p98, %p99
    %s102 = sadd.s32 %s101, 1
    %p105 = scmp.eq.s32.totalorder %s20, 1
    %p106 = scmp.ne.s32.totalorder %s101, %s103
    %p107 = scmp.eq.s32.totalorder %s20, 0
    %p108 = por %p106, %p107
    %p109 = scmp.ne.s32.totalorder %s101, %s103
    %p110 = scmp.eq.s32.totalorder %s25, 1
    %p111 = por %p109, %p110
    %p112 = scmp.ne.s32.totalorder %s103, %s104
    %p113 = scmp.eq.s32.totalorder %s25, 0
    %p114 = por %p112, %p113
    %p115 = scmp.ne.s32.totalorder %s103, %s104
    %p116 = scmp.eq.s32.totalorder %s26, 1
    %p117 = por %p115, %p116
    %p119 = scmp.ne.s32.totalorder %s104, %s118
    %p120 = scmp.eq.s32.totalorder %s26, 0
    %p121 = por %p119, %p120
    %s123 = sadd.s32 %s122, 1
    %p126 = scmp.eq.s32.totalorder %s20, 1
    %p127 = scmp.ne.s32.totalorder %s122, %s124
    %p128 = scmp.eq.s32.totalorder %s20, 0
    %p129 = por %p127, %p128
    %p130 = scmp.ne.s32.totalorder %s122, %s124
    %p131 = scmp.eq.s32.totalorder %s25, 1
    %p132 = por %p130, %p131
    %p133 = scmp.ne.s32.totalorder %s124, %s125
    %p134 = scmp.eq.s32.totalorder %s25, 0
    %p135 = por %p133, %p134
    %p136 = scmp.ne.s32.totalorder %s124, %s125
    %p137 = scmp.eq.s32.totalorder %s26, 1
    %p138 = por %p136, %p137
    %p140 = scmp.ne.s32.totalorder %s125, %s139
    %p141 = scmp.eq.s32.totalorder %s26, 0
    %p142 = por %p140, %p141
    %s144 = sadd.s32 %s143, 1
    %p147 = scmp.eq.s32.totalorder %s20, 1
    %p148 = scmp.ne.s32.totalorder %s143, %s145
    %p149 = scmp.eq.s32.totalorder %s20, 0
    %p150 = por %p148, %p149
    %p151 = scmp.ne.s32.totalorder %s143, %s145
    %p152 = scmp.eq.s32.totalorder %s25, 1
    %p153 = por %p151, %p152
    %p154 = scmp.ne.s32.totalorder %s145, %s146
    %p155 = scmp.eq.s32.totalorder %s25, 0
    %p156 = por %p154, %p155
    %p157 = scmp.ne.s32.totalorder %s145, %s146
    %p158 = scmp.eq.s32.totalorder %s26, 1
    %p159 = por %p157, %p158
    %p161 = scmp.ne.s32.totalorder %s146, %s160
    %p162 = scmp.eq.s32.totalorder %s26, 0
    %p163 = por %p161, %p162
    %s165 = sadd.s32 %s164, 1
    %p168 = scmp.eq.s32.totalorder %s20, 1
    %p169 = scmp.ne.s32.totalorder %s164, %s166
    %p170 = scmp.eq.s32.totalorder %s20, 0
    %p171 = por %p169, %p170
    %p172 = scmp.ne.s32.totalorder %s164, %s166
    %p173 = scmp.eq.s32.totalorder %s25, 1
    %p174 = por %p172, %p173
    %p175 = scmp.ne.s32.totalorder %s166, %s167
    %p176 = scmp.eq.s32.totalorder %s25, 0
    %p177 = por %p175, %p176
    %p178 = scmp.ne.s32.totalorder %s166, %s167
    %p179 = scmp.eq.s32.totalorder %s26, 1
    %p180 = por %p178, %p179
    %p182 = scmp.ne.s32.totalorder %s167, %s181
    %p183 = scmp.eq.s32.totalorder %s26, 0
    %p184 = por %p182, %p183
    %s186 = sadd.s32 %s185, 1
    %p189 = scmp.eq.s32.totalorder %s20, 1
    %p190 = scmp.ne.s32.totalorder %s185, %s187
    %p191 = scmp.eq.s32.totalorder %s20, 0
    %p192 = por %p190, %p191
    %p193 = scmp.ne.s32.totalorder %s185, %s187
    %p194 = scmp.eq.s32.totalorder %s25, 1
    %p195 = por %p193, %p194
    %p196 = scmp.ne.s32.totalorder %s187, %s188
    %p197 = scmp.eq.s32.totalorder %s25, 0
    %p198 = por %p196, %p197
    %p199 = scmp.ne.s32.totalorder %s187, %s188
    %p200 = scmp.eq.s32.totalorder %s26, 1
    %p201 = por %p199, %p200
    %p203 = scmp.ne.s32.totalorder %s188, %s202
    %p204 = scmp.eq.s32.totalorder %s26, 0
    %p205 = por %p203, %p204
    %s207 = sadd.s32 %s206, 1
    %p210 = scmp.eq.s32.totalorder %s20, 1
    %p211 = scmp.ne.s32.totalorder %s206, %s208
    %p212 = scmp.eq.s32.totalorder %s20, 0
    %p213 = por %p211, %p212
    %p214 = scmp.ne.s32.totalorder %s206, %s208
    %p215 = scmp.eq.s32.totalorder %s25, 1
    %p216 = por %p214, %p215
    %p217 = scmp.ne.s32.totalorder %s208, %s209
    %p218 = scmp.eq.s32.totalorder %s25, 0
    %p219 = por %p217, %p218
    %p220 = scmp.ne.s32.totalorder %s208, %s209
    %p221 = scmp.eq.s32.totalorder %s26, 1
    %p222 = por %p220, %p221
    %p224 = scmp.ne.s32.totalorder %s209, %s223
    %p225 = scmp.eq.s32.totalorder %s26, 0
    %p226 = por %p224, %p225
    %s228 = sadd.s32 %s227, 1
    %p231 = scmp.eq.s32.totalorder %s20, 1
    %p232 = scmp.ne.s32.totalorder %s227, %s229
    %p233 = scmp.eq.s32.totalorder %s20, 0
    %p234 = por %p232, %p233
    %p235 = scmp.ne.s32.totalorder %s227, %s229
    %p236 = scmp.eq.s32.totalorder %s25, 1
    %p237 = por %p235, %p236
    %p238 = scmp.ne.s32.totalorder %s229, %s230
    %p239 = scmp.eq.s32.totalorder %s25, 0
    %p240 = por %p238, %p239
    %p241 = scmp.ne.s32.totalorder %s229, %s230
    %p242 = scmp.eq.s32.totalorder %s26, 1
    %p243 = por %p241, %p242
    %p245 = scmp.ne.s32.totalorder %s230, %s244
    %p246 = scmp.eq.s32.totalorder %s26, 0
    %p247 = por %p245, %p246
    %s249 = sadd.s32 %s248, 1
    %p252 = scmp.eq.s32.totalorder %s20, 1
    %p253 = scmp.ne.s32.totalorder %s248, %s250
    %p254 = scmp.eq.s32.totalorder %s20, 0
    %p255 = por %p253, %p254
    %p256 = scmp.ne.s32.totalorder %s248, %s250
    %p257 = scmp.eq.s32.totalorder %s25, 1
    %p258 = por %p256, %p257
    %p259 = scmp.ne.s32.totalorder %s250, %s251
    %p260 = scmp.eq.s32.totalorder %s25, 0
    %p261 = por %p259, %p260
    %p262 = scmp.ne.s32.totalorder %s250, %s251
    %p263 = scmp.eq.s32.totalorder %s26, 1
    %p264 = por %p262, %p263
    %p266 = scmp.ne.s32.totalorder %s251, %s265
    %p267 = scmp.eq.s32.totalorder %s26, 0
    %p268 = por %p266, %p267
    %s270 = sadd.s32 %s269, 1
    %p273 = scmp.eq.s32.totalorder %s20, 1
    %p274 = scmp.ne.s32.totalorder %s269, %s271
    %p275 = scmp.eq.s32.totalorder %s20, 0
    %p276 = por %p274, %p275
    %p277 = scmp.ne.s32.totalorder %s269, %s271
    %p278 = scmp.eq.s32.totalorder %s25, 1
    %p279 = por %p277, %p278
    %p280 = scmp.ne.s32.totalorder %s271, %s272
    %p281 = scmp.eq.s32.totalorder %s25, 0
    %p282 = por %p280, %p281
    %p283 = scmp.ne.s32.totalorder %s271, %s272
    %p284 = scmp.eq.s32.totalorder %s26, 1
    %p285 = por %p283, %p284
    %p287 = scmp.ne.s32.totalorder %s272, %s286
    %p288 = scmp.eq.s32.totalorder %s26, 0
    %p289 = por %p287, %p288
    %s290 = ssub.s32 %s20, %s27
    %p291 = scmp.eq.s32.totalorder %s290, 0
    %s293 = sadd.s32 %s292, 1
    %s294 = scalar_select %p291, %s292, %s293
    %p297 = pneg %p291
    %p298 = scmp.eq.s32.totalorder %s20, 1
    %p299 = por %p297, %p298
    %p300 = scmp.ne.s32.totalorder %s292, %s295
    %p301 = scmp.eq.s32.totalorder %s20, 0
    %p302 = por %p300, %p301
    %p303 = scmp.ne.s32.totalorder %s292, %s295
    %p304 = scmp.eq.s32.totalorder %s25, 1
    %p305 = por %p303, %p304
    %p306 = scmp.ne.s32.totalorder %s295, %s296
    %p307 = scmp.eq.s32.totalorder %s25, 0
    %p308 = por %p306, %p307
    %p309 = scmp.ne.s32.totalorder %s295, %s296
    %p310 = scmp.eq.s32.totalorder %s26, 1
    %p311 = por %p309, %p310
    %p313 = scmp.ne.s32.totalorder %s296, %s312
    %p314 = scmp.eq.s32.totalorder %s26, 0
    %p315 = por %p313, %p314
    %p316 = scmp.le.s32.totalorder 1, %s20
    %p317 = scmp.lt.s32.totalorder %s20, 3
    %p318 = pnand %p316, %p317
    %p319 = pneg %p318
    // Predicated region
    $region9: #{_lambda_.3} parent=5 // pred_check
      _
    $region10: #{_lambda_.3} parent=5 // pred_check_branch
      %321 = sbr.rel (%p318) target = $region12
    $region11: #{_lambda_.3} parent=5 // pred_region
      %s322 = ssub.s32 %s20, 1
      // Predicated region
      $region13: #{_lambda_.3} parent=11 // pred_check
        %p323 = pneg %p93
      $region14: #{_lambda_.3} parent=11 // pred_check_branch
        %325 = sbr.rel (%p323) target = $region16
      $region15: #{_lambda_.3} parent=11 // pred_region
        _
      $region16: #{_lambda_.3} parent=11 // pred_fallthru
        _
      // Predicated region
      $region17: #{_lambda_.3} parent=11 // pred_check
        %p326 = pneg %p114
      $region18: #{_lambda_.3} parent=11 // pred_check_branch
        %328 = sbr.rel (%p326) target = $region20
      $region19: #{_lambda_.3} parent=11 // pred_region
        _
      $region20: #{_lambda_.3} parent=11 // pred_fallthru
        _
      // Predicated region
      $region21: #{_lambda_.3} parent=11 // pred_check
        %p329 = pneg %p135
      $region22: #{_lambda_.3} parent=11 // pred_check_branch
        %331 = sbr.rel (%p329) target = $region24
      $region23: #{_lambda_.3} parent=11 // pred_region
        _
      $region24: #{_lambda_.3} parent=11 // pred_fallthru
        _
      // Predicated region
      $region25: #{_lambda_.3} parent=11 // pred_check
        %p332 = pneg %p156
      $region26: #{_lambda_.3} parent=11 // pred_check_branch
        %334 = sbr.rel (%p332) target = $region28
      $region27: #{_lambda_.3} parent=11 // pred_region
        _
      $region28: #{_lambda_.3} parent=11 // pred_fallthru
        _
      // Predicated region
      $region29: #{_lambda_.3} parent=11 // pred_check
        %p335 = pneg %p177
      $region30: #{_lambda_.3} parent=11 // pred_check_branch
        %337 = sbr.rel (%p335) target = $region32
      $region31: #{_lambda_.3} parent=11 // pred_region
        _
      $region32: #{_lambda_.3} parent=11 // pred_fallthru
        _
      // Predicated region
      $region33: #{_lambda_.3} parent=11 // pred_check
        %p338 = pneg %p198
      $region34: #{_lambda_.3} parent=11 // pred_check_branch
        %340 = sbr.rel (%p338) target = $region36
      $region35: #{_lambda_.3} parent=11 // pred_region
        _
      $region36: #{_lambda_.3} parent=11 // pred_fallthru
        _
      // Predicated region
      $region37: #{_lambda_.3} parent=11 // pred_check
        %p341 = pneg %p219
      $region38: #{_lambda_.3} parent=11 // pred_check_branch
        %343 = sbr.rel (%p341) target = $region40
      $region39: #{_lambda_.3} parent=11 // pred_region
        _
      $region40: #{_lambda_.3} parent=11 // pred_fallthru
        _
      // Predicated region
      $region41: #{_lambda_.3} parent=11 // pred_check
        %p344 = pneg %p240
      $region42: #{_lambda_.3} parent=11 // pred_check_branch
        %346 = sbr.rel (%p344) target = $region44
      $region43: #{_lambda_.3} parent=11 // pred_region
        _
      $region44: #{_lambda_.3} parent=11 // pred_fallthru
        _
      // Predicated region
      $region45: #{_lambda_.3} parent=11 // pred_check
        %p347 = pneg %p261
      $region46: #{_lambda_.3} parent=11 // pred_check_branch
        %349 = sbr.rel (%p347) target = $region48
      $region47: #{_lambda_.3} parent=11 // pred_region
        _
      $region48: #{_lambda_.3} parent=11 // pred_fallthru
        _
      // Predicated region
      $region49: #{_lambda_.3} parent=11 // pred_check
        %p350 = pneg %p282
      $region50: #{_lambda_.3} parent=11 // pred_check_branch
        %352 = sbr.rel (%p350) target = $region52
      $region51: #{_lambda_.3} parent=11 // pred_region
        _
      $region52: #{_lambda_.3} parent=11 // pred_fallthru
        _
    $region12: #{_lambda_.3} parent=5 // pred_fallthru
      _
    %p353 = scmp.lt.s32.totalorder %s20, 2
    // Predicated region
    $region53: #{_lambda_.3} parent=5 // pred_check
      %p354 = pneg %p353
    $region54: #{_lambda_.3} parent=5 // pred_check_branch
      %356 = sbr.rel (%p354) target = $region56
    $region55: #{_lambda_.3} parent=5 // pred_region
      // Predicated region
      $region57: #{_lambda_.3} parent=55 // pred_check
        %p357 = pneg %p40
      $region58: #{_lambda_.3} parent=55 // pred_check_branch
        %359 = sbr.rel (%p357) target = $region60
      $region59: #{_lambda_.3} parent=55 // pred_region
        %p360 = scmp.lt.s32.totalorder %s20, 1
        %s361 = scalar_select %p360, %s20, 1
        %s362 = smul.addr %s361, 54
        %s363 = smul.addr %s362, 8
        %s364 = scalar_lea.vmem %s0, %s363
      $region60: #{_lambda_.3} parent=55 // pred_fallthru
        _
      // Predicated region
      $region61: #{_lambda_.3} parent=55 // pred_check
        %p365 = pneg %p66
      $region62: #{_lambda_.3} parent=55 // pred_check_branch
        %367 = sbr.rel (%p365) target = $region64
      $region63: #{_lambda_.3} parent=55 // pred_region
        %p368 = scmp.lt.s32.totalorder %s20, 1
        %s369 = scalar_select %p368, %s20, 1
        %s370 = smul.addr %s369, 32
        %s371 = smul.addr %s370, 8
        %s372 = scalar_lea.vmem %s1, %s371
      $region64: #{_lambda_.3} parent=55 // pred_fallthru
        _
    $region56: #{_lambda_.3} parent=5 // pred_fallthru
      _
    %p373 = scmp.le.s32.totalorder 1, %s20
    %p374 = scmp.lt.s32.totalorder %s20, 3
    %p375 = pnand %p373, %p374
    %p376 = pneg %p375
    // Predicated region
    $region65: #{_lambda_.3} parent=5 // pred_check
      _
    $region66: #{_lambda_.3} parent=5 // pred_check_branch
      %378 = sbr.rel (%p375) target = $region68
    $region67: #{_lambda_.3} parent=5 // pred_region
      %s379 = ssub.s32 %s20, 1
      %p380 = scmp.lt.s32.totalorder %s25, 1
      %s381 = scalar_select %p380, %s25, 1
      %s382 = smul.addr %s381, 54
      %s383 = smul.addr %s382, 8
      %s384 = scalar_lea.vmem %s0, %s383
      %p385 = pneg %p46
      %p386 = pneg %p43
      %p387 = scmp.lt.s32.totalorder %s25, 1
      %s388 = scalar_select %p387, %s25, 1
      %s389 = smul.addr %s388, 32
      %s390 = smul.addr %s389, 8
      %s391 = scalar_lea.vmem %s1, %s390
      %p392 = pneg %p72
      %p393 = pneg %p69
      %p394 = pneg %p93
      %p395 = pneg %p90
      %p396 = pneg %p114
      %p397 = pneg %p111
      %p398 = pneg %p135
      %p399 = pneg %p132
      %p400 = pneg %p156
      %p401 = pneg %p153
      %p402 = pneg %p177
      %p403 = pneg %p174
      %p404 = pneg %p198
      %p405 = pneg %p195
      %p406 = pneg %p219
      %p407 = pneg %p216
      %p408 = pneg %p240
      %p409 = pneg %p237
      %p410 = pneg %p261
      %p411 = pneg %p258
      %p412 = pneg %p282
      %p413 = pneg %p279
      %p414 = pneg %p308
      %p415 = pneg %p305
      %p416 = scmp.lt.s32.totalorder %s25, 1
      %s417 = scalar_select %p416, %s25, 1
      %s418 = smul.addr %s417, 32
      %s419 = smul.addr %s418, 8
      %s420 = scalar_lea.vmem %s12, %s419
      %p421 = scmp.lt.s32.totalorder %s25, 1
      %s422 = scalar_select %p421, %s25, 1
      %s423 = smul.addr %s422, 54
      %s424 = smul.addr %s423, 8
      %s425 = scalar_lea.vmem %s0, %s424
      %p426 = scmp.lt.s32.totalorder %s25, 1
      %s427 = scalar_select %p426, %s25, 1
      %s428 = smul.addr %s427, 32
      %s429 = smul.addr %s428, 8
      %s430 = scalar_lea.vmem %s1, %s429
      %p431 = scmp.lt.s32.totalorder %s25, 1
      %s432 = scalar_select %p431, %s25, 1
      %s433 = smul.addr %s432, 32
      %s434 = smul.addr %s433, 8
      %s435 = scalar_lea.vmem %s12, %s434
      %v436 = vld [vmem:[%s425] sm:$0xff]
      %v437 = vld [vmem:[%s425 + $0x8] sm:$0xff]
      %v438 = vld [vmem:[%s425 + $0x18] sm:$0xff]
      %v439 = vld [vmem:[%s425 + $0x20] sm:$0xff]
      %v440 = vld [vmem:[%s425 + $0x30] sm:$0xff]
      %v441 = vld [vmem:[%s425 + $0x38] sm:$0xff]
      %v442 = vld [vmem:[%s425 + $0x48] sm:$0xff]
      %v443 = vld [vmem:[%s425 + $0x50] sm:$0xff]
      %v444 = vld [vmem:[%s425 + $0x60] sm:$0xff]
      %v445 = vld [vmem:[%s425 + $0x68] sm:$0xff]
      %v446 = vld [vmem:[%s425 + $0x78] sm:$0xff]
      %v447 = vld [vmem:[%s425 + $0x80] sm:$0xff]
      %v448 = vld [vmem:[%s425 + $0x90] sm:$0xff]
      %v449 = vld [vmem:[%s425 + $0x98] sm:$0xff]
      %v450 = vld [vmem:[%s425 + $0xa8] sm:$0xff]
      %v451 = vld [vmem:[%s425 + $0xb0] sm:$0xff]
      %v452 = vld [vmem:[%s425 + $0xc0] sm:$0xff]
      %v453 = vld [vmem:[%s425 + $0xc8] sm:$0xff]
      %v454 = vld [vmem:[%s425 + $0xd8] sm:$0xff]
      %v455 = vld [vmem:[%s425 + $0xe0] sm:$0xff]
      %v456 = vld [vmem:[%s425 + $0xf0] sm:$0xff]
      %v457 = vld [vmem:[%s425 + $0xf8] sm:$0xff]
      %v458 = vld [vmem:[%s425 + $0x108] sm:$0xff]
      %v459 = vld [vmem:[%s425 + $0x110] sm:$0xff]
      %v460 = vld [vmem:[%s425 + $0x120] sm:$0xff]
      %v461 = vld [vmem:[%s425 + $0x128] sm:$0xff]
      %v462 = vld [vmem:[%s425 + $0x138] sm:$0xff]
      %v463 = vld [vmem:[%s425 + $0x140] sm:$0xff]
      %v464 = vld [vmem:[%s425 + $0x150] sm:$0xff]
      %v465 = vld [vmem:[%s425 + $0x158] sm:$0xff]
      %v466 = vld [vmem:[%s425 + $0x168] sm:$0xff]
      %v467 = vld [vmem:[%s425 + $0x170] sm:$0xff]
      %v468 = vld [vmem:[%s2] sm:$0xff]
      %v469 = vld [vmem:[%s2 + $0x8] sm:$0xff]
      %v470 = vld [vmem:[%s2 + $0x10] sm:$0xff]
      %v471 = vld [vmem:[%s2 + $0x18] sm:$0xff]
      %v472 = vld [vmem:[%s2 + $0x20] sm:$0xff]
      %v473 = vld [vmem:[%s2 + $0x28] sm:$0xff]
      %v474 = vld [vmem:[%s2 + $0x30] sm:$0xff]
      %v475 = vld [vmem:[%s2 + $0x38] sm:$0xff]
      %v476 = vld [vmem:[%s2 + $0x40] sm:$0xff]
      %v477 = vld [vmem:[%s2 + $0x48] sm:$0xff]
      %v478 = vld [vmem:[%s2 + $0x50] sm:$0xff]
      %v479 = vld [vmem:[%s2 + $0x58] sm:$0xff]
      %v480 = vld [vmem:[%s2 + $0x60] sm:$0xff]
      %v481 = vld [vmem:[%s2 + $0x68] sm:$0xff]
      %v482 = vld [vmem:[%s2 + $0x70] sm:$0xff]
      %v483 = vld [vmem:[%s2 + $0x78] sm:$0xff]
      %v484 = vld [vmem:[%s425 + $0x1] sm:$0xff]
      %v485 = vld [vmem:[%s425 + $0x9] sm:$0xff]
      %v486 = vld [vmem:[%s425 + $0x19] sm:$0xff]
      %v487 = vld [vmem:[%s425 + $0x21] sm:$0xff]
      %v488 = vld [vmem:[%s425 + $0x31] sm:$0xff]
      %v489 = vld [vmem:[%s425 + $0x39] sm:$0xff]
      %v490 = vld [vmem:[%s425 + $0x49] sm:$0xff]
      %v491 = vld [vmem:[%s425 + $0x51] sm:$0xff]
      %v492 = vld [vmem:[%s425 + $0x61] sm:$0xff]
      %v493 = vld [vmem:[%s425 + $0x69] sm:$0xff]
      %v494 = vld [vmem:[%s425 + $0x79] sm:$0xff]
      %v495 = vld [vmem:[%s425 + $0x81] sm:$0xff]
      %v496 = vld [vmem:[%s425 + $0x91] sm:$0xff]
      %v497 = vld [vmem:[%s425 + $0x99] sm:$0xff]
      %v498 = vld [vmem:[%s425 + $0xa9] sm:$0xff]
      %v499 = vld [vmem:[%s425 + $0xb1] sm:$0xff]
      %v500 = vld [vmem:[%s425 + $0xc1] sm:$0xff]
      %v501 = vld [vmem:[%s425 + $0xc9] sm:$0xff]
      %v502 = vld [vmem:[%s425 + $0xd9] sm:$0xff]
      %v503 = vld [vmem:[%s425 + $0xe1] sm:$0xff]
      %v504 = vld [vmem:[%s425 + $0xf1] sm:$0xff]
      %v505 = vld [vmem:[%s425 + $0xf9] sm:$0xff]
      %v506 = vld [vmem:[%s425 + $0x109] sm:$0xff]
      %v507 = vld [vmem:[%s425 + $0x111] sm:$0xff]
      %v508 = vld [vmem:[%s425 + $0x121] sm:$0xff]
      %v509 = vld [vmem:[%s425 + $0x129] sm:$0xff]
      %v510 = vld [vmem:[%s425 + $0x139] sm:$0xff]
      %v511 = vld [vmem:[%s425 + $0x141] sm:$0xff]
      %v512 = vld [vmem:[%s425 + $0x151] sm:$0xff]
      %v513 = vld [vmem:[%s425 + $0x159] sm:$0xff]
      %v514 = vld [vmem:[%s425 + $0x169] sm:$0xff]
      %v515 = vld [vmem:[%s425 + $0x171] sm:$0xff]
      %s516 = scalar_lea.vmem %s2, 128
      %v517 = vld [vmem:[%s516] sm:$0xff]
      %v518 = vld [vmem:[%s516 + $0x8] sm:$0xff]
      %v519 = vld [vmem:[%s516 + $0x10] sm:$0xff]
      %v520 = vld [vmem:[%s516 + $0x18] sm:$0xff]
      %v521 = vld [vmem:[%s516 + $0x20] sm:$0xff]
      %v522 = vld [vmem:[%s516 + $0x28] sm:$0xff]
      %v523 = vld [vmem:[%s516 + $0x30] sm:$0xff]
      %v524 = vld [vmem:[%s516 + $0x38] sm:$0xff]
      %v525 = vld [vmem:[%s516 + $0x40] sm:$0xff]
      %v526 = vld [vmem:[%s516 + $0x48] sm:$0xff]
      %v527 = vld [vmem:[%s516 + $0x50] sm:$0xff]
      %v528 = vld [vmem:[%s516 + $0x58] sm:$0xff]
      %v529 = vld [vmem:[%s516 + $0x60] sm:$0xff]
      %v530 = vld [vmem:[%s516 + $0x68] sm:$0xff]
      %v531 = vld [vmem:[%s516 + $0x70] sm:$0xff]
      %v532 = vld [vmem:[%s516 + $0x78] sm:$0xff]
      %533 = vmatprep.subr.mxu0 0.0
      %534 = vmatpush1.msra.mxu0 %v517
      %535 = vmatprep.subr.mxu0 0.0
      %536 = vmatpush1.msra.mxu0 %v518
      %537 = vmatprep.subr.mxu0 0.0
      %538 = vmatpush1.msra.mxu0 %v519
      %539 = vmatprep.subr.mxu0 0.0
      %540 = vmatpush1.msra.mxu0 %v520
      %541 = vmatprep.subr.mxu0 0.0
      %542 = vmatpush1.msra.mxu0 %v521
      %543 = vmatprep.subr.mxu0 0.0
      %544 = vmatpush1.msra.mxu0 %v522
      %545 = vmatprep.subr.mxu0 0.0
      %546 = vmatpush1.msra.mxu0 %v523
      %547 = vmatprep.subr.mxu0 0.0
      %548 = vmatpush1.msra.mxu0 %v524
      %549 = vmatprep.subr.mxu0 0.0
      %550 = vmatpush1.msra.mxu0 %v525
      %551 = vmatprep.subr.mxu0 0.0
      %552 = vmatpush1.msra.mxu0 %v526
      %553 = vmatprep.subr.mxu0 0.0
      %554 = vmatpush1.msra.mxu0 %v527
      %555 = vmatprep.subr.mxu0 0.0
      %556 = vmatpush1.msra.mxu0 %v528
      %557 = vmatprep.subr.mxu0 0.0
      %558 = vmatpush1.msra.mxu0 %v529
      %559 = vmatprep.subr.mxu0 0.0
      %560 = vmatpush1.msra.mxu0 %v530
      %561 = vmatprep.subr.mxu0 0.0
      %562 = vmatpush1.msra.mxu0 %v531
      %563 = vmatprep.subr.mxu0 0.0
      %564 = vmatpush1.msra.mxu0 %v532
      %565 = vmatprep.subr.mxu0 0.0
      %566 = vmatpush1.msra.mxu0 0.0
      %567 = vmatprep.subr.mxu0 0.0
      %568 = vmatpush1.msra.mxu0 0.0
      %569 = vmatprep.subr.mxu0 0.0
      %570 = vmatpush1.msra.mxu0 0.0
      %571 = vmatprep.subr.mxu0 0.0
      %572 = vmatpush1.msra.mxu0 0.0
      %573 = vmatprep.subr.mxu0 0.0
      %574 = vmatpush1.msra.mxu0 0.0
      %575 = vmatprep.subr.mxu0 0.0
      %576 = vmatpush1.msra.mxu0 0.0
      %577 = vmatprep.subr.mxu0 0.0
      %578 = vmatpush1.msra.mxu0 0.0
      %579 = vmatprep.subr.mxu0 0.0
      %580 = vmatpush1.msra.mxu0 0.0
      %581 = vmatprep.subr.mxu0 0.0
      %582 = vmatpush1.msra.mxu0 0.0
      %583 = vmatprep.subr.mxu0 0.0
      %584 = vmatpush1.msra.mxu0 0.0
      %585 = vmatprep.subr.mxu0 0.0
      %586 = vmatpush1.msra.mxu0 0.0
      %587 = vmatprep.subr.mxu0 0.0
      %588 = vmatpush1.msra.mxu0 0.0
      %589 = vmatprep.subr.mxu0 0.0
      %590 = vmatpush1.msra.mxu0 0.0
      %591 = vmatprep.subr.mxu0 0.0
      %592 = vmatpush1.msra.mxu0 0.0
      %593 = vmatprep.subr.mxu0 0.0
      %594 = vmatpush1.msra.mxu0 0.0
      %595 = vmatprep.subr.mxu0 0.0
      %596 = vmatpush1.msra.mxu0 0.0
      %597 = vmatprep.mubr.f32.mxu0 0.0
      %598 = vmatmul.mubr.f32.gmra.mrb[0].mxu0 %v484
      %v599 = vpop.f32.mrb[0].mxu0
      %v600 = vadd.f32 0.0, %v599
      %v601 = vpop.f32.mrb[0].mxu0
      %602 = vmatprep.mubr.f32.mxu0 0.0
      %603 = vmatmul.mubr.f32.gmra.mrb[0].mxu0 %v485
      %v604 = vpop.f32.mrb[0].mxu0
      %v605 = vadd.f32 0.0, %v604
      %v606 = vpop.f32.mrb[0].mxu0
      %607 = vmatprep.mubr.f32.mxu0 0.0
      %608 = vmatmul.mubr.f32.gmra.mrb[0].mxu0 %v486
      %v609 = vpop.f32.mrb[0].mxu0
      %v610 = vadd.f32 0.0, %v609
      %v611 = vpop.f32.mrb[0].mxu0
      %612 = vmatprep.mubr.f32.mxu0 0.0
      %613 = vmatmul.mubr.f32.gmra.mrb[0].mxu0 %v487
      %v614 = vpop.f32.mrb[0].mxu0
      %v615 = vadd.f32 0.0, %v614
      %v616 = vpop.f32.mrb[0].mxu0
      %617 = vmatprep.mubr.f32.mxu0 0.0
      %618 = vmatmul.mubr.f32.gmra.mrb[0].mxu0 %v488
      %v619 = vpop.f32.mrb[0].mxu0
      %v620 = vadd.f32 0.0, %v619
      %v621 = vpop.f32.mrb[0].mxu0
      %622 = vmatprep.mubr.f32.mxu0 0.0
      %623 = vmatmul.mubr.f32.gmra.mrb[0].mxu0 %v489
      %v624 = vpop.f32.mrb[0].mxu0
      %v625 = vadd.f32 0.0, %v624
      %v626 = vpop.f32.mrb[0].mxu0
      %627 = vmatprep.mubr.f32.mxu0 0.0
      %628 = vmatmul.mubr.f32.gmra.mrb[0].mxu0 %v490
      %v629 = vpop.f32.mrb[0].mxu0
      %v630 = vadd.f32 0.0, %v629
      %v631 = vpop.f32.mrb[0].mxu0
      %632 = vmatprep.mubr.f32.mxu0 0.0
      %633 = vmatmul.mubr.f32.gmra.mrb[0].mxu0 %v491
      %v634 = vpop.f32.mrb[0].mxu0
      %v635 = vadd.f32 0.0, %v634
      %v636 = vpop.f32.mrb[0].mxu0
      %637 = vmatprep.mubr.f32.mxu0 0.0
      %638 = vmatmul.mubr.f32.gmra.mrb[0].mxu0 %v492
      %v639 = vpop.f32.mrb[0].mxu0
      %v640 = vadd.f32 0.0, %v639
      %v641 = vpop.f32.mrb[0].mxu0
      %642 = vmatprep.mubr.f32.mxu0 0.0
      %643 = vmatmul.mubr.f32.gmra.mrb[0].mxu0 %v493
      %v644 = vpop.f32.mrb[0].mxu0
      %v645 = vadd.f32 0.0, %v644
      %v646 = vpop.f32.mrb[0].mxu0
      %647 = vmatprep.mubr.f32.mxu0 0.0
      %648 = vmatmul.mubr.f32.gmra.mrb[0].mxu0 %v494
      %v649 = vpop.f32.mrb[0].mxu0
      %v650 = vadd.f32 0.0, %v649
      %v651 = vpop.f32.mrb[0].mxu0
      %652 = vmatprep.mubr.f32.mxu0 0.0
      %653 = vmatmul.mubr.f32.gmra.mrb[0].mxu0 %v495
      %v654 = vpop.f32.mrb[0].mxu0
      %v655 = vadd.f32 0.0, %v654
      %v656 = vpop.f32.mrb[0].mxu0
      %657 = vmatprep.mubr.f32.mxu0 0.0
      %658 = vmatmul.mubr.f32.gmra.mrb[0].mxu0 %v496
      %v659 = vpop.f32.mrb[0].mxu0
      %v660 = vadd.f32 0.0, %v659
      %v661 = vpop.f32.mrb[0].mxu0
      %662 = vmatprep.mubr.f32.mxu0 0.0
      %663 = vmatmul.mubr.f32.gmra.mrb[0].mxu0 %v497
      %v664 = vpop.f32.mrb[0].mxu0
      %v665 = vadd.f32 0.0, %v664
      %v666 = vpop.f32.mrb[0].mxu0
      %667 = vmatprep.mubr.f32.mxu0 0.0
      %668 = vmatmul.mubr.f32.gmra.mrb[0].mxu0 %v498
      %v669 = vpop.f32.mrb[0].mxu0
      %v670 = vadd.f32 0.0, %v669
      %v671 = vpop.f32.mrb[0].mxu0
      %672 = vmatprep.mubr.f32.mxu0 0.0
      %673 = vmatmul.mubr.f32.gmra.mrb[0].mxu0 %v499
      %v674 = vpop.f32.mrb[0].mxu0
      %v675 = vadd.f32 0.0, %v674
      %v676 = vpop.f32.mrb[0].mxu0
      %677 = vmatprep.mubr.f32.mxu0 0.0
      %678 = vmatmul.mubr.f32.gmra.mrb[0].mxu0 %v500
      %v679 = vpop.f32.mrb[0].mxu0
      %v680 = vadd.f32 0.0, %v679
      %v681 = vpop.f32.mrb[0].mxu0
      %682 = vmatprep.mubr.f32.mxu0 0.0
      %683 = vmatmul.mubr.f32.gmra.mrb[0].mxu0 %v501
      %v684 = vpop.f32.mrb[0].mxu0
      %v685 = vadd.f32 0.0, %v684
      %v686 = vpop.f32.mrb[0].mxu0
      %687 = vmatprep.mubr.f32.mxu0 0.0
      %688 = vmatmul.mubr.f32.gmra.mrb[0].mxu0 %v502
      %v689 = vpop.f32.mrb[0].mxu0
      %v690 = vadd.f32 0.0, %v689
      %v691 = vpop.f32.mrb[0].mxu0
      %692 = vmatprep.mubr.f32.mxu0 0.0
      %693 = vmatmul.mubr.f32.gmra.mrb[0].mxu0 %v503
      %v694 = vpop.f32.mrb[0].mxu0
      %v695 = vadd.f32 0.0, %v694
      %v696 = vpop.f32.mrb[0].mxu0
      %697 = vmatprep.mubr.f32.mxu0 0.0
      %698 = vmatmul.mubr.f32.gmra.mrb[0].mxu0 %v504
      %v699 = vpop.f32.mrb[0].mxu0
      %v700 = vadd.f32 0.0, %v699
      %v701 = vpop.f32.mrb[0].mxu0
      %702 = vmatprep.mubr.f32.mxu0 0.0
      %703 = vmatmul.mubr.f32.gmra.mrb[0].mxu0 %v505
      %v704 = vpop.f32.mrb[0].mxu0
      %v705 = vadd.f32 0.0, %v704
      %v706 = vpop.f32.mrb[0].mxu0
      %707 = vmatprep.mubr.f32.mxu0 0.0
      %708 = vmatmul.mubr.f32.gmra.mrb[0].mxu0 %v506
      %v709 = vpop.f32.mrb[0].mxu0
      %v710 = vadd.f32 0.0, %v709
      %v711 = vpop.f32.mrb[0].mxu0
      %712 = vmatprep.mubr.f32.mxu0 0.0
      %713 = vmatmul.mubr.f32.gmra.mrb[0].mxu0 %v507
      %v714 = vpop.f32.mrb[0].mxu0
      %v715 = vadd.f32 0.0, %v714
      %v716 = vpop.f32.mrb[0].mxu0
      %717 = vmatprep.mubr.f32.mxu0 0.0
      %718 = vmatmul.mubr.f32.gmra.mrb[0].mxu0 %v508
      %v719 = vpop.f32.mrb[0].mxu0
      %v720 = vadd.f32 0.0, %v719
      %v721 = vpop.f32.mrb[0].mxu0
      %722 = vmatprep.mubr.f32.mxu0 0.0
      %723 = vmatmul.mubr.f32.gmra.mrb[0].mxu0 %v509
      %v724 = vpop.f32.mrb[0].mxu0
      %v725 = vadd.f32 0.0, %v724
      %v726 = vpop.f32.mrb[0].mxu0
      %727 = vmatprep.mubr.f32.mxu0 0.0
      %728 = vmatmul.mubr.f32.gmra.mrb[0].mxu0 %v510
      %v729 = vpop.f32.mrb[0].mxu0
      %v730 = vadd.f32 0.0, %v729
      %v731 = vpop.f32.mrb[0].mxu0
      %732 = vmatprep.mubr.f32.mxu0 0.0
      %733 = vmatmul.mubr.f32.gmra.mrb[0].mxu0 %v511
      %v734 = vpop.f32.mrb[0].mxu0
      %v735 = vadd.f32 0.0, %v734
      %v736 = vpop.f32.mrb[0].mxu0
      %737 = vmatprep.mubr.f32.mxu0 0.0
      %738 = vmatmul.mubr.f32.gmra.mrb[0].mxu0 %v512
      %v739 = vpop.f32.mrb[0].mxu0
      %v740 = vadd.f32 0.0, %v739
      %v741 = vpop.f32.mrb[0].mxu0
      %742 = vmatprep.mubr.f32.mxu0 0.0
      %743 = vmatmul.mubr.f32.gmra.mrb[0].mxu0 %v513
      %v744 = vpop.f32.mrb[0].mxu0
      %v745 = vadd.f32 0.0, %v744
      %v746 = vpop.f32.mrb[0].mxu0
      %747 = vmatprep.mubr.f32.mxu0 0.0
      %748 = vmatmul.mubr.f32.gmra.mrb[0].mxu0 %v514
      %v749 = vpop.f32.mrb[0].mxu0
      %v750 = vadd.f32 0.0, %v749
      %v751 = vpop.f32.mrb[0].mxu0
      %752 = vmatprep.mubr.f32.mxu0 0.0
      %753 = vmatmul.mubr.f32.gmra.mrb[0].mxu0 %v515
      %v754 = vpop.f32.mrb[0].mxu0
      %v755 = vadd.f32 0.0, %v754
      %v756 = vpop.f32.mrb[0].mxu0
      %757 = vdwg.mxu0
      %758 = vmatprep.subr.mxu0 0.0
      %759 = vmatpush1.msra.mxu0 %v468
      %760 = vmatprep.subr.mxu0 0.0
      %761 = vmatpush1.msra.mxu0 %v469
      %762 = vmatprep.subr.mxu0 0.0
      %763 = vmatpush1.msra.mxu0 %v470
      %764 = vmatprep.subr.mxu0 0.0
      %765 = vmatpush1.msra.mxu0 %v471
      %766 = vmatprep.subr.mxu0 0.0
      %767 = vmatpush1.msra.mxu0 %v472
      %768 = vmatprep.subr.mxu0 0.0
      %769 = vmatpush1.msra.mxu0 %v473
      %770 = vmatprep.subr.mxu0 0.0
      %771 = vmatpush1.msra.mxu0 %v474
      %772 = vmatprep.subr.mxu0 0.0
      %773 = vmatpush1.msra.mxu0 %v475
      %774 = vmatprep.subr.mxu0 0.0
      %775 = vmatpush1.msra.mxu0 %v476
      %776 = vmatprep.subr.mxu0 0.0
      %777 = vmatpush1.msra.mxu0 %v477
      %778 = vmatprep.subr.mxu0 0.0
      %779 = vmatpush1.msra.mxu0 %v478
      %780 = vmatprep.subr.mxu0 0.0
      %781 = vmatpush1.msra.mxu0 %v479
      %782 = vmatprep.subr.mxu0 0.0
      %783 = vmatpush1.msra.mxu0 %v480
      %784 = vmatprep.subr.mxu0 0.0
      %785 = vmatpush1.msra.mxu0 %v481
      %786 = vmatprep.subr.mxu0 0.0
      %787 = vmatpush1.msra.mxu0 %v482
      %788 = vmatprep.subr.mxu0 0.0
      %789 = vmatpush1.msra.mxu0 %v483
      %790 = vmatprep.subr.mxu0 0.0
      %791 = vmatpush1.msra.mxu0 0.0
      %792 = vmatprep.subr.mxu0 0.0
      %793 = vmatpush1.msra.mxu0 0.0
      %794 = vmatprep.subr.mxu0 0.0
      %795 = vmatpush1.msra.mxu0 0.0
      %796 = vmatprep.subr.mxu0 0.0
      %797 = vmatpush1.msra.mxu0 0.0
      %798 = vmatprep.subr.mxu0 0.0
      %799 = vmatpush1.msra.mxu0 0.0
      %800 = vmatprep.subr.mxu0 0.0
      %801 = vmatpush1.msra.mxu0 0.0
      %802 = vmatprep.subr.mxu0 0.0
      %803 = vmatpush1.msra.mxu0 0.0
      %804 = vmatprep.subr.mxu0 0.0
      %805 = vmatpush1.msra.mxu0 0.0
      %806 = vmatprep.subr.mxu0 0.0
      %807 = vmatpush1.msra.mxu0 0.0
      %808 = vmatprep.subr.mxu0 0.0
      %809 = vmatpush1.msra.mxu0 0.0
      %810 = vmatprep.subr.mxu0 0.0
      %811 = vmatpush1.msra.mxu0 0.0
      %812 = vmatprep.subr.mxu0 0.0
      %813 = vmatpush1.msra.mxu0 0.0
      %814 = vmatprep.subr.mxu0 0.0
      %815 = vmatpush1.msra.mxu0 0.0
      %816 = vmatprep.subr.mxu0 0.0
      %817 = vmatpush1.msra.mxu0 0.0
      %818 = vmatprep.subr.mxu0 0.0
      %819 = vmatpush1.msra.mxu0 0.0
      %820 = vmatprep.subr.mxu0 0.0
      %821 = vmatpush1.msra.mxu0 0.0
      %822 = vmatprep.mubr.f32.mxu0 0.0
      %823 = vmatmul.mubr.f32.gmra.mrb[0].mxu0 %v436
      %v824 = vpop.f32.mrb[0].mxu0
      %v825 = vadd.f32 %v600, %v824
      %v826 = vpop.f32.mrb[0].mxu0
      %827 = vmatprep.mubr.f32.mxu0 0.0
      %828 = vmatmul.mubr.f32.gmra.mrb[0].mxu0 %v437
      %v829 = vpop.f32.mrb[0].mxu0
      %v830 = vadd.f32 %v605, %v829
      %v831 = vpop.f32.mrb[0].mxu0
      %832 = vmatprep.mubr.f32.mxu0 0.0
      %833 = vmatmul.mubr.f32.gmra.mrb[0].mxu0 %v438
      %v834 = vpop.f32.mrb[0].mxu0
      %v835 = vadd.f32 %v610, %v834
      %v836 = vpop.f32.mrb[0].mxu0
      %837 = vmatprep.mubr.f32.mxu0 0.0
      %838 = vmatmul.mubr.f32.gmra.mrb[0].mxu0 %v439
      %v839 = vpop.f32.mrb[0].mxu0
      %v840 = vadd.f32 %v615, %v839
      %v841 = vpop.f32.mrb[0].mxu0
      %842 = vmatprep.mubr.f32.mxu0 0.0
      %843 = vmatmul.mubr.f32.gmra.mrb[0].mxu0 %v440
      %v844 = vpop.f32.mrb[0].mxu0
      %v845 = vadd.f32 %v620, %v844
      %v846 = vpop.f32.mrb[0].mxu0
      %847 = vmatprep.mubr.f32.mxu0 0.0
      %848 = vmatmul.mubr.f32.gmra.mrb[0].mxu0 %v441
      %v849 = vpop.f32.mrb[0].mxu0
      %v850 = vadd.f32 %v625, %v849
      %v851 = vpop.f32.mrb[0].mxu0
      %852 = vmatprep.mubr.f32.mxu0 0.0
      %853 = vmatmul.mubr.f32.gmra.mrb[0].mxu0 %v442
      %v854 = vpop.f32.mrb[0].mxu0
      %v855 = vadd.f32 %v630, %v854
      %v856 = vpop.f32.mrb[0].mxu0
      %857 = vmatprep.mubr.f32.mxu0 0.0
      %858 = vmatmul.mubr.f32.gmra.mrb[0].mxu0 %v443
      %v859 = vpop.f32.mrb[0].mxu0
      %v860 = vadd.f32 %v635, %v859
      %v861 = vpop.f32.mrb[0].mxu0
      %862 = vmatprep.mubr.f32.mxu0 0.0
      %863 = vmatmul.mubr.f32.gmra.mrb[0].mxu0 %v444
      %v864 = vpop.f32.mrb[0].mxu0
      %v865 = vadd.f32 %v640, %v864
      %v866 = vpop.f32.mrb[0].mxu0
      %867 = vmatprep.mubr.f32.mxu0 0.0
      %868 = vmatmul.mubr.f32.gmra.mrb[0].mxu0 %v445
      %v869 = vpop.f32.mrb[0].mxu0
      %v870 = vadd.f32 %v645, %v869
      %v871 = vpop.f32.mrb[0].mxu0
      %872 = vmatprep.mubr.f32.mxu0 0.0
      %873 = vmatmul.mubr.f32.gmra.mrb[0].mxu0 %v446
      %v874 = vpop.f32.mrb[0].mxu0
      %v875 = vadd.f32 %v650, %v874
      %v876 = vpop.f32.mrb[0].mxu0
      %877 = vmatprep.mubr.f32.mxu0 0.0
      %878 = vmatmul.mubr.f32.gmra.mrb[0].mxu0 %v447
      %v879 = vpop.f32.mrb[0].mxu0
      %v880 = vadd.f32 %v655, %v879
      %v881 = vpop.f32.mrb[0].mxu0
      %882 = vmatprep.mubr.f32.mxu0 0.0
      %883 = vmatmul.mubr.f32.gmra.mrb[0].mxu0 %v448
      %v884 = vpop.f32.mrb[0].mxu0
      %v885 = vadd.f32 %v660, %v884
      %v886 = vpop.f32.mrb[0].mxu0
      %887 = vmatprep.mubr.f32.mxu0 0.0
      %888 = vmatmul.mubr.f32.gmra.mrb[0].mxu0 %v449
      %v889 = vpop.f32.mrb[0].mxu0
      %v890 = vadd.f32 %v665, %v889
      %v891 = vpop.f32.mrb[0].mxu0
      %892 = vmatprep.mubr.f32.mxu0 0.0
      %893 = vmatmul.mubr.f32.gmra.mrb[0].mxu0 %v450
      %v894 = vpop.f32.mrb[0].mxu0
      %v895 = vadd.f32 %v670, %v894
      %v896 = vpop.f32.mrb[0].mxu0
      %897 = vmatprep.mubr.f32.mxu0 0.0
      %898 = vmatmul.mubr.f32.gmra.mrb[0].mxu0 %v451
      %v899 = vpop.f32.mrb[0].mxu0
      %v900 = vadd.f32 %v675, %v899
      %v901 = vpop.f32.mrb[0].mxu0
      %902 = vmatprep.mubr.f32.mxu0 0.0
      %903 = vmatmul.mubr.f32.gmra.mrb[0].mxu0 %v452
      %v904 = vpop.f32.mrb[0].mxu0
      %v905 = vadd.f32 %v680, %v904
      %v906 = vpop.f32.mrb[0].mxu0
      %907 = vmatprep.mubr.f32.mxu0 0.0
      %908 = vmatmul.mubr.f32.gmra.mrb[0].mxu0 %v453
      %v909 = vpop.f32.mrb[0].mxu0
      %v910 = vadd.f32 %v685, %v909
      %v911 = vpop.f32.mrb[0].mxu0
      %912 = vmatprep.mubr.f32.mxu0 0.0
      %913 = vmatmul.mubr.f32.gmra.mrb[0].mxu0 %v454
      %v914 = vpop.f32.mrb[0].mxu0
      %v915 = vadd.f32 %v690, %v914
      %v916 = vpop.f32.mrb[0].mxu0
      %917 = vmatprep.mubr.f32.mxu0 0.0
      %918 = vmatmul.mubr.f32.gmra.mrb[0].mxu0 %v455
      %v919 = vpop.f32.mrb[0].mxu0
      %v920 = vadd.f32 %v695, %v919
      %v921 = vpop.f32.mrb[0].mxu0
      %922 = vmatprep.mubr.f32.mxu0 0.0
      %923 = vmatmul.mubr.f32.gmra.mrb[0].mxu0 %v456
      %v924 = vpop.f32.mrb[0].mxu0
      %v925 = vadd.f32 %v700, %v924
      %v926 = vpop.f32.mrb[0].mxu0
      %927 = vmatprep.mubr.f32.mxu0 0.0
      %928 = vmatmul.mubr.f32.gmra.mrb[0].mxu0 %v457
      %v929 = vpop.f32.mrb[0].mxu0
      %v930 = vadd.f32 %v705, %v929
      %v931 = vpop.f32.mrb[0].mxu0
      %932 = vmatprep.mubr.f32.mxu0 0.0
      %933 = vmatmul.mubr.f32.gmra.mrb[0].mxu0 %v458
      %v934 = vpop.f32.mrb[0].mxu0
      %v935 = vadd.f32 %v710, %v934
      %v936 = vpop.f32.mrb[0].mxu0
      %937 = vmatprep.mubr.f32.mxu0 0.0
      %938 = vmatmul.mubr.f32.gmra.mrb[0].mxu0 %v459
      %v939 = vpop.f32.mrb[0].mxu0
      %v940 = vadd.f32 %v715, %v939
      %v941 = vpop.f32.mrb[0].mxu0
      %942 = vmatprep.mubr.f32.mxu0 0.0
      %943 = vmatmul.mubr.f32.gmra.mrb[0].mxu0 %v460
      %v944 = vpop.f32.mrb[0].mxu0
      %v945 = vadd.f32 %v720, %v944
      %v946 = vpop.f32.mrb[0].mxu0
      %947 = vmatprep.mubr.f32.mxu0 0.0
      %948 = vmatmul.mubr.f32.gmra.mrb[0].mxu0 %v461
      %v949 = vpop.f32.mrb[0].mxu0
      %v950 = vadd.f32 %v725, %v949
      %v951 = vpop.f32.mrb[0].mxu0
      %952 = vmatprep.mubr.f32.mxu0 0.0
      %953 = vmatmul.mubr.f32.gmra.mrb[0].mxu0 %v462
      %v954 = vpop.f32.mrb[0].mxu0
      %v955 = vadd.f32 %v730, %v954
      %v956 = vpop.f32.mrb[0].mxu0
      %957 = vmatprep.mubr.f32.mxu0 0.0
      %958 = vmatmul.mubr.f32.gmra.mrb[0].mxu0 %v463
      %v959 = vpop.f32.mrb[0].mxu0
      %v960 = vadd.f32 %v735, %v959
      %v961 = vpop.f32.mrb[0].mxu0
      %962 = vmatprep.mubr.f32.mxu0 0.0
      %963 = vmatmul.mubr.f32.gmra.mrb[0].mxu0 %v464
      %v964 = vpop.f32.mrb[0].mxu0
      %v965 = vadd.f32 %v740, %v964
      %v966 = vpop.f32.mrb[0].mxu0
      %967 = vmatprep.mubr.f32.mxu0 0.0
      %968 = vmatmul.mubr.f32.gmra.mrb[0].mxu0 %v465
      %v969 = vpop.f32.mrb[0].mxu0
      %v970 = vadd.f32 %v745, %v969
      %v971 = vpop.f32.mrb[0].mxu0
      %972 = vmatprep.mubr.f32.mxu0 0.0
      %973 = vmatmul.mubr.f32.gmra.mrb[0].mxu0 %v466
      %v974 = vpop.f32.mrb[0].mxu0
      %v975 = vadd.f32 %v750, %v974
      %v976 = vpop.f32.mrb[0].mxu0
      %977 = vmatprep.mubr.f32.mxu0 0.0
      %978 = vmatmul.mubr.f32.gmra.mrb[0].mxu0 %v467
      %v979 = vpop.f32.mrb[0].mxu0
      %v980 = vadd.f32 %v755, %v979
      %v981 = vpop.f32.mrb[0].mxu0
      %982 = vdwg.mxu0
      %v983 = vld [vmem:[%s425 + $0x2] sm:$0xff]
      %v984 = vld [vmem:[%s425 + $0xa] sm:$0xff]
      %v985 = vld [vmem:[%s425 + $0x1a] sm:$0xff]
      %v986 = vld [vmem:[%s425 + $0x22] sm:$0xff]
      %v987 = vld [vmem:[%s425 + $0x32] sm:$0xff]
      %v988 = vld [vmem:[%s425 + $0x3a] sm:$0xff]
      %v989 = vld [vmem:[%s425 + $0x4a] sm:$0xff]
      %v990 = vld [vmem:[%s425 + $0x52] sm:$0xff]
      %v991 = vld [vmem:[%s425 + $0x62] sm:$0xff]
      %v992 = vld [vmem:[%s425 + $0x6a] sm:$0xff]
      %v993 = vld [vmem:[%s425 + $0x7a] sm:$0xff]
      %v994 = vld [vmem:[%s425 + $0x82] sm:$0xff]
      %v995 = vld [vmem:[%s425 + $0x92] sm:$0xff]
      %v996 = vld [vmem:[%s425 + $0x9a] sm:$0xff]
      %v997 = vld [vmem:[%s425 + $0xaa] sm:$0xff]
      %v998 = vld [vmem:[%s425 + $0xb2] sm:$0xff]
      %v999 = vld [vmem:[%s425 + $0xc2] sm:$0xff]
      %v1000 = vld [vmem:[%s425 + $0xca] sm:$0xff]
      %v1001 = vld [vmem:[%s425 + $0xda] sm:$0xff]
      %v1002 = vld [vmem:[%s425 + $0xe2] sm:$0xff]
      %v1003 = vld [vmem:[%s425 + $0xf2] sm:$0xff]
      %v1004 = vld [vmem:[%s425 + $0xfa] sm:$0xff]
      %v1005 = vld [vmem:[%s425 + $0x10a] sm:$0xff]
      %v1006 = vld [vmem:[%s425 + $0x112] sm:$0xff]
      %v1007 = vld [vmem:[%s425 + $0x122] sm:$0xff]
      %v1008 = vld [vmem:[%s425 + $0x12a] sm:$0xff]
      %v1009 = vld [vmem:[%s425 + $0x13a] sm:$0xff]
      %v1010 = vld [vmem:[%s425 + $0x142] sm:$0xff]
      %v1011 = vld [vmem:[%s425 + $0x152] sm:$0xff]
      %v1012 = vld [vmem:[%s425 + $0x15a] sm:$0xff]
      %v1013 = vld [vmem:[%s425 + $0x16a] sm:$0xff]
      %v1014 = vld [vmem:[%s425 + $0x172] sm:$0xff]
      %s1015 = scalar_lea.vmem %s2, 256
      %v1016 = vld [vmem:[%s1015] sm:$0xff]
      %v1017 = vld [vmem:[%s1015 + $0x8] sm:$0xff]
      %v1018 = vld [vmem:[%s1015 + $0x10] sm:$0xff]
      %v1019 = vld [vmem:[%s1015 + $0x18] sm:$0xff]
      %v1020 = vld [vmem:[%s1015 + $0x20] sm:$0xff]
      %v1021 = vld [vmem:[%s1015 + $0x28] sm:$0xff]
      %v1022 = vld [vmem:[%s1015 + $0x30] sm:$0xff]
      %v1023 = vld [vmem:[%s1015 + $0x38] sm:$0xff]
      %v1024 = vld [vmem:[%s1015 + $0x40] sm:$0xff]
      %v1025 = vld [vmem:[%s1015 + $0x48] sm:$0xff]
      %v1026 = vld [vmem:[%s1015 + $0x50] sm:$0xff]
      %v1027 = vld [vmem:[%s1015 + $0x58] sm:$0xff]
      %v1028 = vld [vmem:[%s1015 + $0x60] sm:$0xff]
      %v1029 = vld [vmem:[%s1015 + $0x68] sm:$0xff]
      %v1030 = vld [vmem:[%s1015 + $0x70] sm:$0xff]
      %v1031 = vld [vmem:[%s1015 + $0x78] sm:$0xff]
      %1032 = vmatprep.subr.mxu0 0.0
      %1033 = vmatpush1.msra.mxu0 %v1016
      %1034 = vmatprep.subr.mxu0 0.0
      %1035 = vmatpush1.msra.mxu0 %v1017
      %1036 = vmatprep.subr.mxu0 0.0
      %1037 = vmatpush1.msra.mxu0 %v1018
      %1038 = vmatprep.subr.mxu0 0.0
      %1039 = vmatpush1.msra.mxu0 %v1019
      %1040 = vmatprep.subr.mxu0 0.0
      %1041 = vmatpush1.msra.mxu0 %v1020
      %1042 = vmatprep.subr.mxu0 0.0
      %1043 = vmatpush1.msra.mxu0 %v1021
      %1044 = vmatprep.subr.mxu0 0.0
      %1045 = vmatpush1.msra.mxu0 %v1022
      %1046 = vmatprep.subr.mxu0 0.0
      %1047 = vmatpush1.msra.mxu0 %v1023
      %1048 = vmatprep.subr.mxu0 0.0
      %1049 = vmatpush1.msra.mxu0 %v1024
      %1050 = vmatprep.subr.mxu0 0.0
      %1051 = vmatpush1.msra.mxu0 %v1025
      %1052 = vmatprep.subr.mxu0 0.0
      %1053 = vmatpush1.msra.mxu0 %v1026
      %1054 = vmatprep.subr.mxu0 0.0
      %1055 = vmatpush1.msra.mxu0 %v1027
      %1056 = vmatprep.subr.mxu0 0.0
      %1057 = vmatpush1.msra.mxu0 %v1028
      %1058 = vmatprep.subr.mxu0 0.0
      %1059 = vmatpush1.msra.mxu0 %v1029
      %1060 = vmatprep.subr.mxu0 0.0
      %1061 = vmatpush1.msra.mxu0 %v1030
      %1062 = vmatprep.subr.mxu0 0.0
      %1063 = vmatpush1.msra.mxu0 %v1031
      %1064 = vmatprep.subr.mxu0 0.0
      %1065 = vmatpush1.msra.mxu0 0.0
      %1066 = vmatprep.subr.mxu0 0.0
      %1067 = vmatpush1.msra.mxu0 0.0
      %1068 = vmatprep.subr.mxu0 0.0
      %1069 = vmatpush1.msra.mxu0 0.0
      %1070 = vmatprep.subr.mxu0 0.0
      %1071 = vmatpush1.msra.mxu0 0.0
      %1072 = vmatprep.subr.mxu0 0.0
      %1073 = vmatpush1.msra.mxu0 0.0
      %1074 = vmatprep.subr.mxu0 0.0
      %1075 = vmatpush1.msra.mxu0 0.0
      %1076 = vmatprep.subr.mxu0 0.0
      %1077 = vmatpush1.msra.mxu0 0.0
      %1078 = vmatprep.subr.mxu0 0.0
      %1079 = vmatpush1.msra.mxu0 0.0
      %1080 = vmatprep.subr.mxu0 0.0
      %1081 = vmatpush1.msra.mxu0 0.0
      %1082 = vmatprep.subr.mxu0 0.0
      %1083 = vmatpush1.msra.mxu0 0.0
      %1084 = vmatprep.subr.mxu0 0.0
      %1085 = vmatpush1.msra.mxu0 0.0
      %1086 = vmatprep.subr.mxu0 0.0
      %1087 = vmatpush1.msra.mxu0 0.0
      %1088 = vmatprep.subr.mxu0 0.0
      %1089 = vmatpush1.msra.mxu0 0.0
      %1090 = vmatprep.subr.mxu0 0.0
      %1091 = vmatpush1.msra.mxu0 0.0
      %1092 = vmatprep.subr.mxu0 0.0
      %1093 = vmatpush1.msra.mxu0 0.0
      %1094 = vmatprep.subr.mxu0 0.0
      %1095 = vmatpush1.msra.mxu0 0.0
      %1096 = vmatprep.mubr.f32.mxu0 0.0
      %1097 = vmatmul.mubr.f32.gmra.mrb[0].mxu0 %v983
      %v1098 = vpop.f32.mrb[0].mxu0
      %v1099 = vadd.f32 0.0, %v1098
      %v1100 = vpop.f32.mrb[0].mxu0
      %1101 = vmatprep.mubr.f32.mxu0 0.0
      %1102 = vmatmul.mubr.f32.gmra.mrb[0].mxu0 %v984
      %v1103 = vpop.f32.mrb[0].mxu0
      %v1104 = vadd.f32 0.0, %v1103
      %v1105 = vpop.f32.mrb[0].mxu0
      %1106 = vmatprep.mubr.f32.mxu0 0.0
      %1107 = vmatmul.mubr.f32.gmra.mrb[0].mxu0 %v985
      %v1108 = vpop.f32.mrb[0].mxu0
      %v1109 = vadd.f32 0.0, %v1108
      %v1110 = vpop.f32.mrb[0].mxu0
      %1111 = vmatprep.mubr.f32.mxu0 0.0
      %1112 = vmatmul.mubr.f32.gmra.mrb[0].mxu0 %v986
      %v1113 = vpop.f32.mrb[0].mxu0
      %v1114 = vadd.f32 0.0, %v1113
      %v1115 = vpop.f32.mrb[0].mxu0
      %1116 = vmatprep.mubr.f32.mxu0 0.0
      %1117 = vmatmul.mubr.f32.gmra.mrb[0].mxu0 %v987
      %v1118 = vpop.f32.mrb[0].mxu0
      %v1119 = vadd.f32 0.0, %v1118
      %v1120 = vpop.f32.mrb[0].mxu0
      %1121 = vmatprep.mubr.f32.mxu0 0.0
      %1122 = vmatmul.mubr.f32.gmra.mrb[0].mxu0 %v988
      %v1123 = vpop.f32.mrb[0].mxu0
      %v1124 = vadd.f32 0.0, %v1123
      %v1125 = vpop.f32.mrb[0].mxu0
      %1126 = vmatprep.mubr.f32.mxu0 0.0
      %1127 = vmatmul.mubr.f32.gmra.mrb[0].mxu0 %v989
      %v1128 = vpop.f32.mrb[0].mxu0
      %v1129 = vadd.f32 0.0, %v1128
      %v1130 = vpop.f32.mrb[0].mxu0
      %1131 = vmatprep.mubr.f32.mxu0 0.0
      %1132 = vmatmul.mubr.f32.gmra.mrb[0].mxu0 %v990
      %v1133 = vpop.f32.mrb[0].mxu0
      %v1134 = vadd.f32 0.0, %v1133
      %v1135 = vpop.f32.mrb[0].mxu0
      %1136 = vmatprep.mubr.f32.mxu0 0.0
      %1137 = vmatmul.mubr.f32.gmra.mrb[0].mxu0 %v991
      %v1138 = vpop.f32.mrb[0].mxu0
      %v1139 = vadd.f32 0.0, %v1138
      %v1140 = vpop.f32.mrb[0].mxu0
      %1141 = vmatprep.mubr.f32.mxu0 0.0
      %1142 = vmatmul.mubr.f32.gmra.mrb[0].mxu0 %v992
      %v1143 = vpop.f32.mrb[0].mxu0
      %v1144 = vadd.f32 0.0, %v1143
      %v1145 = vpop.f32.mrb[0].mxu0
      %1146 = vmatprep.mubr.f32.mxu0 0.0
      %1147 = vmatmul.mubr.f32.gmra.mrb[0].mxu0 %v993
      %v1148 = vpop.f32.mrb[0].mxu0
      %v1149 = vadd.f32 0.0, %v1148
      %v1150 = vpop.f32.mrb[0].mxu0
      %1151 = vmatprep.mubr.f32.mxu0 0.0
      %1152 = vmatmul.mubr.f32.gmra.mrb[0].mxu0 %v994
      %v1153 = vpop.f32.mrb[0].mxu0
      %v1154 = vadd.f32 0.0, %v1153
      %v1155 = vpop.f32.mrb[0].mxu0
      %1156 = vmatprep.mubr.f32.mxu0 0.0
      %1157 = vmatmul.mubr.f32.gmra.mrb[0].mxu0 %v995
      %v1158 = vpop.f32.mrb[0].mxu0
      %v1159 = vadd.f32 0.0, %v1158
      %v1160 = vpop.f32.mrb[0].mxu0
      %1161 = vmatprep.mubr.f32.mxu0 0.0
      %1162 = vmatmul.mubr.f32.gmra.mrb[0].mxu0 %v996
      %v1163 = vpop.f32.mrb[0].mxu0
      %v1164 = vadd.f32 0.0, %v1163
      %v1165 = vpop.f32.mrb[0].mxu0
      %1166 = vmatprep.mubr.f32.mxu0 0.0
      %1167 = vmatmul.mubr.f32.gmra.mrb[0].mxu0 %v997
      %v1168 = vpop.f32.mrb[0].mxu0
      %v1169 = vadd.f32 0.0, %v1168
      %v1170 = vpop.f32.mrb[0].mxu0
      %1171 = vmatprep.mubr.f32.mxu0 0.0
      %1172 = vmatmul.mubr.f32.gmra.mrb[0].mxu0 %v998
      %v1173 = vpop.f32.mrb[0].mxu0
      %v1174 = vadd.f32 0.0, %v1173
      %v1175 = vpop.f32.mrb[0].mxu0
      %1176 = vmatprep.mubr.f32.mxu0 0.0
      %1177 = vmatmul.mubr.f32.gmra.mrb[0].mxu0 %v999
      %v1178 = vpop.f32.mrb[0].mxu0
      %v1179 = vadd.f32 0.0, %v1178
      %v1180 = vpop.f32.mrb[0].mxu0
      %1181 = vmatprep.mubr.f32.mxu0 0.0
      %1182 = vmatmul.mubr.f32.gmra.mrb[0].mxu0 %v1000
      %v1183 = vpop.f32.mrb[0].mxu0
      %v1184 = vadd.f32 0.0, %v1183
      %v1185 = vpop.f32.mrb[0].mxu0
      %1186 = vmatprep.mubr.f32.mxu0 0.0
      %1187 = vmatmul.mubr.f32.gmra.mrb[0].mxu0 %v1001
      %v1188 = vpop.f32.mrb[0].mxu0
      %v1189 = vadd.f32 0.0, %v1188
      %v1190 = vpop.f32.mrb[0].mxu0
      %1191 = vmatprep.mubr.f32.mxu0 0.0
      %1192 = vmatmul.mubr.f32.gmra.mrb[0].mxu0 %v1002
      %v1193 = vpop.f32.mrb[0].mxu0
      %v1194 = vadd.f32 0.0, %v1193
      %v1195 = vpop.f32.mrb[0].mxu0
      %1196 = vmatprep.mubr.f32.mxu0 0.0
      %1197 = vmatmul.mubr.f32.gmra.mrb[0].mxu0 %v1003
      %v1198 = vpop.f32.mrb[0].mxu0
      %v1199 = vadd.f32 0.0, %v1198
      %v1200 = vpop.f32.mrb[0].mxu0
      %1201 = vmatprep.mubr.f32.mxu0 0.0
      %1202 = vmatmul.mubr.f32.gmra.mrb[0].mxu0 %v1004
      %v1203 = vpop.f32.mrb[0].mxu0
      %v1204 = vadd.f32 0.0, %v1203
      %v1205 = vpop.f32.mrb[0].mxu0
      %1206 = vmatprep.mubr.f32.mxu0 0.0
      %1207 = vmatmul.mubr.f32.gmra.mrb[0].mxu0 %v1005
      %v1208 = vpop.f32.mrb[0].mxu0
      %v1209 = vadd.f32 0.0, %v1208
      %v1210 = vpop.f32.mrb[0].mxu0
      %1211 = vmatprep.mubr.f32.mxu0 0.0
      %1212 = vmatmul.mubr.f32.gmra.mrb[0].mxu0 %v1006
      %v1213 = vpop.f32.mrb[0].mxu0
      %v1214 = vadd.f32 0.0, %v1213
      %v1215 = vpop.f32.mrb[0].mxu0
      %1216 = vmatprep.mubr.f32.mxu0 0.0
      %1217 = vmatmul.mubr.f32.gmra.mrb[0].mxu0 %v1007
      %v1218 = vpop.f32.mrb[0].mxu0
      %v1219 = vadd.f32 0.0, %v1218
      %v1220 = vpop.f32.mrb[0].mxu0
      %1221 = vmatprep.mubr.f32.mxu0 0.0
      %1222 = vmatmul.mubr.f32.gmra.mrb[0].mxu0 %v1008
      %v1223 = vpop.f32.mrb[0].mxu0
      %v1224 = vadd.f32 0.0, %v1223
      %v1225 = vpop.f32.mrb[0].mxu0
      %1226 = vmatprep.mubr.f32.mxu0 0.0
      %1227 = vmatmul.mubr.f32.gmra.mrb[0].mxu0 %v1009
      %v1228 = vpop.f32.mrb[0].mxu0
      %v1229 = vadd.f32 0.0, %v1228
      %v1230 = vpop.f32.mrb[0].mxu0
      %1231 = vmatprep.mubr.f32.mxu0 0.0
      %1232 = vmatmul.mubr.f32.gmra.mrb[0].mxu0 %v1010
      %v1233 = vpop.f32.mrb[0].mxu0
      %v1234 = vadd.f32 0.0, %v1233
      %v1235 = vpop.f32.mrb[0].mxu0
      %1236 = vmatprep.mubr.f32.mxu0 0.0
      %1237 = vmatmul.mubr.f32.gmra.mrb[0].mxu0 %v1011
      %v1238 = vpop.f32.mrb[0].mxu0
      %v1239 = vadd.f32 0.0, %v1238
      %v1240 = vpop.f32.mrb[0].mxu0
      %1241 = vmatprep.mubr.f32.mxu0 0.0
      %1242 = vmatmul.mubr.f32.gmra.mrb[0].mxu0 %v1012
      %v1243 = vpop.f32.mrb[0].mxu0
      %v1244 = vadd.f32 0.0, %v1243
      %v1245 = vpop.f32.mrb[0].mxu0
      %1246 = vmatprep.mubr.f32.mxu0 0.0
      %1247 = vmatmul.mubr.f32.gmra.mrb[0].mxu0 %v1013
      %v1248 = vpop.f32.mrb[0].mxu0
      %v1249 = vadd.f32 0.0, %v1248
      %v1250 = vpop.f32.mrb[0].mxu0
      %1251 = vmatprep.mubr.f32.mxu0 0.0
      %1252 = vmatmul.mubr.f32.gmra.mrb[0].mxu0 %v1014
      %v1253 = vpop.f32.mrb[0].mxu0
      %v1254 = vadd.f32 0.0, %v1253
      %v1255 = vpop.f32.mrb[0].mxu0
      %1256 = vdwg.mxu0
      %v1257 = vadd.f32 %v825, %v1099
      %v1258 = vadd.f32 %v830, %v1104
      %v1259 = vadd.f32 %v835, %v1109
      %v1260 = vadd.f32 %v840, %v1114
      %v1261 = vadd.f32 %v845, %v1119
      %v1262 = vadd.f32 %v850, %v1124
      %v1263 = vadd.f32 %v855, %v1129
      %v1264 = vadd.f32 %v860, %v1134
      %v1265 = vadd.f32 %v865, %v1139
      %v1266 = vadd.f32 %v870, %v1144
      %v1267 = vadd.f32 %v875, %v1149
      %v1268 = vadd.f32 %v880, %v1154
      %v1269 = vadd.f32 %v885, %v1159
      %v1270 = vadd.f32 %v890, %v1164
      %v1271 = vadd.f32 %v895, %v1169
      %v1272 = vadd.f32 %v900, %v1174
      %v1273 = vadd.f32 %v905, %v1179
      %v1274 = vadd.f32 %v910, %v1184
      %v1275 = vadd.f32 %v915, %v1189
      %v1276 = vadd.f32 %v920, %v1194
      %v1277 = vadd.f32 %v925, %v1199
      %v1278 = vadd.f32 %v930, %v1204
      %v1279 = vadd.f32 %v935, %v1209
      %v1280 = vadd.f32 %v940, %v1214
      %v1281 = vadd.f32 %v945, %v1219
      %v1282 = vadd.f32 %v950, %v1224
      %v1283 = vadd.f32 %v955, %v1229
      %v1284 = vadd.f32 %v960, %v1234
      %v1285 = vadd.f32 %v965, %v1239
      %v1286 = vadd.f32 %v970, %v1244
      %v1287 = vadd.f32 %v975, %v1249
      %v1288 = vadd.f32 %v980, %v1254
      %s1289 = scalar_lea.vmem %s425, 24
      %v1290 = vld [vmem:[%s1289] sm:$0xff]
      %v1291 = vld [vmem:[%s1289 + $0x8] sm:$0xff]
      %v1292 = vld [vmem:[%s1289 + $0x18] sm:$0xff]
      %v1293 = vld [vmem:[%s1289 + $0x20] sm:$0xff]
      %v1294 = vld [vmem:[%s1289 + $0x30] sm:$0xff]
      %v1295 = vld [vmem:[%s1289 + $0x38] sm:$0xff]
      %v1296 = vld [vmem:[%s1289 + $0x48] sm:$0xff]
      %v1297 = vld [vmem:[%s1289 + $0x50] sm:$0xff]
      %v1298 = vld [vmem:[%s1289 + $0x60] sm:$0xff]
      %v1299 = vld [vmem:[%s1289 + $0x68] sm:$0xff]
      %v1300 = vld [vmem:[%s1289 + $0x78] sm:$0xff]
      %v1301 = vld [vmem:[%s1289 + $0x80] sm:$0xff]
      %v1302 = vld [vmem:[%s1289 + $0x90] sm:$0xff]
      %v1303 = vld [vmem:[%s1289 + $0x98] sm:$0xff]
      %v1304 = vld [vmem:[%s1289 + $0xa8] sm:$0xff]
      %v1305 = vld [vmem:[%s1289 + $0xb0] sm:$0xff]
      %v1306 = vld [vmem:[%s1289 + $0xc0] sm:$0xff]
      %v1307 = vld [vmem:[%s1289 + $0xc8] sm:$0xff]
      %v1308 = vld [vmem:[%s1289 + $0xd8] sm:$0xff]
      %v1309 = vld [vmem:[%s1289 + $0xe0] sm:$0xff]
      %v1310 = vld [vmem:[%s1289 + $0xf0] sm:$0xff]
      %v1311 = vld [vmem:[%s1289 + $0xf8] sm:$0xff]
      %v1312 = vld [vmem:[%s1289 + $0x108] sm:$0xff]
      %v1313 = vld [vmem:[%s1289 + $0x110] sm:$0xff]
      %v1314 = vld [vmem:[%s1289 + $0x120] sm:$0xff]
      %v1315 = vld [vmem:[%s1289 + $0x128] sm:$0xff]
      %v1316 = vld [vmem:[%s1289 + $0x138] sm:$0xff]
      %v1317 = vld [vmem:[%s1289 + $0x140] sm:$0xff]
      %v1318 = vld [vmem:[%s1289 + $0x150] sm:$0xff]
      %v1319 = vld [vmem:[%s1289 + $0x158] sm:$0xff]
      %v1320 = vld [vmem:[%s1289 + $0x168] sm:$0xff]
      %v1321 = vld [vmem:[%s1289 + $0x170] sm:$0xff]
      %s1322 = scalar_lea.vmem %s2, 384
      %v1323 = vld [vmem:[%s1322] sm:$0xff]
      %v1324 = vld [vmem:[%s1322 + $0x8] sm:$0xff]
      %v1325 = vld [vmem:[%s1322 + $0x10] sm:$0xff]
      %v1326 = vld [vmem:[%s1322 + $0x18] sm:$0xff]
      %v1327 = vld [vmem:[%s1322 + $0x20] sm:$0xff]
      %v1328 = vld [vmem:[%s1322 + $0x28] sm:$0xff]
      %v1329 = vld [vmem:[%s1322 + $0x30] sm:$0xff]
      %v1330 = vld [vmem:[%s1322 + $0x38] sm:$0xff]
      %v1331 = vld [vmem:[%s1322 + $0x40] sm:$0xff]
      %v1332 = vld [vmem:[%s1322 + $0x48] sm:$0xff]
      %v1333 = vld [vmem:[%s1322 + $0x50] sm:$0xff]
      %v1334 = vld [vmem:[%s1322 + $0x58] sm:$0xff]
      %v1335 = vld [vmem:[%s1322 + $0x60] sm:$0xff]
      %v1336 = vld [vmem:[%s1322 + $0x68] sm:$0xff]
      %v1337 = vld [vmem:[%s1322 + $0x70] sm:$0xff]
      %v1338 = vld [vmem:[%s1322 + $0x78] sm:$0xff]
      %1339 = vmatprep.subr.mxu0 0.0
      %1340 = vmatpush1.msra.mxu0 %v1323
      %1341 = vmatprep.subr.mxu0 0.0
      %1342 = vmatpush1.msra.mxu0 %v1324
      %1343 = vmatprep.subr.mxu0 0.0
      %1344 = vmatpush1.msra.mxu0 %v1325
      %1345 = vmatprep.subr.mxu0 0.0
      %1346 = vmatpush1.msra.mxu0 %v1326
      %1347 = vmatprep.subr.mxu0 0.0
      %1348 = vmatpush1.msra.mxu0 %v1327
      %1349 = vmatprep.subr.mxu0 0.0
      %1350 = vmatpush1.msra.mxu0 %v1328
      %1351 = vmatprep.subr.mxu0 0.0
      %1352 = vmatpush1.msra.mxu0 %v1329
      %1353 = vmatprep.subr.mxu0 0.0
      %1354 = vmatpush1.msra.mxu0 %v1330
      %1355 = vmatprep.subr.mxu0 0.0
      %1356 = vmatpush1.msra.mxu0 %v1331
      %1357 = vmatprep.subr.mxu0 0.0
      %1358 = vmatpush1.msra.mxu0 %v1332
      %1359 = vmatprep.subr.mxu0 0.0
      %1360 = vmatpush1.msra.mxu0 %v1333
      %1361 = vmatprep.subr.mxu0 0.0
      %1362 = vmatpush1.msra.mxu0 %v1334
      %1363 = vmatprep.subr.mxu0 0.0
      %1364 = vmatpush1.msra.mxu0 %v1335
      %1365 = vmatprep.subr.mxu0 0.0
      %1366 = vmatpush1.msra.mxu0 %v1336
      %1367 = vmatprep.subr.mxu0 0.0
      %1368 = vmatpush1.msra.mxu0 %v1337
      %1369 = vmatprep.subr.mxu0 0.0
      %1370 = vmatpush1.msra.mxu0 %v1338
      %1371 = vmatprep.subr.mxu0 0.0
      %1372 = vmatpush1.msra.mxu0 0.0
      %1373 = vmatprep.subr.mxu0 0.0
      %1374 = vmatpush1.msra.mxu0 0.0
      %1375 = vmatprep.subr.mxu0 0.0
      %1376 = vmatpush1.msra.mxu0 0.0
      %1377 = vmatprep.subr.mxu0 0.0
      %1378 = vmatpush1.msra.mxu0 0.0
      %1379 = vmatprep.subr.mxu0 0.0
      %1380 = vmatpush1.msra.mxu0 0.0
      %1381 = vmatprep.subr.mxu0 0.0
      %1382 = vmatpush1.msra.mxu0 0.0
      %1383 = vmatprep.subr.mxu0 0.0
      %1384 = vmatpush1.msra.mxu0 0.0
      %1385 = vmatprep.subr.mxu0 0.0
      %1386 = vmatpush1.msra.mxu0 0.0
      %1387 = vmatprep.subr.mxu0 0.0
      %1388 = vmatpush1.msra.mxu0 0.0
      %1389 = vmatprep.subr.mxu0 0.0
      %1390 = vmatpush1.msra.mxu0 0.0
      %1391 = vmatprep.subr.mxu0 0.0
      %1392 = vmatpush1.msra.mxu0 0.0
      %1393 = vmatprep.subr.mxu0 0.0
      %1394 = vmatpush1.msra.mxu0 0.0
      %1395 = vmatprep.subr.mxu0 0.0
      %1396 = vmatpush1.msra.mxu0 0.0
      %1397 = vmatprep.subr.mxu0 0.0
      %1398 = vmatpush1.msra.mxu0 0.0
      %1399 = vmatprep.subr.mxu0 0.0
      %1400 = vmatpush1.msra.mxu0 0.0
      %1401 = vmatprep.subr.mxu0 0.0
      %1402 = vmatpush1.msra.mxu0 0.0
      %1403 = vmatprep.mubr.f32.mxu0 0.0
      %1404 = vmatmul.mubr.f32.gmra.mrb[0].mxu0 %v1290
      %v1405 = vpop.f32.mrb[0].mxu0
      %v1406 = vadd.f32 0.0, %v1405
      %v1407 = vpop.f32.mrb[0].mxu0
      %1408 = vmatprep.mubr.f32.mxu0 0.0
      %1409 = vmatmul.mubr.f32.gmra.mrb[0].mxu0 %v1291
      %v1410 = vpop.f32.mrb[0].mxu0
      %v1411 = vadd.f32 0.0, %v1410
      %v1412 = vpop.f32.mrb[0].mxu0
      %1413 = vmatprep.mubr.f32.mxu0 0.0
      %1414 = vmatmul.mubr.f32.gmra.mrb[0].mxu0 %v1292
      %v1415 = vpop.f32.mrb[0].mxu0
      %v1416 = vadd.f32 0.0, %v1415
      %v1417 = vpop.f32.mrb[0].mxu0
      %1418 = vmatprep.mubr.f32.mxu0 0.0
      %1419 = vmatmul.mubr.f32.gmra.mrb[0].mxu0 %v1293
      %v1420 = vpop.f32.mrb[0].mxu0
      %v1421 = vadd.f32 0.0, %v1420
      %v1422 = vpop.f32.mrb[0].mxu0
      %1423 = vmatprep.mubr.f32.mxu0 0.0
      %1424 = vmatmul.mubr.f32.gmra.mrb[0].mxu0 %v1294
      %v1425 = vpop.f32.mrb[0].mxu0
      %v1426 = vadd.f32 0.0, %v1425
      %v1427 = vpop.f32.mrb[0].mxu0
      %1428 = vmatprep.mubr.f32.mxu0 0.0
      %1429 = vmatmul.mubr.f32.gmra.mrb[0].mxu0 %v1295
      %v1430 = vpop.f32.mrb[0].mxu0
      %v1431 = vadd.f32 0.0, %v1430
      %v1432 = vpop.f32.mrb[0].mxu0
      %1433 = vmatprep.mubr.f32.mxu0 0.0
      %1434 = vmatmul.mubr.f32.gmra.mrb[0].mxu0 %v1296
      %v1435 = vpop.f32.mrb[0].mxu0
      %v1436 = vadd.f32 0.0, %v1435
      %v1437 = vpop.f32.mrb[0].mxu0
      %1438 = vmatprep.mubr.f32.mxu0 0.0
      %1439 = vmatmul.mubr.f32.gmra.mrb[0].mxu0 %v1297
      %v1440 = vpop.f32.mrb[0].mxu0
      %v1441 = vadd.f32 0.0, %v1440
      %v1442 = vpop.f32.mrb[0].mxu0
      %1443 = vmatprep.mubr.f32.mxu0 0.0
      %1444 = vmatmul.mubr.f32.gmra.mrb[0].mxu0 %v1298
      %v1445 = vpop.f32.mrb[0].mxu0
      %v1446 = vadd.f32 0.0, %v1445
      %v1447 = vpop.f32.mrb[0].mxu0
      %1448 = vmatprep.mubr.f32.mxu0 0.0
      %1449 = vmatmul.mubr.f32.gmra.mrb[0].mxu0 %v1299
      %v1450 = vpop.f32.mrb[0].mxu0
      %v1451 = vadd.f32 0.0, %v1450
      %v1452 = vpop.f32.mrb[0].mxu0
      %1453 = vmatprep.mubr.f32.mxu0 0.0
      %1454 = vmatmul.mubr.f32.gmra.mrb[0].mxu0 %v1300
      %v1455 = vpop.f32.mrb[0].mxu0
      %v1456 = vadd.f32 0.0, %v1455
      %v1457 = vpop.f32.mrb[0].mxu0
      %1458 = vmatprep.mubr.f32.mxu0 0.0
      %1459 = vmatmul.mubr.f32.gmra.mrb[0].mxu0 %v1301
      %v1460 = vpop.f32.mrb[0].mxu0
      %v1461 = vadd.f32 0.0, %v1460
      %v1462 = vpop.f32.mrb[0].mxu0
      %1463 = vmatprep.mubr.f32.mxu0 0.0
      %1464 = vmatmul.mubr.f32.gmra.mrb[0].mxu0 %v1302
      %v1465 = vpop.f32.mrb[0].mxu0
      %v1466 = vadd.f32 0.0, %v1465
      %v1467 = vpop.f32.mrb[0].mxu0
      %1468 = vmatprep.mubr.f32.mxu0 0.0
      %1469 = vmatmul.mubr.f32.gmra.mrb[0].mxu0 %v1303
      %v1470 = vpop.f32.mrb[0].mxu0
      %v1471 = vadd.f32 0.0, %v1470
      %v1472 = vpop.f32.mrb[0].mxu0
      %1473 = vmatprep.mubr.f32.mxu0 0.0
      %1474 = vmatmul.mubr.f32.gmra.mrb[0].mxu0 %v1304
      %v1475 = vpop.f32.mrb[0].mxu0
      %v1476 = vadd.f32 0.0, %v1475
      %v1477 = vpop.f32.mrb[0].mxu0
      %1478 = vmatprep.mubr.f32.mxu0 0.0
      %1479 = vmatmul.mubr.f32.gmra.mrb[0].mxu0 %v1305
      %v1480 = vpop.f32.mrb[0].mxu0
      %v1481 = vadd.f32 0.0, %v1480
      %v1482 = vpop.f32.mrb[0].mxu0
      %1483 = vmatprep.mubr.f32.mxu0 0.0
      %1484 = vmatmul.mubr.f32.gmra.mrb[0].mxu0 %v1306
      %v1485 = vpop.f32.mrb[0].mxu0
      %v1486 = vadd.f32 0.0, %v1485
      %v1487 = vpop.f32.mrb[0].mxu0
      %1488 = vmatprep.mubr.f32.mxu0 0.0
      %1489 = vmatmul.mubr.f32.gmra.mrb[0].mxu0 %v1307
      %v1490 = vpop.f32.mrb[0].mxu0
      %v1491 = vadd.f32 0.0, %v1490
      %v1492 = vpop.f32.mrb[0].mxu0
      %1493 = vmatprep.mubr.f32.mxu0 0.0
      %1494 = vmatmul.mubr.f32.gmra.mrb[0].mxu0 %v1308
      %v1495 = vpop.f32.mrb[0].mxu0
      %v1496 = vadd.f32 0.0, %v1495
      %v1497 = vpop.f32.mrb[0].mxu0
      %1498 = vmatprep.mubr.f32.mxu0 0.0
      %1499 = vmatmul.mubr.f32.gmra.mrb[0].mxu0 %v1309
      %v1500 = vpop.f32.mrb[0].mxu0
      %v1501 = vadd.f32 0.0, %v1500
      %v1502 = vpop.f32.mrb[0].mxu0
      %1503 = vmatprep.mubr.f32.mxu0 0.0
      %1504 = vmatmul.mubr.f32.gmra.mrb[0].mxu0 %v1310
      %v1505 = vpop.f32.mrb[0].mxu0
      %v1506 = vadd.f32 0.0, %v1505
      %v1507 = vpop.f32.mrb[0].mxu0
      %1508 = vmatprep.mubr.f32.mxu0 0.0
      %1509 = vmatmul.mubr.f32.gmra.mrb[0].mxu0 %v1311
      %v1510 = vpop.f32.mrb[0].mxu0
      %v1511 = vadd.f32 0.0, %v1510
      %v1512 = vpop.f32.mrb[0].mxu0
      %1513 = vmatprep.mubr.f32.mxu0 0.0
      %1514 = vmatmul.mubr.f32.gmra.mrb[0].mxu0 %v1312
      %v1515 = vpop.f32.mrb[0].mxu0
      %v1516 = vadd.f32 0.0, %v1515
      %v1517 = vpop.f32.mrb[0].mxu0
      %1518 = vmatprep.mubr.f32.mxu0 0.0
      %1519 = vmatmul.mubr.f32.gmra.mrb[0].mxu0 %v1313
      %v1520 = vpop.f32.mrb[0].mxu0
      %v1521 = vadd.f32 0.0, %v1520
      %v1522 = vpop.f32.mrb[0].mxu0
      %1523 = vmatprep.mubr.f32.mxu0 0.0
      %1524 = vmatmul.mubr.f32.gmra.mrb[0].mxu0 %v1314
      %v1525 = vpop.f32.mrb[0].mxu0
      %v1526 = vadd.f32 0.0, %v1525
      %v1527 = vpop.f32.mrb[0].mxu0
      %1528 = vmatprep.mubr.f32.mxu0 0.0
      %1529 = vmatmul.mubr.f32.gmra.mrb[0].mxu0 %v1315
      %v1530 = vpop.f32.mrb[0].mxu0
      %v1531 = vadd.f32 0.0, %v1530
      %v1532 = vpop.f32.mrb[0].mxu0
      %1533 = vmatprep.mubr.f32.mxu0 0.0
      %1534 = vmatmul.mubr.f32.gmra.mrb[0].mxu0 %v1316
      %v1535 = vpop.f32.mrb[0].mxu0
      %v1536 = vadd.f32 0.0, %v1535
      %v1537 = vpop.f32.mrb[0].mxu0
      %1538 = vmatprep.mubr.f32.mxu0 0.0
      %1539 = vmatmul.mubr.f32.gmra.mrb[0].mxu0 %v1317
      %v1540 = vpop.f32.mrb[0].mxu0
      %v1541 = vadd.f32 0.0, %v1540
      %v1542 = vpop.f32.mrb[0].mxu0
      %1543 = vmatprep.mubr.f32.mxu0 0.0
      %1544 = vmatmul.mubr.f32.gmra.mrb[0].mxu0 %v1318
      %v1545 = vpop.f32.mrb[0].mxu0
      %v1546 = vadd.f32 0.0, %v1545
      %v1547 = vpop.f32.mrb[0].mxu0
      %1548 = vmatprep.mubr.f32.mxu0 0.0
      %1549 = vmatmul.mubr.f32.gmra.mrb[0].mxu0 %v1319
      %v1550 = vpop.f32.mrb[0].mxu0
      %v1551 = vadd.f32 0.0, %v1550
      %v1552 = vpop.f32.mrb[0].mxu0
      %1553 = vmatprep.mubr.f32.mxu0 0.0
      %1554 = vmatmul.mubr.f32.gmra.mrb[0].mxu0 %v1320
      %v1555 = vpop.f32.mrb[0].mxu0
      %v1556 = vadd.f32 0.0, %v1555
      %v1557 = vpop.f32.mrb[0].mxu0
      %1558 = vmatprep.mubr.f32.mxu0 0.0
      %1559 = vmatmul.mubr.f32.gmra.mrb[0].mxu0 %v1321
      %v1560 = vpop.f32.mrb[0].mxu0
      %v1561 = vadd.f32 0.0, %v1560
      %v1562 = vpop.f32.mrb[0].mxu0
      %1563 = vdwg.mxu0
      %v1564 = vadd.f32 %v1257, %v1406
      %v1565 = vadd.f32 %v1258, %v1411
      %v1566 = vadd.f32 %v1259, %v1416
      %v1567 = vadd.f32 %v1260, %v1421
      %v1568 = vadd.f32 %v1261, %v1426
      %v1569 = vadd.f32 %v1262, %v1431
      %v1570 = vadd.f32 %v1263, %v1436
      %v1571 = vadd.f32 %v1264, %v1441
      %v1572 = vadd.f32 %v1265, %v1446
      %v1573 = vadd.f32 %v1266, %v1451
      %v1574 = vadd.f32 %v1267, %v1456
      %v1575 = vadd.f32 %v1268, %v1461
      %v1576 = vadd.f32 %v1269, %v1466
      %v1577 = vadd.f32 %v1270, %v1471
      %v1578 = vadd.f32 %v1271, %v1476
      %v1579 = vadd.f32 %v1272, %v1481
      %v1580 = vadd.f32 %v1273, %v1486
      %v1581 = vadd.f32 %v1274, %v1491
      %v1582 = vadd.f32 %v1275, %v1496
      %v1583 = vadd.f32 %v1276, %v1501
      %v1584 = vadd.f32 %v1277, %v1506
      %v1585 = vadd.f32 %v1278, %v1511
      %v1586 = vadd.f32 %v1279, %v1516
      %v1587 = vadd.f32 %v1280, %v1521
      %v1588 = vadd.f32 %v1281, %v1526
      %v1589 = vadd.f32 %v1282, %v1531
      %v1590 = vadd.f32 %v1283, %v1536
      %v1591 = vadd.f32 %v1284, %v1541
      %v1592 = vadd.f32 %v1285, %v1546
      %v1593 = vadd.f32 %v1286, %v1551
      %v1594 = vadd.f32 %v1287, %v1556
      %v1595 = vadd.f32 %v1288, %v1561
      %v1596 = vld [vmem:[%s1289 + $0x1] sm:$0xff]
      %v1597 = vld [vmem:[%s1289 + $0x9] sm:$0xff]
      %v1598 = vld [vmem:[%s1289 + $0x19] sm:$0xff]
      %v1599 = vld [vmem:[%s1289 + $0x21] sm:$0xff]
      %v1600 = vld [vmem:[%s1289 + $0x31] sm:$0xff]
      %v1601 = vld [vmem:[%s1289 + $0x39] sm:$0xff]
      %v1602 = vld [vmem:[%s1289 + $0x49] sm:$0xff]
      %v1603 = vld [vmem:[%s1289 + $0x51] sm:$0xff]
      %v1604 = vld [vmem:[%s1289 + $0x61] sm:$0xff]
      %v1605 = vld [vmem:[%s1289 + $0x69] sm:$0xff]
      %v1606 = vld [vmem:[%s1289 + $0x79] sm:$0xff]
      %v1607 = vld [vmem:[%s1289 + $0x81] sm:$0xff]
      %v1608 = vld [vmem:[%s1289 + $0x91] sm:$0xff]
      %v1609 = vld [vmem:[%s1289 + $0x99] sm:$0xff]
      %v1610 = vld [vmem:[%s1289 + $0xa9] sm:$0xff]
      %v1611 = vld [vmem:[%s1289 + $0xb1] sm:$0xff]
      %v1612 = vld [vmem:[%s1289 + $0xc1] sm:$0xff]
      %v1613 = vld [vmem:[%s1289 + $0xc9] sm:$0xff]
      %v1614 = vld [vmem:[%s1289 + $0xd9] sm:$0xff]
      %v1615 = vld [vmem:[%s1289 + $0xe1] sm:$0xff]
      %v1616 = vld [vmem:[%s1289 + $0xf1] sm:$0xff]
      %v1617 = vld [vmem:[%s1289 + $0xf9] sm:$0xff]
      %v1618 = vld [vmem:[%s1289 + $0x109] sm:$0xff]
      %v1619 = vld [vmem:[%s1289 + $0x111] sm:$0xff]
      %v1620 = vld [vmem:[%s1289 + $0x121] sm:$0xff]
      %v1621 = vld [vmem:[%s1289 + $0x129] sm:$0xff]
      %v1622 = vld [vmem:[%s1289 + $0x139] sm:$0xff]
      %v1623 = vld [vmem:[%s1289 + $0x141] sm:$0xff]
      %v1624 = vld [vmem:[%s1289 + $0x151] sm:$0xff]
      %v1625 = vld [vmem:[%s1289 + $0x159] sm:$0xff]
      %v1626 = vld [vmem:[%s1289 + $0x169] sm:$0xff]
      %v1627 = vld [vmem:[%s1289 + $0x171] sm:$0xff]
      %s1628 = scalar_lea.vmem %s2, 512
      %v1629 = vld [vmem:[%s1628] sm:$0xff]
      %v1630 = vld [vmem:[%s1628 + $0x8] sm:$0xff]
      %v1631 = vld [vmem:[%s1628 + $0x10] sm:$0xff]
      %v1632 = vld [vmem:[%s1628 + $0x18] sm:$0xff]
      %v1633 = vld [vmem:[%s1628 + $0x20] sm:$0xff]
      %v1634 = vld [vmem:[%s1628 + $0x28] sm:$0xff]
      %v1635 = vld [vmem:[%s1628 + $0x30] sm:$0xff]
      %v1636 = vld [vmem:[%s1628 + $0x38] sm:$0xff]
      %v1637 = vld [vmem:[%s1628 + $0x40] sm:$0xff]
      %v1638 = vld [vmem:[%s1628 + $0x48] sm:$0xff]
      %v1639 = vld [vmem:[%s1628 + $0x50] sm:$0xff]
      %v1640 = vld [vmem:[%s1628 + $0x58] sm:$0xff]
      %v1641 = vld [vmem:[%s1628 + $0x60] sm:$0xff]
      %v1642 = vld [vmem:[%s1628 + $0x68] sm:$0xff]
      %v1643 = vld [vmem:[%s1628 + $0x70] sm:$0xff]
      %v1644 = vld [vmem:[%s1628 + $0x78] sm:$0xff]
      %1645 = vmatprep.subr.mxu0 0.0
      %1646 = vmatpush1.msra.mxu0 %v1629
      %1647 = vmatprep.subr.mxu0 0.0
      %1648 = vmatpush1.msra.mxu0 %v1630
      %1649 = vmatprep.subr.mxu0 0.0
      %1650 = vmatpush1.msra.mxu0 %v1631
      %1651 = vmatprep.subr.mxu0 0.0
      %1652 = vmatpush1.msra.mxu0 %v1632
      %1653 = vmatprep.subr.mxu0 0.0
      %1654 = vmatpush1.msra.mxu0 %v1633
      %1655 = vmatprep.subr.mxu0 0.0
      %1656 = vmatpush1.msra.mxu0 %v1634
      %1657 = vmatprep.subr.mxu0 0.0
      %1658 = vmatpush1.msra.mxu0 %v1635
      %1659 = vmatprep.subr.mxu0 0.0
      %1660 = vmatpush1.msra.mxu0 %v1636
      %1661 = vmatprep.subr.mxu0 0.0
      %1662 = vmatpush1.msra.mxu0 %v1637
      %1663 = vmatprep.subr.mxu0 0.0
      %1664 = vmatpush1.msra.mxu0 %v1638
      %1665 = vmatprep.subr.mxu0 0.0
      %1666 = vmatpush1.msra.mxu0 %v1639
      %1667 = vmatprep.subr.mxu0 0.0
      %1668 = vmatpush1.msra.mxu0 %v1640
      %1669 = vmatprep.subr.mxu0 0.0
      %1670 = vmatpush1.msra.mxu0 %v1641
      %1671 = vmatprep.subr.mxu0 0.0
      %1672 = vmatpush1.msra.mxu0 %v1642
      %1673 = vmatprep.subr.mxu0 0.0
      %1674 = vmatpush1.msra.mxu0 %v1643
      %1675 = vmatprep.subr.mxu0 0.0
      %1676 = vmatpush1.msra.mxu0 %v1644
      %1677 = vmatprep.subr.mxu0 0.0
      %1678 = vmatpush1.msra.mxu0 0.0
      %1679 = vmatprep.subr.mxu0 0.0
      %1680 = vmatpush1.msra.mxu0 0.0
      %1681 = vmatprep.subr.mxu0 0.0
      %1682 = vmatpush1.msra.mxu0 0.0
      %1683 = vmatprep.subr.mxu0 0.0
      %1684 = vmatpush1.msra.mxu0 0.0
      %1685 = vmatprep.subr.mxu0 0.0
      %1686 = vmatpush1.msra.mxu0 0.0
      %1687 = vmatprep.subr.mxu0 0.0
      %1688 = vmatpush1.msra.mxu0 0.0
      %1689 = vmatprep.subr.mxu0 0.0
      %1690 = vmatpush1.msra.mxu0 0.0
      %1691 = vmatprep.subr.mxu0 0.0
      %1692 = vmatpush1.msra.mxu0 0.0
      %1693 = vmatprep.subr.mxu0 0.0
      %1694 = vmatpush1.msra.mxu0 0.0
      %1695 = vmatprep.subr.mxu0 0.0
      %1696 = vmatpush1.msra.mxu0 0.0
      %1697 = vmatprep.subr.mxu0 0.0
      %1698 = vmatpush1.msra.mxu0 0.0
      %1699 = vmatprep.subr.mxu0 0.0
      %1700 = vmatpush1.msra.mxu0 0.0
      %1701 = vmatprep.subr.mxu0 0.0
      %1702 = vmatpush1.msra.mxu0 0.0
      %1703 = vmatprep.subr.mxu0 0.0
      %1704 = vmatpush1.msra.mxu0 0.0
      %1705 = vmatprep.subr.mxu0 0.0
      %1706 = vmatpush1.msra.mxu0 0.0
      %1707 = vmatprep.subr.mxu0 0.0
      %1708 = vmatpush1.msra.mxu0 0.0
      %1709 = vmatprep.mubr.f32.mxu0 0.0
      %1710 = vmatmul.mubr.f32.gmra.mrb[0].mxu0 %v1596
      %v1711 = vpop.f32.mrb[0].mxu0
      %v1712 = vadd.f32 0.0, %v1711
      %v1713 = vpop.f32.mrb[0].mxu0
      %1714 = vmatprep.mubr.f32.mxu0 0.0
      %1715 = vmatmul.mubr.f32.gmra.mrb[0].mxu0 %v1597
      %v1716 = vpop.f32.mrb[0].mxu0
      %v1717 = vadd.f32 0.0, %v1716
      %v1718 = vpop.f32.mrb[0].mxu0
      %1719 = vmatprep.mubr.f32.mxu0 0.0
      %1720 = vmatmul.mubr.f32.gmra.mrb[0].mxu0 %v1598
      %v1721 = vpop.f32.mrb[0].mxu0
      %v1722 = vadd.f32 0.0, %v1721
      %v1723 = vpop.f32.mrb[0].mxu0
      %1724 = vmatprep.mubr.f32.mxu0 0.0
      %1725 = vmatmul.mubr.f32.gmra.mrb[0].mxu0 %v1599
      %v1726 = vpop.f32.mrb[0].mxu0
      %v1727 = vadd.f32 0.0, %v1726
      %v1728 = vpop.f32.mrb[0].mxu0
      %1729 = vmatprep.mubr.f32.mxu0 0.0
      %1730 = vmatmul.mubr.f32.gmra.mrb[0].mxu0 %v1600
      %v1731 = vpop.f32.mrb[0].mxu0
      %v1732 = vadd.f32 0.0, %v1731
      %v1733 = vpop.f32.mrb[0].mxu0
      %1734 = vmatprep.mubr.f32.mxu0 0.0
      %1735 = vmatmul.mubr.f32.gmra.mrb[0].mxu0 %v1601
      %v1736 = vpop.f32.mrb[0].mxu0
      %v1737 = vadd.f32 0.0, %v1736
      %v1738 = vpop.f32.mrb[0].mxu0
      %1739 = vmatprep.mubr.f32.mxu0 0.0
      %1740 = vmatmul.mubr.f32.gmra.mrb[0].mxu0 %v1602
      %v1741 = vpop.f32.mrb[0].mxu0
      %v1742 = vadd.f32 0.0, %v1741
      %v1743 = vpop.f32.mrb[0].mxu0
      %1744 = vmatprep.mubr.f32.mxu0 0.0
      %1745 = vmatmul.mubr.f32.gmra.mrb[0].mxu0 %v1603
      %v1746 = vpop.f32.mrb[0].mxu0
      %v1747 = vadd.f32 0.0, %v1746
      %v1748 = vpop.f32.mrb[0].mxu0
      %1749 = vmatprep.mubr.f32.mxu0 0.0
      %1750 = vmatmul.mubr.f32.gmra.mrb[0].mxu0 %v1604
      %v1751 = vpop.f32.mrb[0].mxu0
      %v1752 = vadd.f32 0.0, %v1751
      %v1753 = vpop.f32.mrb[0].mxu0
      %1754 = vmatprep.mubr.f32.mxu0 0.0
      %1755 = vmatmul.mubr.f32.gmra.mrb[0].mxu0 %v1605
      %v1756 = vpop.f32.mrb[0].mxu0
      %v1757 = vadd.f32 0.0, %v1756
      %v1758 = vpop.f32.mrb[0].mxu0
      %1759 = vmatprep.mubr.f32.mxu0 0.0
      %1760 = vmatmul.mubr.f32.gmra.mrb[0].mxu0 %v1606
      %v1761 = vpop.f32.mrb[0].mxu0
      %v1762 = vadd.f32 0.0, %v1761
      %v1763 = vpop.f32.mrb[0].mxu0
      %1764 = vmatprep.mubr.f32.mxu0 0.0
      %1765 = vmatmul.mubr.f32.gmra.mrb[0].mxu0 %v1607
      %v1766 = vpop.f32.mrb[0].mxu0
      %v1767 = vadd.f32 0.0, %v1766
      %v1768 = vpop.f32.mrb[0].mxu0
      %1769 = vmatprep.mubr.f32.mxu0 0.0
      %1770 = vmatmul.mubr.f32.gmra.mrb[0].mxu0 %v1608
      %v1771 = vpop.f32.mrb[0].mxu0
      %v1772 = vadd.f32 0.0, %v1771
      %v1773 = vpop.f32.mrb[0].mxu0
      %1774 = vmatprep.mubr.f32.mxu0 0.0
      %1775 = vmatmul.mubr.f32.gmra.mrb[0].mxu0 %v1609
      %v1776 = vpop.f32.mrb[0].mxu0
      %v1777 = vadd.f32 0.0, %v1776
      %v1778 = vpop.f32.mrb[0].mxu0
      %1779 = vmatprep.mubr.f32.mxu0 0.0
      %1780 = vmatmul.mubr.f32.gmra.mrb[0].mxu0 %v1610
      %v1781 = vpop.f32.mrb[0].mxu0
      %v1782 = vadd.f32 0.0, %v1781
      %v1783 = vpop.f32.mrb[0].mxu0
      %1784 = vmatprep.mubr.f32.mxu0 0.0
      %1785 = vmatmul.mubr.f32.gmra.mrb[0].mxu0 %v1611
      %v1786 = vpop.f32.mrb[0].mxu0
      %v1787 = vadd.f32 0.0, %v1786
      %v1788 = vpop.f32.mrb[0].mxu0
      %1789 = vmatprep.mubr.f32.mxu0 0.0
      %1790 = vmatmul.mubr.f32.gmra.mrb[0].mxu0 %v1612
      %v1791 = vpop.f32.mrb[0].mxu0
      %v1792 = vadd.f32 0.0, %v1791
      %v1793 = vpop.f32.mrb[0].mxu0
      %1794 = vmatprep.mubr.f32.mxu0 0.0
      %1795 = vmatmul.mubr.f32.gmra.mrb[0].mxu0 %v1613
      %v1796 = vpop.f32.mrb[0].mxu0
      %v1797 = vadd.f32 0.0, %v1796
      %v1798 = vpop.f32.mrb[0].mxu0
      %1799 = vmatprep.mubr.f32.mxu0 0.0
      %1800 = vmatmul.mubr.f32.gmra.mrb[0].mxu0 %v1614
      %v1801 = vpop.f32.mrb[0].mxu0
      %v1802 = vadd.f32 0.0, %v1801
      %v1803 = vpop.f32.mrb[0].mxu0
      %1804 = vmatprep.mubr.f32.mxu0 0.0
      %1805 = vmatmul.mubr.f32.gmra.mrb[0].mxu0 %v1615
      %v1806 = vpop.f32.mrb[0].mxu0
      %v1807 = vadd.f32 0.0, %v1806
      %v1808 = vpop.f32.mrb[0].mxu0
      %1809 = vmatprep.mubr.f32.mxu0 0.0
      %1810 = vmatmul.mubr.f32.gmra.mrb[0].mxu0 %v1616
      %v1811 = vpop.f32.mrb[0].mxu0
      %v1812 = vadd.f32 0.0, %v1811
      %v1813 = vpop.f32.mrb[0].mxu0
      %1814 = vmatprep.mubr.f32.mxu0 0.0
      %1815 = vmatmul.mubr.f32.gmra.mrb[0].mxu0 %v1617
      %v1816 = vpop.f32.mrb[0].mxu0
      %v1817 = vadd.f32 0.0, %v1816
      %v1818 = vpop.f32.mrb[0].mxu0
      %1819 = vmatprep.mubr.f32.mxu0 0.0
      %1820 = vmatmul.mubr.f32.gmra.mrb[0].mxu0 %v1618
      %v1821 = vpop.f32.mrb[0].mxu0
      %v1822 = vadd.f32 0.0, %v1821
      %v1823 = vpop.f32.mrb[0].mxu0
      %1824 = vmatprep.mubr.f32.mxu0 0.0
      %1825 = vmatmul.mubr.f32.gmra.mrb[0].mxu0 %v1619
      %v1826 = vpop.f32.mrb[0].mxu0
      %v1827 = vadd.f32 0.0, %v1826
      %v1828 = vpop.f32.mrb[0].mxu0
      %1829 = vmatprep.mubr.f32.mxu0 0.0
      %1830 = vmatmul.mubr.f32.gmra.mrb[0].mxu0 %v1620
      %v1831 = vpop.f32.mrb[0].mxu0
      %v1832 = vadd.f32 0.0, %v1831
      %v1833 = vpop.f32.mrb[0].mxu0
      %1834 = vmatprep.mubr.f32.mxu0 0.0
      %1835 = vmatmul.mubr.f32.gmra.mrb[0].mxu0 %v1621
      %v1836 = vpop.f32.mrb[0].mxu0
      %v1837 = vadd.f32 0.0, %v1836
      %v1838 = vpop.f32.mrb[0].mxu0
      %1839 = vmatprep.mubr.f32.mxu0 0.0
      %1840 = vmatmul.mubr.f32.gmra.mrb[0].mxu0 %v1622
      %v1841 = vpop.f32.mrb[0].mxu0
      %v1842 = vadd.f32 0.0, %v1841
      %v1843 = vpop.f32.mrb[0].mxu0
      %1844 = vmatprep.mubr.f32.mxu0 0.0
      %1845 = vmatmul.mubr.f32.gmra.mrb[0].mxu0 %v1623
      %v1846 = vpop.f32.mrb[0].mxu0
      %v1847 = vadd.f32 0.0, %v1846
      %v1848 = vpop.f32.mrb[0].mxu0
      %1849 = vmatprep.mubr.f32.mxu0 0.0
      %1850 = vmatmul.mubr.f32.gmra.mrb[0].mxu0 %v1624
      %v1851 = vpop.f32.mrb[0].mxu0
      %v1852 = vadd.f32 0.0, %v1851
      %v1853 = vpop.f32.mrb[0].mxu0
      %1854 = vmatprep.mubr.f32.mxu0 0.0
      %1855 = vmatmul.mubr.f32.gmra.mrb[0].mxu0 %v1625
      %v1856 = vpop.f32.mrb[0].mxu0
      %v1857 = vadd.f32 0.0, %v1856
      %v1858 = vpop.f32.mrb[0].mxu0
      %1859 = vmatprep.mubr.f32.mxu0 0.0
      %1860 = vmatmul.mubr.f32.gmra.mrb[0].mxu0 %v1626
      %v1861 = vpop.f32.mrb[0].mxu0
      %v1862 = vadd.f32 0.0, %v1861
      %v1863 = vpop.f32.mrb[0].mxu0
      %1864 = vmatprep.mubr.f32.mxu0 0.0
      %1865 = vmatmul.mubr.f32.gmra.mrb[0].mxu0 %v1627
      %v1866 = vpop.f32.mrb[0].mxu0
      %v1867 = vadd.f32 0.0, %v1866
      %v1868 = vpop.f32.mrb[0].mxu0
      %1869 = vdwg.mxu0
      %v1870 = vadd.f32 %v1564, %v1712
      %v1871 = vadd.f32 %v1565, %v1717
      %v1872 = vadd.f32 %v1566, %v1722
      %v1873 = vadd.f32 %v1567, %v1727
      %v1874 = vadd.f32 %v1568, %v1732
      %v1875 = vadd.f32 %v1569, %v1737
      %v1876 = vadd.f32 %v1570, %v1742
      %v1877 = vadd.f32 %v1571, %v1747
      %v1878 = vadd.f32 %v1572, %v1752
      %v1879 = vadd.f32 %v1573, %v1757
      %v1880 = vadd.f32 %v1574, %v1762
      %v1881 = vadd.f32 %v1575, %v1767
      %v1882 = vadd.f32 %v1576, %v1772
      %v1883 = vadd.f32 %v1577, %v1777
      %v1884 = vadd.f32 %v1578, %v1782
      %v1885 = vadd.f32 %v1579, %v1787
      %v1886 = vadd.f32 %v1580, %v1792
      %v1887 = vadd.f32 %v1581, %v1797
      %v1888 = vadd.f32 %v1582, %v1802
      %v1889 = vadd.f32 %v1583, %v1807
      %v1890 = vadd.f32 %v1584, %v1812
      %v1891 = vadd.f32 %v1585, %v1817
      %v1892 = vadd.f32 %v1586, %v1822
      %v1893 = vadd.f32 %v1587, %v1827
      %v1894 = vadd.f32 %v1588, %v1832
      %v1895 = vadd.f32 %v1589, %v1837
      %v1896 = vadd.f32 %v1590, %v1842
      %v1897 = vadd.f32 %v1591, %v1847
      %v1898 = vadd.f32 %v1592, %v1852
      %v1899 = vadd.f32 %v1593, %v1857
      %v1900 = vadd.f32 %v1594, %v1862
      %v1901 = vadd.f32 %v1595, %v1867
      %v1902 = vld [vmem:[%s1289 + $0x2] sm:$0xff]
      %v1903 = vld [vmem:[%s1289 + $0xa] sm:$0xff]
      %v1904 = vld [vmem:[%s1289 + $0x1a] sm:$0xff]
      %v1905 = vld [vmem:[%s1289 + $0x22] sm:$0xff]
      %v1906 = vld [vmem:[%s1289 + $0x32] sm:$0xff]
      %v1907 = vld [vmem:[%s1289 + $0x3a] sm:$0xff]
      %v1908 = vld [vmem:[%s1289 + $0x4a] sm:$0xff]
      %v1909 = vld [vmem:[%s1289 + $0x52] sm:$0xff]
      %v1910 = vld [vmem:[%s1289 + $0x62] sm:$0xff]
      %v1911 = vld [vmem:[%s1289 + $0x6a] sm:$0xff]
      %v1912 = vld [vmem:[%s1289 + $0x7a] sm:$0xff]
      %v1913 = vld [vmem:[%s1289 + $0x82] sm:$0xff]
      %v1914 = vld [vmem:[%s1289 + $0x92] sm:$0xff]
      %v1915 = vld [vmem:[%s1289 + $0x9a] sm:$0xff]
      %v1916 = vld [vmem:[%s1289 + $0xaa] sm:$0xff]
      %v1917 = vld [vmem:[%s1289 + $0xb2] sm:$0xff]
      %v1918 = vld [vmem:[%s1289 + $0xc2] sm:$0xff]
      %v1919 = vld [vmem:[%s1289 + $0xca] sm:$0xff]
      %v1920 = vld [vmem:[%s1289 + $0xda] sm:$0xff]
      %v1921 = vld [vmem:[%s1289 + $0xe2] sm:$0xff]
      %v1922 = vld [vmem:[%s1289 + $0xf2] sm:$0xff]
      %v1923 = vld [vmem:[%s1289 + $0xfa] sm:$0xff]
      %v1924 = vld [vmem:[%s1289 + $0x10a] sm:$0xff]
      %v1925 = vld [vmem:[%s1289 + $0x112] sm:$0xff]
      %v1926 = vld [vmem:[%s1289 + $0x122] sm:$0xff]
      %v1927 = vld [vmem:[%s1289 + $0x12a] sm:$0xff]
      %v1928 = vld [vmem:[%s1289 + $0x13a] sm:$0xff]
      %v1929 = vld [vmem:[%s1289 + $0x142] sm:$0xff]
      %v1930 = vld [vmem:[%s1289 + $0x152] sm:$0xff]
      %v1931 = vld [vmem:[%s1289 + $0x15a] sm:$0xff]
      %v1932 = vld [vmem:[%s1289 + $0x16a] sm:$0xff]
      %v1933 = vld [vmem:[%s1289 + $0x172] sm:$0xff]
      %s1934 = scalar_lea.vmem %s2, 640
      %v1935 = vld [vmem:[%s1934] sm:$0xff]
      %v1936 = vld [vmem:[%s1934 + $0x8] sm:$0xff]
      %v1937 = vld [vmem:[%s1934 + $0x10] sm:$0xff]
      %v1938 = vld [vmem:[%s1934 + $0x18] sm:$0xff]
      %v1939 = vld [vmem:[%s1934 + $0x20] sm:$0xff]
      %v1940 = vld [vmem:[%s1934 + $0x28] sm:$0xff]
      %v1941 = vld [vmem:[%s1934 + $0x30] sm:$0xff]
      %v1942 = vld [vmem:[%s1934 + $0x38] sm:$0xff]
      %v1943 = vld [vmem:[%s1934 + $0x40] sm:$0xff]
      %v1944 = vld [vmem:[%s1934 + $0x48] sm:$0xff]
      %v1945 = vld [vmem:[%s1934 + $0x50] sm:$0xff]
      %v1946 = vld [vmem:[%s1934 + $0x58] sm:$0xff]
      %v1947 = vld [vmem:[%s1934 + $0x60] sm:$0xff]
      %v1948 = vld [vmem:[%s1934 + $0x68] sm:$0xff]
      %v1949 = vld [vmem:[%s1934 + $0x70] sm:$0xff]
      %v1950 = vld [vmem:[%s1934 + $0x78] sm:$0xff]
      %1951 = vmatprep.subr.mxu0 0.0
      %1952 = vmatpush1.msra.mxu0 %v1935
      %1953 = vmatprep.subr.mxu0 0.0
      %1954 = vmatpush1.msra.mxu0 %v1936
      %1955 = vmatprep.subr.mxu0 0.0
      %1956 = vmatpush1.msra.mxu0 %v1937
      %1957 = vmatprep.subr.mxu0 0.0
      %1958 = vmatpush1.msra.mxu0 %v1938
      %1959 = vmatprep.subr.mxu0 0.0
      %1960 = vmatpush1.msra.mxu0 %v1939
      %1961 = vmatprep.subr.mxu0 0.0
      %1962 = vmatpush1.msra.mxu0 %v1940
      %1963 = vmatprep.subr.mxu0 0.0
      %1964 = vmatpush1.msra.mxu0 %v1941
      %1965 = vmatprep.subr.mxu0 0.0
      %1966 = vmatpush1.msra.mxu0 %v1942
      %1967 = vmatprep.subr.mxu0 0.0
      %1968 = vmatpush1.msra.mxu0 %v1943
      %1969 = vmatprep.subr.mxu0 0.0
      %1970 = vmatpush1.msra.mxu0 %v1944
      %1971 = vmatprep.subr.mxu0 0.0
      %1972 = vmatpush1.msra.mxu0 %v1945
      %1973 = vmatprep.subr.mxu0 0.0
      %1974 = vmatpush1.msra.mxu0 %v1946
      %1975 = vmatprep.subr.mxu0 0.0
      %1976 = vmatpush1.msra.mxu0 %v1947
      %1977 = vmatprep.subr.mxu0 0.0
      %1978 = vmatpush1.msra.mxu0 %v1948
      %1979 = vmatprep.subr.mxu0 0.0
      %1980 = vmatpush1.msra.mxu0 %v1949
      %1981 = vmatprep.subr.mxu0 0.0
      %1982 = vmatpush1.msra.mxu0 %v1950
      %1983 = vmatprep.subr.mxu0 0.0
      %1984 = vmatpush1.msra.mxu0 0.0
      %1985 = vmatprep.subr.mxu0 0.0
      %1986 = vmatpush1.msra.mxu0 0.0
      %1987 = vmatprep.subr.mxu0 0.0
      %1988 = vmatpush1.msra.mxu0 0.0
      %1989 = vmatprep.subr.mxu0 0.0
      %1990 = vmatpush1.msra.mxu0 0.0
      %1991 = vmatprep.subr.mxu0 0.0
      %1992 = vmatpush1.msra.mxu0 0.0
      %1993 = vmatprep.subr.mxu0 0.0
      %1994 = vmatpush1.msra.mxu0 0.0
      %1995 = vmatprep.subr.mxu0 0.0
      %1996 = vmatpush1.msra.mxu0 0.0
      %1997 = vmatprep.subr.mxu0 0.0
      %1998 = vmatpush1.msra.mxu0 0.0
      %1999 = vmatprep.subr.mxu0 0.0
      %2000 = vmatpush1.msra.mxu0 0.0
      %2001 = vmatprep.subr.mxu0 0.0
      %2002 = vmatpush1.msra.mxu0 0.0
      %2003 = vmatprep.subr.mxu0 0.0
      %2004 = vmatpush1.msra.mxu0 0.0
      %2005 = vmatprep.subr.mxu0 0.0
      %2006 = vmatpush1.msra.mxu0 0.0
      %2007 = vmatprep.subr.mxu0 0.0
      %2008 = vmatpush1.msra.mxu0 0.0
      %2009 = vmatprep.subr.mxu0 0.0
      %2010 = vmatpush1.msra.mxu0 0.0
      %2011 = vmatprep.subr.mxu0 0.0
      %2012 = vmatpush1.msra.mxu0 0.0
      %2013 = vmatprep.subr.mxu0 0.0
      %2014 = vmatpush1.msra.mxu0 0.0
      %2015 = vmatprep.mubr.f32.mxu0 0.0
      %2016 = vmatmul.mubr.f32.gmra.mrb[0].mxu0 %v1902
      %v2017 = vpop.f32.mrb[0].mxu0
      %v2018 = vadd.f32 0.0, %v2017
      %v2019 = vpop.f32.mrb[0].mxu0
      %2020 = vmatprep.mubr.f32.mxu0 0.0
      %2021 = vmatmul.mubr.f32.gmra.mrb[0].mxu0 %v1903
      %v2022 = vpop.f32.mrb[0].mxu0
      %v2023 = vadd.f32 0.0, %v2022
      %v2024 = vpop.f32.mrb[0].mxu0
      %2025 = vmatprep.mubr.f32.mxu0 0.0
      %2026 = vmatmul.mubr.f32.gmra.mrb[0].mxu0 %v1904
      %v2027 = vpop.f32.mrb[0].mxu0
      %v2028 = vadd.f32 0.0, %v2027
      %v2029 = vpop.f32.mrb[0].mxu0
      %2030 = vmatprep.mubr.f32.mxu0 0.0
      %2031 = vmatmul.mubr.f32.gmra.mrb[0].mxu0 %v1905
      %v2032 = vpop.f32.mrb[0].mxu0
      %v2033 = vadd.f32 0.0, %v2032
      %v2034 = vpop.f32.mrb[0].mxu0
      %2035 = vmatprep.mubr.f32.mxu0 0.0
      %2036 = vmatmul.mubr.f32.gmra.mrb[0].mxu0 %v1906
      %v2037 = vpop.f32.mrb[0].mxu0
      %v2038 = vadd.f32 0.0, %v2037
      %v2039 = vpop.f32.mrb[0].mxu0
      %2040 = vmatprep.mubr.f32.mxu0 0.0
      %2041 = vmatmul.mubr.f32.gmra.mrb[0].mxu0 %v1907
      %v2042 = vpop.f32.mrb[0].mxu0
      %v2043 = vadd.f32 0.0, %v2042
      %v2044 = vpop.f32.mrb[0].mxu0
      %2045 = vmatprep.mubr.f32.mxu0 0.0
      %2046 = vmatmul.mubr.f32.gmra.mrb[0].mxu0 %v1908
      %v2047 = vpop.f32.mrb[0].mxu0
      %v2048 = vadd.f32 0.0, %v2047
      %v2049 = vpop.f32.mrb[0].mxu0
      %2050 = vmatprep.mubr.f32.mxu0 0.0
      %2051 = vmatmul.mubr.f32.gmra.mrb[0].mxu0 %v1909
      %v2052 = vpop.f32.mrb[0].mxu0
      %v2053 = vadd.f32 0.0, %v2052
      %v2054 = vpop.f32.mrb[0].mxu0
      %2055 = vmatprep.mubr.f32.mxu0 0.0
      %2056 = vmatmul.mubr.f32.gmra.mrb[0].mxu0 %v1910
      %v2057 = vpop.f32.mrb[0].mxu0
      %v2058 = vadd.f32 0.0, %v2057
      %v2059 = vpop.f32.mrb[0].mxu0
      %2060 = vmatprep.mubr.f32.mxu0 0.0
      %2061 = vmatmul.mubr.f32.gmra.mrb[0].mxu0 %v1911
      %v2062 = vpop.f32.mrb[0].mxu0
      %v2063 = vadd.f32 0.0, %v2062
      %v2064 = vpop.f32.mrb[0].mxu0
      %2065 = vmatprep.mubr.f32.mxu0 0.0
      %2066 = vmatmul.mubr.f32.gmra.mrb[0].mxu0 %v1912
      %v2067 = vpop.f32.mrb[0].mxu0
      %v2068 = vadd.f32 0.0, %v2067
      %v2069 = vpop.f32.mrb[0].mxu0
      %2070 = vmatprep.mubr.f32.mxu0 0.0
      %2071 = vmatmul.mubr.f32.gmra.mrb[0].mxu0 %v1913
      %v2072 = vpop.f32.mrb[0].mxu0
      %v2073 = vadd.f32 0.0, %v2072
      %v2074 = vpop.f32.mrb[0].mxu0
      %2075 = vmatprep.mubr.f32.mxu0 0.0
      %2076 = vmatmul.mubr.f32.gmra.mrb[0].mxu0 %v1914
      %v2077 = vpop.f32.mrb[0].mxu0
      %v2078 = vadd.f32 0.0, %v2077
      %v2079 = vpop.f32.mrb[0].mxu0
      %2080 = vmatprep.mubr.f32.mxu0 0.0
      %2081 = vmatmul.mubr.f32.gmra.mrb[0].mxu0 %v1915
      %v2082 = vpop.f32.mrb[0].mxu0
      %v2083 = vadd.f32 0.0, %v2082
      %v2084 = vpop.f32.mrb[0].mxu0
      %2085 = vmatprep.mubr.f32.mxu0 0.0
      %2086 = vmatmul.mubr.f32.gmra.mrb[0].mxu0 %v1916
      %v2087 = vpop.f32.mrb[0].mxu0
      %v2088 = vadd.f32 0.0, %v2087
      %v2089 = vpop.f32.mrb[0].mxu0
      %2090 = vmatprep.mubr.f32.mxu0 0.0
      %2091 = vmatmul.mubr.f32.gmra.mrb[0].mxu0 %v1917
      %v2092 = vpop.f32.mrb[0].mxu0
      %v2093 = vadd.f32 0.0, %v2092
      %v2094 = vpop.f32.mrb[0].mxu0
      %2095 = vmatprep.mubr.f32.mxu0 0.0
      %2096 = vmatmul.mubr.f32.gmra.mrb[0].mxu0 %v1918
      %v2097 = vpop.f32.mrb[0].mxu0
      %v2098 = vadd.f32 0.0, %v2097
      %v2099 = vpop.f32.mrb[0].mxu0
      %2100 = vmatprep.mubr.f32.mxu0 0.0
      %2101 = vmatmul.mubr.f32.gmra.mrb[0].mxu0 %v1919
      %v2102 = vpop.f32.mrb[0].mxu0
      %v2103 = vadd.f32 0.0, %v2102
      %v2104 = vpop.f32.mrb[0].mxu0
      %2105 = vmatprep.mubr.f32.mxu0 0.0
      %2106 = vmatmul.mubr.f32.gmra.mrb[0].mxu0 %v1920
      %v2107 = vpop.f32.mrb[0].mxu0
      %v2108 = vadd.f32 0.0, %v2107
      %v2109 = vpop.f32.mrb[0].mxu0
      %2110 = vmatprep.mubr.f32.mxu0 0.0
      %2111 = vmatmul.mubr.f32.gmra.mrb[0].mxu0 %v1921
      %v2112 = vpop.f32.mrb[0].mxu0
      %v2113 = vadd.f32 0.0, %v2112
      %v2114 = vpop.f32.mrb[0].mxu0
      %2115 = vmatprep.mubr.f32.mxu0 0.0
      %2116 = vmatmul.mubr.f32.gmra.mrb[0].mxu0 %v1922
      %v2117 = vpop.f32.mrb[0].mxu0
      %v2118 = vadd.f32 0.0, %v2117
      %v2119 = vpop.f32.mrb[0].mxu0
      %2120 = vmatprep.mubr.f32.mxu0 0.0
      %2121 = vmatmul.mubr.f32.gmra.mrb[0].mxu0 %v1923
      %v2122 = vpop.f32.mrb[0].mxu0
      %v2123 = vadd.f32 0.0, %v2122
      %v2124 = vpop.f32.mrb[0].mxu0
      %2125 = vmatprep.mubr.f32.mxu0 0.0
      %2126 = vmatmul.mubr.f32.gmra.mrb[0].mxu0 %v1924
      %v2127 = vpop.f32.mrb[0].mxu0
      %v2128 = vadd.f32 0.0, %v2127
      %v2129 = vpop.f32.mrb[0].mxu0
      %2130 = vmatprep.mubr.f32.mxu0 0.0
      %2131 = vmatmul.mubr.f32.gmra.mrb[0].mxu0 %v1925
      %v2132 = vpop.f32.mrb[0].mxu0
      %v2133 = vadd.f32 0.0, %v2132
      %v2134 = vpop.f32.mrb[0].mxu0
      %2135 = vmatprep.mubr.f32.mxu0 0.0
      %2136 = vmatmul.mubr.f32.gmra.mrb[0].mxu0 %v1926
      %v2137 = vpop.f32.mrb[0].mxu0
      %v2138 = vadd.f32 0.0, %v2137
      %v2139 = vpop.f32.mrb[0].mxu0
      %2140 = vmatprep.mubr.f32.mxu0 0.0
      %2141 = vmatmul.mubr.f32.gmra.mrb[0].mxu0 %v1927
      %v2142 = vpop.f32.mrb[0].mxu0
      %v2143 = vadd.f32 0.0, %v2142
      %v2144 = vpop.f32.mrb[0].mxu0
      %2145 = vmatprep.mubr.f32.mxu0 0.0
      %2146 = vmatmul.mubr.f32.gmra.mrb[0].mxu0 %v1928
      %v2147 = vpop.f32.mrb[0].mxu0
      %v2148 = vadd.f32 0.0, %v2147
      %v2149 = vpop.f32.mrb[0].mxu0
      %2150 = vmatprep.mubr.f32.mxu0 0.0
      %2151 = vmatmul.mubr.f32.gmra.mrb[0].mxu0 %v1929
      %v2152 = vpop.f32.mrb[0].mxu0
      %v2153 = vadd.f32 0.0, %v2152
      %v2154 = vpop.f32.mrb[0].mxu0
      %2155 = vmatprep.mubr.f32.mxu0 0.0
      %2156 = vmatmul.mubr.f32.gmra.mrb[0].mxu0 %v1930
      %v2157 = vpop.f32.mrb[0].mxu0
      %v2158 = vadd.f32 0.0, %v2157
      %v2159 = vpop.f32.mrb[0].mxu0
      %2160 = vmatprep.mubr.f32.mxu0 0.0
      %2161 = vmatmul.mubr.f32.gmra.mrb[0].mxu0 %v1931
      %v2162 = vpop.f32.mrb[0].mxu0
      %v2163 = vadd.f32 0.0, %v2162
      %v2164 = vpop.f32.mrb[0].mxu0
      %2165 = vmatprep.mubr.f32.mxu0 0.0
      %2166 = vmatmul.mubr.f32.gmra.mrb[0].mxu0 %v1932
      %v2167 = vpop.f32.mrb[0].mxu0
      %v2168 = vadd.f32 0.0, %v2167
      %v2169 = vpop.f32.mrb[0].mxu0
      %2170 = vmatprep.mubr.f32.mxu0 0.0
      %2171 = vmatmul.mubr.f32.gmra.mrb[0].mxu0 %v1933
      %v2172 = vpop.f32.mrb[0].mxu0
      %v2173 = vadd.f32 0.0, %v2172
      %v2174 = vpop.f32.mrb[0].mxu0
      %2175 = vdwg.mxu0
      %v2176 = vadd.f32 %v1870, %v2018
      %v2177 = vadd.f32 %v1871, %v2023
      %v2178 = vadd.f32 %v1872, %v2028
      %v2179 = vadd.f32 %v1873, %v2033
      %v2180 = vadd.f32 %v1874, %v2038
      %v2181 = vadd.f32 %v1875, %v2043
      %v2182 = vadd.f32 %v1876, %v2048
      %v2183 = vadd.f32 %v1877, %v2053
      %v2184 = vadd.f32 %v1878, %v2058
      %v2185 = vadd.f32 %v1879, %v2063
      %v2186 = vadd.f32 %v1880, %v2068
      %v2187 = vadd.f32 %v1881, %v2073
      %v2188 = vadd.f32 %v1882, %v2078
      %v2189 = vadd.f32 %v1883, %v2083
      %v2190 = vadd.f32 %v1884, %v2088
      %v2191 = vadd.f32 %v1885, %v2093
      %v2192 = vadd.f32 %v1886, %v2098
      %v2193 = vadd.f32 %v1887, %v2103
      %v2194 = vadd.f32 %v1888, %v2108
      %v2195 = vadd.f32 %v1889, %v2113
      %v2196 = vadd.f32 %v1890, %v2118
      %v2197 = vadd.f32 %v1891, %v2123
      %v2198 = vadd.f32 %v1892, %v2128
      %v2199 = vadd.f32 %v1893, %v2133
      %v2200 = vadd.f32 %v1894, %v2138
      %v2201 = vadd.f32 %v1895, %v2143
      %v2202 = vadd.f32 %v1896, %v2148
      %v2203 = vadd.f32 %v1897, %v2153
      %v2204 = vadd.f32 %v1898, %v2158
      %v2205 = vadd.f32 %v1899, %v2163
      %v2206 = vadd.f32 %v1900, %v2168
      %v2207 = vadd.f32 %v1901, %v2173
      %s2208 = scalar_lea.vmem %s425, 48
      %v2209 = vld [vmem:[%s2208] sm:$0xff]
      %v2210 = vld [vmem:[%s2208 + $0x8] sm:$0xff]
      %v2211 = vld [vmem:[%s2208 + $0x18] sm:$0xff]
      %v2212 = vld [vmem:[%s2208 + $0x20] sm:$0xff]
      %v2213 = vld [vmem:[%s2208 + $0x30] sm:$0xff]
      %v2214 = vld [vmem:[%s2208 + $0x38] sm:$0xff]
      %v2215 = vld [vmem:[%s2208 + $0x48] sm:$0xff]
      %v2216 = vld [vmem:[%s2208 + $0x50] sm:$0xff]
      %v2217 = vld [vmem:[%s2208 + $0x60] sm:$0xff]
      %v2218 = vld [vmem:[%s2208 + $0x68] sm:$0xff]
      %v2219 = vld [vmem:[%s2208 + $0x78] sm:$0xff]
      %v2220 = vld [vmem:[%s2208 + $0x80] sm:$0xff]
      %v2221 = vld [vmem:[%s2208 + $0x90] sm:$0xff]
      %v2222 = vld [vmem:[%s2208 + $0x98] sm:$0xff]
      %v2223 = vld [vmem:[%s2208 + $0xa8] sm:$0xff]
      %v2224 = vld [vmem:[%s2208 + $0xb0] sm:$0xff]
      %v2225 = vld [vmem:[%s2208 + $0xc0] sm:$0xff]
      %v2226 = vld [vmem:[%s2208 + $0xc8] sm:$0xff]
      %v2227 = vld [vmem:[%s2208 + $0xd8] sm:$0xff]
      %v2228 = vld [vmem:[%s2208 + $0xe0] sm:$0xff]
      %v2229 = vld [vmem:[%s2208 + $0xf0] sm:$0xff]
      %v2230 = vld [vmem:[%s2208 + $0xf8] sm:$0xff]
      %v2231 = vld [vmem:[%s2208 + $0x108] sm:$0xff]
      %v2232 = vld [vmem:[%s2208 + $0x110] sm:$0xff]
      %v2233 = vld [vmem:[%s2208 + $0x120] sm:$0xff]
      %v2234 = vld [vmem:[%s2208 + $0x128] sm:$0xff]
      %v2235 = vld [vmem:[%s2208 + $0x138] sm:$0xff]
      %v2236 = vld [vmem:[%s2208 + $0x140] sm:$0xff]
      %v2237 = vld [vmem:[%s2208 + $0x150] sm:$0xff]
      %v2238 = vld [vmem:[%s2208 + $0x158] sm:$0xff]
      %v2239 = vld [vmem:[%s2208 + $0x168] sm:$0xff]
      %v2240 = vld [vmem:[%s2208 + $0x170] sm:$0xff]
      %s2241 = scalar_lea.vmem %s2, 768
      %v2242 = vld [vmem:[%s2241] sm:$0xff]
      %v2243 = vld [vmem:[%s2241 + $0x8] sm:$0xff]
      %v2244 = vld [vmem:[%s2241 + $0x10] sm:$0xff]
      %v2245 = vld [vmem:[%s2241 + $0x18] sm:$0xff]
      %v2246 = vld [vmem:[%s2241 + $0x20] sm:$0xff]
      %v2247 = vld [vmem:[%s2241 + $0x28] sm:$0xff]
      %v2248 = vld [vmem:[%s2241 + $0x30] sm:$0xff]
      %v2249 = vld [vmem:[%s2241 + $0x38] sm:$0xff]
      %v2250 = vld [vmem:[%s2241 + $0x40] sm:$0xff]
      %v2251 = vld [vmem:[%s2241 + $0x48] sm:$0xff]
      %v2252 = vld [vmem:[%s2241 + $0x50] sm:$0xff]
      %v2253 = vld [vmem:[%s2241 + $0x58] sm:$0xff]
      %v2254 = vld [vmem:[%s2241 + $0x60] sm:$0xff]
      %v2255 = vld [vmem:[%s2241 + $0x68] sm:$0xff]
      %v2256 = vld [vmem:[%s2241 + $0x70] sm:$0xff]
      %v2257 = vld [vmem:[%s2241 + $0x78] sm:$0xff]
      %2258 = vmatprep.subr.mxu0 0.0
      %2259 = vmatpush1.msra.mxu0 %v2242
      %2260 = vmatprep.subr.mxu0 0.0
      %2261 = vmatpush1.msra.mxu0 %v2243
      %2262 = vmatprep.subr.mxu0 0.0
      %2263 = vmatpush1.msra.mxu0 %v2244
      %2264 = vmatprep.subr.mxu0 0.0
      %2265 = vmatpush1.msra.mxu0 %v2245
      %2266 = vmatprep.subr.mxu0 0.0
      %2267 = vmatpush1.msra.mxu0 %v2246
      %2268 = vmatprep.subr.mxu0 0.0
      %2269 = vmatpush1.msra.mxu0 %v2247
      %2270 = vmatprep.subr.mxu0 0.0
      %2271 = vmatpush1.msra.mxu0 %v2248
      %2272 = vmatprep.subr.mxu0 0.0
      %2273 = vmatpush1.msra.mxu0 %v2249
      %2274 = vmatprep.subr.mxu0 0.0
      %2275 = vmatpush1.msra.mxu0 %v2250
      %2276 = vmatprep.subr.mxu0 0.0
      %2277 = vmatpush1.msra.mxu0 %v2251
      %2278 = vmatprep.subr.mxu0 0.0
      %2279 = vmatpush1.msra.mxu0 %v2252
      %2280 = vmatprep.subr.mxu0 0.0
      %2281 = vmatpush1.msra.mxu0 %v2253
      %2282 = vmatprep.subr.mxu0 0.0
      %2283 = vmatpush1.msra.mxu0 %v2254
      %2284 = vmatprep.subr.mxu0 0.0
      %2285 = vmatpush1.msra.mxu0 %v2255
      %2286 = vmatprep.subr.mxu0 0.0
      %2287 = vmatpush1.msra.mxu0 %v2256
      %2288 = vmatprep.subr.mxu0 0.0
      %2289 = vmatpush1.msra.mxu0 %v2257
      %2290 = vmatprep.subr.mxu0 0.0
      %2291 = vmatpush1.msra.mxu0 0.0
      %2292 = vmatprep.subr.mxu0 0.0
      %2293 = vmatpush1.msra.mxu0 0.0
      %2294 = vmatprep.subr.mxu0 0.0
      %2295 = vmatpush1.msra.mxu0 0.0
      %2296 = vmatprep.subr.mxu0 0.0
      %2297 = vmatpush1.msra.mxu0 0.0
      %2298 = vmatprep.subr.mxu0 0.0
      %2299 = vmatpush1.msra.mxu0 0.0
      %2300 = vmatprep.subr.mxu0 0.0
      %2301 = vmatpush1.msra.mxu0 0.0
      %2302 = vmatprep.subr.mxu0 0.0
      %2303 = vmatpush1.msra.mxu0 0.0
      %2304 = vmatprep.subr.mxu0 0.0
      %2305 = vmatpush1.msra.mxu0 0.0
      %2306 = vmatprep.subr.mxu0 0.0
      %2307 = vmatpush1.msra.mxu0 0.0
      %2308 = vmatprep.subr.mxu0 0.0
      %2309 = vmatpush1.msra.mxu0 0.0
      %2310 = vmatprep.subr.mxu0 0.0
      %2311 = vmatpush1.msra.mxu0 0.0
      %2312 = vmatprep.subr.mxu0 0.0
      %2313 = vmatpush1.msra.mxu0 0.0
      %2314 = vmatprep.subr.mxu0 0.0
      %2315 = vmatpush1.msra.mxu0 0.0
      %2316 = vmatprep.subr.mxu0 0.0
      %2317 = vmatpush1.msra.mxu0 0.0
      %2318 = vmatprep.subr.mxu0 0.0
      %2319 = vmatpush1.msra.mxu0 0.0
      %2320 = vmatprep.subr.mxu0 0.0
      %2321 = vmatpush1.msra.mxu0 0.0
      %2322 = vmatprep.mubr.f32.mxu0 0.0
      %2323 = vmatmul.mubr.f32.gmra.mrb[0].mxu0 %v2209
      %v2324 = vpop.f32.mrb[0].mxu0
      %v2325 = vadd.f32 0.0, %v2324
      %v2326 = vpop.f32.mrb[0].mxu0
      %2327 = vmatprep.mubr.f32.mxu0 0.0
      %2328 = vmatmul.mubr.f32.gmra.mrb[0].mxu0 %v2210
      %v2329 = vpop.f32.mrb[0].mxu0
      %v2330 = vadd.f32 0.0, %v2329
      %v2331 = vpop.f32.mrb[0].mxu0
      %2332 = vmatprep.mubr.f32.mxu0 0.0
      %2333 = vmatmul.mubr.f32.gmra.mrb[0].mxu0 %v2211
      %v2334 = vpop.f32.mrb[0].mxu0
      %v2335 = vadd.f32 0.0, %v2334
      %v2336 = vpop.f32.mrb[0].mxu0
      %2337 = vmatprep.mubr.f32.mxu0 0.0
      %2338 = vmatmul.mubr.f32.gmra.mrb[0].mxu0 %v2212
      %v2339 = vpop.f32.mrb[0].mxu0
      %v2340 = vadd.f32 0.0, %v2339
      %v2341 = vpop.f32.mrb[0].mxu0
      %2342 = vmatprep.mubr.f32.mxu0 0.0
      %2343 = vmatmul.mubr.f32.gmra.mrb[0].mxu0 %v2213
      %v2344 = vpop.f32.mrb[0].mxu0
      %v2345 = vadd.f32 0.0, %v2344
      %v2346 = vpop.f32.mrb[0].mxu0
      %2347 = vmatprep.mubr.f32.mxu0 0.0
      %2348 = vmatmul.mubr.f32.gmra.mrb[0].mxu0 %v2214
      %v2349 = vpop.f32.mrb[0].mxu0
      %v2350 = vadd.f32 0.0, %v2349
      %v2351 = vpop.f32.mrb[0].mxu0
      %2352 = vmatprep.mubr.f32.mxu0 0.0
      %2353 = vmatmul.mubr.f32.gmra.mrb[0].mxu0 %v2215
      %v2354 = vpop.f32.mrb[0].mxu0
      %v2355 = vadd.f32 0.0, %v2354
      %v2356 = vpop.f32.mrb[0].mxu0
      %2357 = vmatprep.mubr.f32.mxu0 0.0
      %2358 = vmatmul.mubr.f32.gmra.mrb[0].mxu0 %v2216
      %v2359 = vpop.f32.mrb[0].mxu0
      %v2360 = vadd.f32 0.0, %v2359
      %v2361 = vpop.f32.mrb[0].mxu0
      %2362 = vmatprep.mubr.f32.mxu0 0.0
      %2363 = vmatmul.mubr.f32.gmra.mrb[0].mxu0 %v2217
      %v2364 = vpop.f32.mrb[0].mxu0
      %v2365 = vadd.f32 0.0, %v2364
      %v2366 = vpop.f32.mrb[0].mxu0
      %2367 = vmatprep.mubr.f32.mxu0 0.0
      %2368 = vmatmul.mubr.f32.gmra.mrb[0].mxu0 %v2218
      %v2369 = vpop.f32.mrb[0].mxu0
      %v2370 = vadd.f32 0.0, %v2369
      %v2371 = vpop.f32.mrb[0].mxu0
      %2372 = vmatprep.mubr.f32.mxu0 0.0
      %2373 = vmatmul.mubr.f32.gmra.mrb[0].mxu0 %v2219
      %v2374 = vpop.f32.mrb[0].mxu0
      %v2375 = vadd.f32 0.0, %v2374
      %v2376 = vpop.f32.mrb[0].mxu0
      %2377 = vmatprep.mubr.f32.mxu0 0.0
      %2378 = vmatmul.mubr.f32.gmra.mrb[0].mxu0 %v2220
      %v2379 = vpop.f32.mrb[0].mxu0
      %v2380 = vadd.f32 0.0, %v2379
      %v2381 = vpop.f32.mrb[0].mxu0
      %2382 = vmatprep.mubr.f32.mxu0 0.0
      %2383 = vmatmul.mubr.f32.gmra.mrb[0].mxu0 %v2221
      %v2384 = vpop.f32.mrb[0].mxu0
      %v2385 = vadd.f32 0.0, %v2384
      %v2386 = vpop.f32.mrb[0].mxu0
      %2387 = vmatprep.mubr.f32.mxu0 0.0
      %2388 = vmatmul.mubr.f32.gmra.mrb[0].mxu0 %v2222
      %v2389 = vpop.f32.mrb[0].mxu0
      %v2390 = vadd.f32 0.0, %v2389
      %v2391 = vpop.f32.mrb[0].mxu0
      %2392 = vmatprep.mubr.f32.mxu0 0.0
      %2393 = vmatmul.mubr.f32.gmra.mrb[0].mxu0 %v2223
      %v2394 = vpop.f32.mrb[0].mxu0
      %v2395 = vadd.f32 0.0, %v2394
      %v2396 = vpop.f32.mrb[0].mxu0
      %2397 = vmatprep.mubr.f32.mxu0 0.0
      %2398 = vmatmul.mubr.f32.gmra.mrb[0].mxu0 %v2224
      %v2399 = vpop.f32.mrb[0].mxu0
      %v2400 = vadd.f32 0.0, %v2399
      %v2401 = vpop.f32.mrb[0].mxu0
      %2402 = vmatprep.mubr.f32.mxu0 0.0
      %2403 = vmatmul.mubr.f32.gmra.mrb[0].mxu0 %v2225
      %v2404 = vpop.f32.mrb[0].mxu0
      %v2405 = vadd.f32 0.0, %v2404
      %v2406 = vpop.f32.mrb[0].mxu0
      %2407 = vmatprep.mubr.f32.mxu0 0.0
      %2408 = vmatmul.mubr.f32.gmra.mrb[0].mxu0 %v2226
      %v2409 = vpop.f32.mrb[0].mxu0
      %v2410 = vadd.f32 0.0, %v2409
      %v2411 = vpop.f32.mrb[0].mxu0
      %2412 = vmatprep.mubr.f32.mxu0 0.0
      %2413 = vmatmul.mubr.f32.gmra.mrb[0].mxu0 %v2227
      %v2414 = vpop.f32.mrb[0].mxu0
      %v2415 = vadd.f32 0.0, %v2414
      %v2416 = vpop.f32.mrb[0].mxu0
      %2417 = vmatprep.mubr.f32.mxu0 0.0
      %2418 = vmatmul.mubr.f32.gmra.mrb[0].mxu0 %v2228
      %v2419 = vpop.f32.mrb[0].mxu0
      %v2420 = vadd.f32 0.0, %v2419
      %v2421 = vpop.f32.mrb[0].mxu0
      %2422 = vmatprep.mubr.f32.mxu0 0.0
      %2423 = vmatmul.mubr.f32.gmra.mrb[0].mxu0 %v2229
      %v2424 = vpop.f32.mrb[0].mxu0
      %v2425 = vadd.f32 0.0, %v2424
      %v2426 = vpop.f32.mrb[0].mxu0
      %2427 = vmatprep.mubr.f32.mxu0 0.0
      %2428 = vmatmul.mubr.f32.gmra.mrb[0].mxu0 %v2230
      %v2429 = vpop.f32.mrb[0].mxu0
      %v2430 = vadd.f32 0.0, %v2429
      %v2431 = vpop.f32.mrb[0].mxu0
      %2432 = vmatprep.mubr.f32.mxu0 0.0
      %2433 = vmatmul.mubr.f32.gmra.mrb[0].mxu0 %v2231
      %v2434 = vpop.f32.mrb[0].mxu0
      %v2435 = vadd.f32 0.0, %v2434
      %v2436 = vpop.f32.mrb[0].mxu0
      %2437 = vmatprep.mubr.f32.mxu0 0.0
      %2438 = vmatmul.mubr.f32.gmra.mrb[0].mxu0 %v2232
      %v2439 = vpop.f32.mrb[0].mxu0
      %v2440 = vadd.f32 0.0, %v2439
      %v2441 = vpop.f32.mrb[0].mxu0
      %2442 = vmatprep.mubr.f32.mxu0 0.0
      %2443 = vmatmul.mubr.f32.gmra.mrb[0].mxu0 %v2233
      %v2444 = vpop.f32.mrb[0].mxu0
      %v2445 = vadd.f32 0.0, %v2444
      %v2446 = vpop.f32.mrb[0].mxu0
      %2447 = vmatprep.mubr.f32.mxu0 0.0
      %2448 = vmatmul.mubr.f32.gmra.mrb[0].mxu0 %v2234
      %v2449 = vpop.f32.mrb[0].mxu0
      %v2450 = vadd.f32 0.0, %v2449
      %v2451 = vpop.f32.mrb[0].mxu0
      %2452 = vmatprep.mubr.f32.mxu0 0.0
      %2453 = vmatmul.mubr.f32.gmra.mrb[0].mxu0 %v2235
      %v2454 = vpop.f32.mrb[0].mxu0
      %v2455 = vadd.f32 0.0, %v2454
      %v2456 = vpop.f32.mrb[0].mxu0
      %2457 = vmatprep.mubr.f32.mxu0 0.0
      %2458 = vmatmul.mubr.f32.gmra.mrb[0].mxu0 %v2236
      %v2459 = vpop.f32.mrb[0].mxu0
      %v2460 = vadd.f32 0.0, %v2459
      %v2461 = vpop.f32.mrb[0].mxu0
      %2462 = vmatprep.mubr.f32.mxu0 0.0
      %2463 = vmatmul.mubr.f32.gmra.mrb[0].mxu0 %v2237
      %v2464 = vpop.f32.mrb[0].mxu0
      %v2465 = vadd.f32 0.0, %v2464
      %v2466 = vpop.f32.mrb[0].mxu0
      %2467 = vmatprep.mubr.f32.mxu0 0.0
      %2468 = vmatmul.mubr.f32.gmra.mrb[0].mxu0 %v2238
      %v2469 = vpop.f32.mrb[0].mxu0
      %v2470 = vadd.f32 0.0, %v2469
      %v2471 = vpop.f32.mrb[0].mxu0
      %2472 = vmatprep.mubr.f32.mxu0 0.0
      %2473 = vmatmul.mubr.f32.gmra.mrb[0].mxu0 %v2239
      %v2474 = vpop.f32.mrb[0].mxu0
      %v2475 = vadd.f32 0.0, %v2474
      %v2476 = vpop.f32.mrb[0].mxu0
      %2477 = vmatprep.mubr.f32.mxu0 0.0
      %2478 = vmatmul.mubr.f32.gmra.mrb[0].mxu0 %v2240
      %v2479 = vpop.f32.mrb[0].mxu0
      %v2480 = vadd.f32 0.0, %v2479
      %v2481 = vpop.f32.mrb[0].mxu0
      %2482 = vdwg.mxu0
      %v2483 = vadd.f32 %v2176, %v2325
      %v2484 = vadd.f32 %v2177, %v2330
      %v2485 = vadd.f32 %v2178, %v2335
      %v2486 = vadd.f32 %v2179, %v2340
      %v2487 = vadd.f32 %v2180, %v2345
      %v2488 = vadd.f32 %v2181, %v2350
      %v2489 = vadd.f32 %v2182, %v2355
      %v2490 = vadd.f32 %v2183, %v2360
      %v2491 = vadd.f32 %v2184, %v2365
      %v2492 = vadd.f32 %v2185, %v2370
      %v2493 = vadd.f32 %v2186, %v2375
      %v2494 = vadd.f32 %v2187, %v2380
      %v2495 = vadd.f32 %v2188, %v2385
      %v2496 = vadd.f32 %v2189, %v2390
      %v2497 = vadd.f32 %v2190, %v2395
      %v2498 = vadd.f32 %v2191, %v2400
      %v2499 = vadd.f32 %v2192, %v2405
      %v2500 = vadd.f32 %v2193, %v2410
      %v2501 = vadd.f32 %v2194, %v2415
      %v2502 = vadd.f32 %v2195, %v2420
      %v2503 = vadd.f32 %v2196, %v2425
      %v2504 = vadd.f32 %v2197, %v2430
      %v2505 = vadd.f32 %v2198, %v2435
      %v2506 = vadd.f32 %v2199, %v2440
      %v2507 = vadd.f32 %v2200, %v2445
      %v2508 = vadd.f32 %v2201, %v2450
      %v2509 = vadd.f32 %v2202, %v2455
      %v2510 = vadd.f32 %v2203, %v2460
      %v2511 = vadd.f32 %v2204, %v2465
      %v2512 = vadd.f32 %v2205, %v2470
      %v2513 = vadd.f32 %v2206, %v2475
      %v2514 = vadd.f32 %v2207, %v2480
      %v2515 = vld [vmem:[%s2208 + $0x1] sm:$0xff]
      %v2516 = vld [vmem:[%s2208 + $0x9] sm:$0xff]
      %v2517 = vld [vmem:[%s2208 + $0x19] sm:$0xff]
      %v2518 = vld [vmem:[%s2208 + $0x21] sm:$0xff]
      %v2519 = vld [vmem:[%s2208 + $0x31] sm:$0xff]
      %v2520 = vld [vmem:[%s2208 + $0x39] sm:$0xff]
      %v2521 = vld [vmem:[%s2208 + $0x49] sm:$0xff]
      %v2522 = vld [vmem:[%s2208 + $0x51] sm:$0xff]
      %v2523 = vld [vmem:[%s2208 + $0x61] sm:$0xff]
      %v2524 = vld [vmem:[%s2208 + $0x69] sm:$0xff]
      %v2525 = vld [vmem:[%s2208 + $0x79] sm:$0xff]
      %v2526 = vld [vmem:[%s2208 + $0x81] sm:$0xff]
      %v2527 = vld [vmem:[%s2208 + $0x91] sm:$0xff]
      %v2528 = vld [vmem:[%s2208 + $0x99] sm:$0xff]
      %v2529 = vld [vmem:[%s2208 + $0xa9] sm:$0xff]
      %v2530 = vld [vmem:[%s2208 + $0xb1] sm:$0xff]
      %v2531 = vld [vmem:[%s2208 + $0xc1] sm:$0xff]
      %v2532 = vld [vmem:[%s2208 + $0xc9] sm:$0xff]
      %v2533 = vld [vmem:[%s2208 + $0xd9] sm:$0xff]
      %v2534 = vld [vmem:[%s2208 + $0xe1] sm:$0xff]
      %v2535 = vld [vmem:[%s2208 + $0xf1] sm:$0xff]
      %v2536 = vld [vmem:[%s2208 + $0xf9] sm:$0xff]
      %v2537 = vld [vmem:[%s2208 + $0x109] sm:$0xff]
      %v2538 = vld [vmem:[%s2208 + $0x111] sm:$0xff]
      %v2539 = vld [vmem:[%s2208 + $0x121] sm:$0xff]
      %v2540 = vld [vmem:[%s2208 + $0x129] sm:$0xff]
      %v2541 = vld [vmem:[%s2208 + $0x139] sm:$0xff]
      %v2542 = vld [vmem:[%s2208 + $0x141] sm:$0xff]
      %v2543 = vld [vmem:[%s2208 + $0x151] sm:$0xff]
      %v2544 = vld [vmem:[%s2208 + $0x159] sm:$0xff]
      %v2545 = vld [vmem:[%s2208 + $0x169] sm:$0xff]
      %v2546 = vld [vmem:[%s2208 + $0x171] sm:$0xff]
      %s2547 = scalar_lea.vmem %s2, 896
      %v2548 = vld [vmem:[%s2547] sm:$0xff]
      %v2549 = vld [vmem:[%s2547 + $0x8] sm:$0xff]
      %v2550 = vld [vmem:[%s2547 + $0x10] sm:$0xff]
      %v2551 = vld [vmem:[%s2547 + $0x18] sm:$0xff]
      %v2552 = vld [vmem:[%s2547 + $0x20] sm:$0xff]
      %v2553 = vld [vmem:[%s2547 + $0x28] sm:$0xff]
      %v2554 = vld [vmem:[%s2547 + $0x30] sm:$0xff]
      %v2555 = vld [vmem:[%s2547 + $0x38] sm:$0xff]
      %v2556 = vld [vmem:[%s2547 + $0x40] sm:$0xff]
      %v2557 = vld [vmem:[%s2547 + $0x48] sm:$0xff]
      %v2558 = vld [vmem:[%s2547 + $0x50] sm:$0xff]
      %v2559 = vld [vmem:[%s2547 + $0x58] sm:$0xff]
      %v2560 = vld [vmem:[%s2547 + $0x60] sm:$0xff]
      %v2561 = vld [vmem:[%s2547 + $0x68] sm:$0xff]
      %v2562 = vld [vmem:[%s2547 + $0x70] sm:$0xff]
      %v2563 = vld [vmem:[%s2547 + $0x78] sm:$0xff]
      %2564 = vmatprep.subr.mxu0 0.0
      %2565 = vmatpush1.msra.mxu0 %v2548
      %2566 = vmatprep.subr.mxu0 0.0
      %2567 = vmatpush1.msra.mxu0 %v2549
      %2568 = vmatprep.subr.mxu0 0.0
      %2569 = vmatpush1.msra.mxu0 %v2550
      %2570 = vmatprep.subr.mxu0 0.0
      %2571 = vmatpush1.msra.mxu0 %v2551
      %2572 = vmatprep.subr.mxu0 0.0
      %2573 = vmatpush1.msra.mxu0 %v2552
      %2574 = vmatprep.subr.mxu0 0.0
      %2575 = vmatpush1.msra.mxu0 %v2553
      %2576 = vmatprep.subr.mxu0 0.0
      %2577 = vmatpush1.msra.mxu0 %v2554
      %2578 = vmatprep.subr.mxu0 0.0
      %2579 = vmatpush1.msra.mxu0 %v2555
      %2580 = vmatprep.subr.mxu0 0.0
      %2581 = vmatpush1.msra.mxu0 %v2556
      %2582 = vmatprep.subr.mxu0 0.0
      %2583 = vmatpush1.msra.mxu0 %v2557
      %2584 = vmatprep.subr.mxu0 0.0
      %2585 = vmatpush1.msra.mxu0 %v2558
      %2586 = vmatprep.subr.mxu0 0.0
      %2587 = vmatpush1.msra.mxu0 %v2559
      %2588 = vmatprep.subr.mxu0 0.0
      %2589 = vmatpush1.msra.mxu0 %v2560
      %2590 = vmatprep.subr.mxu0 0.0
      %2591 = vmatpush1.msra.mxu0 %v2561
      %2592 = vmatprep.subr.mxu0 0.0
      %2593 = vmatpush1.msra.mxu0 %v2562
      %2594 = vmatprep.subr.mxu0 0.0
      %2595 = vmatpush1.msra.mxu0 %v2563
      %2596 = vmatprep.subr.mxu0 0.0
      %2597 = vmatpush1.msra.mxu0 0.0
      %2598 = vmatprep.subr.mxu0 0.0
      %2599 = vmatpush1.msra.mxu0 0.0
      %2600 = vmatprep.subr.mxu0 0.0
      %2601 = vmatpush1.msra.mxu0 0.0
      %2602 = vmatprep.subr.mxu0 0.0
      %2603 = vmatpush1.msra.mxu0 0.0
      %2604 = vmatprep.subr.mxu0 0.0
      %2605 = vmatpush1.msra.mxu0 0.0
      %2606 = vmatprep.subr.mxu0 0.0
      %2607 = vmatpush1.msra.mxu0 0.0
      %2608 = vmatprep.subr.mxu0 0.0
      %2609 = vmatpush1.msra.mxu0 0.0
      %2610 = vmatprep.subr.mxu0 0.0
      %2611 = vmatpush1.msra.mxu0 0.0
      %2612 = vmatprep.subr.mxu0 0.0
      %2613 = vmatpush1.msra.mxu0 0.0
      %2614 = vmatprep.subr.mxu0 0.0
      %2615 = vmatpush1.msra.mxu0 0.0
      %2616 = vmatprep.subr.mxu0 0.0
      %2617 = vmatpush1.msra.mxu0 0.0
      %2618 = vmatprep.subr.mxu0 0.0
      %2619 = vmatpush1.msra.mxu0 0.0
      %2620 = vmatprep.subr.mxu0 0.0
      %2621 = vmatpush1.msra.mxu0 0.0
      %2622 = vmatprep.subr.mxu0 0.0
      %2623 = vmatpush1.msra.mxu0 0.0
      %2624 = vmatprep.subr.mxu0 0.0
      %2625 = vmatpush1.msra.mxu0 0.0
      %2626 = vmatprep.subr.mxu0 0.0
      %2627 = vmatpush1.msra.mxu0 0.0
      %2628 = vmatprep.mubr.f32.mxu0 0.0
      %2629 = vmatmul.mubr.f32.gmra.mrb[0].mxu0 %v2515
      %v2630 = vpop.f32.mrb[0].mxu0
      %v2631 = vadd.f32 0.0, %v2630
      %v2632 = vpop.f32.mrb[0].mxu0
      %2633 = vmatprep.mubr.f32.mxu0 0.0
      %2634 = vmatmul.mubr.f32.gmra.mrb[0].mxu0 %v2516
      %v2635 = vpop.f32.mrb[0].mxu0
      %v2636 = vadd.f32 0.0, %v2635
      %v2637 = vpop.f32.mrb[0].mxu0
      %2638 = vmatprep.mubr.f32.mxu0 0.0
      %2639 = vmatmul.mubr.f32.gmra.mrb[0].mxu0 %v2517
      %v2640 = vpop.f32.mrb[0].mxu0
      %v2641 = vadd.f32 0.0, %v2640
      %v2642 = vpop.f32.mrb[0].mxu0
      %2643 = vmatprep.mubr.f32.mxu0 0.0
      %2644 = vmatmul.mubr.f32.gmra.mrb[0].mxu0 %v2518
      %v2645 = vpop.f32.mrb[0].mxu0
      %v2646 = vadd.f32 0.0, %v2645
      %v2647 = vpop.f32.mrb[0].mxu0
      %2648 = vmatprep.mubr.f32.mxu0 0.0
      %2649 = vmatmul.mubr.f32.gmra.mrb[0].mxu0 %v2519
      %v2650 = vpop.f32.mrb[0].mxu0
      %v2651 = vadd.f32 0.0, %v2650
      %v2652 = vpop.f32.mrb[0].mxu0
      %2653 = vmatprep.mubr.f32.mxu0 0.0
      %2654 = vmatmul.mubr.f32.gmra.mrb[0].mxu0 %v2520
      %v2655 = vpop.f32.mrb[0].mxu0
      %v2656 = vadd.f32 0.0, %v2655
      %v2657 = vpop.f32.mrb[0].mxu0
      %2658 = vmatprep.mubr.f32.mxu0 0.0
      %2659 = vmatmul.mubr.f32.gmra.mrb[0].mxu0 %v2521
      %v2660 = vpop.f32.mrb[0].mxu0
      %v2661 = vadd.f32 0.0, %v2660
      %v2662 = vpop.f32.mrb[0].mxu0
      %2663 = vmatprep.mubr.f32.mxu0 0.0
      %2664 = vmatmul.mubr.f32.gmra.mrb[0].mxu0 %v2522
      %v2665 = vpop.f32.mrb[0].mxu0
      %v2666 = vadd.f32 0.0, %v2665
      %v2667 = vpop.f32.mrb[0].mxu0
      %2668 = vmatprep.mubr.f32.mxu0 0.0
      %2669 = vmatmul.mubr.f32.gmra.mrb[0].mxu0 %v2523
      %v2670 = vpop.f32.mrb[0].mxu0
      %v2671 = vadd.f32 0.0, %v2670
      %v2672 = vpop.f32.mrb[0].mxu0
      %2673 = vmatprep.mubr.f32.mxu0 0.0
      %2674 = vmatmul.mubr.f32.gmra.mrb[0].mxu0 %v2524
      %v2675 = vpop.f32.mrb[0].mxu0
      %v2676 = vadd.f32 0.0, %v2675
      %v2677 = vpop.f32.mrb[0].mxu0
      %2678 = vmatprep.mubr.f32.mxu0 0.0
      %2679 = vmatmul.mubr.f32.gmra.mrb[0].mxu0 %v2525
      %v2680 = vpop.f32.mrb[0].mxu0
      %v2681 = vadd.f32 0.0, %v2680
      %v2682 = vpop.f32.mrb[0].mxu0
      %2683 = vmatprep.mubr.f32.mxu0 0.0
      %2684 = vmatmul.mubr.f32.gmra.mrb[0].mxu0 %v2526
      %v2685 = vpop.f32.mrb[0].mxu0
      %v2686 = vadd.f32 0.0, %v2685
      %v2687 = vpop.f32.mrb[0].mxu0
      %2688 = vmatprep.mubr.f32.mxu0 0.0
      %2689 = vmatmul.mubr.f32.gmra.mrb[0].mxu0 %v2527
      %v2690 = vpop.f32.mrb[0].mxu0
      %v2691 = vadd.f32 0.0, %v2690
      %v2692 = vpop.f32.mrb[0].mxu0
      %2693 = vmatprep.mubr.f32.mxu0 0.0
      %2694 = vmatmul.mubr.f32.gmra.mrb[0].mxu0 %v2528
      %v2695 = vpop.f32.mrb[0].mxu0
      %v2696 = vadd.f32 0.0, %v2695
      %v2697 = vpop.f32.mrb[0].mxu0
      %2698 = vmatprep.mubr.f32.mxu0 0.0
      %2699 = vmatmul.mubr.f32.gmra.mrb[0].mxu0 %v2529
      %v2700 = vpop.f32.mrb[0].mxu0
      %v2701 = vadd.f32 0.0, %v2700
      %v2702 = vpop.f32.mrb[0].mxu0
      %2703 = vmatprep.mubr.f32.mxu0 0.0
      %2704 = vmatmul.mubr.f32.gmra.mrb[0].mxu0 %v2530
      %v2705 = vpop.f32.mrb[0].mxu0
      %v2706 = vadd.f32 0.0, %v2705
      %v2707 = vpop.f32.mrb[0].mxu0
      %2708 = vmatprep.mubr.f32.mxu0 0.0
      %2709 = vmatmul.mubr.f32.gmra.mrb[0].mxu0 %v2531
      %v2710 = vpop.f32.mrb[0].mxu0
      %v2711 = vadd.f32 0.0, %v2710
      %v2712 = vpop.f32.mrb[0].mxu0
      %2713 = vmatprep.mubr.f32.mxu0 0.0
      %2714 = vmatmul.mubr.f32.gmra.mrb[0].mxu0 %v2532
      %v2715 = vpop.f32.mrb[0].mxu0
      %v2716 = vadd.f32 0.0, %v2715
      %v2717 = vpop.f32.mrb[0].mxu0
      %2718 = vmatprep.mubr.f32.mxu0 0.0
      %2719 = vmatmul.mubr.f32.gmra.mrb[0].mxu0 %v2533
      %v2720 = vpop.f32.mrb[0].mxu0
      %v2721 = vadd.f32 0.0, %v2720
      %v2722 = vpop.f32.mrb[0].mxu0
      %2723 = vmatprep.mubr.f32.mxu0 0.0
      %2724 = vmatmul.mubr.f32.gmra.mrb[0].mxu0 %v2534
      %v2725 = vpop.f32.mrb[0].mxu0
      %v2726 = vadd.f32 0.0, %v2725
      %v2727 = vpop.f32.mrb[0].mxu0
      %2728 = vmatprep.mubr.f32.mxu0 0.0
      %2729 = vmatmul.mubr.f32.gmra.mrb[0].mxu0 %v2535
      %v2730 = vpop.f32.mrb[0].mxu0
      %v2731 = vadd.f32 0.0, %v2730
      %v2732 = vpop.f32.mrb[0].mxu0
      %2733 = vmatprep.mubr.f32.mxu0 0.0
      %2734 = vmatmul.mubr.f32.gmra.mrb[0].mxu0 %v2536
      %v2735 = vpop.f32.mrb[0].mxu0
      %v2736 = vadd.f32 0.0, %v2735
      %v2737 = vpop.f32.mrb[0].mxu0
      %2738 = vmatprep.mubr.f32.mxu0 0.0
      %2739 = vmatmul.mubr.f32.gmra.mrb[0].mxu0 %v2537
      %v2740 = vpop.f32.mrb[0].mxu0
      %v2741 = vadd.f32 0.0, %v2740
      %v2742 = vpop.f32.mrb[0].mxu0
      %2743 = vmatprep.mubr.f32.mxu0 0.0
      %2744 = vmatmul.mubr.f32.gmra.mrb[0].mxu0 %v2538
      %v2745 = vpop.f32.mrb[0].mxu0
      %v2746 = vadd.f32 0.0, %v2745
      %v2747 = vpop.f32.mrb[0].mxu0
      %2748 = vmatprep.mubr.f32.mxu0 0.0
      %2749 = vmatmul.mubr.f32.gmra.mrb[0].mxu0 %v2539
      %v2750 = vpop.f32.mrb[0].mxu0
      %v2751 = vadd.f32 0.0, %v2750
      %v2752 = vpop.f32.mrb[0].mxu0
      %2753 = vmatprep.mubr.f32.mxu0 0.0
      %2754 = vmatmul.mubr.f32.gmra.mrb[0].mxu0 %v2540
      %v2755 = vpop.f32.mrb[0].mxu0
      %v2756 = vadd.f32 0.0, %v2755
      %v2757 = vpop.f32.mrb[0].mxu0
      %2758 = vmatprep.mubr.f32.mxu0 0.0
      %2759 = vmatmul.mubr.f32.gmra.mrb[0].mxu0 %v2541
      %v2760 = vpop.f32.mrb[0].mxu0
      %v2761 = vadd.f32 0.0, %v2760
      %v2762 = vpop.f32.mrb[0].mxu0
      %2763 = vmatprep.mubr.f32.mxu0 0.0
      %2764 = vmatmul.mubr.f32.gmra.mrb[0].mxu0 %v2542
      %v2765 = vpop.f32.mrb[0].mxu0
      %v2766 = vadd.f32 0.0, %v2765
      %v2767 = vpop.f32.mrb[0].mxu0
      %2768 = vmatprep.mubr.f32.mxu0 0.0
      %2769 = vmatmul.mubr.f32.gmra.mrb[0].mxu0 %v2543
      %v2770 = vpop.f32.mrb[0].mxu0
      %v2771 = vadd.f32 0.0, %v2770
      %v2772 = vpop.f32.mrb[0].mxu0
      %2773 = vmatprep.mubr.f32.mxu0 0.0
      %2774 = vmatmul.mubr.f32.gmra.mrb[0].mxu0 %v2544
      %v2775 = vpop.f32.mrb[0].mxu0
      %v2776 = vadd.f32 0.0, %v2775
      %v2777 = vpop.f32.mrb[0].mxu0
      %2778 = vmatprep.mubr.f32.mxu0 0.0
      %2779 = vmatmul.mubr.f32.gmra.mrb[0].mxu0 %v2545
      %v2780 = vpop.f32.mrb[0].mxu0
      %v2781 = vadd.f32 0.0, %v2780
      %v2782 = vpop.f32.mrb[0].mxu0
      %2783 = vmatprep.mubr.f32.mxu0 0.0
      %2784 = vmatmul.mubr.f32.gmra.mrb[0].mxu0 %v2546
      %v2785 = vpop.f32.mrb[0].mxu0
      %v2786 = vadd.f32 0.0, %v2785
      %v2787 = vpop.f32.mrb[0].mxu0
      %2788 = vdwg.mxu0
      %v2789 = vadd.f32 %v2483, %v2631
      %v2790 = vadd.f32 %v2484, %v2636
      %v2791 = vadd.f32 %v2485, %v2641
      %v2792 = vadd.f32 %v2486, %v2646
      %v2793 = vadd.f32 %v2487, %v2651
      %v2794 = vadd.f32 %v2488, %v2656
      %v2795 = vadd.f32 %v2489, %v2661
      %v2796 = vadd.f32 %v2490, %v2666
      %v2797 = vadd.f32 %v2491, %v2671
      %v2798 = vadd.f32 %v2492, %v2676
      %v2799 = vadd.f32 %v2493, %v2681
      %v2800 = vadd.f32 %v2494, %v2686
      %v2801 = vadd.f32 %v2495, %v2691
      %v2802 = vadd.f32 %v2496, %v2696
      %v2803 = vadd.f32 %v2497, %v2701
      %v2804 = vadd.f32 %v2498, %v2706
      %v2805 = vadd.f32 %v2499, %v2711
      %v2806 = vadd.f32 %v2500, %v2716
      %v2807 = vadd.f32 %v2501, %v2721
      %v2808 = vadd.f32 %v2502, %v2726
      %v2809 = vadd.f32 %v2503, %v2731
      %v2810 = vadd.f32 %v2504, %v2736
      %v2811 = vadd.f32 %v2505, %v2741
      %v2812 = vadd.f32 %v2506, %v2746
      %v2813 = vadd.f32 %v2507, %v2751
      %v2814 = vadd.f32 %v2508, %v2756
      %v2815 = vadd.f32 %v2509, %v2761
      %v2816 = vadd.f32 %v2510, %v2766
      %v2817 = vadd.f32 %v2511, %v2771
      %v2818 = vadd.f32 %v2512, %v2776
      %v2819 = vadd.f32 %v2513, %v2781
      %v2820 = vadd.f32 %v2514, %v2786
      %v2821 = vld [vmem:[%s2208 + $0x2] sm:$0xff]
      %v2822 = vld [vmem:[%s2208 + $0xa] sm:$0xff]
      %v2823 = vld [vmem:[%s2208 + $0x1a] sm:$0xff]
      %v2824 = vld [vmem:[%s2208 + $0x22] sm:$0xff]
      %v2825 = vld [vmem:[%s2208 + $0x32] sm:$0xff]
      %v2826 = vld [vmem:[%s2208 + $0x3a] sm:$0xff]
      %v2827 = vld [vmem:[%s2208 + $0x4a] sm:$0xff]
      %v2828 = vld [vmem:[%s2208 + $0x52] sm:$0xff]
      %v2829 = vld [vmem:[%s2208 + $0x62] sm:$0xff]
      %v2830 = vld [vmem:[%s2208 + $0x6a] sm:$0xff]
      %v2831 = vld [vmem:[%s2208 + $0x7a] sm:$0xff]
      %v2832 = vld [vmem:[%s2208 + $0x82] sm:$0xff]
      %v2833 = vld [vmem:[%s2208 + $0x92] sm:$0xff]
      %v2834 = vld [vmem:[%s2208 + $0x9a] sm:$0xff]
      %v2835 = vld [vmem:[%s2208 + $0xaa] sm:$0xff]
      %v2836 = vld [vmem:[%s2208 + $0xb2] sm:$0xff]
      %v2837 = vld [vmem:[%s2208 + $0xc2] sm:$0xff]
      %v2838 = vld [vmem:[%s2208 + $0xca] sm:$0xff]
      %v2839 = vld [vmem:[%s2208 + $0xda] sm:$0xff]
      %v2840 = vld [vmem:[%s2208 + $0xe2] sm:$0xff]
      %v2841 = vld [vmem:[%s2208 + $0xf2] sm:$0xff]
      %v2842 = vld [vmem:[%s2208 + $0xfa] sm:$0xff]
      %v2843 = vld [vmem:[%s2208 + $0x10a] sm:$0xff]
      %v2844 = vld [vmem:[%s2208 + $0x112] sm:$0xff]
      %v2845 = vld [vmem:[%s2208 + $0x122] sm:$0xff]
      %v2846 = vld [vmem:[%s2208 + $0x12a] sm:$0xff]
      %v2847 = vld [vmem:[%s2208 + $0x13a] sm:$0xff]
      %v2848 = vld [vmem:[%s2208 + $0x142] sm:$0xff]
      %v2849 = vld [vmem:[%s2208 + $0x152] sm:$0xff]
      %v2850 = vld [vmem:[%s2208 + $0x15a] sm:$0xff]
      %v2851 = vld [vmem:[%s2208 + $0x16a] sm:$0xff]
      %v2852 = vld [vmem:[%s2208 + $0x172] sm:$0xff]
      %s2853 = scalar_lea.vmem %s2, 1024
      %v2854 = vld [vmem:[%s2853] sm:$0xff]
      %v2855 = vld [vmem:[%s2853 + $0x8] sm:$0xff]
      %v2856 = vld [vmem:[%s2853 + $0x10] sm:$0xff]
      %v2857 = vld [vmem:[%s2853 + $0x18] sm:$0xff]
      %v2858 = vld [vmem:[%s2853 + $0x20] sm:$0xff]
      %v2859 = vld [vmem:[%s2853 + $0x28] sm:$0xff]
      %v2860 = vld [vmem:[%s2853 + $0x30] sm:$0xff]
      %v2861 = vld [vmem:[%s2853 + $0x38] sm:$0xff]
      %v2862 = vld [vmem:[%s2853 + $0x40] sm:$0xff]
      %v2863 = vld [vmem:[%s2853 + $0x48] sm:$0xff]
      %v2864 = vld [vmem:[%s2853 + $0x50] sm:$0xff]
      %v2865 = vld [vmem:[%s2853 + $0x58] sm:$0xff]
      %v2866 = vld [vmem:[%s2853 + $0x60] sm:$0xff]
      %v2867 = vld [vmem:[%s2853 + $0x68] sm:$0xff]
      %v2868 = vld [vmem:[%s2853 + $0x70] sm:$0xff]
      %v2869 = vld [vmem:[%s2853 + $0x78] sm:$0xff]
      %2870 = vmatprep.subr.mxu0 0.0
      %2871 = vmatpush1.msra.mxu0 %v2854
      %2872 = vmatprep.subr.mxu0 0.0
      %2873 = vmatpush1.msra.mxu0 %v2855
      %2874 = vmatprep.subr.mxu0 0.0
      %2875 = vmatpush1.msra.mxu0 %v2856
      %2876 = vmatprep.subr.mxu0 0.0
      %2877 = vmatpush1.msra.mxu0 %v2857
      %2878 = vmatprep.subr.mxu0 0.0
      %2879 = vmatpush1.msra.mxu0 %v2858
      %2880 = vmatprep.subr.mxu0 0.0
      %2881 = vmatpush1.msra.mxu0 %v2859
      %2882 = vmatprep.subr.mxu0 0.0
      %2883 = vmatpush1.msra.mxu0 %v2860
      %2884 = vmatprep.subr.mxu0 0.0
      %2885 = vmatpush1.msra.mxu0 %v2861
      %2886 = vmatprep.subr.mxu0 0.0
      %2887 = vmatpush1.msra.mxu0 %v2862
      %2888 = vmatprep.subr.mxu0 0.0
      %2889 = vmatpush1.msra.mxu0 %v2863
      %2890 = vmatprep.subr.mxu0 0.0
      %2891 = vmatpush1.msra.mxu0 %v2864
      %2892 = vmatprep.subr.mxu0 0.0
      %2893 = vmatpush1.msra.mxu0 %v2865
      %2894 = vmatprep.subr.mxu0 0.0
      %2895 = vmatpush1.msra.mxu0 %v2866
      %2896 = vmatprep.subr.mxu0 0.0
      %2897 = vmatpush1.msra.mxu0 %v2867
      %2898 = vmatprep.subr.mxu0 0.0
      %2899 = vmatpush1.msra.mxu0 %v2868
      %2900 = vmatprep.subr.mxu0 0.0
      %2901 = vmatpush1.msra.mxu0 %v2869
      %2902 = vmatprep.subr.mxu0 0.0
      %2903 = vmatpush1.msra.mxu0 0.0
      %2904 = vmatprep.subr.mxu0 0.0
      %2905 = vmatpush1.msra.mxu0 0.0
      %2906 = vmatprep.subr.mxu0 0.0
      %2907 = vmatpush1.msra.mxu0 0.0
      %2908 = vmatprep.subr.mxu0 0.0
      %2909 = vmatpush1.msra.mxu0 0.0
      %2910 = vmatprep.subr.mxu0 0.0
      %2911 = vmatpush1.msra.mxu0 0.0
      %2912 = vmatprep.subr.mxu0 0.0
      %2913 = vmatpush1.msra.mxu0 0.0
      %2914 = vmatprep.subr.mxu0 0.0
      %2915 = vmatpush1.msra.mxu0 0.0
      %2916 = vmatprep.subr.mxu0 0.0
      %2917 = vmatpush1.msra.mxu0 0.0
      %2918 = vmatprep.subr.mxu0 0.0
      %2919 = vmatpush1.msra.mxu0 0.0
      %2920 = vmatprep.subr.mxu0 0.0
      %2921 = vmatpush1.msra.mxu0 0.0
      %2922 = vmatprep.subr.mxu0 0.0
      %2923 = vmatpush1.msra.mxu0 0.0
      %2924 = vmatprep.subr.mxu0 0.0
      %2925 = vmatpush1.msra.mxu0 0.0
      %2926 = vmatprep.subr.mxu0 0.0
      %2927 = vmatpush1.msra.mxu0 0.0
      %2928 = vmatprep.subr.mxu0 0.0
      %2929 = vmatpush1.msra.mxu0 0.0
      %2930 = vmatprep.subr.mxu0 0.0
      %2931 = vmatpush1.msra.mxu0 0.0
      %2932 = vmatprep.subr.mxu0 0.0
      %2933 = vmatpush1.msra.mxu0 0.0
      %2934 = vmatprep.mubr.f32.mxu0 0.0
      %2935 = vmatmul.mubr.f32.gmra.mrb[0].mxu0 %v2821
      %v2936 = vpop.f32.mrb[0].mxu0
      %v2937 = vadd.f32 0.0, %v2936
      %v2938 = vpop.f32.mrb[0].mxu0
      %2939 = vmatprep.mubr.f32.mxu0 0.0
      %2940 = vmatmul.mubr.f32.gmra.mrb[0].mxu0 %v2822
      %v2941 = vpop.f32.mrb[0].mxu0
      %v2942 = vadd.f32 0.0, %v2941
      %v2943 = vpop.f32.mrb[0].mxu0
      %2944 = vmatprep.mubr.f32.mxu0 0.0
      %2945 = vmatmul.mubr.f32.gmra.mrb[0].mxu0 %v2823
      %v2946 = vpop.f32.mrb[0].mxu0
      %v2947 = vadd.f32 0.0, %v2946
      %v2948 = vpop.f32.mrb[0].mxu0
      %2949 = vmatprep.mubr.f32.mxu0 0.0
      %2950 = vmatmul.mubr.f32.gmra.mrb[0].mxu0 %v2824
      %v2951 = vpop.f32.mrb[0].mxu0
      %v2952 = vadd.f32 0.0, %v2951
      %v2953 = vpop.f32.mrb[0].mxu0
      %2954 = vmatprep.mubr.f32.mxu0 0.0
      %2955 = vmatmul.mubr.f32.gmra.mrb[0].mxu0 %v2825
      %v2956 = vpop.f32.mrb[0].mxu0
      %v2957 = vadd.f32 0.0, %v2956
      %v2958 = vpop.f32.mrb[0].mxu0
      %2959 = vmatprep.mubr.f32.mxu0 0.0
      %2960 = vmatmul.mubr.f32.gmra.mrb[0].mxu0 %v2826
      %v2961 = vpop.f32.mrb[0].mxu0
      %v2962 = vadd.f32 0.0, %v2961
      %v2963 = vpop.f32.mrb[0].mxu0
      %2964 = vmatprep.mubr.f32.mxu0 0.0
      %2965 = vmatmul.mubr.f32.gmra.mrb[0].mxu0 %v2827
      %v2966 = vpop.f32.mrb[0].mxu0
      %v2967 = vadd.f32 0.0, %v2966
      %v2968 = vpop.f32.mrb[0].mxu0
      %2969 = vmatprep.mubr.f32.mxu0 0.0
      %2970 = vmatmul.mubr.f32.gmra.mrb[0].mxu0 %v2828
      %v2971 = vpop.f32.mrb[0].mxu0
      %v2972 = vadd.f32 0.0, %v2971
      %v2973 = vpop.f32.mrb[0].mxu0
      %2974 = vmatprep.mubr.f32.mxu0 0.0
      %2975 = vmatmul.mubr.f32.gmra.mrb[0].mxu0 %v2829
      %v2976 = vpop.f32.mrb[0].mxu0
      %v2977 = vadd.f32 0.0, %v2976
      %v2978 = vpop.f32.mrb[0].mxu0
      %2979 = vmatprep.mubr.f32.mxu0 0.0
      %2980 = vmatmul.mubr.f32.gmra.mrb[0].mxu0 %v2830
      %v2981 = vpop.f32.mrb[0].mxu0
      %v2982 = vadd.f32 0.0, %v2981
      %v2983 = vpop.f32.mrb[0].mxu0
      %2984 = vmatprep.mubr.f32.mxu0 0.0
      %2985 = vmatmul.mubr.f32.gmra.mrb[0].mxu0 %v2831
      %v2986 = vpop.f32.mrb[0].mxu0
      %v2987 = vadd.f32 0.0, %v2986
      %v2988 = vpop.f32.mrb[0].mxu0
      %2989 = vmatprep.mubr.f32.mxu0 0.0
      %2990 = vmatmul.mubr.f32.gmra.mrb[0].mxu0 %v2832
      %v2991 = vpop.f32.mrb[0].mxu0
      %v2992 = vadd.f32 0.0, %v2991
      %v2993 = vpop.f32.mrb[0].mxu0
      %2994 = vmatprep.mubr.f32.mxu0 0.0
      %2995 = vmatmul.mubr.f32.gmra.mrb[0].mxu0 %v2833
      %v2996 = vpop.f32.mrb[0].mxu0
      %v2997 = vadd.f32 0.0, %v2996
      %v2998 = vpop.f32.mrb[0].mxu0
      %2999 = vmatprep.mubr.f32.mxu0 0.0
      %3000 = vmatmul.mubr.f32.gmra.mrb[0].mxu0 %v2834
      %v3001 = vpop.f32.mrb[0].mxu0
      %v3002 = vadd.f32 0.0, %v3001
      %v3003 = vpop.f32.mrb[0].mxu0
      %3004 = vmatprep.mubr.f32.mxu0 0.0
      %3005 = vmatmul.mubr.f32.gmra.mrb[0].mxu0 %v2835
      %v3006 = vpop.f32.mrb[0].mxu0
      %v3007 = vadd.f32 0.0, %v3006
      %v3008 = vpop.f32.mrb[0].mxu0
      %3009 = vmatprep.mubr.f32.mxu0 0.0
      %3010 = vmatmul.mubr.f32.gmra.mrb[0].mxu0 %v2836
      %v3011 = vpop.f32.mrb[0].mxu0
      %v3012 = vadd.f32 0.0, %v3011
      %v3013 = vpop.f32.mrb[0].mxu0
      %3014 = vmatprep.mubr.f32.mxu0 0.0
      %3015 = vmatmul.mubr.f32.gmra.mrb[0].mxu0 %v2837
      %v3016 = vpop.f32.mrb[0].mxu0
      %v3017 = vadd.f32 0.0, %v3016
      %v3018 = vpop.f32.mrb[0].mxu0
      %3019 = vmatprep.mubr.f32.mxu0 0.0
      %3020 = vmatmul.mubr.f32.gmra.mrb[0].mxu0 %v2838
      %v3021 = vpop.f32.mrb[0].mxu0
      %v3022 = vadd.f32 0.0, %v3021
      %v3023 = vpop.f32.mrb[0].mxu0
      %3024 = vmatprep.mubr.f32.mxu0 0.0
      %3025 = vmatmul.mubr.f32.gmra.mrb[0].mxu0 %v2839
      %v3026 = vpop.f32.mrb[0].mxu0
      %v3027 = vadd.f32 0.0, %v3026
      %v3028 = vpop.f32.mrb[0].mxu0
      %3029 = vmatprep.mubr.f32.mxu0 0.0
      %3030 = vmatmul.mubr.f32.gmra.mrb[0].mxu0 %v2840
      %v3031 = vpop.f32.mrb[0].mxu0
      %v3032 = vadd.f32 0.0, %v3031
      %v3033 = vpop.f32.mrb[0].mxu0
      %3034 = vmatprep.mubr.f32.mxu0 0.0
      %3035 = vmatmul.mubr.f32.gmra.mrb[0].mxu0 %v2841
      %v3036 = vpop.f32.mrb[0].mxu0
      %v3037 = vadd.f32 0.0, %v3036
      %v3038 = vpop.f32.mrb[0].mxu0
      %3039 = vmatprep.mubr.f32.mxu0 0.0
      %3040 = vmatmul.mubr.f32.gmra.mrb[0].mxu0 %v2842
      %v3041 = vpop.f32.mrb[0].mxu0
      %v3042 = vadd.f32 0.0, %v3041
      %v3043 = vpop.f32.mrb[0].mxu0
      %3044 = vmatprep.mubr.f32.mxu0 0.0
      %3045 = vmatmul.mubr.f32.gmra.mrb[0].mxu0 %v2843
      %v3046 = vpop.f32.mrb[0].mxu0
      %v3047 = vadd.f32 0.0, %v3046
      %v3048 = vpop.f32.mrb[0].mxu0
      %3049 = vmatprep.mubr.f32.mxu0 0.0
      %3050 = vmatmul.mubr.f32.gmra.mrb[0].mxu0 %v2844
      %v3051 = vpop.f32.mrb[0].mxu0
      %v3052 = vadd.f32 0.0, %v3051
      %v3053 = vpop.f32.mrb[0].mxu0
      %3054 = vmatprep.mubr.f32.mxu0 0.0
      %3055 = vmatmul.mubr.f32.gmra.mrb[0].mxu0 %v2845
      %v3056 = vpop.f32.mrb[0].mxu0
      %v3057 = vadd.f32 0.0, %v3056
      %v3058 = vpop.f32.mrb[0].mxu0
      %3059 = vmatprep.mubr.f32.mxu0 0.0
      %3060 = vmatmul.mubr.f32.gmra.mrb[0].mxu0 %v2846
      %v3061 = vpop.f32.mrb[0].mxu0
      %v3062 = vadd.f32 0.0, %v3061
      %v3063 = vpop.f32.mrb[0].mxu0
      %3064 = vmatprep.mubr.f32.mxu0 0.0
      %3065 = vmatmul.mubr.f32.gmra.mrb[0].mxu0 %v2847
      %v3066 = vpop.f32.mrb[0].mxu0
      %v3067 = vadd.f32 0.0, %v3066
      %v3068 = vpop.f32.mrb[0].mxu0
      %3069 = vmatprep.mubr.f32.mxu0 0.0
      %3070 = vmatmul.mubr.f32.gmra.mrb[0].mxu0 %v2848
      %v3071 = vpop.f32.mrb[0].mxu0
      %v3072 = vadd.f32 0.0, %v3071
      %v3073 = vpop.f32.mrb[0].mxu0
      %3074 = vmatprep.mubr.f32.mxu0 0.0
      %3075 = vmatmul.mubr.f32.gmra.mrb[0].mxu0 %v2849
      %v3076 = vpop.f32.mrb[0].mxu0
      %v3077 = vadd.f32 0.0, %v3076
      %v3078 = vpop.f32.mrb[0].mxu0
      %3079 = vmatprep.mubr.f32.mxu0 0.0
      %3080 = vmatmul.mubr.f32.gmra.mrb[0].mxu0 %v2850
      %v3081 = vpop.f32.mrb[0].mxu0
      %v3082 = vadd.f32 0.0, %v3081
      %v3083 = vpop.f32.mrb[0].mxu0
      %3084 = vmatprep.mubr.f32.mxu0 0.0
      %3085 = vmatmul.mubr.f32.gmra.mrb[0].mxu0 %v2851
      %v3086 = vpop.f32.mrb[0].mxu0
      %v3087 = vadd.f32 0.0, %v3086
      %v3088 = vpop.f32.mrb[0].mxu0
      %3089 = vmatprep.mubr.f32.mxu0 0.0
      %3090 = vmatmul.mubr.f32.gmra.mrb[0].mxu0 %v2852
      %v3091 = vpop.f32.mrb[0].mxu0
      %v3092 = vadd.f32 0.0, %v3091
      %v3093 = vpop.f32.mrb[0].mxu0
      %3094 = vdwg.mxu0
      %v3095 = vadd.f32 %v2789, %v2937
      %v3096 = vadd.f32 %v2790, %v2942
      %v3097 = vadd.f32 %v2791, %v2947
      %v3098 = vadd.f32 %v2792, %v2952
      %v3099 = vadd.f32 %v2793, %v2957
      %v3100 = vadd.f32 %v2794, %v2962
      %v3101 = vadd.f32 %v2795, %v2967
      %v3102 = vadd.f32 %v2796, %v2972
      %v3103 = vadd.f32 %v2797, %v2977
      %v3104 = vadd.f32 %v2798, %v2982
      %v3105 = vadd.f32 %v2799, %v2987
      %v3106 = vadd.f32 %v2800, %v2992
      %v3107 = vadd.f32 %v2801, %v2997
      %v3108 = vadd.f32 %v2802, %v3002
      %v3109 = vadd.f32 %v2803, %v3007
      %v3110 = vadd.f32 %v2804, %v3012
      %v3111 = vadd.f32 %v2805, %v3017
      %v3112 = vadd.f32 %v2806, %v3022
      %v3113 = vadd.f32 %v2807, %v3027
      %v3114 = vadd.f32 %v2808, %v3032
      %v3115 = vadd.f32 %v2809, %v3037
      %v3116 = vadd.f32 %v2810, %v3042
      %v3117 = vadd.f32 %v2811, %v3047
      %v3118 = vadd.f32 %v2812, %v3052
      %v3119 = vadd.f32 %v2813, %v3057
      %v3120 = vadd.f32 %v2814, %v3062
      %v3121 = vadd.f32 %v2815, %v3067
      %v3122 = vadd.f32 %v2816, %v3072
      %v3123 = vadd.f32 %v2817, %v3077
      %v3124 = vadd.f32 %v2818, %v3082
      %v3125 = vadd.f32 %v2819, %v3087
      %v3126 = vadd.f32 %v2820, %v3092
      %v3127 = vld [vmem:[%s3] sm:$0x1]
      %v3129 = vlaneseq
      %v3130 = vshrl.u32 %v3129, 7
      %v3131 = vsub.s32 0, %v3130
      %v3132 = vrot.slane %v3127, %v3131
      %v3134 = vadd.f32 %v3095, %v3132
      %v3135 = vadd.f32 %v3096, %v3132
      %v3136 = vadd.f32 %v3097, %v3132
      %v3137 = vadd.f32 %v3098, %v3132
      %v3138 = vadd.f32 %v3099, %v3132
      %v3139 = vadd.f32 %v3100, %v3132
      %v3140 = vadd.f32 %v3101, %v3132
      %v3141 = vadd.f32 %v3102, %v3132
      %v3142 = vadd.f32 %v3103, %v3132
      %v3143 = vadd.f32 %v3104, %v3132
      %v3144 = vadd.f32 %v3105, %v3132
      %v3145 = vadd.f32 %v3106, %v3132
      %v3146 = vadd.f32 %v3107, %v3132
      %v3147 = vadd.f32 %v3108, %v3132
      %v3148 = vadd.f32 %v3109, %v3132
      %v3149 = vadd.f32 %v3110, %v3132
      %v3150 = vadd.f32 %v3111, %v3132
      %v3151 = vadd.f32 %v3112, %v3132
      %v3152 = vadd.f32 %v3113, %v3132
      %v3153 = vadd.f32 %v3114, %v3132
      %v3154 = vadd.f32 %v3115, %v3132
      %v3155 = vadd.f32 %v3116, %v3132
      %v3156 = vadd.f32 %v3117, %v3132
      %v3157 = vadd.f32 %v3118, %v3132
      %v3158 = vadd.f32 %v3119, %v3132
      %v3159 = vadd.f32 %v3120, %v3132
      %v3160 = vadd.f32 %v3121, %v3132
      %v3161 = vadd.f32 %v3122, %v3132
      %v3162 = vadd.f32 %v3123, %v3132
      %v3163 = vadd.f32 %v3124, %v3132
      %v3164 = vadd.f32 %v3125, %v3132
      %v3165 = vadd.f32 %v3126, %v3132
      %v3166 = vadd.f32 %v3134, %v3135
      %v3167 = vadd.f32 %v3166, %v3136
      %v3168 = vadd.f32 %v3167, %v3137
      %v3169 = vadd.f32 %v3168, %v3138
      %v3170 = vadd.f32 %v3169, %v3139
      %v3171 = vadd.f32 %v3170, %v3140
      %v3172 = vadd.f32 %v3171, %v3141
      %v3173 = vadd.f32 %v3172, %v3142
      %v3174 = vadd.f32 %v3173, %v3143
      %v3175 = vadd.f32 %v3174, %v3144
      %v3176 = vadd.f32 %v3175, %v3145
      %v3177 = vadd.f32 %v3176, %v3146
      %v3178 = vadd.f32 %v3177, %v3147
      %v3179 = vadd.f32 %v3178, %v3148
      %v3180 = vadd.f32 %v3179, %v3149
      %v3181 = vadd.f32 %v3180, %v3150
      %v3182 = vadd.f32 %v3181, %v3151
      %v3183 = vadd.f32 %v3182, %v3152
      %v3184 = vadd.f32 %v3183, %v3153
      %v3185 = vadd.f32 %v3184, %v3154
      %v3186 = vadd.f32 %v3185, %v3155
      %v3187 = vadd.f32 %v3186, %v3156
      %v3188 = vadd.f32 %v3187, %v3157
      %v3189 = vadd.f32 %v3188, %v3158
      %v3190 = vadd.f32 %v3189, %v3159
      %v3191 = vadd.f32 %v3190, %v3160
      %v3192 = vadd.f32 %v3191, %v3161
      %v3193 = vadd.f32 %v3192, %v3162
      %v3194 = vadd.f32 %v3193, %v3163
      %v3195 = vadd.f32 %v3194, %v3164
      %v3196 = vadd.f32 %v3195, %v3165
      %v3197 = vrot.slane %v3196, 4
      %v3198 = vadd.f32 %v3196, %v3197
      %v3199 = vrot.slane %v3198, 2
      %v3200 = vadd.f32 %v3198, %v3199
      %v3201 = vrot.slane %v3200, 1
      %v3202 = vadd.f32 %v3200, %v3201
      %v3203 = vrcp.pop 256.0
      %v3204 = vmul.f32 %v3202, %v3203
      %v3205 = vld [vmem:[%s4] sm:$0xff]
      %v3206 = vld [vmem:[%s4 + $0x8] sm:$0xff]
      %v3207 = vld [vmem:[%s4 + $0x10] sm:$0xff]
      %v3208 = vld [vmem:[%s4 + $0x18] sm:$0xff]
      %v3209 = vld [vmem:[%s4 + $0x20] sm:$0xff]
      %v3210 = vld [vmem:[%s4 + $0x28] sm:$0xff]
      %v3211 = vld [vmem:[%s4 + $0x30] sm:$0xff]
      %v3212 = vld [vmem:[%s4 + $0x38] sm:$0xff]
      %v3213 = vld [vmem:[%s4 + $0x40] sm:$0xff]
      %v3214 = vld [vmem:[%s4 + $0x48] sm:$0xff]
      %v3215 = vld [vmem:[%s4 + $0x50] sm:$0xff]
      %v3216 = vld [vmem:[%s4 + $0x58] sm:$0xff]
      %v3217 = vld [vmem:[%s4 + $0x60] sm:$0xff]
      %v3218 = vld [vmem:[%s4 + $0x68] sm:$0xff]
      %v3219 = vld [vmem:[%s4 + $0x70] sm:$0xff]
      %v3220 = vld [vmem:[%s4 + $0x78] sm:$0xff]
      %v3221 = vld [vmem:[%s5] sm:$0x1]
      %v3223 = vlaneseq
      %v3224 = vshrl.u32 %v3223, 7
      %v3225 = vsub.s32 0, %v3224
      %v3226 = vrot.slane %v3221, %v3225
      %3228 = vmatprep.subr.mxu0 0.0
      %3229 = vmatpush1.msra.mxu0 %v3205
      %3230 = vmatprep.subr.mxu0 0.0
      %3231 = vmatpush1.msra.mxu0 %v3206
      %3232 = vmatprep.subr.mxu0 0.0
      %3233 = vmatpush1.msra.mxu0 %v3207
      %3234 = vmatprep.subr.mxu0 0.0
      %3235 = vmatpush1.msra.mxu0 %v3208
      %3236 = vmatprep.subr.mxu0 0.0
      %3237 = vmatpush1.msra.mxu0 %v3209
      %3238 = vmatprep.subr.mxu0 0.0
      %3239 = vmatpush1.msra.mxu0 %v3210
      %3240 = vmatprep.subr.mxu0 0.0
      %3241 = vmatpush1.msra.mxu0 %v3211
      %3242 = vmatprep.subr.mxu0 0.0
      %3243 = vmatpush1.msra.mxu0 %v3212
      %3244 = vmatprep.subr.mxu0 0.0
      %3245 = vmatpush1.msra.mxu0 %v3213
      %3246 = vmatprep.subr.mxu0 0.0
      %3247 = vmatpush1.msra.mxu0 %v3214
      %3248 = vmatprep.subr.mxu0 0.0
      %3249 = vmatpush1.msra.mxu0 %v3215
      %3250 = vmatprep.subr.mxu0 0.0
      %3251 = vmatpush1.msra.mxu0 %v3216
      %3252 = vmatprep.subr.mxu0 0.0
      %3253 = vmatpush1.msra.mxu0 %v3217
      %3254 = vmatprep.subr.mxu0 0.0
      %3255 = vmatpush1.msra.mxu0 %v3218
      %3256 = vmatprep.subr.mxu0 0.0
      %3257 = vmatpush1.msra.mxu0 %v3219
      %3258 = vmatprep.subr.mxu0 0.0
      %3259 = vmatpush1.msra.mxu0 %v3220
      %3260 = vmatprep.subr.mxu0 0.0
      %3261 = vmatpush1.msra.mxu0 0.0
      %3262 = vmatprep.subr.mxu0 0.0
      %3263 = vmatpush1.msra.mxu0 0.0
      %3264 = vmatprep.subr.mxu0 0.0
      %3265 = vmatpush1.msra.mxu0 0.0
      %3266 = vmatprep.subr.mxu0 0.0
      %3267 = vmatpush1.msra.mxu0 0.0
      %3268 = vmatprep.subr.mxu0 0.0
      %3269 = vmatpush1.msra.mxu0 0.0
      %3270 = vmatprep.subr.mxu0 0.0
      %3271 = vmatpush1.msra.mxu0 0.0
      %3272 = vmatprep.subr.mxu0 0.0
      %3273 = vmatpush1.msra.mxu0 0.0
      %3274 = vmatprep.subr.mxu0 0.0
      %3275 = vmatpush1.msra.mxu0 0.0
      %3276 = vmatprep.subr.mxu0 0.0
      %3277 = vmatpush1.msra.mxu0 0.0
      %3278 = vmatprep.subr.mxu0 0.0
      %3279 = vmatpush1.msra.mxu0 0.0
      %3280 = vmatprep.subr.mxu0 0.0
      %3281 = vmatpush1.msra.mxu0 0.0
      %3282 = vmatprep.subr.mxu0 0.0
      %3283 = vmatpush1.msra.mxu0 0.0
      %3284 = vmatprep.subr.mxu0 0.0
      %3285 = vmatpush1.msra.mxu0 0.0
      %3286 = vmatprep.subr.mxu0 0.0
      %3287 = vmatpush1.msra.mxu0 0.0
      %3288 = vmatprep.subr.mxu0 0.0
      %3289 = vmatpush1.msra.mxu0 0.0
      %3290 = vmatprep.subr.mxu0 0.0
      %3291 = vmatpush1.msra.mxu0 0.0
      %3292 = vmatprep.mubr.f32.mxu0 0.0
      %3293 = vmatmul.mubr.f32.gmra.mrb[0].mxu0 %v3204
      %v3294 = vpop.f32.mrb[0].mxu0
      %v3295 = vadd.f32 %v3226, %v3294
      %v3296 = vpop.f32.mrb[0].mxu0
      %3297 = vdwg.mxu0
      %v3298 = vmax.f32 %v3295, 0.0
      %v3299 = vld [vmem:[%s6] sm:$0xff]
      %v3300 = vld [vmem:[%s6 + $0x8] sm:$0xff]
      %v3301 = vld [vmem:[%s6 + $0x10] sm:$0xff]
      %v3302 = vld [vmem:[%s6 + $0x18] sm:$0xff]
      %v3303 = vld [vmem:[%s6 + $0x20] sm:$0xff]
      %v3304 = vld [vmem:[%s6 + $0x28] sm:$0xff]
      %v3305 = vld [vmem:[%s6 + $0x30] sm:$0xff]
      %v3306 = vld [vmem:[%s6 + $0x38] sm:$0xff]
      %v3307 = vld [vmem:[%s6 + $0x40] sm:$0xff]
      %v3308 = vld [vmem:[%s6 + $0x48] sm:$0xff]
      %v3309 = vld [vmem:[%s6 + $0x50] sm:$0xff]
      %v3310 = vld [vmem:[%s6 + $0x58] sm:$0xff]
      %v3311 = vld [vmem:[%s6 + $0x60] sm:$0xff]
      %v3312 = vld [vmem:[%s6 + $0x68] sm:$0xff]
      %v3313 = vld [vmem:[%s6 + $0x70] sm:$0xff]
      %v3314 = vld [vmem:[%s6 + $0x78] sm:$0xff]
      %v3315 = vld [vmem:[%s7] sm:$0x1]
      %v3317 = vlaneseq
      %v3318 = vshrl.u32 %v3317, 7
      %v3319 = vsub.s32 0, %v3318
      %v3320 = vrot.slane %v3315, %v3319
      %3322 = vmatprep.subr.mxu0 0.0
      %3323 = vmatpush1.msra.mxu0 %v3299
      %3324 = vmatprep.subr.mxu0 0.0
      %3325 = vmatpush1.msra.mxu0 %v3300
      %3326 = vmatprep.subr.mxu0 0.0
      %3327 = vmatpush1.msra.mxu0 %v3301
      %3328 = vmatprep.subr.mxu0 0.0
      %3329 = vmatpush1.msra.mxu0 %v3302
      %3330 = vmatprep.subr.mxu0 0.0
      %3331 = vmatpush1.msra.mxu0 %v3303
      %3332 = vmatprep.subr.mxu0 0.0
      %3333 = vmatpush1.msra.mxu0 %v3304
      %3334 = vmatprep.subr.mxu0 0.0
      %3335 = vmatpush1.msra.mxu0 %v3305
      %3336 = vmatprep.subr.mxu0 0.0
      %3337 = vmatpush1.msra.mxu0 %v3306
      %3338 = vmatprep.subr.mxu0 0.0
      %3339 = vmatpush1.msra.mxu0 %v3307
      %3340 = vmatprep.subr.mxu0 0.0
      %3341 = vmatpush1.msra.mxu0 %v3308
      %3342 = vmatprep.subr.mxu0 0.0
      %3343 = vmatpush1.msra.mxu0 %v3309
      %3344 = vmatprep.subr.mxu0 0.0
      %3345 = vmatpush1.msra.mxu0 %v3310
      %3346 = vmatprep.subr.mxu0 0.0
      %3347 = vmatpush1.msra.mxu0 %v3311
      %3348 = vmatprep.subr.mxu0 0.0
      %3349 = vmatpush1.msra.mxu0 %v3312
      %3350 = vmatprep.subr.mxu0 0.0
      %3351 = vmatpush1.msra.mxu0 %v3313
      %3352 = vmatprep.subr.mxu0 0.0
      %3353 = vmatpush1.msra.mxu0 %v3314
      %3354 = vmatprep.subr.mxu0 0.0
      %3355 = vmatpush1.msra.mxu0 0.0
      %3356 = vmatprep.subr.mxu0 0.0
      %3357 = vmatpush1.msra.mxu0 0.0
      %3358 = vmatprep.subr.mxu0 0.0
      %3359 = vmatpush1.msra.mxu0 0.0
      %3360 = vmatprep.subr.mxu0 0.0
      %3361 = vmatpush1.msra.mxu0 0.0
      %3362 = vmatprep.subr.mxu0 0.0
      %3363 = vmatpush1.msra.mxu0 0.0
      %3364 = vmatprep.subr.mxu0 0.0
      %3365 = vmatpush1.msra.mxu0 0.0
      %3366 = vmatprep.subr.mxu0 0.0
      %3367 = vmatpush1.msra.mxu0 0.0
      %3368 = vmatprep.subr.mxu0 0.0
      %3369 = vmatpush1.msra.mxu0 0.0
      %3370 = vmatprep.subr.mxu0 0.0
      %3371 = vmatpush1.msra.mxu0 0.0
      %3372 = vmatprep.subr.mxu0 0.0
      %3373 = vmatpush1.msra.mxu0 0.0
      %3374 = vmatprep.subr.mxu0 0.0
      %3375 = vmatpush1.msra.mxu0 0.0
      %3376 = vmatprep.subr.mxu0 0.0
      %3377 = vmatpush1.msra.mxu0 0.0
      %3378 = vmatprep.subr.mxu0 0.0
      %3379 = vmatpush1.msra.mxu0 0.0
      %3380 = vmatprep.subr.mxu0 0.0
      %3381 = vmatpush1.msra.mxu0 0.0
      %3382 = vmatprep.subr.mxu0 0.0
      %3383 = vmatpush1.msra.mxu0 0.0
      %3384 = vmatprep.subr.mxu0 0.0
      %3385 = vmatpush1.msra.mxu0 0.0
      %3386 = vmatprep.mubr.f32.mxu0 0.0
      %3387 = vmatmul.mubr.f32.gmra.mrb[0].mxu0 %v3298
      %v3388 = vpop.f32.mrb[0].mxu0
      %v3389 = vadd.f32 %v3320, %v3388
      %v3390 = vpop.f32.mrb[0].mxu0
      %3391 = vdwg.mxu0
      %v3392 = vsub.f32 0.0, %v3389
      %v3393 = vmul.f32 %v3392, 1.442695
      %v3394 = vpow.pop %v3393
      %v3395 = vadd.f32 %v3394, 1.0
      %v3396 = vrcp.pop %v3395
      %v3397 = vmul.f32 1.0, %v3396
      %v3398 = vlaneseq
      %v3399 = vshrl.u32 %v3398, 7
      %v3400 = vsub.s32 0, %v3399
      %v3401 = vrot.slane %v3397, %v3400
      %v3402 = vmul.f32 %v3134, %v3401
      %v3403 = vmul.f32 %v3135, %v3401
      %v3404 = vmul.f32 %v3136, %v3401
      %v3405 = vmul.f32 %v3137, %v3401
      %v3406 = vmul.f32 %v3138, %v3401
      %v3407 = vmul.f32 %v3139, %v3401
      %v3408 = vmul.f32 %v3140, %v3401
      %v3409 = vmul.f32 %v3141, %v3401
      %v3410 = vmul.f32 %v3142, %v3401
      %v3411 = vmul.f32 %v3143, %v3401
      %v3412 = vmul.f32 %v3144, %v3401
      %v3413 = vmul.f32 %v3145, %v3401
      %v3414 = vmul.f32 %v3146, %v3401
      %v3415 = vmul.f32 %v3147, %v3401
      %v3416 = vmul.f32 %v3148, %v3401
      %v3417 = vmul.f32 %v3149, %v3401
      %v3418 = vmul.f32 %v3150, %v3401
      %v3419 = vmul.f32 %v3151, %v3401
      %v3420 = vmul.f32 %v3152, %v3401
      %v3421 = vmul.f32 %v3153, %v3401
      %v3422 = vmul.f32 %v3154, %v3401
      %v3423 = vmul.f32 %v3155, %v3401
      %v3424 = vmul.f32 %v3156, %v3401
      %v3425 = vmul.f32 %v3157, %v3401
      %v3426 = vmul.f32 %v3158, %v3401
      %v3427 = vmul.f32 %v3159, %v3401
      %v3428 = vmul.f32 %v3160, %v3401
      %v3429 = vmul.f32 %v3161, %v3401
      %v3430 = vmul.f32 %v3162, %v3401
      %v3431 = vmul.f32 %v3163, %v3401
      %v3432 = vmul.f32 %v3164, %v3401
      %v3433 = vmul.f32 %v3165, %v3401
      %v3434 = vld [vmem:[%s8] sm:$0xff]
      %v3435 = vld [vmem:[%s8 + $0x8] sm:$0xff]
      %v3436 = vld [vmem:[%s8 + $0x10] sm:$0xff]
      %v3437 = vld [vmem:[%s8 + $0x18] sm:$0xff]
      %v3438 = vld [vmem:[%s8 + $0x20] sm:$0xff]
      %v3439 = vld [vmem:[%s8 + $0x28] sm:$0xff]
      %v3440 = vld [vmem:[%s8 + $0x30] sm:$0xff]
      %v3441 = vld [vmem:[%s8 + $0x38] sm:$0xff]
      %v3442 = vld [vmem:[%s8 + $0x40] sm:$0xff]
      %v3443 = vld [vmem:[%s8 + $0x48] sm:$0xff]
      %v3444 = vld [vmem:[%s8 + $0x50] sm:$0xff]
      %v3445 = vld [vmem:[%s8 + $0x58] sm:$0xff]
      %v3446 = vld [vmem:[%s8 + $0x60] sm:$0xff]
      %v3447 = vld [vmem:[%s8 + $0x68] sm:$0xff]
      %v3448 = vld [vmem:[%s8 + $0x70] sm:$0xff]
      %v3449 = vld [vmem:[%s8 + $0x78] sm:$0xff]
      %v3450 = vld [vmem:[%s9] sm:$0x1]
      %v3452 = vlaneseq
      %v3453 = vshrl.u32 %v3452, 7
      %v3454 = vsub.s32 0, %v3453
      %v3455 = vrot.slane %v3450, %v3454
      %3457 = vmatprep.subr.mxu0 0.0
      %3458 = vmatpush1.msra.mxu0 %v3434
      %3459 = vmatprep.subr.mxu0 0.0
      %3460 = vmatpush1.msra.mxu0 %v3435
      %3461 = vmatprep.subr.mxu0 0.0
      %3462 = vmatpush1.msra.mxu0 %v3436
      %3463 = vmatprep.subr.mxu0 0.0
      %3464 = vmatpush1.msra.mxu0 %v3437
      %3465 = vmatprep.subr.mxu0 0.0
      %3466 = vmatpush1.msra.mxu0 %v3438
      %3467 = vmatprep.subr.mxu0 0.0
      %3468 = vmatpush1.msra.mxu0 %v3439
      %3469 = vmatprep.subr.mxu0 0.0
      %3470 = vmatpush1.msra.mxu0 %v3440
      %3471 = vmatprep.subr.mxu0 0.0
      %3472 = vmatpush1.msra.mxu0 %v3441
      %3473 = vmatprep.subr.mxu0 0.0
      %3474 = vmatpush1.msra.mxu0 %v3442
      %3475 = vmatprep.subr.mxu0 0.0
      %3476 = vmatpush1.msra.mxu0 %v3443
      %3477 = vmatprep.subr.mxu0 0.0
      %3478 = vmatpush1.msra.mxu0 %v3444
      %3479 = vmatprep.subr.mxu0 0.0
      %3480 = vmatpush1.msra.mxu0 %v3445
      %3481 = vmatprep.subr.mxu0 0.0
      %3482 = vmatpush1.msra.mxu0 %v3446
      %3483 = vmatprep.subr.mxu0 0.0
      %3484 = vmatpush1.msra.mxu0 %v3447
      %3485 = vmatprep.subr.mxu0 0.0
      %3486 = vmatpush1.msra.mxu0 %v3448
      %3487 = vmatprep.subr.mxu0 0.0
      %3488 = vmatpush1.msra.mxu0 %v3449
      %3489 = vmatprep.subr.mxu0 0.0
      %3490 = vmatpush1.msra.mxu0 0.0
      %3491 = vmatprep.subr.mxu0 0.0
      %3492 = vmatpush1.msra.mxu0 0.0
      %3493 = vmatprep.subr.mxu0 0.0
      %3494 = vmatpush1.msra.mxu0 0.0
      %3495 = vmatprep.subr.mxu0 0.0
      %3496 = vmatpush1.msra.mxu0 0.0
      %3497 = vmatprep.subr.mxu0 0.0
      %3498 = vmatpush1.msra.mxu0 0.0
      %3499 = vmatprep.subr.mxu0 0.0
      %3500 = vmatpush1.msra.mxu0 0.0
      %3501 = vmatprep.subr.mxu0 0.0
      %3502 = vmatpush1.msra.mxu0 0.0
      %3503 = vmatprep.subr.mxu0 0.0
      %3504 = vmatpush1.msra.mxu0 0.0
      %3505 = vmatprep.subr.mxu0 0.0
      %3506 = vmatpush1.msra.mxu0 0.0
      %3507 = vmatprep.subr.mxu0 0.0
      %3508 = vmatpush1.msra.mxu0 0.0
      %3509 = vmatprep.subr.mxu0 0.0
      %3510 = vmatpush1.msra.mxu0 0.0
      %3511 = vmatprep.subr.mxu0 0.0
      %3512 = vmatpush1.msra.mxu0 0.0
      %3513 = vmatprep.subr.mxu0 0.0
      %3514 = vmatpush1.msra.mxu0 0.0
      %3515 = vmatprep.subr.mxu0 0.0
      %3516 = vmatpush1.msra.mxu0 0.0
      %3517 = vmatprep.subr.mxu0 0.0
      %3518 = vmatpush1.msra.mxu0 0.0
      %3519 = vmatprep.subr.mxu0 0.0
      %3520 = vmatpush1.msra.mxu0 0.0
      %3521 = vmatprep.mubr.f32.mxu0 0.0
      %3522 = vmatmul.mubr.f32.gmra.mrb[0].mxu0 %v3402
      %v3523 = vpop.f32.mrb[0].mxu0
      %v3524 = vadd.f32 %v3455, %v3523
      %v3525 = vpop.f32.mrb[0].mxu0
      %3526 = vmatprep.mubr.f32.mxu0 0.0
      %3527 = vmatmul.mubr.f32.gmra.mrb[0].mxu0 %v3403
      %v3528 = vpop.f32.mrb[0].mxu0
      %v3529 = vadd.f32 %v3455, %v3528
      %v3530 = vpop.f32.mrb[0].mxu0
      %3531 = vmatprep.mubr.f32.mxu0 0.0
      %3532 = vmatmul.mubr.f32.gmra.mrb[0].mxu0 %v3404
      %v3533 = vpop.f32.mrb[0].mxu0
      %v3534 = vadd.f32 %v3455, %v3533
      %v3535 = vpop.f32.mrb[0].mxu0
      %3536 = vmatprep.mubr.f32.mxu0 0.0
      %3537 = vmatmul.mubr.f32.gmra.mrb[0].mxu0 %v3405
      %v3538 = vpop.f32.mrb[0].mxu0
      %v3539 = vadd.f32 %v3455, %v3538
      %v3540 = vpop.f32.mrb[0].mxu0
      %3541 = vmatprep.mubr.f32.mxu0 0.0
      %3542 = vmatmul.mubr.f32.gmra.mrb[0].mxu0 %v3406
      %v3543 = vpop.f32.mrb[0].mxu0
      %v3544 = vadd.f32 %v3455, %v3543
      %v3545 = vpop.f32.mrb[0].mxu0
      %3546 = vmatprep.mubr.f32.mxu0 0.0
      %3547 = vmatmul.mubr.f32.gmra.mrb[0].mxu0 %v3407
      %v3548 = vpop.f32.mrb[0].mxu0
      %v3549 = vadd.f32 %v3455, %v3548
      %v3550 = vpop.f32.mrb[0].mxu0
      %3551 = vmatprep.mubr.f32.mxu0 0.0
      %3552 = vmatmul.mubr.f32.gmra.mrb[0].mxu0 %v3408
      %v3553 = vpop.f32.mrb[0].mxu0
      %v3554 = vadd.f32 %v3455, %v3553
      %v3555 = vpop.f32.mrb[0].mxu0
      %3556 = vmatprep.mubr.f32.mxu0 0.0
      %3557 = vmatmul.mubr.f32.gmra.mrb[0].mxu0 %v3409
      %v3558 = vpop.f32.mrb[0].mxu0
      %v3559 = vadd.f32 %v3455, %v3558
      %v3560 = vpop.f32.mrb[0].mxu0
      %3561 = vmatprep.mubr.f32.mxu0 0.0
      %3562 = vmatmul.mubr.f32.gmra.mrb[0].mxu0 %v3410
      %v3563 = vpop.f32.mrb[0].mxu0
      %v3564 = vadd.f32 %v3455, %v3563
      %v3565 = vpop.f32.mrb[0].mxu0
      %3566 = vmatprep.mubr.f32.mxu0 0.0
      %3567 = vmatmul.mubr.f32.gmra.mrb[0].mxu0 %v3411
      %v3568 = vpop.f32.mrb[0].mxu0
      %v3569 = vadd.f32 %v3455, %v3568
      %v3570 = vpop.f32.mrb[0].mxu0
      %3571 = vmatprep.mubr.f32.mxu0 0.0
      %3572 = vmatmul.mubr.f32.gmra.mrb[0].mxu0 %v3412
      %v3573 = vpop.f32.mrb[0].mxu0
      %v3574 = vadd.f32 %v3455, %v3573
      %v3575 = vpop.f32.mrb[0].mxu0
      %3576 = vmatprep.mubr.f32.mxu0 0.0
      %3577 = vmatmul.mubr.f32.gmra.mrb[0].mxu0 %v3413
      %v3578 = vpop.f32.mrb[0].mxu0
      %v3579 = vadd.f32 %v3455, %v3578
      %v3580 = vpop.f32.mrb[0].mxu0
      %3581 = vmatprep.mubr.f32.mxu0 0.0
      %3582 = vmatmul.mubr.f32.gmra.mrb[0].mxu0 %v3414
      %v3583 = vpop.f32.mrb[0].mxu0
      %v3584 = vadd.f32 %v3455, %v3583
      %v3585 = vpop.f32.mrb[0].mxu0
      %3586 = vmatprep.mubr.f32.mxu0 0.0
      %3587 = vmatmul.mubr.f32.gmra.mrb[0].mxu0 %v3415
      %v3588 = vpop.f32.mrb[0].mxu0
      %v3589 = vadd.f32 %v3455, %v3588
      %v3590 = vpop.f32.mrb[0].mxu0
      %3591 = vmatprep.mubr.f32.mxu0 0.0
      %3592 = vmatmul.mubr.f32.gmra.mrb[0].mxu0 %v3416
      %v3593 = vpop.f32.mrb[0].mxu0
      %v3594 = vadd.f32 %v3455, %v3593
      %v3595 = vpop.f32.mrb[0].mxu0
      %3596 = vmatprep.mubr.f32.mxu0 0.0
      %3597 = vmatmul.mubr.f32.gmra.mrb[0].mxu0 %v3417
      %v3598 = vpop.f32.mrb[0].mxu0
      %v3599 = vadd.f32 %v3455, %v3598
      %v3600 = vpop.f32.mrb[0].mxu0
      %3601 = vmatprep.mubr.f32.mxu0 0.0
      %3602 = vmatmul.mubr.f32.gmra.mrb[0].mxu0 %v3418
      %v3603 = vpop.f32.mrb[0].mxu0
      %v3604 = vadd.f32 %v3455, %v3603
      %v3605 = vpop.f32.mrb[0].mxu0
      %3606 = vmatprep.mubr.f32.mxu0 0.0
      %3607 = vmatmul.mubr.f32.gmra.mrb[0].mxu0 %v3419
      %v3608 = vpop.f32.mrb[0].mxu0
      %v3609 = vadd.f32 %v3455, %v3608
      %v3610 = vpop.f32.mrb[0].mxu0
      %3611 = vmatprep.mubr.f32.mxu0 0.0
      %3612 = vmatmul.mubr.f32.gmra.mrb[0].mxu0 %v3420
      %v3613 = vpop.f32.mrb[0].mxu0
      %v3614 = vadd.f32 %v3455, %v3613
      %v3615 = vpop.f32.mrb[0].mxu0
      %3616 = vmatprep.mubr.f32.mxu0 0.0
      %3617 = vmatmul.mubr.f32.gmra.mrb[0].mxu0 %v3421
      %v3618 = vpop.f32.mrb[0].mxu0
      %v3619 = vadd.f32 %v3455, %v3618
      %v3620 = vpop.f32.mrb[0].mxu0
      %3621 = vmatprep.mubr.f32.mxu0 0.0
      %3622 = vmatmul.mubr.f32.gmra.mrb[0].mxu0 %v3422
      %v3623 = vpop.f32.mrb[0].mxu0
      %v3624 = vadd.f32 %v3455, %v3623
      %v3625 = vpop.f32.mrb[0].mxu0
      %3626 = vmatprep.mubr.f32.mxu0 0.0
      %3627 = vmatmul.mubr.f32.gmra.mrb[0].mxu0 %v3423
      %v3628 = vpop.f32.mrb[0].mxu0
      %v3629 = vadd.f32 %v3455, %v3628
      %v3630 = vpop.f32.mrb[0].mxu0
      %3631 = vmatprep.mubr.f32.mxu0 0.0
      %3632 = vmatmul.mubr.f32.gmra.mrb[0].mxu0 %v3424
      %v3633 = vpop.f32.mrb[0].mxu0
      %v3634 = vadd.f32 %v3455, %v3633
      %v3635 = vpop.f32.mrb[0].mxu0
      %3636 = vmatprep.mubr.f32.mxu0 0.0
      %3637 = vmatmul.mubr.f32.gmra.mrb[0].mxu0 %v3425
      %v3638 = vpop.f32.mrb[0].mxu0
      %v3639 = vadd.f32 %v3455, %v3638
      %v3640 = vpop.f32.mrb[0].mxu0
      %3641 = vmatprep.mubr.f32.mxu0 0.0
      %3642 = vmatmul.mubr.f32.gmra.mrb[0].mxu0 %v3426
      %v3643 = vpop.f32.mrb[0].mxu0
      %v3644 = vadd.f32 %v3455, %v3643
      %v3645 = vpop.f32.mrb[0].mxu0
      %3646 = vmatprep.mubr.f32.mxu0 0.0
      %3647 = vmatmul.mubr.f32.gmra.mrb[0].mxu0 %v3427
      %v3648 = vpop.f32.mrb[0].mxu0
      %v3649 = vadd.f32 %v3455, %v3648
      %v3650 = vpop.f32.mrb[0].mxu0
      %3651 = vmatprep.mubr.f32.mxu0 0.0
      %3652 = vmatmul.mubr.f32.gmra.mrb[0].mxu0 %v3428
      %v3653 = vpop.f32.mrb[0].mxu0
      %v3654 = vadd.f32 %v3455, %v3653
      %v3655 = vpop.f32.mrb[0].mxu0
      %3656 = vmatprep.mubr.f32.mxu0 0.0
      %3657 = vmatmul.mubr.f32.gmra.mrb[0].mxu0 %v3429
      %v3658 = vpop.f32.mrb[0].mxu0
      %v3659 = vadd.f32 %v3455, %v3658
      %v3660 = vpop.f32.mrb[0].mxu0
      %3661 = vmatprep.mubr.f32.mxu0 0.0
      %3662 = vmatmul.mubr.f32.gmra.mrb[0].mxu0 %v3430
      %v3663 = vpop.f32.mrb[0].mxu0
      %v3664 = vadd.f32 %v3455, %v3663
      %v3665 = vpop.f32.mrb[0].mxu0
      %3666 = vmatprep.mubr.f32.mxu0 0.0
      %3667 = vmatmul.mubr.f32.gmra.mrb[0].mxu0 %v3431
      %v3668 = vpop.f32.mrb[0].mxu0
      %v3669 = vadd.f32 %v3455, %v3668
      %v3670 = vpop.f32.mrb[0].mxu0
      %3671 = vmatprep.mubr.f32.mxu0 0.0
      %3672 = vmatmul.mubr.f32.gmra.mrb[0].mxu0 %v3432
      %v3673 = vpop.f32.mrb[0].mxu0
      %v3674 = vadd.f32 %v3455, %v3673
      %v3675 = vpop.f32.mrb[0].mxu0
      %3676 = vmatprep.mubr.f32.mxu0 0.0
      %3677 = vmatmul.mubr.f32.gmra.mrb[0].mxu0 %v3433
      %v3678 = vpop.f32.mrb[0].mxu0
      %v3679 = vadd.f32 %v3455, %v3678
      %v3680 = vpop.f32.mrb[0].mxu0
      %3681 = vdwg.mxu0
      %v3682 = vmax.f32 %v3524, 0.0
      %v3683 = vmax.f32 %v3529, 0.0
      %v3684 = vmax.f32 %v3534, 0.0
      %v3685 = vmax.f32 %v3539, 0.0
      %v3686 = vmax.f32 %v3544, 0.0
      %v3687 = vmax.f32 %v3549, 0.0
      %v3688 = vmax.f32 %v3554, 0.0
      %v3689 = vmax.f32 %v3559, 0.0
      %v3690 = vmax.f32 %v3564, 0.0
      %v3691 = vmax.f32 %v3569, 0.0
      %v3692 = vmax.f32 %v3574, 0.0
      %v3693 = vmax.f32 %v3579, 0.0
      %v3694 = vmax.f32 %v3584, 0.0
      %v3695 = vmax.f32 %v3589, 0.0
      %v3696 = vmax.f32 %v3594, 0.0
      %v3697 = vmax.f32 %v3599, 0.0
      %v3698 = vmax.f32 %v3604, 0.0
      %v3699 = vmax.f32 %v3609, 0.0
      %v3700 = vmax.f32 %v3614, 0.0
      %v3701 = vmax.f32 %v3619, 0.0
      %v3702 = vmax.f32 %v3624, 0.0
      %v3703 = vmax.f32 %v3629, 0.0
      %v3704 = vmax.f32 %v3634, 0.0
      %v3705 = vmax.f32 %v3639, 0.0
      %v3706 = vmax.f32 %v3644, 0.0
      %v3707 = vmax.f32 %v3649, 0.0
      %v3708 = vmax.f32 %v3654, 0.0
      %v3709 = vmax.f32 %v3659, 0.0
      %v3710 = vmax.f32 %v3664, 0.0
      %v3711 = vmax.f32 %v3669, 0.0
      %v3712 = vmax.f32 %v3674, 0.0
      %v3713 = vmax.f32 %v3679, 0.0
      %v3714 = vld [vmem:[%s10] sm:$0x1]
      %v3716 = vlaneseq
      %v3717 = vshrl.u32 %v3716, 7
      %v3718 = vsub.s32 0, %v3717
      %v3719 = vrot.slane %v3714, %v3718
      %v3721 = vmul.f32 %v3682, %v3719
      %v3722 = vmul.f32 %v3683, %v3719
      %v3723 = vmul.f32 %v3684, %v3719
      %v3724 = vmul.f32 %v3685, %v3719
      %v3725 = vmul.f32 %v3686, %v3719
      %v3726 = vmul.f32 %v3687, %v3719
      %v3727 = vmul.f32 %v3688, %v3719
      %v3728 = vmul.f32 %v3689, %v3719
      %v3729 = vmul.f32 %v3690, %v3719
      %v3730 = vmul.f32 %v3691, %v3719
      %v3731 = vmul.f32 %v3692, %v3719
      %v3732 = vmul.f32 %v3693, %v3719
      %v3733 = vmul.f32 %v3694, %v3719
      %v3734 = vmul.f32 %v3695, %v3719
      %v3735 = vmul.f32 %v3696, %v3719
      %v3736 = vmul.f32 %v3697, %v3719
      %v3737 = vmul.f32 %v3698, %v3719
      %v3738 = vmul.f32 %v3699, %v3719
      %v3739 = vmul.f32 %v3700, %v3719
      %v3740 = vmul.f32 %v3701, %v3719
      %v3741 = vmul.f32 %v3702, %v3719
      %v3742 = vmul.f32 %v3703, %v3719
      %v3743 = vmul.f32 %v3704, %v3719
      %v3744 = vmul.f32 %v3705, %v3719
      %v3745 = vmul.f32 %v3706, %v3719
      %v3746 = vmul.f32 %v3707, %v3719
      %v3747 = vmul.f32 %v3708, %v3719
      %v3748 = vmul.f32 %v3709, %v3719
      %v3749 = vmul.f32 %v3710, %v3719
      %v3750 = vmul.f32 %v3711, %v3719
      %v3751 = vmul.f32 %v3712, %v3719
      %v3752 = vmul.f32 %v3713, %v3719
      %3753 = vadd.xlane.f32.xlu0 %v3721
      %v3754 = vpop.xlane.xlu0 %3753
      %3755 = vadd.xlane.f32.xlu0 %v3722
      %v3756 = vpop.xlane.xlu0 %3755
      %3757 = vadd.xlane.f32.xlu0 %v3723
      %v3758 = vpop.xlane.xlu0 %3757
      %3759 = vadd.xlane.f32.xlu0 %v3724
      %v3760 = vpop.xlane.xlu0 %3759
      %3761 = vadd.xlane.f32.xlu0 %v3725
      %v3762 = vpop.xlane.xlu0 %3761
      %3763 = vadd.xlane.f32.xlu0 %v3726
      %v3764 = vpop.xlane.xlu0 %3763
      %3765 = vadd.xlane.f32.xlu0 %v3727
      %v3766 = vpop.xlane.xlu0 %3765
      %3767 = vadd.xlane.f32.xlu0 %v3728
      %v3768 = vpop.xlane.xlu0 %3767
      %3769 = vadd.xlane.f32.xlu0 %v3729
      %v3770 = vpop.xlane.xlu0 %3769
      %3771 = vadd.xlane.f32.xlu0 %v3730
      %v3772 = vpop.xlane.xlu0 %3771
      %3773 = vadd.xlane.f32.xlu0 %v3731
      %v3774 = vpop.xlane.xlu0 %3773
      %3775 = vadd.xlane.f32.xlu0 %v3732
      %v3776 = vpop.xlane.xlu0 %3775
      %3777 = vadd.xlane.f32.xlu0 %v3733
      %v3778 = vpop.xlane.xlu0 %3777
      %3779 = vadd.xlane.f32.xlu0 %v3734
      %v3780 = vpop.xlane.xlu0 %3779
      %3781 = vadd.xlane.f32.xlu0 %v3735
      %v3782 = vpop.xlane.xlu0 %3781
      %3783 = vadd.xlane.f32.xlu0 %v3736
      %v3784 = vpop.xlane.xlu0 %3783
      %3785 = vadd.xlane.f32.xlu0 %v3737
      %v3786 = vpop.xlane.xlu0 %3785
      %3787 = vadd.xlane.f32.xlu0 %v3738
      %v3788 = vpop.xlane.xlu0 %3787
      %3789 = vadd.xlane.f32.xlu0 %v3739
      %v3790 = vpop.xlane.xlu0 %3789
      %3791 = vadd.xlane.f32.xlu0 %v3740
      %v3792 = vpop.xlane.xlu0 %3791
      %3793 = vadd.xlane.f32.xlu0 %v3741
      %v3794 = vpop.xlane.xlu0 %3793
      %3795 = vadd.xlane.f32.xlu0 %v3742
      %v3796 = vpop.xlane.xlu0 %3795
      %3797 = vadd.xlane.f32.xlu0 %v3743
      %v3798 = vpop.xlane.xlu0 %3797
      %3799 = vadd.xlane.f32.xlu0 %v3744
      %v3800 = vpop.xlane.xlu0 %3799
      %3801 = vadd.xlane.f32.xlu0 %v3745
      %v3802 = vpop.xlane.xlu0 %3801
      %3803 = vadd.xlane.f32.xlu0 %v3746
      %v3804 = vpop.xlane.xlu0 %3803
      %3805 = vadd.xlane.f32.xlu0 %v3747
      %v3806 = vpop.xlane.xlu0 %3805
      %3807 = vadd.xlane.f32.xlu0 %v3748
      %v3808 = vpop.xlane.xlu0 %3807
      %3809 = vadd.xlane.f32.xlu0 %v3749
      %v3810 = vpop.xlane.xlu0 %3809
      %3811 = vadd.xlane.f32.xlu0 %v3750
      %v3812 = vpop.xlane.xlu0 %3811
      %3813 = vadd.xlane.f32.xlu0 %v3751
      %v3814 = vpop.xlane.xlu0 %3813
      %3815 = vadd.xlane.f32.xlu0 %v3752
      %v3816 = vpop.xlane.xlu0 %3815
      %v3817 = vld [vmem:[#allocation2] sm:$0x1]
      %v3819 = vlaneseq
      %v3820 = vshrl.u32 %v3819, 7
      %v3821 = vsub.s32 0, %v3820
      %v3822 = vrot.slane %v3817, %v3821
      %v3824 = vadd.f32 %v3754, %v3822
      %v3825 = vadd.f32 %v3756, %v3822
      %v3826 = vadd.f32 %v3758, %v3822
      %v3827 = vadd.f32 %v3760, %v3822
      %v3828 = vadd.f32 %v3762, %v3822
      %v3829 = vadd.f32 %v3764, %v3822
      %v3830 = vadd.f32 %v3766, %v3822
      %v3831 = vadd.f32 %v3768, %v3822
      %v3832 = vadd.f32 %v3770, %v3822
      %v3833 = vadd.f32 %v3772, %v3822
      %v3834 = vadd.f32 %v3774, %v3822
      %v3835 = vadd.f32 %v3776, %v3822
      %v3836 = vadd.f32 %v3778, %v3822
      %v3837 = vadd.f32 %v3780, %v3822
      %v3838 = vadd.f32 %v3782, %v3822
      %v3839 = vadd.f32 %v3784, %v3822
      %v3840 = vadd.f32 %v3786, %v3822
      %v3841 = vadd.f32 %v3788, %v3822
      %v3842 = vadd.f32 %v3790, %v3822
      %v3843 = vadd.f32 %v3792, %v3822
      %v3844 = vadd.f32 %v3794, %v3822
      %v3845 = vadd.f32 %v3796, %v3822
      %v3846 = vadd.f32 %v3798, %v3822
      %v3847 = vadd.f32 %v3800, %v3822
      %v3848 = vadd.f32 %v3802, %v3822
      %v3849 = vadd.f32 %v3804, %v3822
      %v3850 = vadd.f32 %v3806, %v3822
      %v3851 = vadd.f32 %v3808, %v3822
      %v3852 = vadd.f32 %v3810, %v3822
      %v3853 = vadd.f32 %v3812, %v3822
      %v3854 = vadd.f32 %v3814, %v3822
      %v3855 = vadd.f32 %v3816, %v3822
      %v3856 = vsub.f32 0.0, %v3824
      %v3857 = vsub.f32 0.0, %v3825
      %v3858 = vsub.f32 0.0, %v3826
      %v3859 = vsub.f32 0.0, %v3827
      %v3860 = vsub.f32 0.0, %v3828
      %v3861 = vsub.f32 0.0, %v3829
      %v3862 = vsub.f32 0.0, %v3830
      %v3863 = vsub.f32 0.0, %v3831
      %v3864 = vsub.f32 0.0, %v3832
      %v3865 = vsub.f32 0.0, %v3833
      %v3866 = vsub.f32 0.0, %v3834
      %v3867 = vsub.f32 0.0, %v3835
      %v3868 = vsub.f32 0.0, %v3836
      %v3869 = vsub.f32 0.0, %v3837
      %v3870 = vsub.f32 0.0, %v3838
      %v3871 = vsub.f32 0.0, %v3839
      %v3872 = vsub.f32 0.0, %v3840
      %v3873 = vsub.f32 0.0, %v3841
      %v3874 = vsub.f32 0.0, %v3842
      %v3875 = vsub.f32 0.0, %v3843
      %v3876 = vsub.f32 0.0, %v3844
      %v3877 = vsub.f32 0.0, %v3845
      %v3878 = vsub.f32 0.0, %v3846
      %v3879 = vsub.f32 0.0, %v3847
      %v3880 = vsub.f32 0.0, %v3848
      %v3881 = vsub.f32 0.0, %v3849
      %v3882 = vsub.f32 0.0, %v3850
      %v3883 = vsub.f32 0.0, %v3851
      %v3884 = vsub.f32 0.0, %v3852
      %v3885 = vsub.f32 0.0, %v3853
      %v3886 = vsub.f32 0.0, %v3854
      %v3887 = vsub.f32 0.0, %v3855
      %v3888 = vmul.f32 %v3856, 1.442695
      %v3889 = vpow.pop %v3888
      %v3890 = vmul.f32 %v3857, 1.442695
      %v3891 = vpow.pop %v3890
      %v3892 = vmul.f32 %v3858, 1.442695
      %v3893 = vpow.pop %v3892
      %v3894 = vmul.f32 %v3859, 1.442695
      %v3895 = vpow.pop %v3894
      %v3896 = vmul.f32 %v3860, 1.442695
      %v3897 = vpow.pop %v3896
      %v3898 = vmul.f32 %v3861, 1.442695
      %v3899 = vpow.pop %v3898
      %v3900 = vmul.f32 %v3862, 1.442695
      %v3901 = vpow.pop %v3900
      %v3902 = vmul.f32 %v3863, 1.442695
      %v3903 = vpow.pop %v3902
      %v3904 = vmul.f32 %v3864, 1.442695
      %v3905 = vpow.pop %v3904
      %v3906 = vmul.f32 %v3865, 1.442695
      %v3907 = vpow.pop %v3906
      %v3908 = vmul.f32 %v3866, 1.442695
      %v3909 = vpow.pop %v3908
      %v3910 = vmul.f32 %v3867, 1.442695
      %v3911 = vpow.pop %v3910
      %v3912 = vmul.f32 %v3868, 1.442695
      %v3913 = vpow.pop %v3912
      %v3914 = vmul.f32 %v3869, 1.442695
      %v3915 = vpow.pop %v3914
      %v3916 = vmul.f32 %v3870, 1.442695
      %v3917 = vpow.pop %v3916
      %v3918 = vmul.f32 %v3871, 1.442695
      %v3919 = vpow.pop %v3918
      %v3920 = vmul.f32 %v3872, 1.442695
      %v3921 = vpow.pop %v3920
      %v3922 = vmul.f32 %v3873, 1.442695
      %v3923 = vpow.pop %v3922
      %v3924 = vmul.f32 %v3874, 1.442695
      %v3925 = vpow.pop %v3924
      %v3926 = vmul.f32 %v3875, 1.442695
      %v3927 = vpow.pop %v3926
      %v3928 = vmul.f32 %v3876, 1.442695
      %v3929 = vpow.pop %v3928
      %v3930 = vmul.f32 %v3877, 1.442695
      %v3931 = vpow.pop %v3930
      %v3932 = vmul.f32 %v3878, 1.442695
      %v3933 = vpow.pop %v3932
      %v3934 = vmul.f32 %v3879, 1.442695
      %v3935 = vpow.pop %v3934
      %v3936 = vmul.f32 %v3880, 1.442695
      %v3937 = vpow.pop %v3936
      %v3938 = vmul.f32 %v3881, 1.442695
      %v3939 = vpow.pop %v3938
      %v3940 = vmul.f32 %v3882, 1.442695
      %v3941 = vpow.pop %v3940
      %v3942 = vmul.f32 %v3883, 1.442695
      %v3943 = vpow.pop %v3942
      %v3944 = vmul.f32 %v3884, 1.442695
      %v3945 = vpow.pop %v3944
      %v3946 = vmul.f32 %v3885, 1.442695
      %v3947 = vpow.pop %v3946
      %v3948 = vmul.f32 %v3886, 1.442695
      %v3949 = vpow.pop %v3948
      %v3950 = vmul.f32 %v3887, 1.442695
      %v3951 = vpow.pop %v3950
      %v3952 = vadd.f32 %v3889, 1.0
      %v3953 = vadd.f32 %v3891, 1.0
      %v3954 = vadd.f32 %v3893, 1.0
      %v3955 = vadd.f32 %v3895, 1.0
      %v3956 = vadd.f32 %v3897, 1.0
      %v3957 = vadd.f32 %v3899, 1.0
      %v3958 = vadd.f32 %v3901, 1.0
      %v3959 = vadd.f32 %v3903, 1.0
      %v3960 = vadd.f32 %v3905, 1.0
      %v3961 = vadd.f32 %v3907, 1.0
      %v3962 = vadd.f32 %v3909, 1.0
      %v3963 = vadd.f32 %v3911, 1.0
      %v3964 = vadd.f32 %v3913, 1.0
      %v3965 = vadd.f32 %v3915, 1.0
      %v3966 = vadd.f32 %v3917, 1.0
      %v3967 = vadd.f32 %v3919, 1.0
      %v3968 = vadd.f32 %v3921, 1.0
      %v3969 = vadd.f32 %v3923, 1.0
      %v3970 = vadd.f32 %v3925, 1.0
      %v3971 = vadd.f32 %v3927, 1.0
      %v3972 = vadd.f32 %v3929, 1.0
      %v3973 = vadd.f32 %v3931, 1.0
      %v3974 = vadd.f32 %v3933, 1.0
      %v3975 = vadd.f32 %v3935, 1.0
      %v3976 = vadd.f32 %v3937, 1.0
      %v3977 = vadd.f32 %v3939, 1.0
      %v3978 = vadd.f32 %v3941, 1.0
      %v3979 = vadd.f32 %v3943, 1.0
      %v3980 = vadd.f32 %v3945, 1.0
      %v3981 = vadd.f32 %v3947, 1.0
      %v3982 = vadd.f32 %v3949, 1.0
      %v3983 = vadd.f32 %v3951, 1.0
      %v3984 = vrcp.pop %v3952
      %v3985 = vmul.f32 1.0, %v3984
      %v3986 = vrcp.pop %v3953
      %v3987 = vmul.f32 1.0, %v3986
      %v3988 = vrcp.pop %v3954
      %v3989 = vmul.f32 1.0, %v3988
      %v3990 = vrcp.pop %v3955
      %v3991 = vmul.f32 1.0, %v3990
      %v3992 = vrcp.pop %v3956
      %v3993 = vmul.f32 1.0, %v3992
      %v3994 = vrcp.pop %v3957
      %v3995 = vmul.f32 1.0, %v3994
      %v3996 = vrcp.pop %v3958
      %v3997 = vmul.f32 1.0, %v3996
      %v3998 = vrcp.pop %v3959
      %v3999 = vmul.f32 1.0, %v3998
      %v4000 = vrcp.pop %v3960
      %v4001 = vmul.f32 1.0, %v4000
      %v4002 = vrcp.pop %v3961
      %v4003 = vmul.f32 1.0, %v4002
      %v4004 = vrcp.pop %v3962
      %v4005 = vmul.f32 1.0, %v4004
      %v4006 = vrcp.pop %v3963
      %v4007 = vmul.f32 1.0, %v4006
      %v4008 = vrcp.pop %v3964
      %v4009 = vmul.f32 1.0, %v4008
      %v4010 = vrcp.pop %v3965
      %v4011 = vmul.f32 1.0, %v4010
      %v4012 = vrcp.pop %v3966
      %v4013 = vmul.f32 1.0, %v4012
      %v4014 = vrcp.pop %v3967
      %v4015 = vmul.f32 1.0, %v4014
      %v4016 = vrcp.pop %v3968
      %v4017 = vmul.f32 1.0, %v4016
      %v4018 = vrcp.pop %v3969
      %v4019 = vmul.f32 1.0, %v4018
      %v4020 = vrcp.pop %v3970
      %v4021 = vmul.f32 1.0, %v4020
      %v4022 = vrcp.pop %v3971
      %v4023 = vmul.f32 1.0, %v4022
      %v4024 = vrcp.pop %v3972
      %v4025 = vmul.f32 1.0, %v4024
      %v4026 = vrcp.pop %v3973
      %v4027 = vmul.f32 1.0, %v4026
      %v4028 = vrcp.pop %v3974
      %v4029 = vmul.f32 1.0, %v4028
      %v4030 = vrcp.pop %v3975
      %v4031 = vmul.f32 1.0, %v4030
      %v4032 = vrcp.pop %v3976
      %v4033 = vmul.f32 1.0, %v4032
      %v4034 = vrcp.pop %v3977
      %v4035 = vmul.f32 1.0, %v4034
      %v4036 = vrcp.pop %v3978
      %v4037 = vmul.f32 1.0, %v4036
      %v4038 = vrcp.pop %v3979
      %v4039 = vmul.f32 1.0, %v4038
      %v4040 = vrcp.pop %v3980
      %v4041 = vmul.f32 1.0, %v4040
      %v4042 = vrcp.pop %v3981
      %v4043 = vmul.f32 1.0, %v4042
      %v4044 = vrcp.pop %v3982
      %v4045 = vmul.f32 1.0, %v4044
      %v4046 = vrcp.pop %v3983
      %v4047 = vmul.f32 1.0, %v4046
      %4049 = vset.pattern.permute.xlu0 0
      %4050 = vperm.xlu0 %4049, %v3985
      %v4051 = vpop.permute.xlu0 %4050
      %4054 = vset.pattern.permute.xlu0 0
      %4055 = vperm.xlu0 %4054, %v3987
      %v4056 = vpop.permute.xlu0 %4055
      %4059 = vset.pattern.permute.xlu0 0
      %4060 = vperm.xlu0 %4059, %v3989
      %v4061 = vpop.permute.xlu0 %4060
      %4064 = vset.pattern.permute.xlu0 0
      %4065 = vperm.xlu0 %4064, %v3991
      %v4066 = vpop.permute.xlu0 %4065
      %4069 = vset.pattern.permute.xlu0 0
      %4070 = vperm.xlu0 %4069, %v3993
      %v4071 = vpop.permute.xlu0 %4070
      %4074 = vset.pattern.permute.xlu0 0
      %4075 = vperm.xlu0 %4074, %v3995
      %v4076 = vpop.permute.xlu0 %4075
      %4079 = vset.pattern.permute.xlu0 0
      %4080 = vperm.xlu0 %4079, %v3997
      %v4081 = vpop.permute.xlu0 %4080
      %4084 = vset.pattern.permute.xlu0 0
      %4085 = vperm.xlu0 %4084, %v3999
      %v4086 = vpop.permute.xlu0 %4085
      %4089 = vset.pattern.permute.xlu0 0
      %4090 = vperm.xlu0 %4089, %v4001
      %v4091 = vpop.permute.xlu0 %4090
      %4094 = vset.pattern.permute.xlu0 0
      %4095 = vperm.xlu0 %4094, %v4003
      %v4096 = vpop.permute.xlu0 %4095
      %4099 = vset.pattern.permute.xlu0 0
      %4100 = vperm.xlu0 %4099, %v4005
      %v4101 = vpop.permute.xlu0 %4100
      %4104 = vset.pattern.permute.xlu0 0
      %4105 = vperm.xlu0 %4104, %v4007
      %v4106 = vpop.permute.xlu0 %4105
      %4109 = vset.pattern.permute.xlu0 0
      %4110 = vperm.xlu0 %4109, %v4009
      %v4111 = vpop.permute.xlu0 %4110
      %4114 = vset.pattern.permute.xlu0 0
      %4115 = vperm.xlu0 %4114, %v4011
      %v4116 = vpop.permute.xlu0 %4115
      %4119 = vset.pattern.permute.xlu0 0
      %4120 = vperm.xlu0 %4119, %v4013
      %v4121 = vpop.permute.xlu0 %4120
      %4124 = vset.pattern.permute.xlu0 0
      %4125 = vperm.xlu0 %4124, %v4015
      %v4126 = vpop.permute.xlu0 %4125
      %4129 = vset.pattern.permute.xlu0 0
      %4130 = vperm.xlu0 %4129, %v4017
      %v4131 = vpop.permute.xlu0 %4130
      %4134 = vset.pattern.permute.xlu0 0
      %4135 = vperm.xlu0 %4134, %v4019
      %v4136 = vpop.permute.xlu0 %4135
      %4139 = vset.pattern.permute.xlu0 0
      %4140 = vperm.xlu0 %4139, %v4021
      %v4141 = vpop.permute.xlu0 %4140
      %4144 = vset.pattern.permute.xlu0 0
      %4145 = vperm.xlu0 %4144, %v4023
      %v4146 = vpop.permute.xlu0 %4145
      %4149 = vset.pattern.permute.xlu0 0
      %4150 = vperm.xlu0 %4149, %v4025
      %v4151 = vpop.permute.xlu0 %4150
      %4154 = vset.pattern.permute.xlu0 0
      %4155 = vperm.xlu0 %4154, %v4027
      %v4156 = vpop.permute.xlu0 %4155
      %4159 = vset.pattern.permute.xlu0 0
      %4160 = vperm.xlu0 %4159, %v4029
      %v4161 = vpop.permute.xlu0 %4160
      %4164 = vset.pattern.permute.xlu0 0
      %4165 = vperm.xlu0 %4164, %v4031
      %v4166 = vpop.permute.xlu0 %4165
      %4169 = vset.pattern.permute.xlu0 0
      %4170 = vperm.xlu0 %4169, %v4033
      %v4171 = vpop.permute.xlu0 %4170
      %4174 = vset.pattern.permute.xlu0 0
      %4175 = vperm.xlu0 %4174, %v4035
      %v4176 = vpop.permute.xlu0 %4175
      %4179 = vset.pattern.permute.xlu0 0
      %4180 = vperm.xlu0 %4179, %v4037
      %v4181 = vpop.permute.xlu0 %4180
      %4184 = vset.pattern.permute.xlu0 0
      %4185 = vperm.xlu0 %4184, %v4039
      %v4186 = vpop.permute.xlu0 %4185
      %4189 = vset.pattern.permute.xlu0 0
      %4190 = vperm.xlu0 %4189, %v4041
      %v4191 = vpop.permute.xlu0 %4190
      %4194 = vset.pattern.permute.xlu0 0
      %4195 = vperm.xlu0 %4194, %v4043
      %v4196 = vpop.permute.xlu0 %4195
      %4199 = vset.pattern.permute.xlu0 0
      %4200 = vperm.xlu0 %4199, %v4045
      %v4201 = vpop.permute.xlu0 %4200
      %4204 = vset.pattern.permute.xlu0 0
      %4205 = vperm.xlu0 %4204, %v4047
      %v4206 = vpop.permute.xlu0 %4205
      %v4208 = vmul.f32 %v3402, %v4051
      %v4209 = vmul.f32 %v3403, %v4056
      %v4210 = vmul.f32 %v3404, %v4061
      %v4211 = vmul.f32 %v3405, %v4066
      %v4212 = vmul.f32 %v3406, %v4071
      %v4213 = vmul.f32 %v3407, %v4076
      %v4214 = vmul.f32 %v3408, %v4081
      %v4215 = vmul.f32 %v3409, %v4086
      %v4216 = vmul.f32 %v3410, %v4091
      %v4217 = vmul.f32 %v3411, %v4096
      %v4218 = vmul.f32 %v3412, %v4101
      %v4219 = vmul.f32 %v3413, %v4106
      %v4220 = vmul.f32 %v3414, %v4111
      %v4221 = vmul.f32 %v3415, %v4116
      %v4222 = vmul.f32 %v3416, %v4121
      %v4223 = vmul.f32 %v3417, %v4126
      %v4224 = vmul.f32 %v3418, %v4131
      %v4225 = vmul.f32 %v3419, %v4136
      %v4226 = vmul.f32 %v3420, %v4141
      %v4227 = vmul.f32 %v3421, %v4146
      %v4228 = vmul.f32 %v3422, %v4151
      %v4229 = vmul.f32 %v3423, %v4156
      %v4230 = vmul.f32 %v3424, %v4161
      %v4231 = vmul.f32 %v3425, %v4166
      %v4232 = vmul.f32 %v3426, %v4171
      %v4233 = vmul.f32 %v3427, %v4176
      %v4234 = vmul.f32 %v3428, %v4181
      %v4235 = vmul.f32 %v3429, %v4186
      %v4236 = vmul.f32 %v3430, %v4191
      %v4237 = vmul.f32 %v3431, %v4196
      %v4238 = vmul.f32 %v3432, %v4201
      %v4239 = vmul.f32 %v3433, %v4206
      %v4240 = vld [vmem:[%s430] sm:$0xff]
      %v4241 = vld [vmem:[%s430 + $0x8] sm:$0xff]
      %v4242 = vld [vmem:[%s430 + $0x10] sm:$0xff]
      %v4243 = vld [vmem:[%s430 + $0x18] sm:$0xff]
      %v4244 = vld [vmem:[%s430 + $0x20] sm:$0xff]
      %v4245 = vld [vmem:[%s430 + $0x28] sm:$0xff]
      %v4246 = vld [vmem:[%s430 + $0x30] sm:$0xff]
      %v4247 = vld [vmem:[%s430 + $0x38] sm:$0xff]
      %v4248 = vld [vmem:[%s430 + $0x40] sm:$0xff]
      %v4249 = vld [vmem:[%s430 + $0x48] sm:$0xff]
      %v4250 = vld [vmem:[%s430 + $0x50] sm:$0xff]
      %v4251 = vld [vmem:[%s430 + $0x58] sm:$0xff]
      %v4252 = vld [vmem:[%s430 + $0x60] sm:$0xff]
      %v4253 = vld [vmem:[%s430 + $0x68] sm:$0xff]
      %v4254 = vld [vmem:[%s430 + $0x70] sm:$0xff]
      %v4255 = vld [vmem:[%s430 + $0x78] sm:$0xff]
      %v4256 = vld [vmem:[%s430 + $0x80] sm:$0xff]
      %v4257 = vld [vmem:[%s430 + $0x88] sm:$0xff]
      %v4258 = vld [vmem:[%s430 + $0x90] sm:$0xff]
      %v4259 = vld [vmem:[%s430 + $0x98] sm:$0xff]
      %v4260 = vld [vmem:[%s430 + $0xa0] sm:$0xff]
      %v4261 = vld [vmem:[%s430 + $0xa8] sm:$0xff]
      %v4262 = vld [vmem:[%s430 + $0xb0] sm:$0xff]
      %v4263 = vld [vmem:[%s430 + $0xb8] sm:$0xff]
      %v4264 = vld [vmem:[%s430 + $0xc0] sm:$0xff]
      %v4265 = vld [vmem:[%s430 + $0xc8] sm:$0xff]
      %v4266 = vld [vmem:[%s430 + $0xd0] sm:$0xff]
      %v4267 = vld [vmem:[%s430 + $0xd8] sm:$0xff]
      %v4268 = vld [vmem:[%s430 + $0xe0] sm:$0xff]
      %v4269 = vld [vmem:[%s430 + $0xe8] sm:$0xff]
      %v4270 = vld [vmem:[%s430 + $0xf0] sm:$0xff]
      %v4271 = vld [vmem:[%s430 + $0xf8] sm:$0xff]
      %v4272 = vadd.f32 %v4208, %v4240
      %v4273 = vadd.f32 %v4209, %v4241
      %v4274 = vadd.f32 %v4210, %v4242
      %v4275 = vadd.f32 %v4211, %v4243
      %v4276 = vadd.f32 %v4212, %v4244
      %v4277 = vadd.f32 %v4213, %v4245
      %v4278 = vadd.f32 %v4214, %v4246
      %v4279 = vadd.f32 %v4215, %v4247
      %v4280 = vadd.f32 %v4216, %v4248
      %v4281 = vadd.f32 %v4217, %v4249
      %v4282 = vadd.f32 %v4218, %v4250
      %v4283 = vadd.f32 %v4219, %v4251
      %v4284 = vadd.f32 %v4220, %v4252
      %v4285 = vadd.f32 %v4221, %v4253
      %v4286 = vadd.f32 %v4222, %v4254
      %v4287 = vadd.f32 %v4223, %v4255
      %v4288 = vadd.f32 %v4224, %v4256
      %v4289 = vadd.f32 %v4225, %v4257
      %v4290 = vadd.f32 %v4226, %v4258
      %v4291 = vadd.f32 %v4227, %v4259
      %v4292 = vadd.f32 %v4228, %v4260
      %v4293 = vadd.f32 %v4229, %v4261
      %v4294 = vadd.f32 %v4230, %v4262
      %v4295 = vadd.f32 %v4231, %v4263
      %v4296 = vadd.f32 %v4232, %v4264
      %v4297 = vadd.f32 %v4233, %v4265
      %v4298 = vadd.f32 %v4234, %v4266
      %v4299 = vadd.f32 %v4235, %v4267
      %v4300 = vadd.f32 %v4236, %v4268
      %v4301 = vadd.f32 %v4237, %v4269
      %v4302 = vadd.f32 %v4238, %v4270
      %v4303 = vadd.f32 %v4239, %v4271
      %4304 = vst [vmem:[%s435] sm:$0xff] %v4272
      %4305 = vst [vmem:[%s435 + $0x8] sm:$0xff] %v4273
      %4306 = vst [vmem:[%s435 + $0x10] sm:$0xff] %v4274
      %4307 = vst [vmem:[%s435 + $0x18] sm:$0xff] %v4275
      %4308 = vst [vmem:[%s435 + $0x20] sm:$0xff] %v4276
      %4309 = vst [vmem:[%s435 + $0x28] sm:$0xff] %v4277
      %4310 = vst [vmem:[%s435 + $0x30] sm:$0xff] %v4278
      %4311 = vst [vmem:[%s435 + $0x38] sm:$0xff] %v4279
      %4312 = vst [vmem:[%s435 + $0x40] sm:$0xff] %v4280
      %4313 = vst [vmem:[%s435 + $0x48] sm:$0xff] %v4281
      %4314 = vst [vmem:[%s435 + $0x50] sm:$0xff] %v4282
      %4315 = vst [vmem:[%s435 + $0x58] sm:$0xff] %v4283
      %4316 = vst [vmem:[%s435 + $0x60] sm:$0xff] %v4284
      %4317 = vst [vmem:[%s435 + $0x68] sm:$0xff] %v4285
      %4318 = vst [vmem:[%s435 + $0x70] sm:$0xff] %v4286
      %4319 = vst [vmem:[%s435 + $0x78] sm:$0xff] %v4287
      %4320 = vst [vmem:[%s435 + $0x80] sm:$0xff] %v4288
      %4321 = vst [vmem:[%s435 + $0x88] sm:$0xff] %v4289
      %4322 = vst [vmem:[%s435 + $0x90] sm:$0xff] %v4290
      %4323 = vst [vmem:[%s435 + $0x98] sm:$0xff] %v4291
      %4324 = vst [vmem:[%s435 + $0xa0] sm:$0xff] %v4292
      %4325 = vst [vmem:[%s435 + $0xa8] sm:$0xff] %v4293
      %4326 = vst [vmem:[%s435 + $0xb0] sm:$0xff] %v4294
      %4327 = vst [vmem:[%s435 + $0xb8] sm:$0xff] %v4295
      %4328 = vst [vmem:[%s435 + $0xc0] sm:$0xff] %v4296
      %4329 = vst [vmem:[%s435 + $0xc8] sm:$0xff] %v4297
      %4330 = vst [vmem:[%s435 + $0xd0] sm:$0xff] %v4298
      %4331 = vst [vmem:[%s435 + $0xd8] sm:$0xff] %v4299
      %4332 = vst [vmem:[%s435 + $0xe0] sm:$0xff] %v4300
      %4333 = vst [vmem:[%s435 + $0xe8] sm:$0xff] %v4301
      %4334 = vst [vmem:[%s435 + $0xf0] sm:$0xff] %v4302
      %4335 = vst [vmem:[%s435 + $0xf8] sm:$0xff] %v4303
      %p4336 = scmp.lt.s32.totalorder %s25, 1
      %s4337 = scalar_select %p4336, %s25, 1
      %s4338 = smul.addr %s4337, 32
      %s4339 = smul.addr %s4338, 8
      %s4340 = scalar_lea.vmem %s12, %s4339
      // Predicated region
      $region69: #{_lambda_.3} parent=67 // pred_check
        %p4341 = pneg %p305
      $region70: #{_lambda_.3} parent=67 // pred_check_branch
        %4343 = sbr.rel (%p4341) target = $region72
      $region71: #{_lambda_.3} parent=67 // pred_region
        _
      $region72: #{_lambda_.3} parent=67 // pred_fallthru
        _
    $region68: #{_lambda_.3} parent=5 // pred_fallthru
      _
    %p4344 = scmp.le.s32.totalorder 2, %s20
    // Predicated region
    $region73: #{_lambda_.3} parent=5 // pred_check
      %p4345 = pneg %p4344
    $region74: #{_lambda_.3} parent=5 // pred_check_branch
      %4347 = sbr.rel (%p4345) target = $region76
    $region75: #{_lambda_.3} parent=5 // pred_region
      %s4348 = ssub.s32 %s20, 2
      // Predicated region
      $region77: #{_lambda_.3} parent=75 // pred_check
        %p4349 = pneg %p311
      $region78: #{_lambda_.3} parent=75 // pred_check_branch
        %4351 = sbr.rel (%p4349) target = $region80
      $region79: #{_lambda_.3} parent=75 // pred_region
        %p4352 = scmp.lt.s32.totalorder %s26, 1
        %s4353 = scalar_select %p4352, %s26, 1
        %s4354 = smul.addr %s4353, 32
        %s4355 = smul.addr %s4354, 8
        %s4356 = scalar_lea.vmem %s12, %s4355
      $region80: #{_lambda_.3} parent=75 // pred_fallthru
        _
    $region76: #{_lambda_.3} parent=5 // pred_fallthru
      _
  $region6: #{_lambda_.3} parent=0 // loop_footer
    %s24 = sadd.s32 1, %s20
  $region7: #{_lambda_.3} parent=0 // loop_footer_branch
    %19 = sbr.rel target = $region3
  $region8: #{_lambda_.3} parent=0 // loop_exit
    _

// kernel: _lambda_.2
$region0: #{_lambda_.2}
  #allocation0 [shape = 'u32[]', space=smem, size = 0x4, offset = 0x4, fixed_abs, tag = 'smem constant byte address 0x4 - core index']
  #allocation1 [shape = 'u32[144,128]{1,0:T(1,128)}', space=vmem, size = 0x12000, scoped, tag = 'internal scratch']
  %s0 = inlined_call_operand.vmem [shape: f32[2,18,18,128], index: 0, kind: input, shape index: {}]
  %s1 = inlined_call_operand.vmem [shape: f32[3,3,128,128], index: 1, kind: input, shape index: {}]
  %s2 = inlined_call_operand.vmem [shape: f32[1,128], index: 2, kind: input, shape index: {}]
  %s3 = inlined_call_operand.vmem [shape: f32[2,256,128], index: 3, kind: output, shape index: {}]
  %s4 = sld [smem:[#allocation0]]
  $region45: #{_lambda_.2} parent=0
    _
  %s6 = ssub.s32 1, %s4
  %s7 = scalar_select 0, %s6, %s4
  loop: start=0, step=1, limit=4
  $region2: #{_lambda_.2} parent=0 // loop_pre_header
    _
  $region3: #{_lambda_.2} parent=0 // loop_header
    %s9 = sphi 0, %s13
    %p10 = scmp.ge.s32.totalorder %s9, 4
    %s19 = sphi 0, %s21
    %s22 = sphi 0, %s19
    %s23 = sphi 0, %s22
    %s39 = sphi 0, %s23
    %s43 = sphi 0, %s43
    %s45 = sphi 0, %s43
    %s46 = sphi 0, %s45
    %s60 = sphi 0, %s46
    %s64 = sphi 0, %s64
    %s66 = sphi 0, %s64
    %s67 = sphi 0, %s66
    %s81 = sphi 0, %s67
    %s87 = sphi 0, %s89
    %s90 = sphi 0, %s87
    %s91 = sphi 0, %s90
    %s107 = sphi 0, %s91
  $region4: #{_lambda_.2} parent=0 // loop_header_branch
    %12 = sbr.rel (%p10) target = $region8
  $region5: #{_lambda_.2} parent=0 // loop_body
    %s14 = ssub.s32 %s9, 1
    %s15 = ssub.s32 %s9, 2
    %s16 = sadd.s32 %s9, 1
    %s17 = ssub.s32 %s9, %s16
    %p18 = scmp.eq.s32.totalorder %s17, 0
    %s20 = sadd.s32 %s19, 1
    %s21 = scalar_select %p18, %s19, %s20
    %p24 = pneg %p18
    %p25 = scmp.eq.s32.totalorder %s9, 1
    %p26 = por %p24, %p25
    %p27 = scmp.ne.s32.totalorder %s19, %s22
    %p28 = scmp.eq.s32.totalorder %s9, 0
    %p29 = por %p27, %p28
    %p30 = scmp.ne.s32.totalorder %s19, %s22
    %p31 = scmp.eq.s32.totalorder %s14, 1
    %p32 = por %p30, %p31
    %p33 = scmp.ne.s32.totalorder %s22, %s23
    %p34 = scmp.eq.s32.totalorder %s14, 0
    %p35 = por %p33, %p34
    %p36 = scmp.ne.s32.totalorder %s22, %s23
    %p37 = scmp.eq.s32.totalorder %s15, 1
    %p38 = por %p36, %p37
    %p40 = scmp.ne.s32.totalorder %s23, %s39
    %p41 = scmp.eq.s32.totalorder %s15, 0
    %p42 = por %p40, %p41
    %s44 = sadd.s32 %s43, 1
    %p47 = scmp.eq.s32.totalorder %s9, 1
    %p48 = scmp.ne.s32.totalorder %s43, %s45
    %p49 = scmp.eq.s32.totalorder %s9, 0
    %p50 = por %p48, %p49
    %p51 = scmp.ne.s32.totalorder %s43, %s45
    %p52 = scmp.eq.s32.totalorder %s14, 1
    %p53 = por %p51, %p52
    %p54 = scmp.ne.s32.totalorder %s45, %s46
    %p55 = scmp.eq.s32.totalorder %s14, 0
    %p56 = por %p54, %p55
    %p57 = scmp.ne.s32.totalorder %s45, %s46
    %p58 = scmp.eq.s32.totalorder %s15, 1
    %p59 = por %p57, %p58
    %p61 = scmp.ne.s32.totalorder %s46, %s60
    %p62 = scmp.eq.s32.totalorder %s15, 0
    %p63 = por %p61, %p62
    %s65 = sadd.s32 %s64, 1
    %p68 = scmp.eq.s32.totalorder %s9, 1
    %p69 = scmp.ne.s32.totalorder %s64, %s66
    %p70 = scmp.eq.s32.totalorder %s9, 0
    %p71 = por %p69, %p70
    %p72 = scmp.ne.s32.totalorder %s64, %s66
    %p73 = scmp.eq.s32.totalorder %s14, 1
    %p74 = por %p72, %p73
    %p75 = scmp.ne.s32.totalorder %s66, %s67
    %p76 = scmp.eq.s32.totalorder %s14, 0
    %p77 = por %p75, %p76
    %p78 = scmp.ne.s32.totalorder %s66, %s67
    %p79 = scmp.eq.s32.totalorder %s15, 1
    %p80 = por %p78, %p79
    %p82 = scmp.ne.s32.totalorder %s67, %s81
    %p83 = scmp.eq.s32.totalorder %s15, 0
    %p84 = por %p82, %p83
    %s85 = ssub.s32 %s9, %s16
    %p86 = scmp.eq.s32.totalorder %s85, 0
    %s88 = sadd.s32 %s87, 1
    %s89 = scalar_select %p86, %s87, %s88
    %p92 = pneg %p86
    %p93 = scmp.eq.s32.totalorder %s9, 1
    %p94 = por %p92, %p93
    %p95 = scmp.ne.s32.totalorder %s87, %s90
    %p96 = scmp.eq.s32.totalorder %s9, 0
    %p97 = por %p95, %p96
    %p98 = scmp.ne.s32.totalorder %s87, %s90
    %p99 = scmp.eq.s32.totalorder %s14, 1
    %p100 = por %p98, %p99
    %p101 = scmp.ne.s32.totalorder %s90, %s91
    %p102 = scmp.eq.s32.totalorder %s14, 0
    %p103 = por %p101, %p102
    %p104 = scmp.ne.s32.totalorder %s90, %s91
    %p105 = scmp.eq.s32.totalorder %s15, 1
    %p106 = por %p104, %p105
    %p108 = scmp.ne.s32.totalorder %s91, %s107
    %p109 = scmp.eq.s32.totalorder %s15, 0
    %p110 = por %p108, %p109
    %p111 = scmp.le.s32.totalorder 1, %s9
    %p112 = scmp.lt.s32.totalorder %s9, 3
    %p113 = pnand %p111, %p112
    %p114 = pneg %p113
    // Predicated region
    $region9: #{_lambda_.2} parent=5 // pred_check
      _
    $region10: #{_lambda_.2} parent=5 // pred_check_branch
      %116 = sbr.rel (%p113) target = $region12
    $region11: #{_lambda_.2} parent=5 // pred_region
      %s117 = ssub.s32 %s9, 1
      // Predicated region
      $region13: #{_lambda_.2} parent=11 // pred_check
        %p118 = pneg %p56
      $region14: #{_lambda_.2} parent=11 // pred_check_branch
        %120 = sbr.rel (%p118) target = $region16
      $region15: #{_lambda_.2} parent=11 // pred_region
        _
      $region16: #{_lambda_.2} parent=11 // pred_fallthru
        _
      // Predicated region
      $region17: #{_lambda_.2} parent=11 // pred_check
        %p121 = pneg %p77
      $region18: #{_lambda_.2} parent=11 // pred_check_branch
        %123 = sbr.rel (%p121) target = $region20
      $region19: #{_lambda_.2} parent=11 // pred_region
        _
      $region20: #{_lambda_.2} parent=11 // pred_fallthru
        _
    $region12: #{_lambda_.2} parent=5 // pred_fallthru
      _
    %p124 = scmp.lt.s32.totalorder %s9, 2
    // Predicated region
    $region21: #{_lambda_.2} parent=5 // pred_check
      %p125 = pneg %p124
    $region22: #{_lambda_.2} parent=5 // pred_check_branch
      %127 = sbr.rel (%p125) target = $region24
    $region23: #{_lambda_.2} parent=5 // pred_region
      // Predicated region
      $region25: #{_lambda_.2} parent=23 // pred_check
        %p128 = pneg %p29
      $region26: #{_lambda_.2} parent=23 // pred_check_branch
        %130 = sbr.rel (%p128) target = $region28
      $region27: #{_lambda_.2} parent=23 // pred_region
        %p131 = scmp.lt.s32.totalorder %s9, 1
        %s132 = scalar_select %p131, %s9, 1
        %s133 = smul.addr %s132, 54
        %s134 = smul.addr %s133, 8
        %s135 = scalar_lea.vmem %s0, %s134
      $region28: #{_lambda_.2} parent=23 // pred_fallthru
        _
    $region24: #{_lambda_.2} parent=5 // pred_fallthru
      _
    %p136 = scmp.le.s32.totalorder 1, %s9
    %p137 = scmp.lt.s32.totalorder %s9, 3
    %p138 = pnand %p136, %p137
    %p139 = pneg %p138
    // Predicated region
    $region29: #{_lambda_.2} parent=5 // pred_check
      _
    $region30: #{_lambda_.2} parent=5 // pred_check_branch
      %141 = sbr.rel (%p138) target = $region32
    $region31: #{_lambda_.2} parent=5 // pred_region
      %s142 = ssub.s32 %s9, 1
      %p143 = scmp.lt.s32.totalorder %s14, 1
      %s144 = scalar_select %p143, %s14, 1
      %s145 = smul.addr %s144, 54
      %s146 = smul.addr %s145, 8
      %s147 = scalar_lea.vmem %s0, %s146
      %p148 = pneg %p35
      %p149 = pneg %p32
      %p150 = pneg %p56
      %p151 = pneg %p53
      %p152 = pneg %p77
      %p153 = pneg %p74
      %p154 = pneg %p103
      %p155 = pneg %p100
      %p156 = scmp.lt.s32.totalorder %s14, 1
      %s157 = scalar_select %p156, %s14, 1
      %s158 = smul.addr %s157, 32
      %s159 = smul.addr %s158, 8
      %s160 = scalar_lea.vmem %s3, %s159
      %p161 = scmp.lt.s32.totalorder %s14, 1
      %s162 = scalar_select %p161, %s14, 1
      %s163 = smul.addr %s162, 54
      %s164 = smul.addr %s163, 8
      %s165 = scalar_lea.vmem %s0, %s164
      %p166 = scmp.lt.s32.totalorder %s14, 1
      %s167 = scalar_select %p166, %s14, 1
      %s168 = smul.addr %s167, 32
      %s169 = smul.addr %s168, 8
      %s170 = scalar_lea.vmem %s3, %s169
      %v171 = vld [vmem:[%s165] sm:$0xff]
      %v172 = vld [vmem:[%s165 + $0x8] sm:$0xff]
      %v173 = vld [vmem:[%s165 + $0x18] sm:$0xff]
      %v174 = vld [vmem:[%s165 + $0x20] sm:$0xff]
      %v175 = vld [vmem:[%s165 + $0x30] sm:$0xff]
      %v176 = vld [vmem:[%s165 + $0x38] sm:$0xff]
      %v177 = vld [vmem:[%s165 + $0x48] sm:$0xff]
      %v178 = vld [vmem:[%s165 + $0x50] sm:$0xff]
      %v179 = vld [vmem:[%s165 + $0x60] sm:$0xff]
      %v180 = vld [vmem:[%s165 + $0x68] sm:$0xff]
      %v181 = vld [vmem:[%s165 + $0x78] sm:$0xff]
      %v182 = vld [vmem:[%s165 + $0x80] sm:$0xff]
      %v183 = vld [vmem:[%s165 + $0x90] sm:$0xff]
      %v184 = vld [vmem:[%s165 + $0x98] sm:$0xff]
      %v185 = vld [vmem:[%s165 + $0xa8] sm:$0xff]
      %v186 = vld [vmem:[%s165 + $0xb0] sm:$0xff]
      %v187 = vld [vmem:[%s165 + $0xc0] sm:$0xff]
      %v188 = vld [vmem:[%s165 + $0xc8] sm:$0xff]
      %v189 = vld [vmem:[%s165 + $0xd8] sm:$0xff]
      %v190 = vld [vmem:[%s165 + $0xe0] sm:$0xff]
      %v191 = vld [vmem:[%s165 + $0xf0] sm:$0xff]
      %v192 = vld [vmem:[%s165 + $0xf8] sm:$0xff]
      %v193 = vld [vmem:[%s165 + $0x108] sm:$0xff]
      %v194 = vld [vmem:[%s165 + $0x110] sm:$0xff]
      %v195 = vld [vmem:[%s165 + $0x120] sm:$0xff]
      %v196 = vld [vmem:[%s165 + $0x128] sm:$0xff]
      %v197 = vld [vmem:[%s165 + $0x138] sm:$0xff]
      %v198 = vld [vmem:[%s165 + $0x140] sm:$0xff]
      %v199 = vld [vmem:[%s165 + $0x150] sm:$0xff]
      %v200 = vld [vmem:[%s165 + $0x158] sm:$0xff]
      %v201 = vld [vmem:[%s165 + $0x168] sm:$0xff]
      %v202 = vld [vmem:[%s165 + $0x170] sm:$0xff]
      %v203 = vld [vmem:[%s1] sm:$0xff]
      %v204 = vld [vmem:[%s1 + $0x8] sm:$0xff]
      %v205 = vld [vmem:[%s1 + $0x10] sm:$0xff]
      %v206 = vld [vmem:[%s1 + $0x18] sm:$0xff]
      %v207 = vld [vmem:[%s1 + $0x20] sm:$0xff]
      %v208 = vld [vmem:[%s1 + $0x28] sm:$0xff]
      %v209 = vld [vmem:[%s1 + $0x30] sm:$0xff]
      %v210 = vld [vmem:[%s1 + $0x38] sm:$0xff]
      %v211 = vld [vmem:[%s1 + $0x40] sm:$0xff]
      %v212 = vld [vmem:[%s1 + $0x48] sm:$0xff]
      %v213 = vld [vmem:[%s1 + $0x50] sm:$0xff]
      %v214 = vld [vmem:[%s1 + $0x58] sm:$0xff]
      %v215 = vld [vmem:[%s1 + $0x60] sm:$0xff]
      %v216 = vld [vmem:[%s1 + $0x68] sm:$0xff]
      %v217 = vld [vmem:[%s1 + $0x70] sm:$0xff]
      %v218 = vld [vmem:[%s1 + $0x78] sm:$0xff]
      %v219 = vld [vmem:[%s165 + $0x1] sm:$0xff]
      %v220 = vld [vmem:[%s165 + $0x9] sm:$0xff]
      %v221 = vld [vmem:[%s165 + $0x19] sm:$0xff]
      %v222 = vld [vmem:[%s165 + $0x21] sm:$0xff]
      %v223 = vld [vmem:[%s165 + $0x31] sm:$0xff]
      %v224 = vld [vmem:[%s165 + $0x39] sm:$0xff]
      %v225 = vld [vmem:[%s165 + $0x49] sm:$0xff]
      %v226 = vld [vmem:[%s165 + $0x51] sm:$0xff]
      %v227 = vld [vmem:[%s165 + $0x61] sm:$0xff]
      %v228 = vld [vmem:[%s165 + $0x69] sm:$0xff]
      %v229 = vld [vmem:[%s165 + $0x79] sm:$0xff]
      %v230 = vld [vmem:[%s165 + $0x81] sm:$0xff]
      %v231 = vld [vmem:[%s165 + $0x91] sm:$0xff]
      %v232 = vld [vmem:[%s165 + $0x99] sm:$0xff]
      %v233 = vld [vmem:[%s165 + $0xa9] sm:$0xff]
      %v234 = vld [vmem:[%s165 + $0xb1] sm:$0xff]
      %v235 = vld [vmem:[%s165 + $0xc1] sm:$0xff]
      %v236 = vld [vmem:[%s165 + $0xc9] sm:$0xff]
      %v237 = vld [vmem:[%s165 + $0xd9] sm:$0xff]
      %v238 = vld [vmem:[%s165 + $0xe1] sm:$0xff]
      %v239 = vld [vmem:[%s165 + $0xf1] sm:$0xff]
      %v240 = vld [vmem:[%s165 + $0xf9] sm:$0xff]
      %v241 = vld [vmem:[%s165 + $0x109] sm:$0xff]
      %v242 = vld [vmem:[%s165 + $0x111] sm:$0xff]
      %v243 = vld [vmem:[%s165 + $0x121] sm:$0xff]
      %v244 = vld [vmem:[%s165 + $0x129] sm:$0xff]
      %v245 = vld [vmem:[%s165 + $0x139] sm:$0xff]
      %v246 = vld [vmem:[%s165 + $0x141] sm:$0xff]
      %v247 = vld [vmem:[%s165 + $0x151] sm:$0xff]
      %v248 = vld [vmem:[%s165 + $0x159] sm:$0xff]
      %v249 = vld [vmem:[%s165 + $0x169] sm:$0xff]
      %v250 = vld [vmem:[%s165 + $0x171] sm:$0xff]
      %s251 = scalar_lea.vmem %s1, 128
      %v252 = vld [vmem:[%s251] sm:$0xff]
      %v253 = vld [vmem:[%s251 + $0x8] sm:$0xff]
      %v254 = vld [vmem:[%s251 + $0x10] sm:$0xff]
      %v255 = vld [vmem:[%s251 + $0x18] sm:$0xff]
      %v256 = vld [vmem:[%s251 + $0x20] sm:$0xff]
      %v257 = vld [vmem:[%s251 + $0x28] sm:$0xff]
      %v258 = vld [vmem:[%s251 + $0x30] sm:$0xff]
      %v259 = vld [vmem:[%s251 + $0x38] sm:$0xff]
      %v260 = vld [vmem:[%s251 + $0x40] sm:$0xff]
      %v261 = vld [vmem:[%s251 + $0x48] sm:$0xff]
      %v262 = vld [vmem:[%s251 + $0x50] sm:$0xff]
      %v263 = vld [vmem:[%s251 + $0x58] sm:$0xff]
      %v264 = vld [vmem:[%s251 + $0x60] sm:$0xff]
      %v265 = vld [vmem:[%s251 + $0x68] sm:$0xff]
      %v266 = vld [vmem:[%s251 + $0x70] sm:$0xff]
      %v267 = vld [vmem:[%s251 + $0x78] sm:$0xff]
      %268 = vmatprep.subr.mxu0 0.0
      %269 = vmatpush1.msra.mxu0 %v252
      %270 = vmatprep.subr.mxu0 0.0
      %271 = vmatpush1.msra.mxu0 %v253
      %272 = vmatprep.subr.mxu0 0.0
      %273 = vmatpush1.msra.mxu0 %v254
      %274 = vmatprep.subr.mxu0 0.0
      %275 = vmatpush1.msra.mxu0 %v255
      %276 = vmatprep.subr.mxu0 0.0
      %277 = vmatpush1.msra.mxu0 %v256
      %278 = vmatprep.subr.mxu0 0.0
      %279 = vmatpush1.msra.mxu0 %v257
      %280 = vmatprep.subr.mxu0 0.0
      %281 = vmatpush1.msra.mxu0 %v258
      %282 = vmatprep.subr.mxu0 0.0
      %283 = vmatpush1.msra.mxu0 %v259
      %284 = vmatprep.subr.mxu0 0.0
      %285 = vmatpush1.msra.mxu0 %v260
      %286 = vmatprep.subr.mxu0 0.0
      %287 = vmatpush1.msra.mxu0 %v261
      %288 = vmatprep.subr.mxu0 0.0
      %289 = vmatpush1.msra.mxu0 %v262
      %290 = vmatprep.subr.mxu0 0.0
      %291 = vmatpush1.msra.mxu0 %v263
      %292 = vmatprep.subr.mxu0 0.0
      %293 = vmatpush1.msra.mxu0 %v264
      %294 = vmatprep.subr.mxu0 0.0
      %295 = vmatpush1.msra.mxu0 %v265
      %296 = vmatprep.subr.mxu0 0.0
      %297 = vmatpush1.msra.mxu0 %v266
      %298 = vmatprep.subr.mxu0 0.0
      %299 = vmatpush1.msra.mxu0 %v267
      %300 = vmatprep.subr.mxu0 0.0
      %301 = vmatpush1.msra.mxu0 0.0
      %302 = vmatprep.subr.mxu0 0.0
      %303 = vmatpush1.msra.mxu0 0.0
      %304 = vmatprep.subr.mxu0 0.0
      %305 = vmatpush1.msra.mxu0 0.0
      %306 = vmatprep.subr.mxu0 0.0
      %307 = vmatpush1.msra.mxu0 0.0
      %308 = vmatprep.subr.mxu0 0.0
      %309 = vmatpush1.msra.mxu0 0.0
      %310 = vmatprep.subr.mxu0 0.0
      %311 = vmatpush1.msra.mxu0 0.0
      %312 = vmatprep.subr.mxu0 0.0
      %313 = vmatpush1.msra.mxu0 0.0
      %314 = vmatprep.subr.mxu0 0.0
      %315 = vmatpush1.msra.mxu0 0.0
      %316 = vmatprep.subr.mxu0 0.0
      %317 = vmatpush1.msra.mxu0 0.0
      %318 = vmatprep.subr.mxu0 0.0
      %319 = vmatpush1.msra.mxu0 0.0
      %320 = vmatprep.subr.mxu0 0.0
      %321 = vmatpush1.msra.mxu0 0.0
      %322 = vmatprep.subr.mxu0 0.0
      %323 = vmatpush1.msra.mxu0 0.0
      %324 = vmatprep.subr.mxu0 0.0
      %325 = vmatpush1.msra.mxu0 0.0
      %326 = vmatprep.subr.mxu0 0.0
      %327 = vmatpush1.msra.mxu0 0.0
      %328 = vmatprep.subr.mxu0 0.0
      %329 = vmatpush1.msra.mxu0 0.0
      %330 = vmatprep.subr.mxu0 0.0
      %331 = vmatpush1.msra.mxu0 0.0
      %332 = vmatprep.mubr.f32.mxu0 0.0
      %333 = vmatmul.mubr.f32.gmra.mrb[0].mxu0 %v219
      %v334 = vpop.f32.mrb[0].mxu0
      %v335 = vadd.f32 0.0, %v334
      %v336 = vpop.f32.mrb[0].mxu0
      %337 = vmatprep.mubr.f32.mxu0 0.0
      %338 = vmatmul.mubr.f32.gmra.mrb[0].mxu0 %v220
      %v339 = vpop.f32.mrb[0].mxu0
      %v340 = vadd.f32 0.0, %v339
      %v341 = vpop.f32.mrb[0].mxu0
      %342 = vmatprep.mubr.f32.mxu0 0.0
      %343 = vmatmul.mubr.f32.gmra.mrb[0].mxu0 %v221
      %v344 = vpop.f32.mrb[0].mxu0
      %v345 = vadd.f32 0.0, %v344
      %v346 = vpop.f32.mrb[0].mxu0
      %347 = vmatprep.mubr.f32.mxu0 0.0
      %348 = vmatmul.mubr.f32.gmra.mrb[0].mxu0 %v222
      %v349 = vpop.f32.mrb[0].mxu0
      %v350 = vadd.f32 0.0, %v349
      %v351 = vpop.f32.mrb[0].mxu0
      %352 = vmatprep.mubr.f32.mxu0 0.0
      %353 = vmatmul.mubr.f32.gmra.mrb[0].mxu0 %v223
      %v354 = vpop.f32.mrb[0].mxu0
      %v355 = vadd.f32 0.0, %v354
      %v356 = vpop.f32.mrb[0].mxu0
      %357 = vmatprep.mubr.f32.mxu0 0.0
      %358 = vmatmul.mubr.f32.gmra.mrb[0].mxu0 %v224
      %v359 = vpop.f32.mrb[0].mxu0
      %v360 = vadd.f32 0.0, %v359
      %v361 = vpop.f32.mrb[0].mxu0
      %362 = vmatprep.mubr.f32.mxu0 0.0
      %363 = vmatmul.mubr.f32.gmra.mrb[0].mxu0 %v225
      %v364 = vpop.f32.mrb[0].mxu0
      %v365 = vadd.f32 0.0, %v364
      %v366 = vpop.f32.mrb[0].mxu0
      %367 = vmatprep.mubr.f32.mxu0 0.0
      %368 = vmatmul.mubr.f32.gmra.mrb[0].mxu0 %v226
      %v369 = vpop.f32.mrb[0].mxu0
      %v370 = vadd.f32 0.0, %v369
      %v371 = vpop.f32.mrb[0].mxu0
      %372 = vmatprep.mubr.f32.mxu0 0.0
      %373 = vmatmul.mubr.f32.gmra.mrb[0].mxu0 %v227
      %v374 = vpop.f32.mrb[0].mxu0
      %v375 = vadd.f32 0.0, %v374
      %v376 = vpop.f32.mrb[0].mxu0
      %377 = vmatprep.mubr.f32.mxu0 0.0
      %378 = vmatmul.mubr.f32.gmra.mrb[0].mxu0 %v228
      %v379 = vpop.f32.mrb[0].mxu0
      %v380 = vadd.f32 0.0, %v379
      %v381 = vpop.f32.mrb[0].mxu0
      %382 = vmatprep.mubr.f32.mxu0 0.0
      %383 = vmatmul.mubr.f32.gmra.mrb[0].mxu0 %v229
      %v384 = vpop.f32.mrb[0].mxu0
      %v385 = vadd.f32 0.0, %v384
      %v386 = vpop.f32.mrb[0].mxu0
      %387 = vmatprep.mubr.f32.mxu0 0.0
      %388 = vmatmul.mubr.f32.gmra.mrb[0].mxu0 %v230
      %v389 = vpop.f32.mrb[0].mxu0
      %v390 = vadd.f32 0.0, %v389
      %v391 = vpop.f32.mrb[0].mxu0
      %392 = vmatprep.mubr.f32.mxu0 0.0
      %393 = vmatmul.mubr.f32.gmra.mrb[0].mxu0 %v231
      %v394 = vpop.f32.mrb[0].mxu0
      %v395 = vadd.f32 0.0, %v394
      %v396 = vpop.f32.mrb[0].mxu0
      %397 = vmatprep.mubr.f32.mxu0 0.0
      %398 = vmatmul.mubr.f32.gmra.mrb[0].mxu0 %v232
      %v399 = vpop.f32.mrb[0].mxu0
      %v400 = vadd.f32 0.0, %v399
      %v401 = vpop.f32.mrb[0].mxu0
      %402 = vmatprep.mubr.f32.mxu0 0.0
      %403 = vmatmul.mubr.f32.gmra.mrb[0].mxu0 %v233
      %v404 = vpop.f32.mrb[0].mxu0
      %v405 = vadd.f32 0.0, %v404
      %v406 = vpop.f32.mrb[0].mxu0
      %407 = vmatprep.mubr.f32.mxu0 0.0
      %408 = vmatmul.mubr.f32.gmra.mrb[0].mxu0 %v234
      %v409 = vpop.f32.mrb[0].mxu0
      %v410 = vadd.f32 0.0, %v409
      %v411 = vpop.f32.mrb[0].mxu0
      %412 = vmatprep.mubr.f32.mxu0 0.0
      %413 = vmatmul.mubr.f32.gmra.mrb[0].mxu0 %v235
      %v414 = vpop.f32.mrb[0].mxu0
      %v415 = vadd.f32 0.0, %v414
      %v416 = vpop.f32.mrb[0].mxu0
      %417 = vmatprep.mubr.f32.mxu0 0.0
      %418 = vmatmul.mubr.f32.gmra.mrb[0].mxu0 %v236
      %v419 = vpop.f32.mrb[0].mxu0
      %v420 = vadd.f32 0.0, %v419
      %v421 = vpop.f32.mrb[0].mxu0
      %422 = vmatprep.mubr.f32.mxu0 0.0
      %423 = vmatmul.mubr.f32.gmra.mrb[0].mxu0 %v237
      %v424 = vpop.f32.mrb[0].mxu0
      %v425 = vadd.f32 0.0, %v424
      %v426 = vpop.f32.mrb[0].mxu0
      %427 = vmatprep.mubr.f32.mxu0 0.0
      %428 = vmatmul.mubr.f32.gmra.mrb[0].mxu0 %v238
      %v429 = vpop.f32.mrb[0].mxu0
      %v430 = vadd.f32 0.0, %v429
      %v431 = vpop.f32.mrb[0].mxu0
      %432 = vmatprep.mubr.f32.mxu0 0.0
      %433 = vmatmul.mubr.f32.gmra.mrb[0].mxu0 %v239
      %v434 = vpop.f32.mrb[0].mxu0
      %v435 = vadd.f32 0.0, %v434
      %v436 = vpop.f32.mrb[0].mxu0
      %437 = vmatprep.mubr.f32.mxu0 0.0
      %438 = vmatmul.mubr.f32.gmra.mrb[0].mxu0 %v240
      %v439 = vpop.f32.mrb[0].mxu0
      %v440 = vadd.f32 0.0, %v439
      %v441 = vpop.f32.mrb[0].mxu0
      %442 = vmatprep.mubr.f32.mxu0 0.0
      %443 = vmatmul.mubr.f32.gmra.mrb[0].mxu0 %v241
      %v444 = vpop.f32.mrb[0].mxu0
      %v445 = vadd.f32 0.0, %v444
      %v446 = vpop.f32.mrb[0].mxu0
      %447 = vmatprep.mubr.f32.mxu0 0.0
      %448 = vmatmul.mubr.f32.gmra.mrb[0].mxu0 %v242
      %v449 = vpop.f32.mrb[0].mxu0
      %v450 = vadd.f32 0.0, %v449
      %v451 = vpop.f32.mrb[0].mxu0
      %452 = vmatprep.mubr.f32.mxu0 0.0
      %453 = vmatmul.mubr.f32.gmra.mrb[0].mxu0 %v243
      %v454 = vpop.f32.mrb[0].mxu0
      %v455 = vadd.f32 0.0, %v454
      %v456 = vpop.f32.mrb[0].mxu0
      %457 = vmatprep.mubr.f32.mxu0 0.0
      %458 = vmatmul.mubr.f32.gmra.mrb[0].mxu0 %v244
      %v459 = vpop.f32.mrb[0].mxu0
      %v460 = vadd.f32 0.0, %v459
      %v461 = vpop.f32.mrb[0].mxu0
      %462 = vmatprep.mubr.f32.mxu0 0.0
      %463 = vmatmul.mubr.f32.gmra.mrb[0].mxu0 %v245
      %v464 = vpop.f32.mrb[0].mxu0
      %v465 = vadd.f32 0.0, %v464
      %v466 = vpop.f32.mrb[0].mxu0
      %467 = vmatprep.mubr.f32.mxu0 0.0
      %468 = vmatmul.mubr.f32.gmra.mrb[0].mxu0 %v246
      %v469 = vpop.f32.mrb[0].mxu0
      %v470 = vadd.f32 0.0, %v469
      %v471 = vpop.f32.mrb[0].mxu0
      %472 = vmatprep.mubr.f32.mxu0 0.0
      %473 = vmatmul.mubr.f32.gmra.mrb[0].mxu0 %v247
      %v474 = vpop.f32.mrb[0].mxu0
      %v475 = vadd.f32 0.0, %v474
      %v476 = vpop.f32.mrb[0].mxu0
      %477 = vmatprep.mubr.f32.mxu0 0.0
      %478 = vmatmul.mubr.f32.gmra.mrb[0].mxu0 %v248
      %v479 = vpop.f32.mrb[0].mxu0
      %v480 = vadd.f32 0.0, %v479
      %v481 = vpop.f32.mrb[0].mxu0
      %482 = vmatprep.mubr.f32.mxu0 0.0
      %483 = vmatmul.mubr.f32.gmra.mrb[0].mxu0 %v249
      %v484 = vpop.f32.mrb[0].mxu0
      %v485 = vadd.f32 0.0, %v484
      %v486 = vpop.f32.mrb[0].mxu0
      %487 = vmatprep.mubr.f32.mxu0 0.0
      %488 = vmatmul.mubr.f32.gmra.mrb[0].mxu0 %v250
      %v489 = vpop.f32.mrb[0].mxu0
      %v490 = vadd.f32 0.0, %v489
      %v491 = vpop.f32.mrb[0].mxu0
      %492 = vdwg.mxu0
      %493 = vmatprep.subr.mxu0 0.0
      %494 = vmatpush1.msra.mxu0 %v203
      %495 = vmatprep.subr.mxu0 0.0
      %496 = vmatpush1.msra.mxu0 %v204
      %497 = vmatprep.subr.mxu0 0.0
      %498 = vmatpush1.msra.mxu0 %v205
      %499 = vmatprep.subr.mxu0 0.0
      %500 = vmatpush1.msra.mxu0 %v206
      %501 = vmatprep.subr.mxu0 0.0
      %502 = vmatpush1.msra.mxu0 %v207
      %503 = vmatprep.subr.mxu0 0.0
      %504 = vmatpush1.msra.mxu0 %v208
      %505 = vmatprep.subr.mxu0 0.0
      %506 = vmatpush1.msra.mxu0 %v209
      %507 = vmatprep.subr.mxu0 0.0
      %508 = vmatpush1.msra.mxu0 %v210
      %509 = vmatprep.subr.mxu0 0.0
      %510 = vmatpush1.msra.mxu0 %v211
      %511 = vmatprep.subr.mxu0 0.0
      %512 = vmatpush1.msra.mxu0 %v212
      %513 = vmatprep.subr.mxu0 0.0
      %514 = vmatpush1.msra.mxu0 %v213
      %515 = vmatprep.subr.mxu0 0.0
      %516 = vmatpush1.msra.mxu0 %v214
      %517 = vmatprep.subr.mxu0 0.0
      %518 = vmatpush1.msra.mxu0 %v215
      %519 = vmatprep.subr.mxu0 0.0
      %520 = vmatpush1.msra.mxu0 %v216
      %521 = vmatprep.subr.mxu0 0.0
      %522 = vmatpush1.msra.mxu0 %v217
      %523 = vmatprep.subr.mxu0 0.0
      %524 = vmatpush1.msra.mxu0 %v218
      %525 = vmatprep.subr.mxu0 0.0
      %526 = vmatpush1.msra.mxu0 0.0
      %527 = vmatprep.subr.mxu0 0.0
      %528 = vmatpush1.msra.mxu0 0.0
      %529 = vmatprep.subr.mxu0 0.0
      %530 = vmatpush1.msra.mxu0 0.0
      %531 = vmatprep.subr.mxu0 0.0
      %532 = vmatpush1.msra.mxu0 0.0
      %533 = vmatprep.subr.mxu0 0.0
      %534 = vmatpush1.msra.mxu0 0.0
      %535 = vmatprep.subr.mxu0 0.0
      %536 = vmatpush1.msra.mxu0 0.0
      %537 = vmatprep.subr.mxu0 0.0
      %538 = vmatpush1.msra.mxu0 0.0
      %539 = vmatprep.subr.mxu0 0.0
      %540 = vmatpush1.msra.mxu0 0.0
      %541 = vmatprep.subr.mxu0 0.0
      %542 = vmatpush1.msra.mxu0 0.0
      %543 = vmatprep.subr.mxu0 0.0
      %544 = vmatpush1.msra.mxu0 0.0
      %545 = vmatprep.subr.mxu0 0.0
      %546 = vmatpush1.msra.mxu0 0.0
      %547 = vmatprep.subr.mxu0 0.0
      %548 = vmatpush1.msra.mxu0 0.0
      %549 = vmatprep.subr.mxu0 0.0
      %550 = vmatpush1.msra.mxu0 0.0
      %551 = vmatprep.subr.mxu0 0.0
      %552 = vmatpush1.msra.mxu0 0.0
      %553 = vmatprep.subr.mxu0 0.0
      %554 = vmatpush1.msra.mxu0 0.0
      %555 = vmatprep.subr.mxu0 0.0
      %556 = vmatpush1.msra.mxu0 0.0
      %557 = vmatprep.mubr.f32.mxu0 0.0
      %558 = vmatmul.mubr.f32.gmra.mrb[0].mxu0 %v171
      %v559 = vpop.f32.mrb[0].mxu0
      %v560 = vadd.f32 %v335, %v559
      %v561 = vpop.f32.mrb[0].mxu0
      %562 = vmatprep.mubr.f32.mxu0 0.0
      %563 = vmatmul.mubr.f32.gmra.mrb[0].mxu0 %v172
      %v564 = vpop.f32.mrb[0].mxu0
      %v565 = vadd.f32 %v340, %v564
      %v566 = vpop.f32.mrb[0].mxu0
      %567 = vmatprep.mubr.f32.mxu0 0.0
      %568 = vmatmul.mubr.f32.gmra.mrb[0].mxu0 %v173
      %v569 = vpop.f32.mrb[0].mxu0
      %v570 = vadd.f32 %v345, %v569
      %v571 = vpop.f32.mrb[0].mxu0
      %572 = vmatprep.mubr.f32.mxu0 0.0
      %573 = vmatmul.mubr.f32.gmra.mrb[0].mxu0 %v174
      %v574 = vpop.f32.mrb[0].mxu0
      %v575 = vadd.f32 %v350, %v574
      %v576 = vpop.f32.mrb[0].mxu0
      %577 = vmatprep.mubr.f32.mxu0 0.0
      %578 = vmatmul.mubr.f32.gmra.mrb[0].mxu0 %v175
      %v579 = vpop.f32.mrb[0].mxu0
      %v580 = vadd.f32 %v355, %v579
      %v581 = vpop.f32.mrb[0].mxu0
      %582 = vmatprep.mubr.f32.mxu0 0.0
      %583 = vmatmul.mubr.f32.gmra.mrb[0].mxu0 %v176
      %v584 = vpop.f32.mrb[0].mxu0
      %v585 = vadd.f32 %v360, %v584
      %v586 = vpop.f32.mrb[0].mxu0
      %587 = vmatprep.mubr.f32.mxu0 0.0
      %588 = vmatmul.mubr.f32.gmra.mrb[0].mxu0 %v177
      %v589 = vpop.f32.mrb[0].mxu0
      %v590 = vadd.f32 %v365, %v589
      %v591 = vpop.f32.mrb[0].mxu0
      %592 = vmatprep.mubr.f32.mxu0 0.0
      %593 = vmatmul.mubr.f32.gmra.mrb[0].mxu0 %v178
      %v594 = vpop.f32.mrb[0].mxu0
      %v595 = vadd.f32 %v370, %v594
      %v596 = vpop.f32.mrb[0].mxu0
      %597 = vmatprep.mubr.f32.mxu0 0.0
      %598 = vmatmul.mubr.f32.gmra.mrb[0].mxu0 %v179
      %v599 = vpop.f32.mrb[0].mxu0
      %v600 = vadd.f32 %v375, %v599
      %v601 = vpop.f32.mrb[0].mxu0
      %602 = vmatprep.mubr.f32.mxu0 0.0
      %603 = vmatmul.mubr.f32.gmra.mrb[0].mxu0 %v180
      %v604 = vpop.f32.mrb[0].mxu0
      %v605 = vadd.f32 %v380, %v604
      %v606 = vpop.f32.mrb[0].mxu0
      %607 = vmatprep.mubr.f32.mxu0 0.0
      %608 = vmatmul.mubr.f32.gmra.mrb[0].mxu0 %v181
      %v609 = vpop.f32.mrb[0].mxu0
      %v610 = vadd.f32 %v385, %v609
      %v611 = vpop.f32.mrb[0].mxu0
      %612 = vmatprep.mubr.f32.mxu0 0.0
      %613 = vmatmul.mubr.f32.gmra.mrb[0].mxu0 %v182
      %v614 = vpop.f32.mrb[0].mxu0
      %v615 = vadd.f32 %v390, %v614
      %v616 = vpop.f32.mrb[0].mxu0
      %617 = vmatprep.mubr.f32.mxu0 0.0
      %618 = vmatmul.mubr.f32.gmra.mrb[0].mxu0 %v183
      %v619 = vpop.f32.mrb[0].mxu0
      %v620 = vadd.f32 %v395, %v619
      %v621 = vpop.f32.mrb[0].mxu0
      %622 = vmatprep.mubr.f32.mxu0 0.0
      %623 = vmatmul.mubr.f32.gmra.mrb[0].mxu0 %v184
      %v624 = vpop.f32.mrb[0].mxu0
      %v625 = vadd.f32 %v400, %v624
      %v626 = vpop.f32.mrb[0].mxu0
      %627 = vmatprep.mubr.f32.mxu0 0.0
      %628 = vmatmul.mubr.f32.gmra.mrb[0].mxu0 %v185
      %v629 = vpop.f32.mrb[0].mxu0
      %v630 = vadd.f32 %v405, %v629
      %v631 = vpop.f32.mrb[0].mxu0
      %632 = vmatprep.mubr.f32.mxu0 0.0
      %633 = vmatmul.mubr.f32.gmra.mrb[0].mxu0 %v186
      %v634 = vpop.f32.mrb[0].mxu0
      %v635 = vadd.f32 %v410, %v634
      %v636 = vpop.f32.mrb[0].mxu0
      %637 = vmatprep.mubr.f32.mxu0 0.0
      %638 = vmatmul.mubr.f32.gmra.mrb[0].mxu0 %v187
      %v639 = vpop.f32.mrb[0].mxu0
      %v640 = vadd.f32 %v415, %v639
      %v641 = vpop.f32.mrb[0].mxu0
      %642 = vmatprep.mubr.f32.mxu0 0.0
      %643 = vmatmul.mubr.f32.gmra.mrb[0].mxu0 %v188
      %v644 = vpop.f32.mrb[0].mxu0
      %v645 = vadd.f32 %v420, %v644
      %v646 = vpop.f32.mrb[0].mxu0
      %647 = vmatprep.mubr.f32.mxu0 0.0
      %648 = vmatmul.mubr.f32.gmra.mrb[0].mxu0 %v189
      %v649 = vpop.f32.mrb[0].mxu0
      %v650 = vadd.f32 %v425, %v649
      %v651 = vpop.f32.mrb[0].mxu0
      %652 = vmatprep.mubr.f32.mxu0 0.0
      %653 = vmatmul.mubr.f32.gmra.mrb[0].mxu0 %v190
      %v654 = vpop.f32.mrb[0].mxu0
      %v655 = vadd.f32 %v430, %v654
      %v656 = vpop.f32.mrb[0].mxu0
      %657 = vmatprep.mubr.f32.mxu0 0.0
      %658 = vmatmul.mubr.f32.gmra.mrb[0].mxu0 %v191
      %v659 = vpop.f32.mrb[0].mxu0
      %v660 = vadd.f32 %v435, %v659
      %v661 = vpop.f32.mrb[0].mxu0
      %662 = vmatprep.mubr.f32.mxu0 0.0
      %663 = vmatmul.mubr.f32.gmra.mrb[0].mxu0 %v192
      %v664 = vpop.f32.mrb[0].mxu0
      %v665 = vadd.f32 %v440, %v664
      %v666 = vpop.f32.mrb[0].mxu0
      %667 = vmatprep.mubr.f32.mxu0 0.0
      %668 = vmatmul.mubr.f32.gmra.mrb[0].mxu0 %v193
      %v669 = vpop.f32.mrb[0].mxu0
      %v670 = vadd.f32 %v445, %v669
      %v671 = vpop.f32.mrb[0].mxu0
      %672 = vmatprep.mubr.f32.mxu0 0.0
      %673 = vmatmul.mubr.f32.gmra.mrb[0].mxu0 %v194
      %v674 = vpop.f32.mrb[0].mxu0
      %v675 = vadd.f32 %v450, %v674
      %v676 = vpop.f32.mrb[0].mxu0
      %677 = vmatprep.mubr.f32.mxu0 0.0
      %678 = vmatmul.mubr.f32.gmra.mrb[0].mxu0 %v195
      %v679 = vpop.f32.mrb[0].mxu0
      %v680 = vadd.f32 %v455, %v679
      %v681 = vpop.f32.mrb[0].mxu0
      %682 = vmatprep.mubr.f32.mxu0 0.0
      %683 = vmatmul.mubr.f32.gmra.mrb[0].mxu0 %v196
      %v684 = vpop.f32.mrb[0].mxu0
      %v685 = vadd.f32 %v460, %v684
      %v686 = vpop.f32.mrb[0].mxu0
      %687 = vmatprep.mubr.f32.mxu0 0.0
      %688 = vmatmul.mubr.f32.gmra.mrb[0].mxu0 %v197
      %v689 = vpop.f32.mrb[0].mxu0
      %v690 = vadd.f32 %v465, %v689
      %v691 = vpop.f32.mrb[0].mxu0
      %692 = vmatprep.mubr.f32.mxu0 0.0
      %693 = vmatmul.mubr.f32.gmra.mrb[0].mxu0 %v198
      %v694 = vpop.f32.mrb[0].mxu0
      %v695 = vadd.f32 %v470, %v694
      %v696 = vpop.f32.mrb[0].mxu0
      %697 = vmatprep.mubr.f32.mxu0 0.0
      %698 = vmatmul.mubr.f32.gmra.mrb[0].mxu0 %v199
      %v699 = vpop.f32.mrb[0].mxu0
      %v700 = vadd.f32 %v475, %v699
      %v701 = vpop.f32.mrb[0].mxu0
      %702 = vmatprep.mubr.f32.mxu0 0.0
      %703 = vmatmul.mubr.f32.gmra.mrb[0].mxu0 %v200
      %v704 = vpop.f32.mrb[0].mxu0
      %v705 = vadd.f32 %v480, %v704
      %v706 = vpop.f32.mrb[0].mxu0
      %707 = vmatprep.mubr.f32.mxu0 0.0
      %708 = vmatmul.mubr.f32.gmra.mrb[0].mxu0 %v201
      %v709 = vpop.f32.mrb[0].mxu0
      %v710 = vadd.f32 %v485, %v709
      %v711 = vpop.f32.mrb[0].mxu0
      %712 = vmatprep.mubr.f32.mxu0 0.0
      %713 = vmatmul.mubr.f32.gmra.mrb[0].mxu0 %v202
      %v714 = vpop.f32.mrb[0].mxu0
      %v715 = vadd.f32 %v490, %v714
      %v716 = vpop.f32.mrb[0].mxu0
      %717 = vdwg.mxu0
      %v718 = vld [vmem:[%s165 + $0x2] sm:$0xff]
      %v719 = vld [vmem:[%s165 + $0xa] sm:$0xff]
      %v720 = vld [vmem:[%s165 + $0x1a] sm:$0xff]
      %v721 = vld [vmem:[%s165 + $0x22] sm:$0xff]
      %v722 = vld [vmem:[%s165 + $0x32] sm:$0xff]
      %v723 = vld [vmem:[%s165 + $0x3a] sm:$0xff]
      %v724 = vld [vmem:[%s165 + $0x4a] sm:$0xff]
      %v725 = vld [vmem:[%s165 + $0x52] sm:$0xff]
      %v726 = vld [vmem:[%s165 + $0x62] sm:$0xff]
      %v727 = vld [vmem:[%s165 + $0x6a] sm:$0xff]
      %v728 = vld [vmem:[%s165 + $0x7a] sm:$0xff]
      %v729 = vld [vmem:[%s165 + $0x82] sm:$0xff]
      %v730 = vld [vmem:[%s165 + $0x92] sm:$0xff]
      %v731 = vld [vmem:[%s165 + $0x9a] sm:$0xff]
      %v732 = vld [vmem:[%s165 + $0xaa] sm:$0xff]
      %v733 = vld [vmem:[%s165 + $0xb2] sm:$0xff]
      %v734 = vld [vmem:[%s165 + $0xc2] sm:$0xff]
      %v735 = vld [vmem:[%s165 + $0xca] sm:$0xff]
      %v736 = vld [vmem:[%s165 + $0xda] sm:$0xff]
      %v737 = vld [vmem:[%s165 + $0xe2] sm:$0xff]
      %v738 = vld [vmem:[%s165 + $0xf2] sm:$0xff]
      %v739 = vld [vmem:[%s165 + $0xfa] sm:$0xff]
      %v740 = vld [vmem:[%s165 + $0x10a] sm:$0xff]
      %v741 = vld [vmem:[%s165 + $0x112] sm:$0xff]
      %v742 = vld [vmem:[%s165 + $0x122] sm:$0xff]
      %v743 = vld [vmem:[%s165 + $0x12a] sm:$0xff]
      %v744 = vld [vmem:[%s165 + $0x13a] sm:$0xff]
      %v745 = vld [vmem:[%s165 + $0x142] sm:$0xff]
      %v746 = vld [vmem:[%s165 + $0x152] sm:$0xff]
      %v747 = vld [vmem:[%s165 + $0x15a] sm:$0xff]
      %v748 = vld [vmem:[%s165 + $0x16a] sm:$0xff]
      %v749 = vld [vmem:[%s165 + $0x172] sm:$0xff]
      %s750 = scalar_lea.vmem %s1, 256
      %v751 = vld [vmem:[%s750] sm:$0xff]
      %v752 = vld [vmem:[%s750 + $0x8] sm:$0xff]
      %v753 = vld [vmem:[%s750 + $0x10] sm:$0xff]
      %v754 = vld [vmem:[%s750 + $0x18] sm:$0xff]
      %v755 = vld [vmem:[%s750 + $0x20] sm:$0xff]
      %v756 = vld [vmem:[%s750 + $0x28] sm:$0xff]
      %v757 = vld [vmem:[%s750 + $0x30] sm:$0xff]
      %v758 = vld [vmem:[%s750 + $0x38] sm:$0xff]
      %v759 = vld [vmem:[%s750 + $0x40] sm:$0xff]
      %v760 = vld [vmem:[%s750 + $0x48] sm:$0xff]
      %v761 = vld [vmem:[%s750 + $0x50] sm:$0xff]
      %v762 = vld [vmem:[%s750 + $0x58] sm:$0xff]
      %v763 = vld [vmem:[%s750 + $0x60] sm:$0xff]
      %v764 = vld [vmem:[%s750 + $0x68] sm:$0xff]
      %v765 = vld [vmem:[%s750 + $0x70] sm:$0xff]
      %v766 = vld [vmem:[%s750 + $0x78] sm:$0xff]
      %767 = vmatprep.subr.mxu0 0.0
      %768 = vmatpush1.msra.mxu0 %v751
      %769 = vmatprep.subr.mxu0 0.0
      %770 = vmatpush1.msra.mxu0 %v752
      %771 = vmatprep.subr.mxu0 0.0
      %772 = vmatpush1.msra.mxu0 %v753
      %773 = vmatprep.subr.mxu0 0.0
      %774 = vmatpush1.msra.mxu0 %v754
      %775 = vmatprep.subr.mxu0 0.0
      %776 = vmatpush1.msra.mxu0 %v755
      %777 = vmatprep.subr.mxu0 0.0
      %778 = vmatpush1.msra.mxu0 %v756
      %779 = vmatprep.subr.mxu0 0.0
      %780 = vmatpush1.msra.mxu0 %v757
      %781 = vmatprep.subr.mxu0 0.0
      %782 = vmatpush1.msra.mxu0 %v758
      %783 = vmatprep.subr.mxu0 0.0
      %784 = vmatpush1.msra.mxu0 %v759
      %785 = vmatprep.subr.mxu0 0.0
      %786 = vmatpush1.msra.mxu0 %v760
      %787 = vmatprep.subr.mxu0 0.0
      %788 = vmatpush1.msra.mxu0 %v761
      %789 = vmatprep.subr.mxu0 0.0
      %790 = vmatpush1.msra.mxu0 %v762
      %791 = vmatprep.subr.mxu0 0.0
      %792 = vmatpush1.msra.mxu0 %v763
      %793 = vmatprep.subr.mxu0 0.0
      %794 = vmatpush1.msra.mxu0 %v764
      %795 = vmatprep.subr.mxu0 0.0
      %796 = vmatpush1.msra.mxu0 %v765
      %797 = vmatprep.subr.mxu0 0.0
      %798 = vmatpush1.msra.mxu0 %v766
      %799 = vmatprep.subr.mxu0 0.0
      %800 = vmatpush1.msra.mxu0 0.0
      %801 = vmatprep.subr.mxu0 0.0
      %802 = vmatpush1.msra.mxu0 0.0
      %803 = vmatprep.subr.mxu0 0.0
      %804 = vmatpush1.msra.mxu0 0.0
      %805 = vmatprep.subr.mxu0 0.0
      %806 = vmatpush1.msra.mxu0 0.0
      %807 = vmatprep.subr.mxu0 0.0
      %808 = vmatpush1.msra.mxu0 0.0
      %809 = vmatprep.subr.mxu0 0.0
      %810 = vmatpush1.msra.mxu0 0.0
      %811 = vmatprep.subr.mxu0 0.0
      %812 = vmatpush1.msra.mxu0 0.0
      %813 = vmatprep.subr.mxu0 0.0
      %814 = vmatpush1.msra.mxu0 0.0
      %815 = vmatprep.subr.mxu0 0.0
      %816 = vmatpush1.msra.mxu0 0.0
      %817 = vmatprep.subr.mxu0 0.0
      %818 = vmatpush1.msra.mxu0 0.0
      %819 = vmatprep.subr.mxu0 0.0
      %820 = vmatpush1.msra.mxu0 0.0
      %821 = vmatprep.subr.mxu0 0.0
      %822 = vmatpush1.msra.mxu0 0.0
      %823 = vmatprep.subr.mxu0 0.0
      %824 = vmatpush1.msra.mxu0 0.0
      %825 = vmatprep.subr.mxu0 0.0
      %826 = vmatpush1.msra.mxu0 0.0
      %827 = vmatprep.subr.mxu0 0.0
      %828 = vmatpush1.msra.mxu0 0.0
      %829 = vmatprep.subr.mxu0 0.0
      %830 = vmatpush1.msra.mxu0 0.0
      %831 = vmatprep.mubr.f32.mxu0 0.0
      %832 = vmatmul.mubr.f32.gmra.mrb[0].mxu0 %v718
      %v833 = vpop.f32.mrb[0].mxu0
      %v834 = vadd.f32 0.0, %v833
      %v835 = vpop.f32.mrb[0].mxu0
      %836 = vmatprep.mubr.f32.mxu0 0.0
      %837 = vmatmul.mubr.f32.gmra.mrb[0].mxu0 %v719
      %v838 = vpop.f32.mrb[0].mxu0
      %v839 = vadd.f32 0.0, %v838
      %v840 = vpop.f32.mrb[0].mxu0
      %841 = vmatprep.mubr.f32.mxu0 0.0
      %842 = vmatmul.mubr.f32.gmra.mrb[0].mxu0 %v720
      %v843 = vpop.f32.mrb[0].mxu0
      %v844 = vadd.f32 0.0, %v843
      %v845 = vpop.f32.mrb[0].mxu0
      %846 = vmatprep.mubr.f32.mxu0 0.0
      %847 = vmatmul.mubr.f32.gmra.mrb[0].mxu0 %v721
      %v848 = vpop.f32.mrb[0].mxu0
      %v849 = vadd.f32 0.0, %v848
      %v850 = vpop.f32.mrb[0].mxu0
      %851 = vmatprep.mubr.f32.mxu0 0.0
      %852 = vmatmul.mubr.f32.gmra.mrb[0].mxu0 %v722
      %v853 = vpop.f32.mrb[0].mxu0
      %v854 = vadd.f32 0.0, %v853
      %v855 = vpop.f32.mrb[0].mxu0
      %856 = vmatprep.mubr.f32.mxu0 0.0
      %857 = vmatmul.mubr.f32.gmra.mrb[0].mxu0 %v723
      %v858 = vpop.f32.mrb[0].mxu0
      %v859 = vadd.f32 0.0, %v858
      %v860 = vpop.f32.mrb[0].mxu0
      %861 = vmatprep.mubr.f32.mxu0 0.0
      %862 = vmatmul.mubr.f32.gmra.mrb[0].mxu0 %v724
      %v863 = vpop.f32.mrb[0].mxu0
      %v864 = vadd.f32 0.0, %v863
      %v865 = vpop.f32.mrb[0].mxu0
      %866 = vmatprep.mubr.f32.mxu0 0.0
      %867 = vmatmul.mubr.f32.gmra.mrb[0].mxu0 %v725
      %v868 = vpop.f32.mrb[0].mxu0
      %v869 = vadd.f32 0.0, %v868
      %v870 = vpop.f32.mrb[0].mxu0
      %871 = vmatprep.mubr.f32.mxu0 0.0
      %872 = vmatmul.mubr.f32.gmra.mrb[0].mxu0 %v726
      %v873 = vpop.f32.mrb[0].mxu0
      %v874 = vadd.f32 0.0, %v873
      %v875 = vpop.f32.mrb[0].mxu0
      %876 = vmatprep.mubr.f32.mxu0 0.0
      %877 = vmatmul.mubr.f32.gmra.mrb[0].mxu0 %v727
      %v878 = vpop.f32.mrb[0].mxu0
      %v879 = vadd.f32 0.0, %v878
      %v880 = vpop.f32.mrb[0].mxu0
      %881 = vmatprep.mubr.f32.mxu0 0.0
      %882 = vmatmul.mubr.f32.gmra.mrb[0].mxu0 %v728
      %v883 = vpop.f32.mrb[0].mxu0
      %v884 = vadd.f32 0.0, %v883
      %v885 = vpop.f32.mrb[0].mxu0
      %886 = vmatprep.mubr.f32.mxu0 0.0
      %887 = vmatmul.mubr.f32.gmra.mrb[0].mxu0 %v729
      %v888 = vpop.f32.mrb[0].mxu0
      %v889 = vadd.f32 0.0, %v888
      %v890 = vpop.f32.mrb[0].mxu0
      %891 = vmatprep.mubr.f32.mxu0 0.0
      %892 = vmatmul.mubr.f32.gmra.mrb[0].mxu0 %v730
      %v893 = vpop.f32.mrb[0].mxu0
      %v894 = vadd.f32 0.0, %v893
      %v895 = vpop.f32.mrb[0].mxu0
      %896 = vmatprep.mubr.f32.mxu0 0.0
      %897 = vmatmul.mubr.f32.gmra.mrb[0].mxu0 %v731
      %v898 = vpop.f32.mrb[0].mxu0
      %v899 = vadd.f32 0.0, %v898
      %v900 = vpop.f32.mrb[0].mxu0
      %901 = vmatprep.mubr.f32.mxu0 0.0
      %902 = vmatmul.mubr.f32.gmra.mrb[0].mxu0 %v732
      %v903 = vpop.f32.mrb[0].mxu0
      %v904 = vadd.f32 0.0, %v903
      %v905 = vpop.f32.mrb[0].mxu0
      %906 = vmatprep.mubr.f32.mxu0 0.0
      %907 = vmatmul.mubr.f32.gmra.mrb[0].mxu0 %v733
      %v908 = vpop.f32.mrb[0].mxu0
      %v909 = vadd.f32 0.0, %v908
      %v910 = vpop.f32.mrb[0].mxu0
      %911 = vmatprep.mubr.f32.mxu0 0.0
      %912 = vmatmul.mubr.f32.gmra.mrb[0].mxu0 %v734
      %v913 = vpop.f32.mrb[0].mxu0
      %v914 = vadd.f32 0.0, %v913
      %v915 = vpop.f32.mrb[0].mxu0
      %916 = vmatprep.mubr.f32.mxu0 0.0
      %917 = vmatmul.mubr.f32.gmra.mrb[0].mxu0 %v735
      %v918 = vpop.f32.mrb[0].mxu0
      %v919 = vadd.f32 0.0, %v918
      %v920 = vpop.f32.mrb[0].mxu0
      %921 = vmatprep.mubr.f32.mxu0 0.0
      %922 = vmatmul.mubr.f32.gmra.mrb[0].mxu0 %v736
      %v923 = vpop.f32.mrb[0].mxu0
      %v924 = vadd.f32 0.0, %v923
      %v925 = vpop.f32.mrb[0].mxu0
      %926 = vmatprep.mubr.f32.mxu0 0.0
      %927 = vmatmul.mubr.f32.gmra.mrb[0].mxu0 %v737
      %v928 = vpop.f32.mrb[0].mxu0
      %v929 = vadd.f32 0.0, %v928
      %v930 = vpop.f32.mrb[0].mxu0
      %931 = vmatprep.mubr.f32.mxu0 0.0
      %932 = vmatmul.mubr.f32.gmra.mrb[0].mxu0 %v738
      %v933 = vpop.f32.mrb[0].mxu0
      %v934 = vadd.f32 0.0, %v933
      %v935 = vpop.f32.mrb[0].mxu0
      %936 = vmatprep.mubr.f32.mxu0 0.0
      %937 = vmatmul.mubr.f32.gmra.mrb[0].mxu0 %v739
      %v938 = vpop.f32.mrb[0].mxu0
      %v939 = vadd.f32 0.0, %v938
      %v940 = vpop.f32.mrb[0].mxu0
      %941 = vmatprep.mubr.f32.mxu0 0.0
      %942 = vmatmul.mubr.f32.gmra.mrb[0].mxu0 %v740
      %v943 = vpop.f32.mrb[0].mxu0
      %v944 = vadd.f32 0.0, %v943
      %v945 = vpop.f32.mrb[0].mxu0
      %946 = vmatprep.mubr.f32.mxu0 0.0
      %947 = vmatmul.mubr.f32.gmra.mrb[0].mxu0 %v741
      %v948 = vpop.f32.mrb[0].mxu0
      %v949 = vadd.f32 0.0, %v948
      %v950 = vpop.f32.mrb[0].mxu0
      %951 = vmatprep.mubr.f32.mxu0 0.0
      %952 = vmatmul.mubr.f32.gmra.mrb[0].mxu0 %v742
      %v953 = vpop.f32.mrb[0].mxu0
      %v954 = vadd.f32 0.0, %v953
      %v955 = vpop.f32.mrb[0].mxu0
      %956 = vmatprep.mubr.f32.mxu0 0.0
      %957 = vmatmul.mubr.f32.gmra.mrb[0].mxu0 %v743
      %v958 = vpop.f32.mrb[0].mxu0
      %v959 = vadd.f32 0.0, %v958
      %v960 = vpop.f32.mrb[0].mxu0
      %961 = vmatprep.mubr.f32.mxu0 0.0
      %962 = vmatmul.mubr.f32.gmra.mrb[0].mxu0 %v744
      %v963 = vpop.f32.mrb[0].mxu0
      %v964 = vadd.f32 0.0, %v963
      %v965 = vpop.f32.mrb[0].mxu0
      %966 = vmatprep.mubr.f32.mxu0 0.0
      %967 = vmatmul.mubr.f32.gmra.mrb[0].mxu0 %v745
      %v968 = vpop.f32.mrb[0].mxu0
      %v969 = vadd.f32 0.0, %v968
      %v970 = vpop.f32.mrb[0].mxu0
      %971 = vmatprep.mubr.f32.mxu0 0.0
      %972 = vmatmul.mubr.f32.gmra.mrb[0].mxu0 %v746
      %v973 = vpop.f32.mrb[0].mxu0
      %v974 = vadd.f32 0.0, %v973
      %v975 = vpop.f32.mrb[0].mxu0
      %976 = vmatprep.mubr.f32.mxu0 0.0
      %977 = vmatmul.mubr.f32.gmra.mrb[0].mxu0 %v747
      %v978 = vpop.f32.mrb[0].mxu0
      %v979 = vadd.f32 0.0, %v978
      %v980 = vpop.f32.mrb[0].mxu0
      %981 = vmatprep.mubr.f32.mxu0 0.0
      %982 = vmatmul.mubr.f32.gmra.mrb[0].mxu0 %v748
      %v983 = vpop.f32.mrb[0].mxu0
      %v984 = vadd.f32 0.0, %v983
      %v985 = vpop.f32.mrb[0].mxu0
      %986 = vmatprep.mubr.f32.mxu0 0.0
      %987 = vmatmul.mubr.f32.gmra.mrb[0].mxu0 %v749
      %v988 = vpop.f32.mrb[0].mxu0
      %v989 = vadd.f32 0.0, %v988
      %v990 = vpop.f32.mrb[0].mxu0
      %991 = vdwg.mxu0
      %v992 = vadd.f32 %v560, %v834
      %v993 = vadd.f32 %v565, %v839
      %v994 = vadd.f32 %v570, %v844
      %v995 = vadd.f32 %v575, %v849
      %v996 = vadd.f32 %v580, %v854
      %v997 = vadd.f32 %v585, %v859
      %v998 = vadd.f32 %v590, %v864
      %v999 = vadd.f32 %v595, %v869
      %v1000 = vadd.f32 %v600, %v874
      %v1001 = vadd.f32 %v605, %v879
      %v1002 = vadd.f32 %v610, %v884
      %v1003 = vadd.f32 %v615, %v889
      %v1004 = vadd.f32 %v620, %v894
      %v1005 = vadd.f32 %v625, %v899
      %v1006 = vadd.f32 %v630, %v904
      %v1007 = vadd.f32 %v635, %v909
      %v1008 = vadd.f32 %v640, %v914
      %v1009 = vadd.f32 %v645, %v919
      %v1010 = vadd.f32 %v650, %v924
      %v1011 = vadd.f32 %v655, %v929
      %v1012 = vadd.f32 %v660, %v934
      %v1013 = vadd.f32 %v665, %v939
      %v1014 = vadd.f32 %v670, %v944
      %v1015 = vadd.f32 %v675, %v949
      %v1016 = vadd.f32 %v680, %v954
      %v1017 = vadd.f32 %v685, %v959
      %v1018 = vadd.f32 %v690, %v964
      %v1019 = vadd.f32 %v695, %v969
      %v1020 = vadd.f32 %v700, %v974
      %v1021 = vadd.f32 %v705, %v979
      %v1022 = vadd.f32 %v710, %v984
      %v1023 = vadd.f32 %v715, %v989
      %s1024 = scalar_lea.vmem %s165, 24
      %v1025 = vld [vmem:[%s1024] sm:$0xff]
      %v1026 = vld [vmem:[%s1024 + $0x8] sm:$0xff]
      %v1027 = vld [vmem:[%s1024 + $0x18] sm:$0xff]
      %v1028 = vld [vmem:[%s1024 + $0x20] sm:$0xff]
      %v1029 = vld [vmem:[%s1024 + $0x30] sm:$0xff]
      %v1030 = vld [vmem:[%s1024 + $0x38] sm:$0xff]
      %v1031 = vld [vmem:[%s1024 + $0x48] sm:$0xff]
      %v1032 = vld [vmem:[%s1024 + $0x50] sm:$0xff]
      %v1033 = vld [vmem:[%s1024 + $0x60] sm:$0xff]
      %v1034 = vld [vmem:[%s1024 + $0x68] sm:$0xff]
      %v1035 = vld [vmem:[%s1024 + $0x78] sm:$0xff]
      %v1036 = vld [vmem:[%s1024 + $0x80] sm:$0xff]
      %v1037 = vld [vmem:[%s1024 + $0x90] sm:$0xff]
      %v1038 = vld [vmem:[%s1024 + $0x98] sm:$0xff]
      %v1039 = vld [vmem:[%s1024 + $0xa8] sm:$0xff]
      %v1040 = vld [vmem:[%s1024 + $0xb0] sm:$0xff]
      %v1041 = vld [vmem:[%s1024 + $0xc0] sm:$0xff]
      %v1042 = vld [vmem:[%s1024 + $0xc8] sm:$0xff]
      %v1043 = vld [vmem:[%s1024 + $0xd8] sm:$0xff]
      %v1044 = vld [vmem:[%s1024 + $0xe0] sm:$0xff]
      %v1045 = vld [vmem:[%s1024 + $0xf0] sm:$0xff]
      %v1046 = vld [vmem:[%s1024 + $0xf8] sm:$0xff]
      %v1047 = vld [vmem:[%s1024 + $0x108] sm:$0xff]
      %v1048 = vld [vmem:[%s1024 + $0x110] sm:$0xff]
      %v1049 = vld [vmem:[%s1024 + $0x120] sm:$0xff]
      %v1050 = vld [vmem:[%s1024 + $0x128] sm:$0xff]
      %v1051 = vld [vmem:[%s1024 + $0x138] sm:$0xff]
      %v1052 = vld [vmem:[%s1024 + $0x140] sm:$0xff]
      %v1053 = vld [vmem:[%s1024 + $0x150] sm:$0xff]
      %v1054 = vld [vmem:[%s1024 + $0x158] sm:$0xff]
      %v1055 = vld [vmem:[%s1024 + $0x168] sm:$0xff]
      %v1056 = vld [vmem:[%s1024 + $0x170] sm:$0xff]
      %s1057 = scalar_lea.vmem %s1, 384
      %v1058 = vld [vmem:[%s1057] sm:$0xff]
      %v1059 = vld [vmem:[%s1057 + $0x8] sm:$0xff]
      %v1060 = vld [vmem:[%s1057 + $0x10] sm:$0xff]
      %v1061 = vld [vmem:[%s1057 + $0x18] sm:$0xff]
      %v1062 = vld [vmem:[%s1057 + $0x20] sm:$0xff]
      %v1063 = vld [vmem:[%s1057 + $0x28] sm:$0xff]
      %v1064 = vld [vmem:[%s1057 + $0x30] sm:$0xff]
      %v1065 = vld [vmem:[%s1057 + $0x38] sm:$0xff]
      %v1066 = vld [vmem:[%s1057 + $0x40] sm:$0xff]
      %v1067 = vld [vmem:[%s1057 + $0x48] sm:$0xff]
      %v1068 = vld [vmem:[%s1057 + $0x50] sm:$0xff]
      %v1069 = vld [vmem:[%s1057 + $0x58] sm:$0xff]
      %v1070 = vld [vmem:[%s1057 + $0x60] sm:$0xff]
      %v1071 = vld [vmem:[%s1057 + $0x68] sm:$0xff]
      %v1072 = vld [vmem:[%s1057 + $0x70] sm:$0xff]
      %v1073 = vld [vmem:[%s1057 + $0x78] sm:$0xff]
      %1074 = vmatprep.subr.mxu0 0.0
      %1075 = vmatpush1.msra.mxu0 %v1058
      %1076 = vmatprep.subr.mxu0 0.0
      %1077 = vmatpush1.msra.mxu0 %v1059
      %1078 = vmatprep.subr.mxu0 0.0
      %1079 = vmatpush1.msra.mxu0 %v1060
      %1080 = vmatprep.subr.mxu0 0.0
      %1081 = vmatpush1.msra.mxu0 %v1061
      %1082 = vmatprep.subr.mxu0 0.0
      %1083 = vmatpush1.msra.mxu0 %v1062
      %1084 = vmatprep.subr.mxu0 0.0
      %1085 = vmatpush1.msra.mxu0 %v1063
      %1086 = vmatprep.subr.mxu0 0.0
      %1087 = vmatpush1.msra.mxu0 %v1064
      %1088 = vmatprep.subr.mxu0 0.0
      %1089 = vmatpush1.msra.mxu0 %v1065
      %1090 = vmatprep.subr.mxu0 0.0
      %1091 = vmatpush1.msra.mxu0 %v1066
      %1092 = vmatprep.subr.mxu0 0.0
      %1093 = vmatpush1.msra.mxu0 %v1067
      %1094 = vmatprep.subr.mxu0 0.0
      %1095 = vmatpush1.msra.mxu0 %v1068
      %1096 = vmatprep.subr.mxu0 0.0
      %1097 = vmatpush1.msra.mxu0 %v1069
      %1098 = vmatprep.subr.mxu0 0.0
      %1099 = vmatpush1.msra.mxu0 %v1070
      %1100 = vmatprep.subr.mxu0 0.0
      %1101 = vmatpush1.msra.mxu0 %v1071
      %1102 = vmatprep.subr.mxu0 0.0
      %1103 = vmatpush1.msra.mxu0 %v1072
      %1104 = vmatprep.subr.mxu0 0.0
      %1105 = vmatpush1.msra.mxu0 %v1073
      %1106 = vmatprep.subr.mxu0 0.0
      %1107 = vmatpush1.msra.mxu0 0.0
      %1108 = vmatprep.subr.mxu0 0.0
      %1109 = vmatpush1.msra.mxu0 0.0
      %1110 = vmatprep.subr.mxu0 0.0
      %1111 = vmatpush1.msra.mxu0 0.0
      %1112 = vmatprep.subr.mxu0 0.0
      %1113 = vmatpush1.msra.mxu0 0.0
      %1114 = vmatprep.subr.mxu0 0.0
      %1115 = vmatpush1.msra.mxu0 0.0
      %1116 = vmatprep.subr.mxu0 0.0
      %1117 = vmatpush1.msra.mxu0 0.0
      %1118 = vmatprep.subr.mxu0 0.0
      %1119 = vmatpush1.msra.mxu0 0.0
      %1120 = vmatprep.subr.mxu0 0.0
      %1121 = vmatpush1.msra.mxu0 0.0
      %1122 = vmatprep.subr.mxu0 0.0
      %1123 = vmatpush1.msra.mxu0 0.0
      %1124 = vmatprep.subr.mxu0 0.0
      %1125 = vmatpush1.msra.mxu0 0.0
      %1126 = vmatprep.subr.mxu0 0.0
      %1127 = vmatpush1.msra.mxu0 0.0
      %1128 = vmatprep.subr.mxu0 0.0
      %1129 = vmatpush1.msra.mxu0 0.0
      %1130 = vmatprep.subr.mxu0 0.0
      %1131 = vmatpush1.msra.mxu0 0.0
      %1132 = vmatprep.subr.mxu0 0.0
      %1133 = vmatpush1.msra.mxu0 0.0
      %1134 = vmatprep.subr.mxu0 0.0
      %1135 = vmatpush1.msra.mxu0 0.0
      %1136 = vmatprep.subr.mxu0 0.0
      %1137 = vmatpush1.msra.mxu0 0.0
      %1138 = vmatprep.mubr.f32.mxu0 0.0
      %1139 = vmatmul.mubr.f32.gmra.mrb[0].mxu0 %v1025
      %v1140 = vpop.f32.mrb[0].mxu0
      %v1141 = vadd.f32 0.0, %v1140
      %v1142 = vpop.f32.mrb[0].mxu0
      %1143 = vmatprep.mubr.f32.mxu0 0.0
      %1144 = vmatmul.mubr.f32.gmra.mrb[0].mxu0 %v1026
      %v1145 = vpop.f32.mrb[0].mxu0
      %v1146 = vadd.f32 0.0, %v1145
      %v1147 = vpop.f32.mrb[0].mxu0
      %1148 = vmatprep.mubr.f32.mxu0 0.0
      %1149 = vmatmul.mubr.f32.gmra.mrb[0].mxu0 %v1027
      %v1150 = vpop.f32.mrb[0].mxu0
      %v1151 = vadd.f32 0.0, %v1150
      %v1152 = vpop.f32.mrb[0].mxu0
      %1153 = vmatprep.mubr.f32.mxu0 0.0
      %1154 = vmatmul.mubr.f32.gmra.mrb[0].mxu0 %v1028
      %v1155 = vpop.f32.mrb[0].mxu0
      %v1156 = vadd.f32 0.0, %v1155
      %v1157 = vpop.f32.mrb[0].mxu0
      %1158 = vmatprep.mubr.f32.mxu0 0.0
      %1159 = vmatmul.mubr.f32.gmra.mrb[0].mxu0 %v1029
      %v1160 = vpop.f32.mrb[0].mxu0
      %v1161 = vadd.f32 0.0, %v1160
      %v1162 = vpop.f32.mrb[0].mxu0
      %1163 = vmatprep.mubr.f32.mxu0 0.0
      %1164 = vmatmul.mubr.f32.gmra.mrb[0].mxu0 %v1030
      %v1165 = vpop.f32.mrb[0].mxu0
      %v1166 = vadd.f32 0.0, %v1165
      %v1167 = vpop.f32.mrb[0].mxu0
      %1168 = vmatprep.mubr.f32.mxu0 0.0
      %1169 = vmatmul.mubr.f32.gmra.mrb[0].mxu0 %v1031
      %v1170 = vpop.f32.mrb[0].mxu0
      %v1171 = vadd.f32 0.0, %v1170
      %v1172 = vpop.f32.mrb[0].mxu0
      %1173 = vmatprep.mubr.f32.mxu0 0.0
      %1174 = vmatmul.mubr.f32.gmra.mrb[0].mxu0 %v1032
      %v1175 = vpop.f32.mrb[0].mxu0
      %v1176 = vadd.f32 0.0, %v1175
      %v1177 = vpop.f32.mrb[0].mxu0
      %1178 = vmatprep.mubr.f32.mxu0 0.0
      %1179 = vmatmul.mubr.f32.gmra.mrb[0].mxu0 %v1033
      %v1180 = vpop.f32.mrb[0].mxu0
      %v1181 = vadd.f32 0.0, %v1180
      %v1182 = vpop.f32.mrb[0].mxu0
      %1183 = vmatprep.mubr.f32.mxu0 0.0
      %1184 = vmatmul.mubr.f32.gmra.mrb[0].mxu0 %v1034
      %v1185 = vpop.f32.mrb[0].mxu0
      %v1186 = vadd.f32 0.0, %v1185
      %v1187 = vpop.f32.mrb[0].mxu0
      %1188 = vmatprep.mubr.f32.mxu0 0.0
      %1189 = vmatmul.mubr.f32.gmra.mrb[0].mxu0 %v1035
      %v1190 = vpop.f32.mrb[0].mxu0
      %v1191 = vadd.f32 0.0, %v1190
      %v1192 = vpop.f32.mrb[0].mxu0
      %1193 = vmatprep.mubr.f32.mxu0 0.0
      %1194 = vmatmul.mubr.f32.gmra.mrb[0].mxu0 %v1036
      %v1195 = vpop.f32.mrb[0].mxu0
      %v1196 = vadd.f32 0.0, %v1195
      %v1197 = vpop.f32.mrb[0].mxu0
      %1198 = vmatprep.mubr.f32.mxu0 0.0
      %1199 = vmatmul.mubr.f32.gmra.mrb[0].mxu0 %v1037
      %v1200 = vpop.f32.mrb[0].mxu0
      %v1201 = vadd.f32 0.0, %v1200
      %v1202 = vpop.f32.mrb[0].mxu0
      %1203 = vmatprep.mubr.f32.mxu0 0.0
      %1204 = vmatmul.mubr.f32.gmra.mrb[0].mxu0 %v1038
      %v1205 = vpop.f32.mrb[0].mxu0
      %v1206 = vadd.f32 0.0, %v1205
      %v1207 = vpop.f32.mrb[0].mxu0
      %1208 = vmatprep.mubr.f32.mxu0 0.0
      %1209 = vmatmul.mubr.f32.gmra.mrb[0].mxu0 %v1039
      %v1210 = vpop.f32.mrb[0].mxu0
      %v1211 = vadd.f32 0.0, %v1210
      %v1212 = vpop.f32.mrb[0].mxu0
      %1213 = vmatprep.mubr.f32.mxu0 0.0
      %1214 = vmatmul.mubr.f32.gmra.mrb[0].mxu0 %v1040
      %v1215 = vpop.f32.mrb[0].mxu0
      %v1216 = vadd.f32 0.0, %v1215
      %v1217 = vpop.f32.mrb[0].mxu0
      %1218 = vmatprep.mubr.f32.mxu0 0.0
      %1219 = vmatmul.mubr.f32.gmra.mrb[0].mxu0 %v1041
      %v1220 = vpop.f32.mrb[0].mxu0
      %v1221 = vadd.f32 0.0, %v1220
      %v1222 = vpop.f32.mrb[0].mxu0
      %1223 = vmatprep.mubr.f32.mxu0 0.0
      %1224 = vmatmul.mubr.f32.gmra.mrb[0].mxu0 %v1042
      %v1225 = vpop.f32.mrb[0].mxu0
      %v1226 = vadd.f32 0.0, %v1225
      %v1227 = vpop.f32.mrb[0].mxu0
      %1228 = vmatprep.mubr.f32.mxu0 0.0
      %1229 = vmatmul.mubr.f32.gmra.mrb[0].mxu0 %v1043
      %v1230 = vpop.f32.mrb[0].mxu0
      %v1231 = vadd.f32 0.0, %v1230
      %v1232 = vpop.f32.mrb[0].mxu0
      %1233 = vmatprep.mubr.f32.mxu0 0.0
      %1234 = vmatmul.mubr.f32.gmra.mrb[0].mxu0 %v1044
      %v1235 = vpop.f32.mrb[0].mxu0
      %v1236 = vadd.f32 0.0, %v1235
      %v1237 = vpop.f32.mrb[0].mxu0
      %1238 = vmatprep.mubr.f32.mxu0 0.0
      %1239 = vmatmul.mubr.f32.gmra.mrb[0].mxu0 %v1045
      %v1240 = vpop.f32.mrb[0].mxu0
      %v1241 = vadd.f32 0.0, %v1240
      %v1242 = vpop.f32.mrb[0].mxu0
      %1243 = vmatprep.mubr.f32.mxu0 0.0
      %1244 = vmatmul.mubr.f32.gmra.mrb[0].mxu0 %v1046
      %v1245 = vpop.f32.mrb[0].mxu0
      %v1246 = vadd.f32 0.0, %v1245
      %v1247 = vpop.f32.mrb[0].mxu0
      %1248 = vmatprep.mubr.f32.mxu0 0.0
      %1249 = vmatmul.mubr.f32.gmra.mrb[0].mxu0 %v1047
      %v1250 = vpop.f32.mrb[0].mxu0
      %v1251 = vadd.f32 0.0, %v1250
      %v1252 = vpop.f32.mrb[0].mxu0
      %1253 = vmatprep.mubr.f32.mxu0 0.0
      %1254 = vmatmul.mubr.f32.gmra.mrb[0].mxu0 %v1048
      %v1255 = vpop.f32.mrb[0].mxu0
      %v1256 = vadd.f32 0.0, %v1255
      %v1257 = vpop.f32.mrb[0].mxu0
      %1258 = vmatprep.mubr.f32.mxu0 0.0
      %1259 = vmatmul.mubr.f32.gmra.mrb[0].mxu0 %v1049
      %v1260 = vpop.f32.mrb[0].mxu0
      %v1261 = vadd.f32 0.0, %v1260
      %v1262 = vpop.f32.mrb[0].mxu0
      %1263 = vmatprep.mubr.f32.mxu0 0.0
      %1264 = vmatmul.mubr.f32.gmra.mrb[0].mxu0 %v1050
      %v1265 = vpop.f32.mrb[0].mxu0
      %v1266 = vadd.f32 0.0, %v1265
      %v1267 = vpop.f32.mrb[0].mxu0
      %1268 = vmatprep.mubr.f32.mxu0 0.0
      %1269 = vmatmul.mubr.f32.gmra.mrb[0].mxu0 %v1051
      %v1270 = vpop.f32.mrb[0].mxu0
      %v1271 = vadd.f32 0.0, %v1270
      %v1272 = vpop.f32.mrb[0].mxu0
      %1273 = vmatprep.mubr.f32.mxu0 0.0
      %1274 = vmatmul.mubr.f32.gmra.mrb[0].mxu0 %v1052
      %v1275 = vpop.f32.mrb[0].mxu0
      %v1276 = vadd.f32 0.0, %v1275
      %v1277 = vpop.f32.mrb[0].mxu0
      %1278 = vmatprep.mubr.f32.mxu0 0.0
      %1279 = vmatmul.mubr.f32.gmra.mrb[0].mxu0 %v1053
      %v1280 = vpop.f32.mrb[0].mxu0
      %v1281 = vadd.f32 0.0, %v1280
      %v1282 = vpop.f32.mrb[0].mxu0
      %1283 = vmatprep.mubr.f32.mxu0 0.0
      %1284 = vmatmul.mubr.f32.gmra.mrb[0].mxu0 %v1054
      %v1285 = vpop.f32.mrb[0].mxu0
      %v1286 = vadd.f32 0.0, %v1285
      %v1287 = vpop.f32.mrb[0].mxu0
      %1288 = vmatprep.mubr.f32.mxu0 0.0
      %1289 = vmatmul.mubr.f32.gmra.mrb[0].mxu0 %v1055
      %v1290 = vpop.f32.mrb[0].mxu0
      %v1291 = vadd.f32 0.0, %v1290
      %v1292 = vpop.f32.mrb[0].mxu0
      %1293 = vmatprep.mubr.f32.mxu0 0.0
      %1294 = vmatmul.mubr.f32.gmra.mrb[0].mxu0 %v1056
      %v1295 = vpop.f32.mrb[0].mxu0
      %v1296 = vadd.f32 0.0, %v1295
      %v1297 = vpop.f32.mrb[0].mxu0
      %1298 = vdwg.mxu0
      %v1299 = vadd.f32 %v992, %v1141
      %v1300 = vadd.f32 %v993, %v1146
      %v1301 = vadd.f32 %v994, %v1151
      %v1302 = vadd.f32 %v995, %v1156
      %v1303 = vadd.f32 %v996, %v1161
      %v1304 = vadd.f32 %v997, %v1166
      %v1305 = vadd.f32 %v998, %v1171
      %v1306 = vadd.f32 %v999, %v1176
      %v1307 = vadd.f32 %v1000, %v1181
      %v1308 = vadd.f32 %v1001, %v1186
      %v1309 = vadd.f32 %v1002, %v1191
      %v1310 = vadd.f32 %v1003, %v1196
      %v1311 = vadd.f32 %v1004, %v1201
      %v1312 = vadd.f32 %v1005, %v1206
      %v1313 = vadd.f32 %v1006, %v1211
      %v1314 = vadd.f32 %v1007, %v1216
      %v1315 = vadd.f32 %v1008, %v1221
      %v1316 = vadd.f32 %v1009, %v1226
      %v1317 = vadd.f32 %v1010, %v1231
      %v1318 = vadd.f32 %v1011, %v1236
      %v1319 = vadd.f32 %v1012, %v1241
      %v1320 = vadd.f32 %v1013, %v1246
      %v1321 = vadd.f32 %v1014, %v1251
      %v1322 = vadd.f32 %v1015, %v1256
      %v1323 = vadd.f32 %v1016, %v1261
      %v1324 = vadd.f32 %v1017, %v1266
      %v1325 = vadd.f32 %v1018, %v1271
      %v1326 = vadd.f32 %v1019, %v1276
      %v1327 = vadd.f32 %v1020, %v1281
      %v1328 = vadd.f32 %v1021, %v1286
      %v1329 = vadd.f32 %v1022, %v1291
      %v1330 = vadd.f32 %v1023, %v1296
      %v1331 = vld [vmem:[%s1024 + $0x1] sm:$0xff]
      %v1332 = vld [vmem:[%s1024 + $0x9] sm:$0xff]
      %v1333 = vld [vmem:[%s1024 + $0x19] sm:$0xff]
      %v1334 = vld [vmem:[%s1024 + $0x21] sm:$0xff]
      %v1335 = vld [vmem:[%s1024 + $0x31] sm:$0xff]
      %v1336 = vld [vmem:[%s1024 + $0x39] sm:$0xff]
      %v1337 = vld [vmem:[%s1024 + $0x49] sm:$0xff]
      %v1338 = vld [vmem:[%s1024 + $0x51] sm:$0xff]
      %v1339 = vld [vmem:[%s1024 + $0x61] sm:$0xff]
      %v1340 = vld [vmem:[%s1024 + $0x69] sm:$0xff]
      %v1341 = vld [vmem:[%s1024 + $0x79] sm:$0xff]
      %v1342 = vld [vmem:[%s1024 + $0x81] sm:$0xff]
      %v1343 = vld [vmem:[%s1024 + $0x91] sm:$0xff]
      %v1344 = vld [vmem:[%s1024 + $0x99] sm:$0xff]
      %v1345 = vld [vmem:[%s1024 + $0xa9] sm:$0xff]
      %v1346 = vld [vmem:[%s1024 + $0xb1] sm:$0xff]
      %v1347 = vld [vmem:[%s1024 + $0xc1] sm:$0xff]
      %v1348 = vld [vmem:[%s1024 + $0xc9] sm:$0xff]
      %v1349 = vld [vmem:[%s1024 + $0xd9] sm:$0xff]
      %v1350 = vld [vmem:[%s1024 + $0xe1] sm:$0xff]
      %v1351 = vld [vmem:[%s1024 + $0xf1] sm:$0xff]
      %v1352 = vld [vmem:[%s1024 + $0xf9] sm:$0xff]
      %v1353 = vld [vmem:[%s1024 + $0x109] sm:$0xff]
      %v1354 = vld [vmem:[%s1024 + $0x111] sm:$0xff]
      %v1355 = vld [vmem:[%s1024 + $0x121] sm:$0xff]
      %v1356 = vld [vmem:[%s1024 + $0x129] sm:$0xff]
      %v1357 = vld [vmem:[%s1024 + $0x139] sm:$0xff]
      %v1358 = vld [vmem:[%s1024 + $0x141] sm:$0xff]
      %v1359 = vld [vmem:[%s1024 + $0x151] sm:$0xff]
      %v1360 = vld [vmem:[%s1024 + $0x159] sm:$0xff]
      %v1361 = vld [vmem:[%s1024 + $0x169] sm:$0xff]
      %v1362 = vld [vmem:[%s1024 + $0x171] sm:$0xff]
      %s1363 = scalar_lea.vmem %s1, 512
      %v1364 = vld [vmem:[%s1363] sm:$0xff]
      %v1365 = vld [vmem:[%s1363 + $0x8] sm:$0xff]
      %v1366 = vld [vmem:[%s1363 + $0x10] sm:$0xff]
      %v1367 = vld [vmem:[%s1363 + $0x18] sm:$0xff]
      %v1368 = vld [vmem:[%s1363 + $0x20] sm:$0xff]
      %v1369 = vld [vmem:[%s1363 + $0x28] sm:$0xff]
      %v1370 = vld [vmem:[%s1363 + $0x30] sm:$0xff]
      %v1371 = vld [vmem:[%s1363 + $0x38] sm:$0xff]
      %v1372 = vld [vmem:[%s1363 + $0x40] sm:$0xff]
      %v1373 = vld [vmem:[%s1363 + $0x48] sm:$0xff]
      %v1374 = vld [vmem:[%s1363 + $0x50] sm:$0xff]
      %v1375 = vld [vmem:[%s1363 + $0x58] sm:$0xff]
      %v1376 = vld [vmem:[%s1363 + $0x60] sm:$0xff]
      %v1377 = vld [vmem:[%s1363 + $0x68] sm:$0xff]
      %v1378 = vld [vmem:[%s1363 + $0x70] sm:$0xff]
      %v1379 = vld [vmem:[%s1363 + $0x78] sm:$0xff]
      %1380 = vmatprep.subr.mxu0 0.0
      %1381 = vmatpush1.msra.mxu0 %v1364
      %1382 = vmatprep.subr.mxu0 0.0
      %1383 = vmatpush1.msra.mxu0 %v1365
      %1384 = vmatprep.subr.mxu0 0.0
      %1385 = vmatpush1.msra.mxu0 %v1366
      %1386 = vmatprep.subr.mxu0 0.0
      %1387 = vmatpush1.msra.mxu0 %v1367
      %1388 = vmatprep.subr.mxu0 0.0
      %1389 = vmatpush1.msra.mxu0 %v1368
      %1390 = vmatprep.subr.mxu0 0.0
      %1391 = vmatpush1.msra.mxu0 %v1369
      %1392 = vmatprep.subr.mxu0 0.0
      %1393 = vmatpush1.msra.mxu0 %v1370
      %1394 = vmatprep.subr.mxu0 0.0
      %1395 = vmatpush1.msra.mxu0 %v1371
      %1396 = vmatprep.subr.mxu0 0.0
      %1397 = vmatpush1.msra.mxu0 %v1372
      %1398 = vmatprep.subr.mxu0 0.0
      %1399 = vmatpush1.msra.mxu0 %v1373
      %1400 = vmatprep.subr.mxu0 0.0
      %1401 = vmatpush1.msra.mxu0 %v1374
      %1402 = vmatprep.subr.mxu0 0.0
      %1403 = vmatpush1.msra.mxu0 %v1375
      %1404 = vmatprep.subr.mxu0 0.0
      %1405 = vmatpush1.msra.mxu0 %v1376
      %1406 = vmatprep.subr.mxu0 0.0
      %1407 = vmatpush1.msra.mxu0 %v1377
      %1408 = vmatprep.subr.mxu0 0.0
      %1409 = vmatpush1.msra.mxu0 %v1378
      %1410 = vmatprep.subr.mxu0 0.0
      %1411 = vmatpush1.msra.mxu0 %v1379
      %1412 = vmatprep.subr.mxu0 0.0
      %1413 = vmatpush1.msra.mxu0 0.0
      %1414 = vmatprep.subr.mxu0 0.0
      %1415 = vmatpush1.msra.mxu0 0.0
      %1416 = vmatprep.subr.mxu0 0.0
      %1417 = vmatpush1.msra.mxu0 0.0
      %1418 = vmatprep.subr.mxu0 0.0
      %1419 = vmatpush1.msra.mxu0 0.0
      %1420 = vmatprep.subr.mxu0 0.0
      %1421 = vmatpush1.msra.mxu0 0.0
      %1422 = vmatprep.subr.mxu0 0.0
      %1423 = vmatpush1.msra.mxu0 0.0
      %1424 = vmatprep.subr.mxu0 0.0
      %1425 = vmatpush1.msra.mxu0 0.0
      %1426 = vmatprep.subr.mxu0 0.0
      %1427 = vmatpush1.msra.mxu0 0.0
      %1428 = vmatprep.subr.mxu0 0.0
      %1429 = vmatpush1.msra.mxu0 0.0
      %1430 = vmatprep.subr.mxu0 0.0
      %1431 = vmatpush1.msra.mxu0 0.0
      %1432 = vmatprep.subr.mxu0 0.0
      %1433 = vmatpush1.msra.mxu0 0.0
      %1434 = vmatprep.subr.mxu0 0.0
      %1435 = vmatpush1.msra.mxu0 0.0
      %1436 = vmatprep.subr.mxu0 0.0
      %1437 = vmatpush1.msra.mxu0 0.0
      %1438 = vmatprep.subr.mxu0 0.0
      %1439 = vmatpush1.msra.mxu0 0.0
      %1440 = vmatprep.subr.mxu0 0.0
      %1441 = vmatpush1.msra.mxu0 0.0
      %1442 = vmatprep.subr.mxu0 0.0
      %1443 = vmatpush1.msra.mxu0 0.0
      %1444 = vmatprep.mubr.f32.mxu0 0.0
      %1445 = vmatmul.mubr.f32.gmra.mrb[0].mxu0 %v1331
      %v1446 = vpop.f32.mrb[0].mxu0
      %v1447 = vadd.f32 0.0, %v1446
      %v1448 = vpop.f32.mrb[0].mxu0
      %1449 = vmatprep.mubr.f32.mxu0 0.0
      %1450 = vmatmul.mubr.f32.gmra.mrb[0].mxu0 %v1332
      %v1451 = vpop.f32.mrb[0].mxu0
      %v1452 = vadd.f32 0.0, %v1451
      %v1453 = vpop.f32.mrb[0].mxu0
      %1454 = vmatprep.mubr.f32.mxu0 0.0
      %1455 = vmatmul.mubr.f32.gmra.mrb[0].mxu0 %v1333
      %v1456 = vpop.f32.mrb[0].mxu0
      %v1457 = vadd.f32 0.0, %v1456
      %v1458 = vpop.f32.mrb[0].mxu0
      %1459 = vmatprep.mubr.f32.mxu0 0.0
      %1460 = vmatmul.mubr.f32.gmra.mrb[0].mxu0 %v1334
      %v1461 = vpop.f32.mrb[0].mxu0
      %v1462 = vadd.f32 0.0, %v1461
      %v1463 = vpop.f32.mrb[0].mxu0
      %1464 = vmatprep.mubr.f32.mxu0 0.0
      %1465 = vmatmul.mubr.f32.gmra.mrb[0].mxu0 %v1335
      %v1466 = vpop.f32.mrb[0].mxu0
      %v1467 = vadd.f32 0.0, %v1466
      %v1468 = vpop.f32.mrb[0].mxu0
      %1469 = vmatprep.mubr.f32.mxu0 0.0
      %1470 = vmatmul.mubr.f32.gmra.mrb[0].mxu0 %v1336
      %v1471 = vpop.f32.mrb[0].mxu0
      %v1472 = vadd.f32 0.0, %v1471
      %v1473 = vpop.f32.mrb[0].mxu0
      %1474 = vmatprep.mubr.f32.mxu0 0.0
      %1475 = vmatmul.mubr.f32.gmra.mrb[0].mxu0 %v1337
      %v1476 = vpop.f32.mrb[0].mxu0
      %v1477 = vadd.f32 0.0, %v1476
      %v1478 = vpop.f32.mrb[0].mxu0
      %1479 = vmatprep.mubr.f32.mxu0 0.0
      %1480 = vmatmul.mubr.f32.gmra.mrb[0].mxu0 %v1338
      %v1481 = vpop.f32.mrb[0].mxu0
      %v1482 = vadd.f32 0.0, %v1481
      %v1483 = vpop.f32.mrb[0].mxu0
      %1484 = vmatprep.mubr.f32.mxu0 0.0
      %1485 = vmatmul.mubr.f32.gmra.mrb[0].mxu0 %v1339
      %v1486 = vpop.f32.mrb[0].mxu0
      %v1487 = vadd.f32 0.0, %v1486
      %v1488 = vpop.f32.mrb[0].mxu0
      %1489 = vmatprep.mubr.f32.mxu0 0.0
      %1490 = vmatmul.mubr.f32.gmra.mrb[0].mxu0 %v1340
      %v1491 = vpop.f32.mrb[0].mxu0
      %v1492 = vadd.f32 0.0, %v1491
      %v1493 = vpop.f32.mrb[0].mxu0
      %1494 = vmatprep.mubr.f32.mxu0 0.0
      %1495 = vmatmul.mubr.f32.gmra.mrb[0].mxu0 %v1341
      %v1496 = vpop.f32.mrb[0].mxu0
      %v1497 = vadd.f32 0.0, %v1496
      %v1498 = vpop.f32.mrb[0].mxu0
      %1499 = vmatprep.mubr.f32.mxu0 0.0
      %1500 = vmatmul.mubr.f32.gmra.mrb[0].mxu0 %v1342
      %v1501 = vpop.f32.mrb[0].mxu0
      %v1502 = vadd.f32 0.0, %v1501
      %v1503 = vpop.f32.mrb[0].mxu0
      %1504 = vmatprep.mubr.f32.mxu0 0.0
      %1505 = vmatmul.mubr.f32.gmra.mrb[0].mxu0 %v1343
      %v1506 = vpop.f32.mrb[0].mxu0
      %v1507 = vadd.f32 0.0, %v1506
      %v1508 = vpop.f32.mrb[0].mxu0
      %1509 = vmatprep.mubr.f32.mxu0 0.0
      %1510 = vmatmul.mubr.f32.gmra.mrb[0].mxu0 %v1344
      %v1511 = vpop.f32.mrb[0].mxu0
      %v1512 = vadd.f32 0.0, %v1511
      %v1513 = vpop.f32.mrb[0].mxu0
      %1514 = vmatprep.mubr.f32.mxu0 0.0
      %1515 = vmatmul.mubr.f32.gmra.mrb[0].mxu0 %v1345
      %v1516 = vpop.f32.mrb[0].mxu0
      %v1517 = vadd.f32 0.0, %v1516
      %v1518 = vpop.f32.mrb[0].mxu0
      %1519 = vmatprep.mubr.f32.mxu0 0.0
      %1520 = vmatmul.mubr.f32.gmra.mrb[0].mxu0 %v1346
      %v1521 = vpop.f32.mrb[0].mxu0
      %v1522 = vadd.f32 0.0, %v1521
      %v1523 = vpop.f32.mrb[0].mxu0
      %1524 = vmatprep.mubr.f32.mxu0 0.0
      %1525 = vmatmul.mubr.f32.gmra.mrb[0].mxu0 %v1347
      %v1526 = vpop.f32.mrb[0].mxu0
      %v1527 = vadd.f32 0.0, %v1526
      %v1528 = vpop.f32.mrb[0].mxu0
      %1529 = vmatprep.mubr.f32.mxu0 0.0
      %1530 = vmatmul.mubr.f32.gmra.mrb[0].mxu0 %v1348
      %v1531 = vpop.f32.mrb[0].mxu0
      %v1532 = vadd.f32 0.0, %v1531
      %v1533 = vpop.f32.mrb[0].mxu0
      %1534 = vmatprep.mubr.f32.mxu0 0.0
      %1535 = vmatmul.mubr.f32.gmra.mrb[0].mxu0 %v1349
      %v1536 = vpop.f32.mrb[0].mxu0
      %v1537 = vadd.f32 0.0, %v1536
      %v1538 = vpop.f32.mrb[0].mxu0
      %1539 = vmatprep.mubr.f32.mxu0 0.0
      %1540 = vmatmul.mubr.f32.gmra.mrb[0].mxu0 %v1350
      %v1541 = vpop.f32.mrb[0].mxu0
      %v1542 = vadd.f32 0.0, %v1541
      %v1543 = vpop.f32.mrb[0].mxu0
      %1544 = vmatprep.mubr.f32.mxu0 0.0
      %1545 = vmatmul.mubr.f32.gmra.mrb[0].mxu0 %v1351
      %v1546 = vpop.f32.mrb[0].mxu0
      %v1547 = vadd.f32 0.0, %v1546
      %v1548 = vpop.f32.mrb[0].mxu0
      %1549 = vmatprep.mubr.f32.mxu0 0.0
      %1550 = vmatmul.mubr.f32.gmra.mrb[0].mxu0 %v1352
      %v1551 = vpop.f32.mrb[0].mxu0
      %v1552 = vadd.f32 0.0, %v1551
      %v1553 = vpop.f32.mrb[0].mxu0
      %1554 = vmatprep.mubr.f32.mxu0 0.0
      %1555 = vmatmul.mubr.f32.gmra.mrb[0].mxu0 %v1353
      %v1556 = vpop.f32.mrb[0].mxu0
      %v1557 = vadd.f32 0.0, %v1556
      %v1558 = vpop.f32.mrb[0].mxu0
      %1559 = vmatprep.mubr.f32.mxu0 0.0
      %1560 = vmatmul.mubr.f32.gmra.mrb[0].mxu0 %v1354
      %v1561 = vpop.f32.mrb[0].mxu0
      %v1562 = vadd.f32 0.0, %v1561
      %v1563 = vpop.f32.mrb[0].mxu0
      %1564 = vmatprep.mubr.f32.mxu0 0.0
      %1565 = vmatmul.mubr.f32.gmra.mrb[0].mxu0 %v1355
      %v1566 = vpop.f32.mrb[0].mxu0
      %v1567 = vadd.f32 0.0, %v1566
      %v1568 = vpop.f32.mrb[0].mxu0
      %1569 = vmatprep.mubr.f32.mxu0 0.0
      %1570 = vmatmul.mubr.f32.gmra.mrb[0].mxu0 %v1356
      %v1571 = vpop.f32.mrb[0].mxu0
      %v1572 = vadd.f32 0.0, %v1571
      %v1573 = vpop.f32.mrb[0].mxu0
      %1574 = vmatprep.mubr.f32.mxu0 0.0
      %1575 = vmatmul.mubr.f32.gmra.mrb[0].mxu0 %v1357
      %v1576 = vpop.f32.mrb[0].mxu0
      %v1577 = vadd.f32 0.0, %v1576
      %v1578 = vpop.f32.mrb[0].mxu0
      %1579 = vmatprep.mubr.f32.mxu0 0.0
      %1580 = vmatmul.mubr.f32.gmra.mrb[0].mxu0 %v1358
      %v1581 = vpop.f32.mrb[0].mxu0
      %v1582 = vadd.f32 0.0, %v1581
      %v1583 = vpop.f32.mrb[0].mxu0
      %1584 = vmatprep.mubr.f32.mxu0 0.0
      %1585 = vmatmul.mubr.f32.gmra.mrb[0].mxu0 %v1359
      %v1586 = vpop.f32.mrb[0].mxu0
      %v1587 = vadd.f32 0.0, %v1586
      %v1588 = vpop.f32.mrb[0].mxu0
      %1589 = vmatprep.mubr.f32.mxu0 0.0
      %1590 = vmatmul.mubr.f32.gmra.mrb[0].mxu0 %v1360
      %v1591 = vpop.f32.mrb[0].mxu0
      %v1592 = vadd.f32 0.0, %v1591
      %v1593 = vpop.f32.mrb[0].mxu0
      %1594 = vmatprep.mubr.f32.mxu0 0.0
      %1595 = vmatmul.mubr.f32.gmra.mrb[0].mxu0 %v1361
      %v1596 = vpop.f32.mrb[0].mxu0
      %v1597 = vadd.f32 0.0, %v1596
      %v1598 = vpop.f32.mrb[0].mxu0
      %1599 = vmatprep.mubr.f32.mxu0 0.0
      %1600 = vmatmul.mubr.f32.gmra.mrb[0].mxu0 %v1362
      %v1601 = vpop.f32.mrb[0].mxu0
      %v1602 = vadd.f32 0.0, %v1601
      %v1603 = vpop.f32.mrb[0].mxu0
      %1604 = vdwg.mxu0
      %v1605 = vadd.f32 %v1299, %v1447
      %v1606 = vadd.f32 %v1300, %v1452
      %v1607 = vadd.f32 %v1301, %v1457
      %v1608 = vadd.f32 %v1302, %v1462
      %v1609 = vadd.f32 %v1303, %v1467
      %v1610 = vadd.f32 %v1304, %v1472
      %v1611 = vadd.f32 %v1305, %v1477
      %v1612 = vadd.f32 %v1306, %v1482
      %v1613 = vadd.f32 %v1307, %v1487
      %v1614 = vadd.f32 %v1308, %v1492
      %v1615 = vadd.f32 %v1309, %v1497
      %v1616 = vadd.f32 %v1310, %v1502
      %v1617 = vadd.f32 %v1311, %v1507
      %v1618 = vadd.f32 %v1312, %v1512
      %v1619 = vadd.f32 %v1313, %v1517
      %v1620 = vadd.f32 %v1314, %v1522
      %v1621 = vadd.f32 %v1315, %v1527
      %v1622 = vadd.f32 %v1316, %v1532
      %v1623 = vadd.f32 %v1317, %v1537
      %v1624 = vadd.f32 %v1318, %v1542
      %v1625 = vadd.f32 %v1319, %v1547
      %v1626 = vadd.f32 %v1320, %v1552
      %v1627 = vadd.f32 %v1321, %v1557
      %v1628 = vadd.f32 %v1322, %v1562
      %v1629 = vadd.f32 %v1323, %v1567
      %v1630 = vadd.f32 %v1324, %v1572
      %v1631 = vadd.f32 %v1325, %v1577
      %v1632 = vadd.f32 %v1326, %v1582
      %v1633 = vadd.f32 %v1327, %v1587
      %v1634 = vadd.f32 %v1328, %v1592
      %v1635 = vadd.f32 %v1329, %v1597
      %v1636 = vadd.f32 %v1330, %v1602
      %v1637 = vld [vmem:[%s1024 + $0x2] sm:$0xff]
      %v1638 = vld [vmem:[%s1024 + $0xa] sm:$0xff]
      %v1639 = vld [vmem:[%s1024 + $0x1a] sm:$0xff]
      %v1640 = vld [vmem:[%s1024 + $0x22] sm:$0xff]
      %v1641 = vld [vmem:[%s1024 + $0x32] sm:$0xff]
      %v1642 = vld [vmem:[%s1024 + $0x3a] sm:$0xff]
      %v1643 = vld [vmem:[%s1024 + $0x4a] sm:$0xff]
      %v1644 = vld [vmem:[%s1024 + $0x52] sm:$0xff]
      %v1645 = vld [vmem:[%s1024 + $0x62] sm:$0xff]
      %v1646 = vld [vmem:[%s1024 + $0x6a] sm:$0xff]
      %v1647 = vld [vmem:[%s1024 + $0x7a] sm:$0xff]
      %v1648 = vld [vmem:[%s1024 + $0x82] sm:$0xff]
      %v1649 = vld [vmem:[%s1024 + $0x92] sm:$0xff]
      %v1650 = vld [vmem:[%s1024 + $0x9a] sm:$0xff]
      %v1651 = vld [vmem:[%s1024 + $0xaa] sm:$0xff]
      %v1652 = vld [vmem:[%s1024 + $0xb2] sm:$0xff]
      %v1653 = vld [vmem:[%s1024 + $0xc2] sm:$0xff]
      %v1654 = vld [vmem:[%s1024 + $0xca] sm:$0xff]
      %v1655 = vld [vmem:[%s1024 + $0xda] sm:$0xff]
      %v1656 = vld [vmem:[%s1024 + $0xe2] sm:$0xff]
      %v1657 = vld [vmem:[%s1024 + $0xf2] sm:$0xff]
      %v1658 = vld [vmem:[%s1024 + $0xfa] sm:$0xff]
      %v1659 = vld [vmem:[%s1024 + $0x10a] sm:$0xff]
      %v1660 = vld [vmem:[%s1024 + $0x112] sm:$0xff]
      %v1661 = vld [vmem:[%s1024 + $0x122] sm:$0xff]
      %v1662 = vld [vmem:[%s1024 + $0x12a] sm:$0xff]
      %v1663 = vld [vmem:[%s1024 + $0x13a] sm:$0xff]
      %v1664 = vld [vmem:[%s1024 + $0x142] sm:$0xff]
      %v1665 = vld [vmem:[%s1024 + $0x152] sm:$0xff]
      %v1666 = vld [vmem:[%s1024 + $0x15a] sm:$0xff]
      %v1667 = vld [vmem:[%s1024 + $0x16a] sm:$0xff]
      %v1668 = vld [vmem:[%s1024 + $0x172] sm:$0xff]
      %s1669 = scalar_lea.vmem %s1, 640
      %v1670 = vld [vmem:[%s1669] sm:$0xff]
      %v1671 = vld [vmem:[%s1669 + $0x8] sm:$0xff]
      %v1672 = vld [vmem:[%s1669 + $0x10] sm:$0xff]
      %v1673 = vld [vmem:[%s1669 + $0x18] sm:$0xff]
      %v1674 = vld [vmem:[%s1669 + $0x20] sm:$0xff]
      %v1675 = vld [vmem:[%s1669 + $0x28] sm:$0xff]
      %v1676 = vld [vmem:[%s1669 + $0x30] sm:$0xff]
      %v1677 = vld [vmem:[%s1669 + $0x38] sm:$0xff]
      %v1678 = vld [vmem:[%s1669 + $0x40] sm:$0xff]
      %v1679 = vld [vmem:[%s1669 + $0x48] sm:$0xff]
      %v1680 = vld [vmem:[%s1669 + $0x50] sm:$0xff]
      %v1681 = vld [vmem:[%s1669 + $0x58] sm:$0xff]
      %v1682 = vld [vmem:[%s1669 + $0x60] sm:$0xff]
      %v1683 = vld [vmem:[%s1669 + $0x68] sm:$0xff]
      %v1684 = vld [vmem:[%s1669 + $0x70] sm:$0xff]
      %v1685 = vld [vmem:[%s1669 + $0x78] sm:$0xff]
      %1686 = vmatprep.subr.mxu0 0.0
      %1687 = vmatpush1.msra.mxu0 %v1670
      %1688 = vmatprep.subr.mxu0 0.0
      %1689 = vmatpush1.msra.mxu0 %v1671
      %1690 = vmatprep.subr.mxu0 0.0
      %1691 = vmatpush1.msra.mxu0 %v1672
      %1692 = vmatprep.subr.mxu0 0.0
      %1693 = vmatpush1.msra.mxu0 %v1673
      %1694 = vmatprep.subr.mxu0 0.0
      %1695 = vmatpush1.msra.mxu0 %v1674
      %1696 = vmatprep.subr.mxu0 0.0
      %1697 = vmatpush1.msra.mxu0 %v1675
      %1698 = vmatprep.subr.mxu0 0.0
      %1699 = vmatpush1.msra.mxu0 %v1676
      %1700 = vmatprep.subr.mxu0 0.0
      %1701 = vmatpush1.msra.mxu0 %v1677
      %1702 = vmatprep.subr.mxu0 0.0
      %1703 = vmatpush1.msra.mxu0 %v1678
      %1704 = vmatprep.subr.mxu0 0.0
      %1705 = vmatpush1.msra.mxu0 %v1679
      %1706 = vmatprep.subr.mxu0 0.0
      %1707 = vmatpush1.msra.mxu0 %v1680
      %1708 = vmatprep.subr.mxu0 0.0
      %1709 = vmatpush1.msra.mxu0 %v1681
      %1710 = vmatprep.subr.mxu0 0.0
      %1711 = vmatpush1.msra.mxu0 %v1682
      %1712 = vmatprep.subr.mxu0 0.0
      %1713 = vmatpush1.msra.mxu0 %v1683
      %1714 = vmatprep.subr.mxu0 0.0
      %1715 = vmatpush1.msra.mxu0 %v1684
      %1716 = vmatprep.subr.mxu0 0.0
      %1717 = vmatpush1.msra.mxu0 %v1685
      %1718 = vmatprep.subr.mxu0 0.0
      %1719 = vmatpush1.msra.mxu0 0.0
      %1720 = vmatprep.subr.mxu0 0.0
      %1721 = vmatpush1.msra.mxu0 0.0
      %1722 = vmatprep.subr.mxu0 0.0
      %1723 = vmatpush1.msra.mxu0 0.0
      %1724 = vmatprep.subr.mxu0 0.0
      %1725 = vmatpush1.msra.mxu0 0.0
      %1726 = vmatprep.subr.mxu0 0.0
      %1727 = vmatpush1.msra.mxu0 0.0
      %1728 = vmatprep.subr.mxu0 0.0
      %1729 = vmatpush1.msra.mxu0 0.0
      %1730 = vmatprep.subr.mxu0 0.0
      %1731 = vmatpush1.msra.mxu0 0.0
      %1732 = vmatprep.subr.mxu0 0.0
      %1733 = vmatpush1.msra.mxu0 0.0
      %1734 = vmatprep.subr.mxu0 0.0
      %1735 = vmatpush1.msra.mxu0 0.0
      %1736 = vmatprep.subr.mxu0 0.0
      %1737 = vmatpush1.msra.mxu0 0.0
      %1738 = vmatprep.subr.mxu0 0.0
      %1739 = vmatpush1.msra.mxu0 0.0
      %1740 = vmatprep.subr.mxu0 0.0
      %1741 = vmatpush1.msra.mxu0 0.0
      %1742 = vmatprep.subr.mxu0 0.0
      %1743 = vmatpush1.msra.mxu0 0.0
      %1744 = vmatprep.subr.mxu0 0.0
      %1745 = vmatpush1.msra.mxu0 0.0
      %1746 = vmatprep.subr.mxu0 0.0
      %1747 = vmatpush1.msra.mxu0 0.0
      %1748 = vmatprep.subr.mxu0 0.0
      %1749 = vmatpush1.msra.mxu0 0.0
      %1750 = vmatprep.mubr.f32.mxu0 0.0
      %1751 = vmatmul.mubr.f32.gmra.mrb[0].mxu0 %v1637
      %v1752 = vpop.f32.mrb[0].mxu0
      %v1753 = vadd.f32 0.0, %v1752
      %v1754 = vpop.f32.mrb[0].mxu0
      %1755 = vmatprep.mubr.f32.mxu0 0.0
      %1756 = vmatmul.mubr.f32.gmra.mrb[0].mxu0 %v1638
      %v1757 = vpop.f32.mrb[0].mxu0
      %v1758 = vadd.f32 0.0, %v1757
      %v1759 = vpop.f32.mrb[0].mxu0
      %1760 = vmatprep.mubr.f32.mxu0 0.0
      %1761 = vmatmul.mubr.f32.gmra.mrb[0].mxu0 %v1639
      %v1762 = vpop.f32.mrb[0].mxu0
      %v1763 = vadd.f32 0.0, %v1762
      %v1764 = vpop.f32.mrb[0].mxu0
      %1765 = vmatprep.mubr.f32.mxu0 0.0
      %1766 = vmatmul.mubr.f32.gmra.mrb[0].mxu0 %v1640
      %v1767 = vpop.f32.mrb[0].mxu0
      %v1768 = vadd.f32 0.0, %v1767
      %v1769 = vpop.f32.mrb[0].mxu0
      %1770 = vmatprep.mubr.f32.mxu0 0.0
      %1771 = vmatmul.mubr.f32.gmra.mrb[0].mxu0 %v1641
      %v1772 = vpop.f32.mrb[0].mxu0
      %v1773 = vadd.f32 0.0, %v1772
      %v1774 = vpop.f32.mrb[0].mxu0
      %1775 = vmatprep.mubr.f32.mxu0 0.0
      %1776 = vmatmul.mubr.f32.gmra.mrb[0].mxu0 %v1642
      %v1777 = vpop.f32.mrb[0].mxu0
      %v1778 = vadd.f32 0.0, %v1777
      %v1779 = vpop.f32.mrb[0].mxu0
      %1780 = vmatprep.mubr.f32.mxu0 0.0
      %1781 = vmatmul.mubr.f32.gmra.mrb[0].mxu0 %v1643
      %v1782 = vpop.f32.mrb[0].mxu0
      %v1783 = vadd.f32 0.0, %v1782
      %v1784 = vpop.f32.mrb[0].mxu0
      %1785 = vmatprep.mubr.f32.mxu0 0.0
      %1786 = vmatmul.mubr.f32.gmra.mrb[0].mxu0 %v1644
      %v1787 = vpop.f32.mrb[0].mxu0
      %v1788 = vadd.f32 0.0, %v1787
      %v1789 = vpop.f32.mrb[0].mxu0
      %1790 = vmatprep.mubr.f32.mxu0 0.0
      %1791 = vmatmul.mubr.f32.gmra.mrb[0].mxu0 %v1645
      %v1792 = vpop.f32.mrb[0].mxu0
      %v1793 = vadd.f32 0.0, %v1792
      %v1794 = vpop.f32.mrb[0].mxu0
      %1795 = vmatprep.mubr.f32.mxu0 0.0
      %1796 = vmatmul.mubr.f32.gmra.mrb[0].mxu0 %v1646
      %v1797 = vpop.f32.mrb[0].mxu0
      %v1798 = vadd.f32 0.0, %v1797
      %v1799 = vpop.f32.mrb[0].mxu0
      %1800 = vmatprep.mubr.f32.mxu0 0.0
      %1801 = vmatmul.mubr.f32.gmra.mrb[0].mxu0 %v1647
      %v1802 = vpop.f32.mrb[0].mxu0
      %v1803 = vadd.f32 0.0, %v1802
      %v1804 = vpop.f32.mrb[0].mxu0
      %1805 = vmatprep.mubr.f32.mxu0 0.0
      %1806 = vmatmul.mubr.f32.gmra.mrb[0].mxu0 %v1648
      %v1807 = vpop.f32.mrb[0].mxu0
      %v1808 = vadd.f32 0.0, %v1807
      %v1809 = vpop.f32.mrb[0].mxu0
      %1810 = vmatprep.mubr.f32.mxu0 0.0
      %1811 = vmatmul.mubr.f32.gmra.mrb[0].mxu0 %v1649
      %v1812 = vpop.f32.mrb[0].mxu0
      %v1813 = vadd.f32 0.0, %v1812
      %v1814 = vpop.f32.mrb[0].mxu0
      %1815 = vmatprep.mubr.f32.mxu0 0.0
      %1816 = vmatmul.mubr.f32.gmra.mrb[0].mxu0 %v1650
      %v1817 = vpop.f32.mrb[0].mxu0
      %v1818 = vadd.f32 0.0, %v1817
      %v1819 = vpop.f32.mrb[0].mxu0
      %1820 = vmatprep.mubr.f32.mxu0 0.0
      %1821 = vmatmul.mubr.f32.gmra.mrb[0].mxu0 %v1651
      %v1822 = vpop.f32.mrb[0].mxu0
      %v1823 = vadd.f32 0.0, %v1822
      %v1824 = vpop.f32.mrb[0].mxu0
      %1825 = vmatprep.mubr.f32.mxu0 0.0
      %1826 = vmatmul.mubr.f32.gmra.mrb[0].mxu0 %v1652
      %v1827 = vpop.f32.mrb[0].mxu0
      %v1828 = vadd.f32 0.0, %v1827
      %v1829 = vpop.f32.mrb[0].mxu0
      %1830 = vmatprep.mubr.f32.mxu0 0.0
      %1831 = vmatmul.mubr.f32.gmra.mrb[0].mxu0 %v1653
      %v1832 = vpop.f32.mrb[0].mxu0
      %v1833 = vadd.f32 0.0, %v1832
      %v1834 = vpop.f32.mrb[0].mxu0
      %1835 = vmatprep.mubr.f32.mxu0 0.0
      %1836 = vmatmul.mubr.f32.gmra.mrb[0].mxu0 %v1654
      %v1837 = vpop.f32.mrb[0].mxu0
      %v1838 = vadd.f32 0.0, %v1837
      %v1839 = vpop.f32.mrb[0].mxu0
      %1840 = vmatprep.mubr.f32.mxu0 0.0
      %1841 = vmatmul.mubr.f32.gmra.mrb[0].mxu0 %v1655
      %v1842 = vpop.f32.mrb[0].mxu0
      %v1843 = vadd.f32 0.0, %v1842
      %v1844 = vpop.f32.mrb[0].mxu0
      %1845 = vmatprep.mubr.f32.mxu0 0.0
      %1846 = vmatmul.mubr.f32.gmra.mrb[0].mxu0 %v1656
      %v1847 = vpop.f32.mrb[0].mxu0
      %v1848 = vadd.f32 0.0, %v1847
      %v1849 = vpop.f32.mrb[0].mxu0
      %1850 = vmatprep.mubr.f32.mxu0 0.0
      %1851 = vmatmul.mubr.f32.gmra.mrb[0].mxu0 %v1657
      %v1852 = vpop.f32.mrb[0].mxu0
      %v1853 = vadd.f32 0.0, %v1852
      %v1854 = vpop.f32.mrb[0].mxu0
      %1855 = vmatprep.mubr.f32.mxu0 0.0
      %1856 = vmatmul.mubr.f32.gmra.mrb[0].mxu0 %v1658
      %v1857 = vpop.f32.mrb[0].mxu0
      %v1858 = vadd.f32 0.0, %v1857
      %v1859 = vpop.f32.mrb[0].mxu0
      %1860 = vmatprep.mubr.f32.mxu0 0.0
      %1861 = vmatmul.mubr.f32.gmra.mrb[0].mxu0 %v1659
      %v1862 = vpop.f32.mrb[0].mxu0
      %v1863 = vadd.f32 0.0, %v1862
      %v1864 = vpop.f32.mrb[0].mxu0
      %1865 = vmatprep.mubr.f32.mxu0 0.0
      %1866 = vmatmul.mubr.f32.gmra.mrb[0].mxu0 %v1660
      %v1867 = vpop.f32.mrb[0].mxu0
      %v1868 = vadd.f32 0.0, %v1867
      %v1869 = vpop.f32.mrb[0].mxu0
      %1870 = vmatprep.mubr.f32.mxu0 0.0
      %1871 = vmatmul.mubr.f32.gmra.mrb[0].mxu0 %v1661
      %v1872 = vpop.f32.mrb[0].mxu0
      %v1873 = vadd.f32 0.0, %v1872
      %v1874 = vpop.f32.mrb[0].mxu0
      %1875 = vmatprep.mubr.f32.mxu0 0.0
      %1876 = vmatmul.mubr.f32.gmra.mrb[0].mxu0 %v1662
      %v1877 = vpop.f32.mrb[0].mxu0
      %v1878 = vadd.f32 0.0, %v1877
      %v1879 = vpop.f32.mrb[0].mxu0
      %1880 = vmatprep.mubr.f32.mxu0 0.0
      %1881 = vmatmul.mubr.f32.gmra.mrb[0].mxu0 %v1663
      %v1882 = vpop.f32.mrb[0].mxu0
      %v1883 = vadd.f32 0.0, %v1882
      %v1884 = vpop.f32.mrb[0].mxu0
      %1885 = vmatprep.mubr.f32.mxu0 0.0
      %1886 = vmatmul.mubr.f32.gmra.mrb[0].mxu0 %v1664
      %v1887 = vpop.f32.mrb[0].mxu0
      %v1888 = vadd.f32 0.0, %v1887
      %v1889 = vpop.f32.mrb[0].mxu0
      %1890 = vmatprep.mubr.f32.mxu0 0.0
      %1891 = vmatmul.mubr.f32.gmra.mrb[0].mxu0 %v1665
      %v1892 = vpop.f32.mrb[0].mxu0
      %v1893 = vadd.f32 0.0, %v1892
      %v1894 = vpop.f32.mrb[0].mxu0
      %1895 = vmatprep.mubr.f32.mxu0 0.0
      %1896 = vmatmul.mubr.f32.gmra.mrb[0].mxu0 %v1666
      %v1897 = vpop.f32.mrb[0].mxu0
      %v1898 = vadd.f32 0.0, %v1897
      %v1899 = vpop.f32.mrb[0].mxu0
      %1900 = vmatprep.mubr.f32.mxu0 0.0
      %1901 = vmatmul.mubr.f32.gmra.mrb[0].mxu0 %v1667
      %v1902 = vpop.f32.mrb[0].mxu0
      %v1903 = vadd.f32 0.0, %v1902
      %v1904 = vpop.f32.mrb[0].mxu0
      %1905 = vmatprep.mubr.f32.mxu0 0.0
      %1906 = vmatmul.mubr.f32.gmra.mrb[0].mxu0 %v1668
      %v1907 = vpop.f32.mrb[0].mxu0
      %v1908 = vadd.f32 0.0, %v1907
      %v1909 = vpop.f32.mrb[0].mxu0
      %1910 = vdwg.mxu0
      %v1911 = vadd.f32 %v1605, %v1753
      %v1912 = vadd.f32 %v1606, %v1758
      %v1913 = vadd.f32 %v1607, %v1763
      %v1914 = vadd.f32 %v1608, %v1768
      %v1915 = vadd.f32 %v1609, %v1773
      %v1916 = vadd.f32 %v1610, %v1778
      %v1917 = vadd.f32 %v1611, %v1783
      %v1918 = vadd.f32 %v1612, %v1788
      %v1919 = vadd.f32 %v1613, %v1793
      %v1920 = vadd.f32 %v1614, %v1798
      %v1921 = vadd.f32 %v1615, %v1803
      %v1922 = vadd.f32 %v1616, %v1808
      %v1923 = vadd.f32 %v1617, %v1813
      %v1924 = vadd.f32 %v1618, %v1818
      %v1925 = vadd.f32 %v1619, %v1823
      %v1926 = vadd.f32 %v1620, %v1828
      %v1927 = vadd.f32 %v1621, %v1833
      %v1928 = vadd.f32 %v1622, %v1838
      %v1929 = vadd.f32 %v1623, %v1843
      %v1930 = vadd.f32 %v1624, %v1848
      %v1931 = vadd.f32 %v1625, %v1853
      %v1932 = vadd.f32 %v1626, %v1858
      %v1933 = vadd.f32 %v1627, %v1863
      %v1934 = vadd.f32 %v1628, %v1868
      %v1935 = vadd.f32 %v1629, %v1873
      %v1936 = vadd.f32 %v1630, %v1878
      %v1937 = vadd.f32 %v1631, %v1883
      %v1938 = vadd.f32 %v1632, %v1888
      %v1939 = vadd.f32 %v1633, %v1893
      %v1940 = vadd.f32 %v1634, %v1898
      %v1941 = vadd.f32 %v1635, %v1903
      %v1942 = vadd.f32 %v1636, %v1908
      %s1943 = scalar_lea.vmem %s165, 48
      %v1944 = vld [vmem:[%s1943] sm:$0xff]
      %v1945 = vld [vmem:[%s1943 + $0x8] sm:$0xff]
      %v1946 = vld [vmem:[%s1943 + $0x18] sm:$0xff]
      %v1947 = vld [vmem:[%s1943 + $0x20] sm:$0xff]
      %v1948 = vld [vmem:[%s1943 + $0x30] sm:$0xff]
      %v1949 = vld [vmem:[%s1943 + $0x38] sm:$0xff]
      %v1950 = vld [vmem:[%s1943 + $0x48] sm:$0xff]
      %v1951 = vld [vmem:[%s1943 + $0x50] sm:$0xff]
      %v1952 = vld [vmem:[%s1943 + $0x60] sm:$0xff]
      %v1953 = vld [vmem:[%s1943 + $0x68] sm:$0xff]
      %v1954 = vld [vmem:[%s1943 + $0x78] sm:$0xff]
      %v1955 = vld [vmem:[%s1943 + $0x80] sm:$0xff]
      %v1956 = vld [vmem:[%s1943 + $0x90] sm:$0xff]
      %v1957 = vld [vmem:[%s1943 + $0x98] sm:$0xff]
      %v1958 = vld [vmem:[%s1943 + $0xa8] sm:$0xff]
      %v1959 = vld [vmem:[%s1943 + $0xb0] sm:$0xff]
      %v1960 = vld [vmem:[%s1943 + $0xc0] sm:$0xff]
      %v1961 = vld [vmem:[%s1943 + $0xc8] sm:$0xff]
      %v1962 = vld [vmem:[%s1943 + $0xd8] sm:$0xff]
      %v1963 = vld [vmem:[%s1943 + $0xe0] sm:$0xff]
      %v1964 = vld [vmem:[%s1943 + $0xf0] sm:$0xff]
      %v1965 = vld [vmem:[%s1943 + $0xf8] sm:$0xff]
      %v1966 = vld [vmem:[%s1943 + $0x108] sm:$0xff]
      %v1967 = vld [vmem:[%s1943 + $0x110] sm:$0xff]
      %v1968 = vld [vmem:[%s1943 + $0x120] sm:$0xff]
      %v1969 = vld [vmem:[%s1943 + $0x128] sm:$0xff]
      %v1970 = vld [vmem:[%s1943 + $0x138] sm:$0xff]
      %v1971 = vld [vmem:[%s1943 + $0x140] sm:$0xff]
      %v1972 = vld [vmem:[%s1943 + $0x150] sm:$0xff]
      %v1973 = vld [vmem:[%s1943 + $0x158] sm:$0xff]
      %v1974 = vld [vmem:[%s1943 + $0x168] sm:$0xff]
      %v1975 = vld [vmem:[%s1943 + $0x170] sm:$0xff]
      %s1976 = scalar_lea.vmem %s1, 768
      %v1977 = vld [vmem:[%s1976] sm:$0xff]
      %v1978 = vld [vmem:[%s1976 + $0x8] sm:$0xff]
      %v1979 = vld [vmem:[%s1976 + $0x10] sm:$0xff]
      %v1980 = vld [vmem:[%s1976 + $0x18] sm:$0xff]
      %v1981 = vld [vmem:[%s1976 + $0x20] sm:$0xff]
      %v1982 = vld [vmem:[%s1976 + $0x28] sm:$0xff]
      %v1983 = vld [vmem:[%s1976 + $0x30] sm:$0xff]
      %v1984 = vld [vmem:[%s1976 + $0x38] sm:$0xff]
      %v1985 = vld [vmem:[%s1976 + $0x40] sm:$0xff]
      %v1986 = vld [vmem:[%s1976 + $0x48] sm:$0xff]
      %v1987 = vld [vmem:[%s1976 + $0x50] sm:$0xff]
      %v1988 = vld [vmem:[%s1976 + $0x58] sm:$0xff]
      %v1989 = vld [vmem:[%s1976 + $0x60] sm:$0xff]
      %v1990 = vld [vmem:[%s1976 + $0x68] sm:$0xff]
      %v1991 = vld [vmem:[%s1976 + $0x70] sm:$0xff]
      %v1992 = vld [vmem:[%s1976 + $0x78] sm:$0xff]
      %1993 = vmatprep.subr.mxu0 0.0
      %1994 = vmatpush1.msra.mxu0 %v1977
      %1995 = vmatprep.subr.mxu0 0.0
      %1996 = vmatpush1.msra.mxu0 %v1978
      %1997 = vmatprep.subr.mxu0 0.0
      %1998 = vmatpush1.msra.mxu0 %v1979
      %1999 = vmatprep.subr.mxu0 0.0
      %2000 = vmatpush1.msra.mxu0 %v1980
      %2001 = vmatprep.subr.mxu0 0.0
      %2002 = vmatpush1.msra.mxu0 %v1981
      %2003 = vmatprep.subr.mxu0 0.0
      %2004 = vmatpush1.msra.mxu0 %v1982
      %2005 = vmatprep.subr.mxu0 0.0
      %2006 = vmatpush1.msra.mxu0 %v1983
      %2007 = vmatprep.subr.mxu0 0.0
      %2008 = vmatpush1.msra.mxu0 %v1984
      %2009 = vmatprep.subr.mxu0 0.0
      %2010 = vmatpush1.msra.mxu0 %v1985
      %2011 = vmatprep.subr.mxu0 0.0
      %2012 = vmatpush1.msra.mxu0 %v1986
      %2013 = vmatprep.subr.mxu0 0.0
      %2014 = vmatpush1.msra.mxu0 %v1987
      %2015 = vmatprep.subr.mxu0 0.0
      %2016 = vmatpush1.msra.mxu0 %v1988
      %2017 = vmatprep.subr.mxu0 0.0
      %2018 = vmatpush1.msra.mxu0 %v1989
      %2019 = vmatprep.subr.mxu0 0.0
      %2020 = vmatpush1.msra.mxu0 %v1990
      %2021 = vmatprep.subr.mxu0 0.0
      %2022 = vmatpush1.msra.mxu0 %v1991
      %2023 = vmatprep.subr.mxu0 0.0
      %2024 = vmatpush1.msra.mxu0 %v1992
      %2025 = vmatprep.subr.mxu0 0.0
      %2026 = vmatpush1.msra.mxu0 0.0
      %2027 = vmatprep.subr.mxu0 0.0
      %2028 = vmatpush1.msra.mxu0 0.0
      %2029 = vmatprep.subr.mxu0 0.0
      %2030 = vmatpush1.msra.mxu0 0.0
      %2031 = vmatprep.subr.mxu0 0.0
      %2032 = vmatpush1.msra.mxu0 0.0
      %2033 = vmatprep.subr.mxu0 0.0
      %2034 = vmatpush1.msra.mxu0 0.0
      %2035 = vmatprep.subr.mxu0 0.0
      %2036 = vmatpush1.msra.mxu0 0.0
      %2037 = vmatprep.subr.mxu0 0.0
      %2038 = vmatpush1.msra.mxu0 0.0
      %2039 = vmatprep.subr.mxu0 0.0
      %2040 = vmatpush1.msra.mxu0 0.0
      %2041 = vmatprep.subr.mxu0 0.0
      %2042 = vmatpush1.msra.mxu0 0.0
      %2043 = vmatprep.subr.mxu0 0.0
      %2044 = vmatpush1.msra.mxu0 0.0
      %2045 = vmatprep.subr.mxu0 0.0
      %2046 = vmatpush1.msra.mxu0 0.0
      %2047 = vmatprep.subr.mxu0 0.0
      %2048 = vmatpush1.msra.mxu0 0.0
      %2049 = vmatprep.subr.mxu0 0.0
      %2050 = vmatpush1.msra.mxu0 0.0
      %2051 = vmatprep.subr.mxu0 0.0
      %2052 = vmatpush1.msra.mxu0 0.0
      %2053 = vmatprep.subr.mxu0 0.0
      %2054 = vmatpush1.msra.mxu0 0.0
      %2055 = vmatprep.subr.mxu0 0.0
      %2056 = vmatpush1.msra.mxu0 0.0
      %2057 = vmatprep.mubr.f32.mxu0 0.0
      %2058 = vmatmul.mubr.f32.gmra.mrb[0].mxu0 %v1944
      %v2059 = vpop.f32.mrb[0].mxu0
      %v2060 = vadd.f32 0.0, %v2059
      %v2061 = vpop.f32.mrb[0].mxu0
      %2062 = vmatprep.mubr.f32.mxu0 0.0
      %2063 = vmatmul.mubr.f32.gmra.mrb[0].mxu0 %v1945
      %v2064 = vpop.f32.mrb[0].mxu0
      %v2065 = vadd.f32 0.0, %v2064
      %v2066 = vpop.f32.mrb[0].mxu0
      %2067 = vmatprep.mubr.f32.mxu0 0.0
      %2068 = vmatmul.mubr.f32.gmra.mrb[0].mxu0 %v1946
      %v2069 = vpop.f32.mrb[0].mxu0
      %v2070 = vadd.f32 0.0, %v2069
      %v2071 = vpop.f32.mrb[0].mxu0
      %2072 = vmatprep.mubr.f32.mxu0 0.0
      %2073 = vmatmul.mubr.f32.gmra.mrb[0].mxu0 %v1947
      %v2074 = vpop.f32.mrb[0].mxu0
      %v2075 = vadd.f32 0.0, %v2074
      %v2076 = vpop.f32.mrb[0].mxu0
      %2077 = vmatprep.mubr.f32.mxu0 0.0
      %2078 = vmatmul.mubr.f32.gmra.mrb[0].mxu0 %v1948
      %v2079 = vpop.f32.mrb[0].mxu0
      %v2080 = vadd.f32 0.0, %v2079
      %v2081 = vpop.f32.mrb[0].mxu0
      %2082 = vmatprep.mubr.f32.mxu0 0.0
      %2083 = vmatmul.mubr.f32.gmra.mrb[0].mxu0 %v1949
      %v2084 = vpop.f32.mrb[0].mxu0
      %v2085 = vadd.f32 0.0, %v2084
      %v2086 = vpop.f32.mrb[0].mxu0
      %2087 = vmatprep.mubr.f32.mxu0 0.0
      %2088 = vmatmul.mubr.f32.gmra.mrb[0].mxu0 %v1950
      %v2089 = vpop.f32.mrb[0].mxu0
      %v2090 = vadd.f32 0.0, %v2089
      %v2091 = vpop.f32.mrb[0].mxu0
      %2092 = vmatprep.mubr.f32.mxu0 0.0
      %2093 = vmatmul.mubr.f32.gmra.mrb[0].mxu0 %v1951
      %v2094 = vpop.f32.mrb[0].mxu0
      %v2095 = vadd.f32 0.0, %v2094
      %v2096 = vpop.f32.mrb[0].mxu0
      %2097 = vmatprep.mubr.f32.mxu0 0.0
      %2098 = vmatmul.mubr.f32.gmra.mrb[0].mxu0 %v1952
      %v2099 = vpop.f32.mrb[0].mxu0
      %v2100 = vadd.f32 0.0, %v2099
      %v2101 = vpop.f32.mrb[0].mxu0
      %2102 = vmatprep.mubr.f32.mxu0 0.0
      %2103 = vmatmul.mubr.f32.gmra.mrb[0].mxu0 %v1953
      %v2104 = vpop.f32.mrb[0].mxu0
      %v2105 = vadd.f32 0.0, %v2104
      %v2106 = vpop.f32.mrb[0].mxu0
      %2107 = vmatprep.mubr.f32.mxu0 0.0
      %2108 = vmatmul.mubr.f32.gmra.mrb[0].mxu0 %v1954
      %v2109 = vpop.f32.mrb[0].mxu0
      %v2110 = vadd.f32 0.0, %v2109
      %v2111 = vpop.f32.mrb[0].mxu0
      %2112 = vmatprep.mubr.f32.mxu0 0.0
      %2113 = vmatmul.mubr.f32.gmra.mrb[0].mxu0 %v1955
      %v2114 = vpop.f32.mrb[0].mxu0
      %v2115 = vadd.f32 0.0, %v2114
      %v2116 = vpop.f32.mrb[0].mxu0
      %2117 = vmatprep.mubr.f32.mxu0 0.0
      %2118 = vmatmul.mubr.f32.gmra.mrb[0].mxu0 %v1956
      %v2119 = vpop.f32.mrb[0].mxu0
      %v2120 = vadd.f32 0.0, %v2119
      %v2121 = vpop.f32.mrb[0].mxu0
      %2122 = vmatprep.mubr.f32.mxu0 0.0
      %2123 = vmatmul.mubr.f32.gmra.mrb[0].mxu0 %v1957
      %v2124 = vpop.f32.mrb[0].mxu0
      %v2125 = vadd.f32 0.0, %v2124
      %v2126 = vpop.f32.mrb[0].mxu0
      %2127 = vmatprep.mubr.f32.mxu0 0.0
      %2128 = vmatmul.mubr.f32.gmra.mrb[0].mxu0 %v1958
      %v2129 = vpop.f32.mrb[0].mxu0
      %v2130 = vadd.f32 0.0, %v2129
      %v2131 = vpop.f32.mrb[0].mxu0
      %2132 = vmatprep.mubr.f32.mxu0 0.0
      %2133 = vmatmul.mubr.f32.gmra.mrb[0].mxu0 %v1959
      %v2134 = vpop.f32.mrb[0].mxu0
      %v2135 = vadd.f32 0.0, %v2134
      %v2136 = vpop.f32.mrb[0].mxu0
      %2137 = vmatprep.mubr.f32.mxu0 0.0
      %2138 = vmatmul.mubr.f32.gmra.mrb[0].mxu0 %v1960
      %v2139 = vpop.f32.mrb[0].mxu0
      %v2140 = vadd.f32 0.0, %v2139
      %v2141 = vpop.f32.mrb[0].mxu0
      %2142 = vmatprep.mubr.f32.mxu0 0.0
      %2143 = vmatmul.mubr.f32.gmra.mrb[0].mxu0 %v1961
      %v2144 = vpop.f32.mrb[0].mxu0
      %v2145 = vadd.f32 0.0, %v2144
      %v2146 = vpop.f32.mrb[0].mxu0
      %2147 = vmatprep.mubr.f32.mxu0 0.0
      %2148 = vmatmul.mubr.f32.gmra.mrb[0].mxu0 %v1962
      %v2149 = vpop.f32.mrb[0].mxu0
      %v2150 = vadd.f32 0.0, %v2149
      %v2151 = vpop.f32.mrb[0].mxu0
      %2152 = vmatprep.mubr.f32.mxu0 0.0
      %2153 = vmatmul.mubr.f32.gmra.mrb[0].mxu0 %v1963
      %v2154 = vpop.f32.mrb[0].mxu0
      %v2155 = vadd.f32 0.0, %v2154
      %v2156 = vpop.f32.mrb[0].mxu0
      %2157 = vmatprep.mubr.f32.mxu0 0.0
      %2158 = vmatmul.mubr.f32.gmra.mrb[0].mxu0 %v1964
      %v2159 = vpop.f32.mrb[0].mxu0
      %v2160 = vadd.f32 0.0, %v2159
      %v2161 = vpop.f32.mrb[0].mxu0
      %2162 = vmatprep.mubr.f32.mxu0 0.0
      %2163 = vmatmul.mubr.f32.gmra.mrb[0].mxu0 %v1965
      %v2164 = vpop.f32.mrb[0].mxu0
      %v2165 = vadd.f32 0.0, %v2164
      %v2166 = vpop.f32.mrb[0].mxu0
      %2167 = vmatprep.mubr.f32.mxu0 0.0
      %2168 = vmatmul.mubr.f32.gmra.mrb[0].mxu0 %v1966
      %v2169 = vpop.f32.mrb[0].mxu0
      %v2170 = vadd.f32 0.0, %v2169
      %v2171 = vpop.f32.mrb[0].mxu0
      %2172 = vmatprep.mubr.f32.mxu0 0.0
      %2173 = vmatmul.mubr.f32.gmra.mrb[0].mxu0 %v1967
      %v2174 = vpop.f32.mrb[0].mxu0
      %v2175 = vadd.f32 0.0, %v2174
      %v2176 = vpop.f32.mrb[0].mxu0
      %2177 = vmatprep.mubr.f32.mxu0 0.0
      %2178 = vmatmul.mubr.f32.gmra.mrb[0].mxu0 %v1968
      %v2179 = vpop.f32.mrb[0].mxu0
      %v2180 = vadd.f32 0.0, %v2179
      %v2181 = vpop.f32.mrb[0].mxu0
      %2182 = vmatprep.mubr.f32.mxu0 0.0
      %2183 = vmatmul.mubr.f32.gmra.mrb[0].mxu0 %v1969
      %v2184 = vpop.f32.mrb[0].mxu0
      %v2185 = vadd.f32 0.0, %v2184
      %v2186 = vpop.f32.mrb[0].mxu0
      %2187 = vmatprep.mubr.f32.mxu0 0.0
      %2188 = vmatmul.mubr.f32.gmra.mrb[0].mxu0 %v1970
      %v2189 = vpop.f32.mrb[0].mxu0
      %v2190 = vadd.f32 0.0, %v2189
      %v2191 = vpop.f32.mrb[0].mxu0
      %2192 = vmatprep.mubr.f32.mxu0 0.0
      %2193 = vmatmul.mubr.f32.gmra.mrb[0].mxu0 %v1971
      %v2194 = vpop.f32.mrb[0].mxu0
      %v2195 = vadd.f32 0.0, %v2194
      %v2196 = vpop.f32.mrb[0].mxu0
      %2197 = vmatprep.mubr.f32.mxu0 0.0
      %2198 = vmatmul.mubr.f32.gmra.mrb[0].mxu0 %v1972
      %v2199 = vpop.f32.mrb[0].mxu0
      %v2200 = vadd.f32 0.0, %v2199
      %v2201 = vpop.f32.mrb[0].mxu0
      %2202 = vmatprep.mubr.f32.mxu0 0.0
      %2203 = vmatmul.mubr.f32.gmra.mrb[0].mxu0 %v1973
      %v2204 = vpop.f32.mrb[0].mxu0
      %v2205 = vadd.f32 0.0, %v2204
      %v2206 = vpop.f32.mrb[0].mxu0
      %2207 = vmatprep.mubr.f32.mxu0 0.0
      %2208 = vmatmul.mubr.f32.gmra.mrb[0].mxu0 %v1974
      %v2209 = vpop.f32.mrb[0].mxu0
      %v2210 = vadd.f32 0.0, %v2209
      %v2211 = vpop.f32.mrb[0].mxu0
      %2212 = vmatprep.mubr.f32.mxu0 0.0
      %2213 = vmatmul.mubr.f32.gmra.mrb[0].mxu0 %v1975
      %v2214 = vpop.f32.mrb[0].mxu0
      %v2215 = vadd.f32 0.0, %v2214
      %v2216 = vpop.f32.mrb[0].mxu0
      %2217 = vdwg.mxu0
      %v2218 = vadd.f32 %v1911, %v2060
      %v2219 = vadd.f32 %v1912, %v2065
      %v2220 = vadd.f32 %v1913, %v2070
      %v2221 = vadd.f32 %v1914, %v2075
      %v2222 = vadd.f32 %v1915, %v2080
      %v2223 = vadd.f32 %v1916, %v2085
      %v2224 = vadd.f32 %v1917, %v2090
      %v2225 = vadd.f32 %v1918, %v2095
      %v2226 = vadd.f32 %v1919, %v2100
      %v2227 = vadd.f32 %v1920, %v2105
      %v2228 = vadd.f32 %v1921, %v2110
      %v2229 = vadd.f32 %v1922, %v2115
      %v2230 = vadd.f32 %v1923, %v2120
      %v2231 = vadd.f32 %v1924, %v2125
      %v2232 = vadd.f32 %v1925, %v2130
      %v2233 = vadd.f32 %v1926, %v2135
      %v2234 = vadd.f32 %v1927, %v2140
      %v2235 = vadd.f32 %v1928, %v2145
      %v2236 = vadd.f32 %v1929, %v2150
      %v2237 = vadd.f32 %v1930, %v2155
      %v2238 = vadd.f32 %v1931, %v2160
      %v2239 = vadd.f32 %v1932, %v2165
      %v2240 = vadd.f32 %v1933, %v2170
      %v2241 = vadd.f32 %v1934, %v2175
      %v2242 = vadd.f32 %v1935, %v2180
      %v2243 = vadd.f32 %v1936, %v2185
      %v2244 = vadd.f32 %v1937, %v2190
      %v2245 = vadd.f32 %v1938, %v2195
      %v2246 = vadd.f32 %v1939, %v2200
      %v2247 = vadd.f32 %v1940, %v2205
      %v2248 = vadd.f32 %v1941, %v2210
      %v2249 = vadd.f32 %v1942, %v2215
      %v2250 = vld [vmem:[%s1943 + $0x1] sm:$0xff]
      %v2251 = vld [vmem:[%s1943 + $0x9] sm:$0xff]
      %v2252 = vld [vmem:[%s1943 + $0x19] sm:$0xff]
      %v2253 = vld [vmem:[%s1943 + $0x21] sm:$0xff]
      %v2254 = vld [vmem:[%s1943 + $0x31] sm:$0xff]
      %v2255 = vld [vmem:[%s1943 + $0x39] sm:$0xff]
      %v2256 = vld [vmem:[%s1943 + $0x49] sm:$0xff]
      %v2257 = vld [vmem:[%s1943 + $0x51] sm:$0xff]
      %v2258 = vld [vmem:[%s1943 + $0x61] sm:$0xff]
      %v2259 = vld [vmem:[%s1943 + $0x69] sm:$0xff]
      %v2260 = vld [vmem:[%s1943 + $0x79] sm:$0xff]
      %v2261 = vld [vmem:[%s1943 + $0x81] sm:$0xff]
      %v2262 = vld [vmem:[%s1943 + $0x91] sm:$0xff]
      %v2263 = vld [vmem:[%s1943 + $0x99] sm:$0xff]
      %v2264 = vld [vmem:[%s1943 + $0xa9] sm:$0xff]
      %v2265 = vld [vmem:[%s1943 + $0xb1] sm:$0xff]
      %v2266 = vld [vmem:[%s1943 + $0xc1] sm:$0xff]
      %v2267 = vld [vmem:[%s1943 + $0xc9] sm:$0xff]
      %v2268 = vld [vmem:[%s1943 + $0xd9] sm:$0xff]
      %v2269 = vld [vmem:[%s1943 + $0xe1] sm:$0xff]
      %v2270 = vld [vmem:[%s1943 + $0xf1] sm:$0xff]
      %v2271 = vld [vmem:[%s1943 + $0xf9] sm:$0xff]
      %v2272 = vld [vmem:[%s1943 + $0x109] sm:$0xff]
      %v2273 = vld [vmem:[%s1943 + $0x111] sm:$0xff]
      %v2274 = vld [vmem:[%s1943 + $0x121] sm:$0xff]
      %v2275 = vld [vmem:[%s1943 + $0x129] sm:$0xff]
      %v2276 = vld [vmem:[%s1943 + $0x139] sm:$0xff]
      %v2277 = vld [vmem:[%s1943 + $0x141] sm:$0xff]
      %v2278 = vld [vmem:[%s1943 + $0x151] sm:$0xff]
      %v2279 = vld [vmem:[%s1943 + $0x159] sm:$0xff]
      %v2280 = vld [vmem:[%s1943 + $0x169] sm:$0xff]
      %v2281 = vld [vmem:[%s1943 + $0x171] sm:$0xff]
      %s2282 = scalar_lea.vmem %s1, 896
      %v2283 = vld [vmem:[%s2282] sm:$0xff]
      %v2284 = vld [vmem:[%s2282 + $0x8] sm:$0xff]
      %v2285 = vld [vmem:[%s2282 + $0x10] sm:$0xff]
      %v2286 = vld [vmem:[%s2282 + $0x18] sm:$0xff]
      %v2287 = vld [vmem:[%s2282 + $0x20] sm:$0xff]
      %v2288 = vld [vmem:[%s2282 + $0x28] sm:$0xff]
      %v2289 = vld [vmem:[%s2282 + $0x30] sm:$0xff]
      %v2290 = vld [vmem:[%s2282 + $0x38] sm:$0xff]
      %v2291 = vld [vmem:[%s2282 + $0x40] sm:$0xff]
      %v2292 = vld [vmem:[%s2282 + $0x48] sm:$0xff]
      %v2293 = vld [vmem:[%s2282 + $0x50] sm:$0xff]
      %v2294 = vld [vmem:[%s2282 + $0x58] sm:$0xff]
      %v2295 = vld [vmem:[%s2282 + $0x60] sm:$0xff]
      %v2296 = vld [vmem:[%s2282 + $0x68] sm:$0xff]
      %v2297 = vld [vmem:[%s2282 + $0x70] sm:$0xff]
      %v2298 = vld [vmem:[%s2282 + $0x78] sm:$0xff]
      %2299 = vmatprep.subr.mxu0 0.0
      %2300 = vmatpush1.msra.mxu0 %v2283
      %2301 = vmatprep.subr.mxu0 0.0
      %2302 = vmatpush1.msra.mxu0 %v2284
      %2303 = vmatprep.subr.mxu0 0.0
      %2304 = vmatpush1.msra.mxu0 %v2285
      %2305 = vmatprep.subr.mxu0 0.0
      %2306 = vmatpush1.msra.mxu0 %v2286
      %2307 = vmatprep.subr.mxu0 0.0
      %2308 = vmatpush1.msra.mxu0 %v2287
      %2309 = vmatprep.subr.mxu0 0.0
      %2310 = vmatpush1.msra.mxu0 %v2288
      %2311 = vmatprep.subr.mxu0 0.0
      %2312 = vmatpush1.msra.mxu0 %v2289
      %2313 = vmatprep.subr.mxu0 0.0
      %2314 = vmatpush1.msra.mxu0 %v2290
      %2315 = vmatprep.subr.mxu0 0.0
      %2316 = vmatpush1.msra.mxu0 %v2291
      %2317 = vmatprep.subr.mxu0 0.0
      %2318 = vmatpush1.msra.mxu0 %v2292
      %2319 = vmatprep.subr.mxu0 0.0
      %2320 = vmatpush1.msra.mxu0 %v2293
      %2321 = vmatprep.subr.mxu0 0.0
      %2322 = vmatpush1.msra.mxu0 %v2294
      %2323 = vmatprep.subr.mxu0 0.0
      %2324 = vmatpush1.msra.mxu0 %v2295
      %2325 = vmatprep.subr.mxu0 0.0
      %2326 = vmatpush1.msra.mxu0 %v2296
      %2327 = vmatprep.subr.mxu0 0.0
      %2328 = vmatpush1.msra.mxu0 %v2297
      %2329 = vmatprep.subr.mxu0 0.0
      %2330 = vmatpush1.msra.mxu0 %v2298
      %2331 = vmatprep.subr.mxu0 0.0
      %2332 = vmatpush1.msra.mxu0 0.0
      %2333 = vmatprep.subr.mxu0 0.0
      %2334 = vmatpush1.msra.mxu0 0.0
      %2335 = vmatprep.subr.mxu0 0.0
      %2336 = vmatpush1.msra.mxu0 0.0
      %2337 = vmatprep.subr.mxu0 0.0
      %2338 = vmatpush1.msra.mxu0 0.0
      %2339 = vmatprep.subr.mxu0 0.0
      %2340 = vmatpush1.msra.mxu0 0.0
      %2341 = vmatprep.subr.mxu0 0.0
      %2342 = vmatpush1.msra.mxu0 0.0
      %2343 = vmatprep.subr.mxu0 0.0
      %2344 = vmatpush1.msra.mxu0 0.0
      %2345 = vmatprep.subr.mxu0 0.0
      %2346 = vmatpush1.msra.mxu0 0.0
      %2347 = vmatprep.subr.mxu0 0.0
      %2348 = vmatpush1.msra.mxu0 0.0
      %2349 = vmatprep.subr.mxu0 0.0
      %2350 = vmatpush1.msra.mxu0 0.0
      %2351 = vmatprep.subr.mxu0 0.0
      %2352 = vmatpush1.msra.mxu0 0.0
      %2353 = vmatprep.subr.mxu0 0.0
      %2354 = vmatpush1.msra.mxu0 0.0
      %2355 = vmatprep.subr.mxu0 0.0
      %2356 = vmatpush1.msra.mxu0 0.0
      %2357 = vmatprep.subr.mxu0 0.0
      %2358 = vmatpush1.msra.mxu0 0.0
      %2359 = vmatprep.subr.mxu0 0.0
      %2360 = vmatpush1.msra.mxu0 0.0
      %2361 = vmatprep.subr.mxu0 0.0
      %2362 = vmatpush1.msra.mxu0 0.0
      %2363 = vmatprep.mubr.f32.mxu0 0.0
      %2364 = vmatmul.mubr.f32.gmra.mrb[0].mxu0 %v2250
      %v2365 = vpop.f32.mrb[0].mxu0
      %v2366 = vadd.f32 0.0, %v2365
      %v2367 = vpop.f32.mrb[0].mxu0
      %2368 = vmatprep.mubr.f32.mxu0 0.0
      %2369 = vmatmul.mubr.f32.gmra.mrb[0].mxu0 %v2251
      %v2370 = vpop.f32.mrb[0].mxu0
      %v2371 = vadd.f32 0.0, %v2370
      %v2372 = vpop.f32.mrb[0].mxu0
      %2373 = vmatprep.mubr.f32.mxu0 0.0
      %2374 = vmatmul.mubr.f32.gmra.mrb[0].mxu0 %v2252
      %v2375 = vpop.f32.mrb[0].mxu0
      %v2376 = vadd.f32 0.0, %v2375
      %v2377 = vpop.f32.mrb[0].mxu0
      %2378 = vmatprep.mubr.f32.mxu0 0.0
      %2379 = vmatmul.mubr.f32.gmra.mrb[0].mxu0 %v2253
      %v2380 = vpop.f32.mrb[0].mxu0
      %v2381 = vadd.f32 0.0, %v2380
      %v2382 = vpop.f32.mrb[0].mxu0
      %2383 = vmatprep.mubr.f32.mxu0 0.0
      %2384 = vmatmul.mubr.f32.gmra.mrb[0].mxu0 %v2254
      %v2385 = vpop.f32.mrb[0].mxu0
      %v2386 = vadd.f32 0.0, %v2385
      %v2387 = vpop.f32.mrb[0].mxu0
      %2388 = vmatprep.mubr.f32.mxu0 0.0
      %2389 = vmatmul.mubr.f32.gmra.mrb[0].mxu0 %v2255
      %v2390 = vpop.f32.mrb[0].mxu0
      %v2391 = vadd.f32 0.0, %v2390
      %v2392 = vpop.f32.mrb[0].mxu0
      %2393 = vmatprep.mubr.f32.mxu0 0.0
      %2394 = vmatmul.mubr.f32.gmra.mrb[0].mxu0 %v2256
      %v2395 = vpop.f32.mrb[0].mxu0
      %v2396 = vadd.f32 0.0, %v2395
      %v2397 = vpop.f32.mrb[0].mxu0
      %2398 = vmatprep.mubr.f32.mxu0 0.0
      %2399 = vmatmul.mubr.f32.gmra.mrb[0].mxu0 %v2257
      %v2400 = vpop.f32.mrb[0].mxu0
      %v2401 = vadd.f32 0.0, %v2400
      %v2402 = vpop.f32.mrb[0].mxu0
      %2403 = vmatprep.mubr.f32.mxu0 0.0
      %2404 = vmatmul.mubr.f32.gmra.mrb[0].mxu0 %v2258
      %v2405 = vpop.f32.mrb[0].mxu0
      %v2406 = vadd.f32 0.0, %v2405
      %v2407 = vpop.f32.mrb[0].mxu0
      %2408 = vmatprep.mubr.f32.mxu0 0.0
      %2409 = vmatmul.mubr.f32.gmra.mrb[0].mxu0 %v2259
      %v2410 = vpop.f32.mrb[0].mxu0
      %v2411 = vadd.f32 0.0, %v2410
      %v2412 = vpop.f32.mrb[0].mxu0
      %2413 = vmatprep.mubr.f32.mxu0 0.0
      %2414 = vmatmul.mubr.f32.gmra.mrb[0].mxu0 %v2260
      %v2415 = vpop.f32.mrb[0].mxu0
      %v2416 = vadd.f32 0.0, %v2415
      %v2417 = vpop.f32.mrb[0].mxu0
      %2418 = vmatprep.mubr.f32.mxu0 0.0
      %2419 = vmatmul.mubr.f32.gmra.mrb[0].mxu0 %v2261
      %v2420 = vpop.f32.mrb[0].mxu0
      %v2421 = vadd.f32 0.0, %v2420
      %v2422 = vpop.f32.mrb[0].mxu0
      %2423 = vmatprep.mubr.f32.mxu0 0.0
      %2424 = vmatmul.mubr.f32.gmra.mrb[0].mxu0 %v2262
      %v2425 = vpop.f32.mrb[0].mxu0
      %v2426 = vadd.f32 0.0, %v2425
      %v2427 = vpop.f32.mrb[0].mxu0
      %2428 = vmatprep.mubr.f32.mxu0 0.0
      %2429 = vmatmul.mubr.f32.gmra.mrb[0].mxu0 %v2263
      %v2430 = vpop.f32.mrb[0].mxu0
      %v2431 = vadd.f32 0.0, %v2430
      %v2432 = vpop.f32.mrb[0].mxu0
      %2433 = vmatprep.mubr.f32.mxu0 0.0
      %2434 = vmatmul.mubr.f32.gmra.mrb[0].mxu0 %v2264
      %v2435 = vpop.f32.mrb[0].mxu0
      %v2436 = vadd.f32 0.0, %v2435
      %v2437 = vpop.f32.mrb[0].mxu0
      %2438 = vmatprep.mubr.f32.mxu0 0.0
      %2439 = vmatmul.mubr.f32.gmra.mrb[0].mxu0 %v2265
      %v2440 = vpop.f32.mrb[0].mxu0
      %v2441 = vadd.f32 0.0, %v2440
      %v2442 = vpop.f32.mrb[0].mxu0
      %2443 = vmatprep.mubr.f32.mxu0 0.0
      %2444 = vmatmul.mubr.f32.gmra.mrb[0].mxu0 %v2266
      %v2445 = vpop.f32.mrb[0].mxu0
      %v2446 = vadd.f32 0.0, %v2445
      %v2447 = vpop.f32.mrb[0].mxu0
      %2448 = vmatprep.mubr.f32.mxu0 0.0
      %2449 = vmatmul.mubr.f32.gmra.mrb[0].mxu0 %v2267
      %v2450 = vpop.f32.mrb[0].mxu0
      %v2451 = vadd.f32 0.0, %v2450
      %v2452 = vpop.f32.mrb[0].mxu0
      %2453 = vmatprep.mubr.f32.mxu0 0.0
      %2454 = vmatmul.mubr.f32.gmra.mrb[0].mxu0 %v2268
      %v2455 = vpop.f32.mrb[0].mxu0
      %v2456 = vadd.f32 0.0, %v2455
      %v2457 = vpop.f32.mrb[0].mxu0
      %2458 = vmatprep.mubr.f32.mxu0 0.0
      %2459 = vmatmul.mubr.f32.gmra.mrb[0].mxu0 %v2269
      %v2460 = vpop.f32.mrb[0].mxu0
      %v2461 = vadd.f32 0.0, %v2460
      %v2462 = vpop.f32.mrb[0].mxu0
      %2463 = vmatprep.mubr.f32.mxu0 0.0
      %2464 = vmatmul.mubr.f32.gmra.mrb[0].mxu0 %v2270
      %v2465 = vpop.f32.mrb[0].mxu0
      %v2466 = vadd.f32 0.0, %v2465
      %v2467 = vpop.f32.mrb[0].mxu0
      %2468 = vmatprep.mubr.f32.mxu0 0.0
      %2469 = vmatmul.mubr.f32.gmra.mrb[0].mxu0 %v2271
      %v2470 = vpop.f32.mrb[0].mxu0
      %v2471 = vadd.f32 0.0, %v2470
      %v2472 = vpop.f32.mrb[0].mxu0
      %2473 = vmatprep.mubr.f32.mxu0 0.0
      %2474 = vmatmul.mubr.f32.gmra.mrb[0].mxu0 %v2272
      %v2475 = vpop.f32.mrb[0].mxu0
      %v2476 = vadd.f32 0.0, %v2475
      %v2477 = vpop.f32.mrb[0].mxu0
      %2478 = vmatprep.mubr.f32.mxu0 0.0
      %2479 = vmatmul.mubr.f32.gmra.mrb[0].mxu0 %v2273
      %v2480 = vpop.f32.mrb[0].mxu0
      %v2481 = vadd.f32 0.0, %v2480
      %v2482 = vpop.f32.mrb[0].mxu0
      %2483 = vmatprep.mubr.f32.mxu0 0.0
      %2484 = vmatmul.mubr.f32.gmra.mrb[0].mxu0 %v2274
      %v2485 = vpop.f32.mrb[0].mxu0
      %v2486 = vadd.f32 0.0, %v2485
      %v2487 = vpop.f32.mrb[0].mxu0
      %2488 = vmatprep.mubr.f32.mxu0 0.0
      %2489 = vmatmul.mubr.f32.gmra.mrb[0].mxu0 %v2275
      %v2490 = vpop.f32.mrb[0].mxu0
      %v2491 = vadd.f32 0.0, %v2490
      %v2492 = vpop.f32.mrb[0].mxu0
      %2493 = vmatprep.mubr.f32.mxu0 0.0
      %2494 = vmatmul.mubr.f32.gmra.mrb[0].mxu0 %v2276
      %v2495 = vpop.f32.mrb[0].mxu0
      %v2496 = vadd.f32 0.0, %v2495
      %v2497 = vpop.f32.mrb[0].mxu0
      %2498 = vmatprep.mubr.f32.mxu0 0.0
      %2499 = vmatmul.mubr.f32.gmra.mrb[0].mxu0 %v2277
      %v2500 = vpop.f32.mrb[0].mxu0
      %v2501 = vadd.f32 0.0, %v2500
      %v2502 = vpop.f32.mrb[0].mxu0
      %2503 = vmatprep.mubr.f32.mxu0 0.0
      %2504 = vmatmul.mubr.f32.gmra.mrb[0].mxu0 %v2278
      %v2505 = vpop.f32.mrb[0].mxu0
      %v2506 = vadd.f32 0.0, %v2505
      %v2507 = vpop.f32.mrb[0].mxu0
      %2508 = vmatprep.mubr.f32.mxu0 0.0
      %2509 = vmatmul.mubr.f32.gmra.mrb[0].mxu0 %v2279
      %v2510 = vpop.f32.mrb[0].mxu0
      %v2511 = vadd.f32 0.0, %v2510
      %v2512 = vpop.f32.mrb[0].mxu0
      %2513 = vmatprep.mubr.f32.mxu0 0.0
      %2514 = vmatmul.mubr.f32.gmra.mrb[0].mxu0 %v2280
      %v2515 = vpop.f32.mrb[0].mxu0
      %v2516 = vadd.f32 0.0, %v2515
      %v2517 = vpop.f32.mrb[0].mxu0
      %2518 = vmatprep.mubr.f32.mxu0 0.0
      %2519 = vmatmul.mubr.f32.gmra.mrb[0].mxu0 %v2281
      %v2520 = vpop.f32.mrb[0].mxu0
      %v2521 = vadd.f32 0.0, %v2520
      %v2522 = vpop.f32.mrb[0].mxu0
      %2523 = vdwg.mxu0
      %v2524 = vadd.f32 %v2218, %v2366
      %v2525 = vadd.f32 %v2219, %v2371
      %v2526 = vadd.f32 %v2220, %v2376
      %v2527 = vadd.f32 %v2221, %v2381
      %v2528 = vadd.f32 %v2222, %v2386
      %v2529 = vadd.f32 %v2223, %v2391
      %v2530 = vadd.f32 %v2224, %v2396
      %v2531 = vadd.f32 %v2225, %v2401
      %v2532 = vadd.f32 %v2226, %v2406
      %v2533 = vadd.f32 %v2227, %v2411
      %v2534 = vadd.f32 %v2228, %v2416
      %v2535 = vadd.f32 %v2229, %v2421
      %v2536 = vadd.f32 %v2230, %v2426
      %v2537 = vadd.f32 %v2231, %v2431
      %v2538 = vadd.f32 %v2232, %v2436
      %v2539 = vadd.f32 %v2233, %v2441
      %v2540 = vadd.f32 %v2234, %v2446
      %v2541 = vadd.f32 %v2235, %v2451
      %v2542 = vadd.f32 %v2236, %v2456
      %v2543 = vadd.f32 %v2237, %v2461
      %v2544 = vadd.f32 %v2238, %v2466
      %v2545 = vadd.f32 %v2239, %v2471
      %v2546 = vadd.f32 %v2240, %v2476
      %v2547 = vadd.f32 %v2241, %v2481
      %v2548 = vadd.f32 %v2242, %v2486
      %v2549 = vadd.f32 %v2243, %v2491
      %v2550 = vadd.f32 %v2244, %v2496
      %v2551 = vadd.f32 %v2245, %v2501
      %v2552 = vadd.f32 %v2246, %v2506
      %v2553 = vadd.f32 %v2247, %v2511
      %v2554 = vadd.f32 %v2248, %v2516
      %v2555 = vadd.f32 %v2249, %v2521
      %v2556 = vld [vmem:[%s1943 + $0x2] sm:$0xff]
      %v2557 = vld [vmem:[%s1943 + $0xa] sm:$0xff]
      %v2558 = vld [vmem:[%s1943 + $0x1a] sm:$0xff]
      %v2559 = vld [vmem:[%s1943 + $0x22] sm:$0xff]
      %v2560 = vld [vmem:[%s1943 + $0x32] sm:$0xff]
      %v2561 = vld [vmem:[%s1943 + $0x3a] sm:$0xff]
      %v2562 = vld [vmem:[%s1943 + $0x4a] sm:$0xff]
      %v2563 = vld [vmem:[%s1943 + $0x52] sm:$0xff]
      %v2564 = vld [vmem:[%s1943 + $0x62] sm:$0xff]
      %v2565 = vld [vmem:[%s1943 + $0x6a] sm:$0xff]
      %v2566 = vld [vmem:[%s1943 + $0x7a] sm:$0xff]
      %v2567 = vld [vmem:[%s1943 + $0x82] sm:$0xff]
      %v2568 = vld [vmem:[%s1943 + $0x92] sm:$0xff]
      %v2569 = vld [vmem:[%s1943 + $0x9a] sm:$0xff]
      %v2570 = vld [vmem:[%s1943 + $0xaa] sm:$0xff]
      %v2571 = vld [vmem:[%s1943 + $0xb2] sm:$0xff]
      %v2572 = vld [vmem:[%s1943 + $0xc2] sm:$0xff]
      %v2573 = vld [vmem:[%s1943 + $0xca] sm:$0xff]
      %v2574 = vld [vmem:[%s1943 + $0xda] sm:$0xff]
      %v2575 = vld [vmem:[%s1943 + $0xe2] sm:$0xff]
      %v2576 = vld [vmem:[%s1943 + $0xf2] sm:$0xff]
      %v2577 = vld [vmem:[%s1943 + $0xfa] sm:$0xff]
      %v2578 = vld [vmem:[%s1943 + $0x10a] sm:$0xff]
      %v2579 = vld [vmem:[%s1943 + $0x112] sm:$0xff]
      %v2580 = vld [vmem:[%s1943 + $0x122] sm:$0xff]
      %v2581 = vld [vmem:[%s1943 + $0x12a] sm:$0xff]
      %v2582 = vld [vmem:[%s1943 + $0x13a] sm:$0xff]
      %v2583 = vld [vmem:[%s1943 + $0x142] sm:$0xff]
      %v2584 = vld [vmem:[%s1943 + $0x152] sm:$0xff]
      %v2585 = vld [vmem:[%s1943 + $0x15a] sm:$0xff]
      %v2586 = vld [vmem:[%s1943 + $0x16a] sm:$0xff]
      %v2587 = vld [vmem:[%s1943 + $0x172] sm:$0xff]
      %s2588 = scalar_lea.vmem %s1, 1024
      %v2589 = vld [vmem:[%s2588] sm:$0xff]
      %v2590 = vld [vmem:[%s2588 + $0x8] sm:$0xff]
      %v2591 = vld [vmem:[%s2588 + $0x10] sm:$0xff]
      %v2592 = vld [vmem:[%s2588 + $0x18] sm:$0xff]
      %v2593 = vld [vmem:[%s2588 + $0x20] sm:$0xff]
      %v2594 = vld [vmem:[%s2588 + $0x28] sm:$0xff]
      %v2595 = vld [vmem:[%s2588 + $0x30] sm:$0xff]
      %v2596 = vld [vmem:[%s2588 + $0x38] sm:$0xff]
      %v2597 = vld [vmem:[%s2588 + $0x40] sm:$0xff]
      %v2598 = vld [vmem:[%s2588 + $0x48] sm:$0xff]
      %v2599 = vld [vmem:[%s2588 + $0x50] sm:$0xff]
      %v2600 = vld [vmem:[%s2588 + $0x58] sm:$0xff]
      %v2601 = vld [vmem:[%s2588 + $0x60] sm:$0xff]
      %v2602 = vld [vmem:[%s2588 + $0x68] sm:$0xff]
      %v2603 = vld [vmem:[%s2588 + $0x70] sm:$0xff]
      %v2604 = vld [vmem:[%s2588 + $0x78] sm:$0xff]
      %2605 = vmatprep.subr.mxu0 0.0
      %2606 = vmatpush1.msra.mxu0 %v2589
      %2607 = vmatprep.subr.mxu0 0.0
      %2608 = vmatpush1.msra.mxu0 %v2590
      %2609 = vmatprep.subr.mxu0 0.0
      %2610 = vmatpush1.msra.mxu0 %v2591
      %2611 = vmatprep.subr.mxu0 0.0
      %2612 = vmatpush1.msra.mxu0 %v2592
      %2613 = vmatprep.subr.mxu0 0.0
      %2614 = vmatpush1.msra.mxu0 %v2593
      %2615 = vmatprep.subr.mxu0 0.0
      %2616 = vmatpush1.msra.mxu0 %v2594
      %2617 = vmatprep.subr.mxu0 0.0
      %2618 = vmatpush1.msra.mxu0 %v2595
      %2619 = vmatprep.subr.mxu0 0.0
      %2620 = vmatpush1.msra.mxu0 %v2596
      %2621 = vmatprep.subr.mxu0 0.0
      %2622 = vmatpush1.msra.mxu0 %v2597
      %2623 = vmatprep.subr.mxu0 0.0
      %2624 = vmatpush1.msra.mxu0 %v2598
      %2625 = vmatprep.subr.mxu0 0.0
      %2626 = vmatpush1.msra.mxu0 %v2599
      %2627 = vmatprep.subr.mxu0 0.0
      %2628 = vmatpush1.msra.mxu0 %v2600
      %2629 = vmatprep.subr.mxu0 0.0
      %2630 = vmatpush1.msra.mxu0 %v2601
      %2631 = vmatprep.subr.mxu0 0.0
      %2632 = vmatpush1.msra.mxu0 %v2602
      %2633 = vmatprep.subr.mxu0 0.0
      %2634 = vmatpush1.msra.mxu0 %v2603
      %2635 = vmatprep.subr.mxu0 0.0
      %2636 = vmatpush1.msra.mxu0 %v2604
      %2637 = vmatprep.subr.mxu0 0.0
      %2638 = vmatpush1.msra.mxu0 0.0
      %2639 = vmatprep.subr.mxu0 0.0
      %2640 = vmatpush1.msra.mxu0 0.0
      %2641 = vmatprep.subr.mxu0 0.0
      %2642 = vmatpush1.msra.mxu0 0.0
      %2643 = vmatprep.subr.mxu0 0.0
      %2644 = vmatpush1.msra.mxu0 0.0
      %2645 = vmatprep.subr.mxu0 0.0
      %2646 = vmatpush1.msra.mxu0 0.0
      %2647 = vmatprep.subr.mxu0 0.0
      %2648 = vmatpush1.msra.mxu0 0.0
      %2649 = vmatprep.subr.mxu0 0.0
      %2650 = vmatpush1.msra.mxu0 0.0
      %2651 = vmatprep.subr.mxu0 0.0
      %2652 = vmatpush1.msra.mxu0 0.0
      %2653 = vmatprep.subr.mxu0 0.0
      %2654 = vmatpush1.msra.mxu0 0.0
      %2655 = vmatprep.subr.mxu0 0.0
      %2656 = vmatpush1.msra.mxu0 0.0
      %2657 = vmatprep.subr.mxu0 0.0
      %2658 = vmatpush1.msra.mxu0 0.0
      %2659 = vmatprep.subr.mxu0 0.0
      %2660 = vmatpush1.msra.mxu0 0.0
      %2661 = vmatprep.subr.mxu0 0.0
      %2662 = vmatpush1.msra.mxu0 0.0
      %2663 = vmatprep.subr.mxu0 0.0
      %2664 = vmatpush1.msra.mxu0 0.0
      %2665 = vmatprep.subr.mxu0 0.0
      %2666 = vmatpush1.msra.mxu0 0.0
      %2667 = vmatprep.subr.mxu0 0.0
      %2668 = vmatpush1.msra.mxu0 0.0
      %2669 = vmatprep.mubr.f32.mxu0 0.0
      %2670 = vmatmul.mubr.f32.gmra.mrb[0].mxu0 %v2556
      %v2671 = vpop.f32.mrb[0].mxu0
      %v2672 = vadd.f32 0.0, %v2671
      %v2673 = vpop.f32.mrb[0].mxu0
      %2674 = vmatprep.mubr.f32.mxu0 0.0
      %2675 = vmatmul.mubr.f32.gmra.mrb[0].mxu0 %v2557
      %v2676 = vpop.f32.mrb[0].mxu0
      %v2677 = vadd.f32 0.0, %v2676
      %v2678 = vpop.f32.mrb[0].mxu0
      %2679 = vmatprep.mubr.f32.mxu0 0.0
      %2680 = vmatmul.mubr.f32.gmra.mrb[0].mxu0 %v2558
      %v2681 = vpop.f32.mrb[0].mxu0
      %v2682 = vadd.f32 0.0, %v2681
      %v2683 = vpop.f32.mrb[0].mxu0
      %2684 = vmatprep.mubr.f32.mxu0 0.0
      %2685 = vmatmul.mubr.f32.gmra.mrb[0].mxu0 %v2559
      %v2686 = vpop.f32.mrb[0].mxu0
      %v2687 = vadd.f32 0.0, %v2686
      %v2688 = vpop.f32.mrb[0].mxu0
      %2689 = vmatprep.mubr.f32.mxu0 0.0
      %2690 = vmatmul.mubr.f32.gmra.mrb[0].mxu0 %v2560
      %v2691 = vpop.f32.mrb[0].mxu0
      %v2692 = vadd.f32 0.0, %v2691
      %v2693 = vpop.f32.mrb[0].mxu0
      %2694 = vmatprep.mubr.f32.mxu0 0.0
      %2695 = vmatmul.mubr.f32.gmra.mrb[0].mxu0 %v2561
      %v2696 = vpop.f32.mrb[0].mxu0
      %v2697 = vadd.f32 0.0, %v2696
      %v2698 = vpop.f32.mrb[0].mxu0
      %2699 = vmatprep.mubr.f32.mxu0 0.0
      %2700 = vmatmul.mubr.f32.gmra.mrb[0].mxu0 %v2562
      %v2701 = vpop.f32.mrb[0].mxu0
      %v2702 = vadd.f32 0.0, %v2701
      %v2703 = vpop.f32.mrb[0].mxu0
      %2704 = vmatprep.mubr.f32.mxu0 0.0
      %2705 = vmatmul.mubr.f32.gmra.mrb[0].mxu0 %v2563
      %v2706 = vpop.f32.mrb[0].mxu0
      %v2707 = vadd.f32 0.0, %v2706
      %v2708 = vpop.f32.mrb[0].mxu0
      %2709 = vmatprep.mubr.f32.mxu0 0.0
      %2710 = vmatmul.mubr.f32.gmra.mrb[0].mxu0 %v2564
      %v2711 = vpop.f32.mrb[0].mxu0
      %v2712 = vadd.f32 0.0, %v2711
      %v2713 = vpop.f32.mrb[0].mxu0
      %2714 = vmatprep.mubr.f32.mxu0 0.0
      %2715 = vmatmul.mubr.f32.gmra.mrb[0].mxu0 %v2565
      %v2716 = vpop.f32.mrb[0].mxu0
      %v2717 = vadd.f32 0.0, %v2716
      %v2718 = vpop.f32.mrb[0].mxu0
      %2719 = vmatprep.mubr.f32.mxu0 0.0
      %2720 = vmatmul.mubr.f32.gmra.mrb[0].mxu0 %v2566
      %v2721 = vpop.f32.mrb[0].mxu0
      %v2722 = vadd.f32 0.0, %v2721
      %v2723 = vpop.f32.mrb[0].mxu0
      %2724 = vmatprep.mubr.f32.mxu0 0.0
      %2725 = vmatmul.mubr.f32.gmra.mrb[0].mxu0 %v2567
      %v2726 = vpop.f32.mrb[0].mxu0
      %v2727 = vadd.f32 0.0, %v2726
      %v2728 = vpop.f32.mrb[0].mxu0
      %2729 = vmatprep.mubr.f32.mxu0 0.0
      %2730 = vmatmul.mubr.f32.gmra.mrb[0].mxu0 %v2568
      %v2731 = vpop.f32.mrb[0].mxu0
      %v2732 = vadd.f32 0.0, %v2731
      %v2733 = vpop.f32.mrb[0].mxu0
      %2734 = vmatprep.mubr.f32.mxu0 0.0
      %2735 = vmatmul.mubr.f32.gmra.mrb[0].mxu0 %v2569
      %v2736 = vpop.f32.mrb[0].mxu0
      %v2737 = vadd.f32 0.0, %v2736
      %v2738 = vpop.f32.mrb[0].mxu0
      %2739 = vmatprep.mubr.f32.mxu0 0.0
      %2740 = vmatmul.mubr.f32.gmra.mrb[0].mxu0 %v2570
      %v2741 = vpop.f32.mrb[0].mxu0
      %v2742 = vadd.f32 0.0, %v2741
      %v2743 = vpop.f32.mrb[0].mxu0
      %2744 = vmatprep.mubr.f32.mxu0 0.0
      %2745 = vmatmul.mubr.f32.gmra.mrb[0].mxu0 %v2571
      %v2746 = vpop.f32.mrb[0].mxu0
      %v2747 = vadd.f32 0.0, %v2746
      %v2748 = vpop.f32.mrb[0].mxu0
      %2749 = vmatprep.mubr.f32.mxu0 0.0
      %2750 = vmatmul.mubr.f32.gmra.mrb[0].mxu0 %v2572
      %v2751 = vpop.f32.mrb[0].mxu0
      %v2752 = vadd.f32 0.0, %v2751
      %v2753 = vpop.f32.mrb[0].mxu0
      %2754 = vmatprep.mubr.f32.mxu0 0.0
      %2755 = vmatmul.mubr.f32.gmra.mrb[0].mxu0 %v2573
      %v2756 = vpop.f32.mrb[0].mxu0
      %v2757 = vadd.f32 0.0, %v2756
      %v2758 = vpop.f32.mrb[0].mxu0
      %2759 = vmatprep.mubr.f32.mxu0 0.0
      %2760 = vmatmul.mubr.f32.gmra.mrb[0].mxu0 %v2574
      %v2761 = vpop.f32.mrb[0].mxu0
      %v2762 = vadd.f32 0.0, %v2761
      %v2763 = vpop.f32.mrb[0].mxu0
      %2764 = vmatprep.mubr.f32.mxu0 0.0
      %2765 = vmatmul.mubr.f32.gmra.mrb[0].mxu0 %v2575
      %v2766 = vpop.f32.mrb[0].mxu0
      %v2767 = vadd.f32 0.0, %v2766
      %v2768 = vpop.f32.mrb[0].mxu0
      %2769 = vmatprep.mubr.f32.mxu0 0.0
      %2770 = vmatmul.mubr.f32.gmra.mrb[0].mxu0 %v2576
      %v2771 = vpop.f32.mrb[0].mxu0
      %v2772 = vadd.f32 0.0, %v2771
      %v2773 = vpop.f32.mrb[0].mxu0
      %2774 = vmatprep.mubr.f32.mxu0 0.0
      %2775 = vmatmul.mubr.f32.gmra.mrb[0].mxu0 %v2577
      %v2776 = vpop.f32.mrb[0].mxu0
      %v2777 = vadd.f32 0.0, %v2776
      %v2778 = vpop.f32.mrb[0].mxu0
      %2779 = vmatprep.mubr.f32.mxu0 0.0
      %2780 = vmatmul.mubr.f32.gmra.mrb[0].mxu0 %v2578
      %v2781 = vpop.f32.mrb[0].mxu0
      %v2782 = vadd.f32 0.0, %v2781
      %v2783 = vpop.f32.mrb[0].mxu0
      %2784 = vmatprep.mubr.f32.mxu0 0.0
      %2785 = vmatmul.mubr.f32.gmra.mrb[0].mxu0 %v2579
      %v2786 = vpop.f32.mrb[0].mxu0
      %v2787 = vadd.f32 0.0, %v2786
      %v2788 = vpop.f32.mrb[0].mxu0
      %2789 = vmatprep.mubr.f32.mxu0 0.0
      %2790 = vmatmul.mubr.f32.gmra.mrb[0].mxu0 %v2580
      %v2791 = vpop.f32.mrb[0].mxu0
      %v2792 = vadd.f32 0.0, %v2791
      %v2793 = vpop.f32.mrb[0].mxu0
      %2794 = vmatprep.mubr.f32.mxu0 0.0
      %2795 = vmatmul.mubr.f32.gmra.mrb[0].mxu0 %v2581
      %v2796 = vpop.f32.mrb[0].mxu0
      %v2797 = vadd.f32 0.0, %v2796
      %v2798 = vpop.f32.mrb[0].mxu0
      %2799 = vmatprep.mubr.f32.mxu0 0.0
      %2800 = vmatmul.mubr.f32.gmra.mrb[0].mxu0 %v2582
      %v2801 = vpop.f32.mrb[0].mxu0
      %v2802 = vadd.f32 0.0, %v2801
      %v2803 = vpop.f32.mrb[0].mxu0
      %2804 = vmatprep.mubr.f32.mxu0 0.0
      %2805 = vmatmul.mubr.f32.gmra.mrb[0].mxu0 %v2583
      %v2806 = vpop.f32.mrb[0].mxu0
      %v2807 = vadd.f32 0.0, %v2806
      %v2808 = vpop.f32.mrb[0].mxu0
      %2809 = vmatprep.mubr.f32.mxu0 0.0
      %2810 = vmatmul.mubr.f32.gmra.mrb[0].mxu0 %v2584
      %v2811 = vpop.f32.mrb[0].mxu0
      %v2812 = vadd.f32 0.0, %v2811
      %v2813 = vpop.f32.mrb[0].mxu0
      %2814 = vmatprep.mubr.f32.mxu0 0.0
      %2815 = vmatmul.mubr.f32.gmra.mrb[0].mxu0 %v2585
      %v2816 = vpop.f32.mrb[0].mxu0
      %v2817 = vadd.f32 0.0, %v2816
      %v2818 = vpop.f32.mrb[0].mxu0
      %2819 = vmatprep.mubr.f32.mxu0 0.0
      %2820 = vmatmul.mubr.f32.gmra.mrb[0].mxu0 %v2586
      %v2821 = vpop.f32.mrb[0].mxu0
      %v2822 = vadd.f32 0.0, %v2821
      %v2823 = vpop.f32.mrb[0].mxu0
      %2824 = vmatprep.mubr.f32.mxu0 0.0
      %2825 = vmatmul.mubr.f32.gmra.mrb[0].mxu0 %v2587
      %v2826 = vpop.f32.mrb[0].mxu0
      %v2827 = vadd.f32 0.0, %v2826
      %v2828 = vpop.f32.mrb[0].mxu0
      %2829 = vdwg.mxu0
      %v2830 = vadd.f32 %v2524, %v2672
      %v2831 = vadd.f32 %v2525, %v2677
      %v2832 = vadd.f32 %v2526, %v2682
      %v2833 = vadd.f32 %v2527, %v2687
      %v2834 = vadd.f32 %v2528, %v2692
      %v2835 = vadd.f32 %v2529, %v2697
      %v2836 = vadd.f32 %v2530, %v2702
      %v2837 = vadd.f32 %v2531, %v2707
      %v2838 = vadd.f32 %v2532, %v2712
      %v2839 = vadd.f32 %v2533, %v2717
      %v2840 = vadd.f32 %v2534, %v2722
      %v2841 = vadd.f32 %v2535, %v2727
      %v2842 = vadd.f32 %v2536, %v2732
      %v2843 = vadd.f32 %v2537, %v2737
      %v2844 = vadd.f32 %v2538, %v2742
      %v2845 = vadd.f32 %v2539, %v2747
      %v2846 = vadd.f32 %v2540, %v2752
      %v2847 = vadd.f32 %v2541, %v2757
      %v2848 = vadd.f32 %v2542, %v2762
      %v2849 = vadd.f32 %v2543, %v2767
      %v2850 = vadd.f32 %v2544, %v2772
      %v2851 = vadd.f32 %v2545, %v2777
      %v2852 = vadd.f32 %v2546, %v2782
      %v2853 = vadd.f32 %v2547, %v2787
      %v2854 = vadd.f32 %v2548, %v2792
      %v2855 = vadd.f32 %v2549, %v2797
      %v2856 = vadd.f32 %v2550, %v2802
      %v2857 = vadd.f32 %v2551, %v2807
      %v2858 = vadd.f32 %v2552, %v2812
      %v2859 = vadd.f32 %v2553, %v2817
      %v2860 = vadd.f32 %v2554, %v2822
      %v2861 = vadd.f32 %v2555, %v2827
      %v2862 = vld [vmem:[%s2] sm:$0x1]
      %v2864 = vlaneseq
      %v2865 = vshrl.u32 %v2864, 7
      %v2866 = vsub.s32 0, %v2865
      %v2867 = vrot.slane %v2862, %v2866
      %v2869 = vadd.f32 %v2830, %v2867
      %v2870 = vadd.f32 %v2831, %v2867
      %v2871 = vadd.f32 %v2832, %v2867
      %v2872 = vadd.f32 %v2833, %v2867
      %v2873 = vadd.f32 %v2834, %v2867
      %v2874 = vadd.f32 %v2835, %v2867
      %v2875 = vadd.f32 %v2836, %v2867
      %v2876 = vadd.f32 %v2837, %v2867
      %v2877 = vadd.f32 %v2838, %v2867
      %v2878 = vadd.f32 %v2839, %v2867
      %v2879 = vadd.f32 %v2840, %v2867
      %v2880 = vadd.f32 %v2841, %v2867
      %v2881 = vadd.f32 %v2842, %v2867
      %v2882 = vadd.f32 %v2843, %v2867
      %v2883 = vadd.f32 %v2844, %v2867
      %v2884 = vadd.f32 %v2845, %v2867
      %v2885 = vadd.f32 %v2846, %v2867
      %v2886 = vadd.f32 %v2847, %v2867
      %v2887 = vadd.f32 %v2848, %v2867
      %v2888 = vadd.f32 %v2849, %v2867
      %v2889 = vadd.f32 %v2850, %v2867
      %v2890 = vadd.f32 %v2851, %v2867
      %v2891 = vadd.f32 %v2852, %v2867
      %v2892 = vadd.f32 %v2853, %v2867
      %v2893 = vadd.f32 %v2854, %v2867
      %v2894 = vadd.f32 %v2855, %v2867
      %v2895 = vadd.f32 %v2856, %v2867
      %v2896 = vadd.f32 %v2857, %v2867
      %v2897 = vadd.f32 %v2858, %v2867
      %v2898 = vadd.f32 %v2859, %v2867
      %v2899 = vadd.f32 %v2860, %v2867
      %v2900 = vadd.f32 %v2861, %v2867
      %v2901 = vmax.f32 %v2869, 0.0
      %v2902 = vmax.f32 %v2870, 0.0
      %v2903 = vmax.f32 %v2871, 0.0
      %v2904 = vmax.f32 %v2872, 0.0
      %v2905 = vmax.f32 %v2873, 0.0
      %v2906 = vmax.f32 %v2874, 0.0
      %v2907 = vmax.f32 %v2875, 0.0
      %v2908 = vmax.f32 %v2876, 0.0
      %v2909 = vmax.f32 %v2877, 0.0
      %v2910 = vmax.f32 %v2878, 0.0
      %v2911 = vmax.f32 %v2879, 0.0
      %v2912 = vmax.f32 %v2880, 0.0
      %v2913 = vmax.f32 %v2881, 0.0
      %v2914 = vmax.f32 %v2882, 0.0
      %v2915 = vmax.f32 %v2883, 0.0
      %v2916 = vmax.f32 %v2884, 0.0
      %v2917 = vmax.f32 %v2885, 0.0
      %v2918 = vmax.f32 %v2886, 0.0
      %v2919 = vmax.f32 %v2887, 0.0
      %v2920 = vmax.f32 %v2888, 0.0
      %v2921 = vmax.f32 %v2889, 0.0
      %v2922 = vmax.f32 %v2890, 0.0
      %v2923 = vmax.f32 %v2891, 0.0
      %v2924 = vmax.f32 %v2892, 0.0
      %v2925 = vmax.f32 %v2893, 0.0
      %v2926 = vmax.f32 %v2894, 0.0
      %v2927 = vmax.f32 %v2895, 0.0
      %v2928 = vmax.f32 %v2896, 0.0
      %v2929 = vmax.f32 %v2897, 0.0
      %v2930 = vmax.f32 %v2898, 0.0
      %v2931 = vmax.f32 %v2899, 0.0
      %v2932 = vmax.f32 %v2900, 0.0
      %v2933 = vadd.f32 %v2901, %v1331
      %v2934 = vadd.f32 %v2902, %v1332
      %v2935 = vadd.f32 %v2903, %v1333
      %v2936 = vadd.f32 %v2904, %v1334
      %v2937 = vadd.f32 %v2905, %v1335
      %v2938 = vadd.f32 %v2906, %v1336
      %v2939 = vadd.f32 %v2907, %v1337
      %v2940 = vadd.f32 %v2908, %v1338
      %v2941 = vadd.f32 %v2909, %v1339
      %v2942 = vadd.f32 %v2910, %v1340
      %v2943 = vadd.f32 %v2911, %v1341
      %v2944 = vadd.f32 %v2912, %v1342
      %v2945 = vadd.f32 %v2913, %v1343
      %v2946 = vadd.f32 %v2914, %v1344
      %v2947 = vadd.f32 %v2915, %v1345
      %v2948 = vadd.f32 %v2916, %v1346
      %v2949 = vadd.f32 %v2917, %v1347
      %v2950 = vadd.f32 %v2918, %v1348
      %v2951 = vadd.f32 %v2919, %v1349
      %v2952 = vadd.f32 %v2920, %v1350
      %v2953 = vadd.f32 %v2921, %v1351
      %v2954 = vadd.f32 %v2922, %v1352
      %v2955 = vadd.f32 %v2923, %v1353
      %v2956 = vadd.f32 %v2924, %v1354
      %v2957 = vadd.f32 %v2925, %v1355
      %v2958 = vadd.f32 %v2926, %v1356
      %v2959 = vadd.f32 %v2927, %v1357
      %v2960 = vadd.f32 %v2928, %v1358
      %v2961 = vadd.f32 %v2929, %v1359
      %v2962 = vadd.f32 %v2930, %v1360
      %v2963 = vadd.f32 %v2931, %v1361
      %v2964 = vadd.f32 %v2932, %v1362
      %2965 = vst [vmem:[%s170] sm:$0xff] %v2933
      %2966 = vst [vmem:[%s170 + $0x8] sm:$0xff] %v2934
      %2967 = vst [vmem:[%s170 + $0x10] sm:$0xff] %v2935
      %2968 = vst [vmem:[%s170 + $0x18] sm:$0xff] %v2936
      %2969 = vst [vmem:[%s170 + $0x20] sm:$0xff] %v2937
      %2970 = vst [vmem:[%s170 + $0x28] sm:$0xff] %v2938
      %2971 = vst [vmem:[%s170 + $0x30] sm:$0xff] %v2939
      %2972 = vst [vmem:[%s170 + $0x38] sm:$0xff] %v2940
      %2973 = vst [vmem:[%s170 + $0x40] sm:$0xff] %v2941
      %2974 = vst [vmem:[%s170 + $0x48] sm:$0xff] %v2942
      %2975 = vst [vmem:[%s170 + $0x50] sm:$0xff] %v2943
      %2976 = vst [vmem:[%s170 + $0x58] sm:$0xff] %v2944
      %2977 = vst [vmem:[%s170 + $0x60] sm:$0xff] %v2945
      %2978 = vst [vmem:[%s170 + $0x68] sm:$0xff] %v2946
      %2979 = vst [vmem:[%s170 + $0x70] sm:$0xff] %v2947
      %2980 = vst [vmem:[%s170 + $0x78] sm:$0xff] %v2948
      %2981 = vst [vmem:[%s170 + $0x80] sm:$0xff] %v2949
      %2982 = vst [vmem:[%s170 + $0x88] sm:$0xff] %v2950
      %2983 = vst [vmem:[%s170 + $0x90] sm:$0xff] %v2951
      %2984 = vst [vmem:[%s170 + $0x98] sm:$0xff] %v2952
      %2985 = vst [vmem:[%s170 + $0xa0] sm:$0xff] %v2953
      %2986 = vst [vmem:[%s170 + $0xa8] sm:$0xff] %v2954
      %2987 = vst [vmem:[%s170 + $0xb0] sm:$0xff] %v2955
      %2988 = vst [vmem:[%s170 + $0xb8] sm:$0xff] %v2956
      %2989 = vst [vmem:[%s170 + $0xc0] sm:$0xff] %v2957
      %2990 = vst [vmem:[%s170 + $0xc8] sm:$0xff] %v2958
      %2991 = vst [vmem:[%s170 + $0xd0] sm:$0xff] %v2959
      %2992 = vst [vmem:[%s170 + $0xd8] sm:$0xff] %v2960
      %2993 = vst [vmem:[%s170 + $0xe0] sm:$0xff] %v2961
      %2994 = vst [vmem:[%s170 + $0xe8] sm:$0xff] %v2962
      %2995 = vst [vmem:[%s170 + $0xf0] sm:$0xff] %v2963
      %2996 = vst [vmem:[%s170 + $0xf8] sm:$0xff] %v2964
      %p2997 = scmp.lt.s32.totalorder %s14, 1
      %s2998 = scalar_select %p2997, %s14, 1
      %s2999 = smul.addr %s2998, 32
      %s3000 = smul.addr %s2999, 8
      %s3001 = scalar_lea.vmem %s3, %s3000
      // Predicated region
      $region33: #{_lambda_.2} parent=31 // pred_check
        %p3002 = pneg %p100
      $region34: #{_lambda_.2} parent=31 // pred_check_branch
        %3004 = sbr.rel (%p3002) target = $region36
      $region35: #{_lambda_.2} parent=31 // pred_region
        _
      $region36: #{_lambda_.2} parent=31 // pred_fallthru
        _
    $region32: #{_lambda_.2} parent=5 // pred_fallthru
      _
    %p3005 = scmp.le.s32.totalorder 2, %s9
    // Predicated region
    $region37: #{_lambda_.2} parent=5 // pred_check
      %p3006 = pneg %p3005
    $region38: #{_lambda_.2} parent=5 // pred_check_branch
      %3008 = sbr.rel (%p3006) target = $region40
    $region39: #{_lambda_.2} parent=5 // pred_region
      %s3009 = ssub.s32 %s9, 2
      // Predicated region
      $region41: #{_lambda_.2} parent=39 // pred_check
        %p3010 = pneg %p106
      $region42: #{_lambda_.2} parent=39 // pred_check_branch
        %3012 = sbr.rel (%p3010) target = $region44
      $region43: #{_lambda_.2} parent=39 // pred_region
        %p3013 = scmp.lt.s32.totalorder %s15, 1
        %s3014 = scalar_select %p3013, %s15, 1
        %s3015 = smul.addr %s3014, 32
        %s3016 = smul.addr %s3015, 8
        %s3017 = scalar_lea.vmem %s3, %s3016
      $region44: #{_lambda_.2} parent=39 // pred_fallthru
        _
    $region40: #{_lambda_.2} parent=5 // pred_fallthru
      _
  $region6: #{_lambda_.2} parent=0 // loop_footer
    %s13 = sadd.s32 1, %s9
  $region7: #{_lambda_.2} parent=0 // loop_footer_branch
    %8 = sbr.rel target = $region3
  $region8: #{_lambda_.2} parent=0 // loop_exit
    _

</llo_original>
